<compile_context>
chip_gen: v7x
topology: tpu7x:2x2x1
jax: 0.10.0
libtpu: 0.0.40
codegen_flags: <defaults>
</compile_context>

<pallas_src>
import math
import functools

import jax
import jax.numpy as jnp
from jax.experimental import pallas as pl
from jax.experimental.pallas import tpu as pltpu

PAD_VAL = -999.0
N_TYPES = 8
EPS = 1e-6
BF16 = jnp.bfloat16
F32 = jnp.float32


# ----------------------------- small in-kernel helpers -----------------------------

def _ln(x, g, b, eps):
    mean = jnp.mean(x, axis=-1, keepdims=True)
    c = x - mean
    var = jnp.mean(c * c, axis=-1, keepdims=True)
    return c * jax.lax.rsqrt(var + eps) * g + b


def _bdot(a, b):
    """MXU matmul with bf16 operands and f32 accumulation."""
    return jnp.dot(a.astype(BF16), b.astype(BF16), preferred_element_type=F32)


# ----------------------------- Pallas kernels -----------------------------

def _linear_kernel(x_ref, w_ref, b_ref, o_ref, *, activation):
    y = _bdot(x_ref[...], w_ref[...]) + b_ref[...].astype(F32)
    if activation == "relu":
        y = jnp.maximum(y, 0.0)
    o_ref[...] = y.astype(o_ref.dtype)


def linear(x, w, b, activation="none", out_dtype=jnp.float32):
    """y = act(x @ w + b); x: (..., K), w: (K, N), b: (N,). One small fused call."""
    lead = x.shape[:-1]
    K = x.shape[-1]
    N = w.shape[-1]
    x2 = x.reshape(-1, K)
    M = x2.shape[0]
    out = pl.pallas_call(
        functools.partial(_linear_kernel, activation=activation),
        out_shape=jax.ShapeDtypeStruct((M, N), out_dtype),
    )(x2, w, b.reshape(1, N))
    return out.reshape(*lead, N)


def _layernorm_kernel(x_ref, g_ref, b_ref, o_ref, *, eps):
    x = x_ref[...].astype(F32)
    o_ref[...] = _ln(x, g_ref[...], b_ref[...], eps).astype(o_ref.dtype)


def layernorm(x, gamma, beta, eps=EPS):
    lead = x.shape[:-1]
    D = x.shape[-1]
    x2 = x.reshape(-1, D)
    out = pl.pallas_call(
        functools.partial(_layernorm_kernel, eps=eps),
        out_shape=jax.ShapeDtypeStruct(x2.shape, jnp.float32),
    )(x2, gamma.reshape(1, D), beta.reshape(1, D))
    return out.reshape(*lead, D)


def _msg_sublayer_kernel(*refs, use_att, eps):
    """Fused message-passing sublayer for one batch element:
         out = x + Linear( scatter( ave_att * (A_ij @ LN(x)_j) ) )."""
    if use_att:
        (x_ref, g_ref, s_ref, a_ref, att_ref,
         lng_ref, lnb_ref, w_ref, b_ref, o_ref) = refs
    else:
        (x_ref, g_ref, s_ref, a_ref,
         lng_ref, lnb_ref, w_ref, b_ref, o_ref) = refs
        att_ref = None

    x = x_ref[0].astype(F32)                                  # (S, D)
    xn = _ln(x, lng_ref[...], lnb_ref[...], eps)              # (S, D)

    # gather x_j for each directed edge via one-hot matmul (MXU)
    x_in = _bdot(g_ref[0], xn)                                # (E2, D)
    E2, D = x_in.shape
    K = a_ref.shape[-1]

    # edge messages: ax[e, k] = sum_d x_in[e, d] * a[d, e, k]
    # a_mat is laid out (D, E2, K) so every a_ref[0, d] is a contiguous (E2, K) tile;
    # x_in[:, d:d+1] is a lane-broadcast column => pure VPU FMAs, no relayout.
    ax = jnp.zeros((E2, K), F32)
    for d in range(D):                                        # D is small; unrolled
        ax = ax + x_in[:, d:d + 1] * a_ref[0, d].astype(F32)

    if att_ref is not None:
        ax = ax * att_ref[0].astype(F32)                      # (E2, K==D)

    # scatter-add to destination nodes via one-hot matmul (MXU)
    m = _bdot(s_ref[0], ax)                                   # (S, D)

    y = _bdot(m, w_ref[...]) + b_ref[...].astype(F32)         # Linear
    o_ref[0] = (x + y).astype(o_ref.dtype)                    # residual


def msg_sublayer(x, gmat, smat, a_mat, ave_att, ln_p, lin_p):
    B, S, D = x.shape
    E2 = gmat.shape[1]
    K = a_mat.shape[-1]
    use_att = ave_att is not None

    args = [x, gmat, smat, a_mat]
    specs = [
        pl.BlockSpec((1, S, D), lambda b: (b, 0, 0)),
        pl.BlockSpec((1, E2, S), lambda b: (b, 0, 0)),
        pl.BlockSpec((1, S, E2), lambda b: (b, 0, 0)),
        pl.BlockSpec((1, D, E2, K), lambda b: (b, 0, 0, 0)),
    ]
    if use_att:
        args.append(ave_att)
        specs.append(pl.BlockSpec((1, E2, D), lambda b: (b, 0, 0)))
    args += [ln_p["g"].reshape(1, D), ln_p["b"].reshape(1, D),
             lin_p["w"].astype(BF16), lin_p["b"].reshape(1, D)]
    specs += [pl.BlockSpec((1, D), lambda b: (0, 0)),
              pl.BlockSpec((1, D), lambda b: (0, 0)),
              pl.BlockSpec((D, D), lambda b: (0, 0)),
              pl.BlockSpec((1, D), lambda b: (0, 0))]

    return pl.pallas_call(
        functools.partial(_msg_sublayer_kernel, use_att=use_att, eps=EPS),
        out_shape=jax.ShapeDtypeStruct((B, S, D), jnp.float32),
        grid=(B,),
        in_specs=specs,
        out_specs=pl.BlockSpec((1, S, D), lambda b: (b, 0, 0)),
        compiler_params=pltpu.CompilerParams(dimension_semantics=("parallel",)),
    )(*args)


def _attending_layer_kernel(x_ref, m_ref, ln0g_ref, ln0b_ref, wqkv_ref, bqkv_ref,
                            wo_ref, bo_ref, ln1g_ref, ln1b_ref,
                            w1_ref, b1_ref, w2_ref, b2_ref, o_ref, *, h, eps):
    """Whole attending layer (MHSA + FF, both pre-norm residual) for one batch elem."""
    x = x_ref[0].astype(F32)                                  # (S, D)
    S, D = x.shape
    dk = D // h
    scale = 1.0 / math.sqrt(dk)
    mask = m_ref[0]                                           # (1, S)

    # --- self-attention sublayer ---
    xn = _ln(x, ln0g_ref[...], ln0b_ref[...], eps)
    qkv = _bdot(xn, wqkv_ref[...]) + bqkv_ref[...].astype(F32)   # (S, 3D)
    q = qkv[:, 0:D]
    k = qkv[:, D:2 * D]
    v = qkv[:, 2 * D:3 * D]

    heads = []
    for i in range(h):
        lo, hi = i * dk, (i + 1) * dk
        qh = q[:, lo:hi].astype(BF16)
        kh = k[:, lo:hi].astype(BF16)
        vh = v[:, lo:hi].astype(BF16)
        sc = jax.lax.dot_general(qh, kh, (((1,), (1,)), ((), ())),
                                 preferred_element_type=F32) * scale   # (S, S)
        sc = jnp.where(mask == 0.0, -1000000000.0, sc)
        sc = sc - jnp.max(sc, axis=-1, keepdims=True)
        p = jnp.exp(sc)
        p = p / jnp.sum(p, axis=-1, keepdims=True)
        p = jnp.where(mask == 0.0, 0.0, p)       # keep: hides 0/0 for fully-masked rows
        heads.append(jnp.dot(p.astype(BF16), vh, preferred_element_type=F32))
    attn = jnp.concatenate(heads, axis=-1)                    # (S, D)
    attn = _bdot(attn, wo_ref[...]) + bo_ref[...].astype(F32)
    x = x + attn

    # --- feed-forward sublayer ---
    xn = _ln(x, ln1g_ref[...], ln1b_ref[...], eps)
    ffh = jnp.maximum(_bdot(xn, w1_ref[...]) + b1_ref[...].astype(F32), 0.0)
    ff = _bdot(ffh, w2_ref[...]) + b2_ref[...].astype(F32)
    o_ref[0] = (x + ff).astype(o_ref.dtype)


def attending_layer(x, mask, lp, h):
    B, S, D = x.shape
    Dff = lp["ff1"]["w"].shape[-1]
    wqkv = jnp.concatenate([lp["wq"]["w"], lp["wk"]["w"], lp["wv"]["w"]],
                           axis=1).astype(BF16)               # (D, 3D) fused QKV
    bqkv = jnp.concatenate([lp["wq"]["b"], lp["wk"]["b"], lp["wv"]["b"]],
                           axis=0).reshape(1, 3 * D)

    args = [x, mask.astype(jnp.float32),
            lp["ln0"]["g"].reshape(1, D), lp["ln0"]["b"].reshape(1, D),
            wqkv, bqkv,
            lp["wo"]["w"].astype(BF16), lp["wo"]["b"].reshape(1, D),
            lp["ln1"]["g"].reshape(1, D), lp["ln1"]["b"].reshape(1, D),
            lp["ff1"]["w"].astype(BF16), lp["ff1"]["b"].reshape(1, Dff),
            lp["ff2"]["w"].astype(BF16), lp["ff2"]["b"].reshape(1, D)]
    specs = [pl.BlockSpec((1, S, D), lambda b: (b, 0, 0)),
             pl.BlockSpec((1, 1, S), lambda b: (b, 0, 0)),
             pl.BlockSpec((1, D), lambda b: (0, 0)),
             pl.BlockSpec((1, D), lambda b: (0, 0)),
             pl.BlockSpec((D, 3 * D), lambda b: (0, 0)),
             pl.BlockSpec((1, 3 * D), lambda b: (0, 0)),
             pl.BlockSpec((D, D), lambda b: (0, 0)),
             pl.BlockSpec((1, D), lambda b: (0, 0)),
             pl.BlockSpec((1, D), lambda b: (0, 0)),
             pl.BlockSpec((1, D), lambda b: (0, 0)),
             pl.BlockSpec((D, Dff), lambda b: (0, 0)),
             pl.BlockSpec((1, Dff), lambda b: (0, 0)),
             pl.BlockSpec((Dff, D), lambda b: (0, 0)),
             pl.BlockSpec((1, D), lambda b: (0, 0))]

    return pl.pallas_call(
        functools.partial(_attending_layer_kernel, h=h, eps=EPS),
        out_shape=jax.ShapeDtypeStruct((B, S, D), jnp.float32),
        grid=(B,),
        in_specs=specs,
        out_specs=pl.BlockSpec((1, S, D), lambda b: (b, 0, 0)),
        compiler_params=pltpu.CompilerParams(dimension_semantics=("parallel",)),
    )(*args)


def _head_kernel(xf_ref, st_ref,
                 wpre_ref, bpre_ref, gpre_ref, betapre_ref,
                 wt_ref, bt_ref, gt_ref, betat_ref,
                 wc1_ref, bc1_ref, gc1_ref, betac1_ref,
                 wc2_ref, bc2_ref, o_ref, *, n_types, eps):
    """Fused write head (MyCustomHead, norm=True) — single pallas_call."""
    xf = xf_ref[...].astype(F32)                              # (M, d_in)
    st = st_ref[...]                                          # (M, 1) int32

    # preproc: Linear -> LN -> ReLU
    xp = _bdot(xf, wpre_ref[...]) + bpre_ref[...].astype(F32)
    xp = jnp.maximum(_ln(xp, gpre_ref[...], betapre_ref[...], eps), 0.0)

    # per-type residual nets (stacked weights, one kernel, per-row select)
    x_types = jnp.zeros_like(xf)
    for i in range(n_types):
        yi = _bdot(xp, wt_ref[i]) + bt_ref[i].astype(F32)
        yi = jnp.maximum(_ln(yi, gt_ref[i], betat_ref[i], eps), 0.0)
        x_types = jnp.where(st == i, yi, x_types)
    xf = xf + x_types

    # contribs net: Linear -> LN -> ReLU -> Linear
    y = _bdot(xf, wc1_ref[...]) + bc1_ref[...].astype(F32)
    y = jnp.maximum(_ln(y, gc1_ref[...], betac1_ref[...], eps), 0.0)
    y = _bdot(y, wc2_ref[...]) + bc2_ref[...].astype(F32)
    o_ref[...] = y.astype(o_ref.dtype)


def write_head(xc, sc_types, params):
    d_in = xc.shape[-1]
    M = xc.shape[0] * xc.shape[1]
    xf = xc.reshape(M, d_in)
    st = sc_types.reshape(M, 1).astype(jnp.int32)
    # TODO(synk): PyTorch drops rows where sc_types == PAD_VAL (dynamic-shape boolean
    # filter); the synthetic inputs here contain no padded sc types, so no rows drop.
    d_ff = params["head_pre"]["w"].shape[-1]
    d_ffc = params["head_c1"]["w"].shape[-1]

    wt = jnp.stack([params["head_types"][i]["lin"]["w"] for i in range(N_TYPES)],
                   axis=0).astype(BF16)                       # (8, d_ff, d_in)
    bt = jnp.stack([params["head_types"][i]["lin"]["b"].reshape(1, d_in)
                    for i in range(N_TYPES)], axis=0)         # (8, 1, d_in)
    gt = jnp.stack([params["head_types"][i]["ln"]["g"].reshape(1, d_in)
                    for i in range(N_TYPES)], axis=0)
    betat = jnp.stack([params["head_types"][i]["ln"]["b"].reshape(1, d_in)
                       for i in range(N_TYPES)], axis=0)

    return pl.pallas_call(
        functools.partial(_head_kernel, n_types=N_TYPES, eps=EPS),
        out_shape=jax.ShapeDtypeStruct((M, 1), jnp.float32),
    )(xf, st,
      params["head_pre"]["w"].astype(BF16), params["head_pre"]["b"].reshape(1, d_ff),
      params["head_pre_ln"]["g"].reshape(1, d_ff), params["head_pre_ln"]["b"].reshape(1, d_ff),
      wt, bt, gt, betat,
      params["head_c1"]["w"].astype(BF16), params["head_c1"]["b"].reshape(1, d_ffc),
      params["head_c1_ln"]["g"].reshape(1, d_ffc), params["head_c1_ln"]["b"].reshape(1, d_ffc),
      params["head_c2"]["w"].astype(BF16), params["head_c2"]["b"].reshape(1, 1))


# ----------------------------- parameter init -----------------------------

def init_linear_params(key, d_in, d_out):
    kw, kb = jax.random.split(key)
    bound = 1.0 / math.sqrt(d_in)
    return {
        "w": jax.random.uniform(kw, (d_in, d_out), jnp.float32, -bound, bound),
        "b": jax.random.uniform(kb, (d_out,), jnp.float32, -bound, bound),
    }


def init_layernorm_params(d):
    return {"g": jnp.ones((d,), jnp.float32), "b": jnp.zeros((d,), jnp.float32)}


def init_params(key, cfg):
    keys = iter(jax.random.split(key, 256))
    nk = lambda: next(keys)
    d_model, d_ff, N = cfg["d_model"], cfg["d_ff"], cfg["N"]
    ks = cfg["kernel_sz"]
    d_input = 2 * d_model + cfg["d_sc_mol"]
    p = {}
    p["projection"] = init_linear_params(nk(), cfg["d_atom"], d_model)
    p["bond_enn"] = init_linear_params(nk(), cfg["d_bond"], d_model * ks)
    p["bond_ann"] = init_linear_params(nk(), 1, d_model)
    p["sc_enn"] = init_linear_params(nk(), cfg["d_sc_pair"], d_model * ks)
    p["mp_lin"] = [init_linear_params(nk(), d_model, d_model) for _ in range(2 * N)]
    p["mp_ln"] = [init_layernorm_params(d_model) for _ in range(2 * N)]
    p["attn_layers"] = [
        {
            "wq": init_linear_params(nk(), d_model, d_model),
            "wk": init_linear_params(nk(), d_model, d_model),
            "wv": init_linear_params(nk(), d_model, d_model),
            "wo": init_linear_params(nk(), d_model, d_model),
            "ff1": init_linear_params(nk(), d_model, d_ff),
            "ff2": init_linear_params(nk(), d_ff, d_model),
            "ln0": init_layernorm_params(d_model),
            "ln1": init_layernorm_params(d_model),
        }
        for _ in range(N)
    ]
    p["enc_norm"] = init_layernorm_params(d_model)
    p["head_pre"] = init_linear_params(nk(), d_input, d_ff)
    p["head_pre_ln"] = init_layernorm_params(d_ff)
    p["head_types"] = [
        {"lin": init_linear_params(nk(), d_ff, d_input),
         "ln": init_layernorm_params(d_input)}
        for _ in range(N_TYPES)
    ]
    p["head_c1"] = init_linear_params(nk(), d_input, cfg["d_ff_contrib"])
    p["head_c1_ln"] = init_layernorm_params(cfg["d_ff_contrib"])
    p["head_c2"] = init_linear_params(nk(), cfg["d_ff_contrib"], 1)
    return p


# ----------------------------- forward (glue in JAX) -----------------------------

def gather_nodes(x, idx):
    """x: (B,S,D), idx: (B,E) -> (B,E,D)   (== torch gather along dim 1)."""
    B, S, D = x.shape
    idx_full = jnp.broadcast_to(idx[:, :, None], (B, idx.shape[1], D))
    return jnp.take_along_axis(x, idx_full, axis=1)


def build_onehot(pairs_idx2, S):
    """One-hot gather (src) and scatter (dst) matrices for the directed edges."""
    gmat = jax.nn.one_hot(pairs_idx2[:, :, 1], S, dtype=BF16)               # (B,E2,S)
    smat = jnp.swapaxes(jax.nn.one_hot(pairs_idx2[:, :, 0], S, dtype=BF16), 1, 2)  # (B,S,E2)
    return gmat, smat


def compute_a_mat(edges, enn, d_model, kernel_sz):
    """ENNMessage.set_a_mat, stored (B, d_model, 2E, kernel_sz) in bf16 so each
    per-d slice is a contiguous (E2, K) tile inside the message kernel."""
    # TODO(synk): only the kernel_sz == d_model matmul path of ENNMessage is
    # implemented (the unfold path for kernel_sz < d_model is not exercised here).
    B, E, _ = edges.shape
    a_vect = linear(edges, enn["w"], enn["b"])                 # (B,E,d_model*ks) [Pallas]
    a_vect = a_vect * (1.0 / kernel_sz ** 0.5)
    pad = edges[:, :, 0:1] == PAD_VAL
    a_vect = jnp.where(pad, 0.0, a_vect)
    a_mat = a_vect.reshape(B, E, d_model, kernel_sz)
    a_mat = jnp.concatenate([a_mat, a_mat], axis=1)            # (B,2E,d_model,ks)
    return jnp.transpose(a_mat, (0, 2, 1, 3)).astype(BF16)     # (B,d_model,2E,ks)


def compute_angle_attn(angles, ann):
    """ENNMessage.set_attn — K==1 linear done in plain JAX (XLA fuses it for free)."""
    a = angles[..., None]                                      # (B,A,1)
    attn = a * ann["w"].reshape(1, 1, -1) + ann["b"].reshape(1, 1, -1)
    return jnp.where(a == PAD_VAL, 0.0, attn)


def scatter_mean_default_ones(attn, angles_idx, n_pairs):
    """scatter_mean(attn, angles_idx, dim=1) with missing entries defaulting to 1."""
    B, A, D = attn.shape
    b_idx = jnp.arange(B)[:, None]
    sums = jnp.zeros((B, n_pairs, D), attn.dtype).at[b_idx, angles_idx].add(attn)
    cnts = jnp.zeros((B, n_pairs), attn.dtype).at[b_idx, angles_idx].add(1.0)
    cnts = cnts[..., None]
    return jnp.where(cnts > 0, sums / jnp.maximum(cnts, 1.0), 1.0)


def graph_transformer_forward(params, cfg, atom_x, bond_x, sc_pair_x, sc_mol_x,
                              angles, mask, bond_idx, sc_idx, angles_idx, sc_types):
    d_model, h, N, ks = cfg["d_model"], cfg["h"], cfg["N"], cfg["kernel_sz"]

    # projection
    x = linear(atom_x, params["projection"]["w"], params["projection"]["b"])
    S = x.shape[1]

    # --- quantities cached at t == 0 in the PyTorch module (x-independent) ---
    bond_pairs2 = jnp.concatenate([bond_idx, bond_idx[:, :, ::-1]], axis=1)
    sc_pairs2 = jnp.concatenate([sc_idx, sc_idx[:, :, ::-1]], axis=1)
    g_bond, s_bond = build_onehot(bond_pairs2, S)
    g_sc, s_sc = build_onehot(sc_pairs2, S)
    a_mat_bond = compute_a_mat(bond_x, params["bond_enn"], d_model, ks)
    a_mat_sc = compute_a_mat(sc_pair_x, params["sc_enn"], d_model, ks)
    ang_attn = compute_angle_attn(angles, params["bond_ann"])
    ave_att = scatter_mean_default_ones(ang_attn, angles_idx, bond_pairs2.shape[1])

    # --- Encoder: N x (MessagePassingLayer, AttendingLayer), all fused kernels ---
    for t in range(N):
        lp = params["attn_layers"][t]
        x = msg_sublayer(x, g_bond, s_bond, a_mat_bond, ave_att,
                         params["mp_ln"][2 * t], params["mp_lin"][2 * t])
        x = msg_sublayer(x, g_sc, s_sc, a_mat_sc, None,
                         params["mp_ln"][2 * t + 1], params["mp_lin"][2 * t + 1])
        x = attending_layer(x, mask, lp, h)

    x = layernorm(x, params["enc_norm"]["g"], params["enc_norm"]["b"])

    # --- gather sc pair node embeddings + mol features ---
    x0 = gather_nodes(x, sc_idx[:, :, 0])
    x1 = gather_nodes(x, sc_idx[:, :, 1])
    xc = jnp.concatenate([x0, x1, sc_mol_x], axis=-1)          # (B, n_sc, 2*d_model+d_sc_mol)

    # --- fused write head (single kernel) ---
    return write_head(xc, sc_types, params)                    # (B*n_sc, 1)


# ----------------------------- main -----------------------------

if __name__ == "__main__":
    cfg = dict(d_atom=6, d_bond=5, d_sc_pair=4, d_sc_mol=3, N=2, d_model=32,
               d_ff=64, d_ff_contrib=16, h=4, kernel_sz=32)
    B, S = 2, 8
    n_bonds, n_sc, n_angles = 6, 5, 7

    key = jax.random.PRNGKey(0)
    kp, kd = jax.random.split(key)
    params = init_params(kp, cfg)

    ks = jax.random.split(kd, 9)
    atom_x = jax.random.normal(ks[0], (B, S, cfg["d_atom"]), jnp.float32)
    bond_x = jax.random.normal(ks[1], (B, n_bonds, cfg["d_bond"]), jnp.float32)
    bond_x = bond_x.at[1, -1, :].set(PAD_VAL)             # one padded bond
    sc_pair_x = jax.random.normal(ks[2], (B, n_sc, cfg["d_sc_pair"]), jnp.float32)
    sc_mol_x = jax.random.normal(ks[3], (B, n_sc, cfg["d_sc_mol"]), jnp.float32)
    angles = jax.random.uniform(ks[4], (B, n_angles), jnp.float32, -1.0, 1.0)
    angles = angles.at[1, -1].set(PAD_VAL)                # one padded angle
    mask = jnp.ones((B, 1, S), jnp.float32)
    mask = mask.at[1, 0, S - 1].set(0.0)                  # one padded atom
    bond_idx = jax.random.randint(ks[5], (B, n_bonds, 2), 0, S, jnp.int32)
    sc_idx = jax.random.randint(ks[6], (B, n_sc, 2), 0, S, jnp.int32)
    angles_idx = jax.random.randint(ks[7], (B, n_angles), 0, 2 * n_bonds, jnp.int32)
    sc_types = jax.random.randint(ks[8], (B, n_sc), 0, N_TYPES, jnp.int32)

    @jax.jit
    def fwd(atom_x, bond_x, sc_pair_x, sc_mol_x, angles, mask,
            bond_idx, sc_idx, angles_idx, sc_types):
        return graph_transformer_forward(params, cfg, atom_x, bond_x, sc_pair_x,
                                         sc_mol_x, angles, mask, bond_idx, sc_idx,
                                         angles_idx, sc_types)

    out = fwd(atom_x, bond_x, sc_pair_x, sc_mol_x, angles, mask,
              bond_idx, sc_idx, angles_idx, sc_types)
    out = jax.block_until_ready(out)
    assert out.shape == (B * n_sc, 1), out.shape
    assert bool(jnp.all(jnp.isfinite(out)))
    print("KERNEL_OK")
</pallas_src>

<mosaic_0001>
module attributes {stable_mosaic.version = 11 : i64} {
  func.func @_linear_kernel(%arg0: memref<12x5xf32, #tpu.memory_space<vmem>>, %arg1: memref<5x1024xf32, #tpu.memory_space<vmem>>, %arg2: memref<1x1024xf32, #tpu.memory_space<vmem>>, %arg3: memref<12x1024xf32, #tpu.memory_space<vmem>>) attributes {dimension_semantics = [], scalar_prefetch = 0 : i64, scratch_operands = 0 : i64, tpu.core_type = #tpu.core_type<tc>} {
    %c0 = arith.constant 0 : index
    %c0_0 = arith.constant 0 : index
    %0 = vector.load %arg0[%c0, %c0_0] : memref<12x5xf32, #tpu.memory_space<vmem>>, vector<12x5xf32>
    %c0_1 = arith.constant 0 : index
    %c0_2 = arith.constant 0 : index
    %1 = vector.load %arg1[%c0_1, %c0_2] : memref<5x1024xf32, #tpu.memory_space<vmem>>, vector<5x1024xf32>
    %2 = arith.truncf %0 : vector<12x5xf32> to vector<12x5xbf16>
    %3 = arith.truncf %1 : vector<5x1024xf32> to vector<5x1024xbf16>
    %cst = arith.constant dense<0.000000e+00> : vector<12x1024xf32>
    %4 = tpu.matmul %2, %3, %cst {dimension_numbers = #tpu.dot_dimension_numbers<[1], [0], [0], [1], [0, 0, 1, 1], [], []>} : vector<12x5xbf16>, vector<5x1024xbf16>, vector<12x1024xf32> -> vector<12x1024xf32>
    %c0_3 = arith.constant 0 : index
    %c0_4 = arith.constant 0 : index
    %5 = vector.load %arg2[%c0_3, %c0_4] : memref<1x1024xf32, #tpu.memory_space<vmem>>, vector<1x1024xf32>
    %6 = vector.broadcast %5 : vector<1x1024xf32> to vector<12x1024xf32>
    %7 = arith.addf %4, %6 : vector<12x1024xf32>
    %c0_5 = arith.constant 0 : index
    %c0_6 = arith.constant 0 : index
    %8 = vector.load %arg3[%c0_5, %c0_6] : memref<12x1024xf32, #tpu.memory_space<vmem>>, vector<12x1024xf32>
    tpu.vector_store %arg3[%c0_5, %c0_6], %7 {strides = array<i32>} : memref<12x1024xf32, #tpu.memory_space<vmem>>, vector<12x1024xf32>,
    return
  }
}

module attributes {stable_mosaic.version = 11 : i64} {
  func.func @_linear_kernel(%arg0: memref<16x6xf32, #tpu.memory_space<vmem>>, %arg1: memref<6x32xf32, #tpu.memory_space<vmem>>, %arg2: memref<1x32xf32, #tpu.memory_space<vmem>>, %arg3: memref<16x32xf32, #tpu.memory_space<vmem>>) attributes {dimension_semantics = [], scalar_prefetch = 0 : i64, scratch_operands = 0 : i64, tpu.core_type = #tpu.core_type<tc>} {
    %c0 = arith.constant 0 : index
    %c0_0 = arith.constant 0 : index
    %0 = vector.load %arg0[%c0, %c0_0] : memref<16x6xf32, #tpu.memory_space<vmem>>, vector<16x6xf32>
    %c0_1 = arith.constant 0 : index
    %c0_2 = arith.constant 0 : index
    %1 = vector.load %arg1[%c0_1, %c0_2] : memref<6x32xf32, #tpu.memory_space<vmem>>, vector<6x32xf32>
    %2 = arith.truncf %0 : vector<16x6xf32> to vector<16x6xbf16>
    %3 = arith.truncf %1 : vector<6x32xf32> to vector<6x32xbf16>
    %cst = arith.constant dense<0.000000e+00> : vector<16x32xf32>
    %4 = tpu.matmul %2, %3, %cst {dimension_numbers = #tpu.dot_dimension_numbers<[1], [0], [0], [1], [0, 0, 1, 1], [], []>} : vector<16x6xbf16>, vector<6x32xbf16>, vector<16x32xf32> -> vector<16x32xf32>
    %c0_3 = arith.constant 0 : index
    %c0_4 = arith.constant 0 : index
    %5 = vector.load %arg2[%c0_3, %c0_4] : memref<1x32xf32, #tpu.memory_space<vmem>>, vector<1x32xf32>
    %6 = vector.broadcast %5 : vector<1x32xf32> to vector<16x32xf32>
    %7 = arith.addf %4, %6 : vector<16x32xf32>
    %c0_5 = arith.constant 0 : index
    %c0_6 = arith.constant 0 : index
    %8 = vector.load %arg3[%c0_5, %c0_6] : memref<16x32xf32, #tpu.memory_space<vmem>>, vector<16x32xf32>
    tpu.vector_store %arg3[%c0_5, %c0_6], %7 {strides = array<i32>} : memref<16x32xf32, #tpu.memory_space<vmem>>, vector<16x32xf32>,
    return
  }
}

module attributes {stable_mosaic.version = 11 : i64} {
  func.func @_msg_sublayer_kernel(%arg0: i32, %arg1: memref<1x8x32xf32, #tpu.memory_space<vmem>>, %arg2: memref<1x12x8xbf16, #tpu.memory_space<vmem>>, %arg3: memref<1x8x12xbf16, #tpu.memory_space<vmem>>, %arg4: memref<1x32x12x32xbf16, #tpu.memory_space<vmem>>, %arg5: memref<1x12x32xf32, #tpu.memory_space<vmem>>, %arg6: memref<1x32xf32, #tpu.memory_space<vmem>>, %arg7: memref<1x32xf32, #tpu.memory_space<vmem>>, %arg8: memref<32x32xbf16, #tpu.memory_space<vmem>>, %arg9: memref<1x32xf32, #tpu.memory_space<vmem>>, %arg10: memref<1x8x32xf32, #tpu.memory_space<vmem>>) attributes {dimension_semantics = [#tpu.dimension_semantics<parallel>], iteration_bounds = array<i64: 2>, scalar_prefetch = 0 : i64, scratch_operands = 0 : i64, tpu.core_type = #tpu.core_type<tc>, window_params = [{transform_indices = @transform_0, window_bounds = array<i64: 1, 8, 32>}, {transform_indices = @transform_1, window_bounds = array<i64: 1, 12, 8>}, {transform_indices = @transform_2, window_bounds = array<i64: 1, 8, 12>}, {transform_indices = @transform_3, window_bounds = array<i64: 1, 32, 12, 32>}, {transform_indices = @transform_4, window_bounds = array<i64: 1, 12, 32>}, {pipeline_mode = #tpu.pipeline_mode<synchronous>, transform_indices = @transform_5, window_bounds = array<i64: 1, 32>}, {pipeline_mode = #tpu.pipeline_mode<synchronous>, transform_indices = @transform_6, window_bounds = array<i64: 1, 32>}, {pipeline_mode = #tpu.pipeline_mode<synchronous>, transform_indices = @transform_7, window_bounds = array<i64: 32, 32>}, {pipeline_mode = #tpu.pipeline_mode<synchronous>, transform_indices = @transform_8, window_bounds = array<i64: 1, 32>}, {transform_indices = @transform_9, window_bounds = array<i64: 1, 8, 32>}]} {
    %c0 = arith.constant 0 : index
    %c0_0 = arith.constant 0 : index
    %c0_1 = arith.constant 0 : index
    %0 = vector.load %arg1[%c0, %c0_0, %c0_1] : memref<1x8x32xf32, #tpu.memory_space<vmem>>, vector<1x8x32xf32>
    %1 = vector.shape_cast %0 : vector<1x8x32xf32> to vector<8x32xf32>
    %c0_2 = arith.constant 0 : index
    %c0_3 = arith.constant 0 : index
    %2 = vector.load %arg6[%c0_2, %c0_3] : memref<1x32xf32, #tpu.memory_space<vmem>>, vector<1x32xf32>
    %c0_4 = arith.constant 0 : index
    %c0_5 = arith.constant 0 : index
    %3 = vector.load %arg7[%c0_4, %c0_5] : memref<1x32xf32, #tpu.memory_space<vmem>>, vector<1x32xf32>
    %cst = arith.constant dense<0.000000e+00> : vector<8xf32>
    %4 = vector.multi_reduction <add>, %1, %cst [1] : vector<8x32xf32> to vector<8xf32>
    %5 = vector.shape_cast %4 : vector<8xf32> to vector<8x1xf32>
    %cst_6 = arith.constant 3.200000e+01 : f32
    %6 = vector.broadcast %cst_6 : f32 to vector<8x1xf32>
    %7 = arith.divf %5, %6 : vector<8x1xf32>
    %8 = vector.broadcast %7 : vector<8x1xf32> to vector<8x32xf32>
    %9 = arith.subf %1, %8 : vector<8x32xf32>
    %10 = arith.mulf %9, %9 : vector<8x32xf32>
    %cst_7 = arith.constant dense<0.000000e+00> : vector<8xf32>
    %11 = vector.multi_reduction <add>, %10, %cst_7 [1] : vector<8x32xf32> to vector<8xf32>
    %12 = vector.shape_cast %11 : vector<8xf32> to vector<8x1xf32>
    %cst_8 = arith.constant 3.200000e+01 : f32
    %13 = vector.broadcast %cst_8 : f32 to vector<8x1xf32>
    %14 = arith.divf %12, %13 : vector<8x1xf32>
    %cst_9 = arith.constant 9.99999997E-7 : f32
    %15 = vector.broadcast %cst_9 : f32 to vector<8x1xf32>
    %16 = arith.addf %14, %15 : vector<8x1xf32>
    %17 = math.rsqrt %16 : vector<8x1xf32>
    %18 = vector.broadcast %17 : vector<8x1xf32> to vector<8x32xf32>
    %19 = arith.mulf %9, %18 : vector<8x32xf32>
    %20 = vector.broadcast %2 : vector<1x32xf32> to vector<8x32xf32>
    %21 = arith.mulf %19, %20 : vector<8x32xf32>
    %22 = vector.broadcast %3 : vector<1x32xf32> to vector<8x32xf32>
    %23 = arith.addf %21, %22 : vector<8x32xf32>
    %c0_10 = arith.constant 0 : index
    %c0_11 = arith.constant 0 : index
    %c0_12 = arith.constant 0 : index
    %24 = vector.load %arg2[%c0_10, %c0_11, %c0_12] : memref<1x12x8xbf16, #tpu.memory_space<vmem>>, vector<1x12x8xbf16>
    %25 = vector.shape_cast %24 : vector<1x12x8xbf16> to vector<12x8xbf16>
    %26 = arith.truncf %23 : vector<8x32xf32> to vector<8x32xbf16>
    %cst_13 = arith.constant dense<0.000000e+00> : vector<12x32xf32>
    %27 = tpu.matmul %25, %26, %cst_13 {dimension_numbers = #tpu.dot_dimension_numbers<[1], [0], [0], [1], [0, 0, 1, 1], [], []>} : vector<12x8xbf16>, vector<8x32xbf16>, vector<12x32xf32> -> vector<12x32xf32>
    %cst_14 = arith.constant 0.000000e+00 : f32
    %28 = vector.broadcast %cst_14 : f32 to vector<12x32xf32>
    %29 = vector.extract_strided_slice %27 {offsets = [0, 0], sizes = [12, 1], strides = [1, 1]} : vector<12x32xf32> to vector<12x1xf32>
    %c0_15 = arith.constant 0 : index
    %c0_16 = arith.constant 0 : index
    %c0_17 = arith.constant 0 : index
    %c0_18 = arith.constant 0 : index
    %30 = vector.load %arg4[%c0_15, %c0_16, %c0_17, %c0_18] : memref<1x32x12x32xbf16, #tpu.memory_space<vmem>>, vector<1x1x12x32xbf16>
    %31 = vector.shape_cast %30 : vector<1x1x12x32xbf16> to vector<12x32xbf16>
    %32 = arith.extf %31 : vector<12x32xbf16> to vector<12x32xf32>
    %33 = vector.broadcast %29 : vector<12x1xf32> to vector<12x32xf32>
    %34 = arith.mulf %33, %32 : vector<12x32xf32>
    %35 = arith.addf %28, %34 : vector<12x32xf32>
    %36 = vector.extract_strided_slice %27 {offsets = [0, 1], sizes = [12, 1], strides = [1, 1]} : vector<12x32xf32> to vector<12x1xf32>
    %c0_19 = arith.constant 0 : index
    %c1 = arith.constant 1 : index
    %c0_20 = arith.constant 0 : index
    %c0_21 = arith.constant 0 : index
    %37 = vector.load %arg4[%c0_19, %c1, %c0_20, %c0_21] : memref<1x32x12x32xbf16, #tpu.memory_space<vmem>>, vector<1x1x12x32xbf16>
    %38 = vector.shape_cast %37 : vector<1x1x12x32xbf16> to vector<12x32xbf16>
    %39 = arith.extf %38 : vector<12x32xbf16> to vector<12x32xf32>
    %40 = vector.broadcast %36 : vector<12x1xf32> to vector<12x32xf32>
    %41 = arith.mulf %40, %39 : vector<12x32xf32>
    %42 = arith.addf %35, %41 : vector<12x32xf32>
    %43 = vector.extract_strided_slice %27 {offsets = [0, 2], sizes = [12, 1], strides = [1, 1]} : vector<12x32xf32> to vector<12x1xf32>
    %c0_22 = arith.constant 0 : index
    %c2 = arith.constant 2 : index
    %c0_23 = arith.constant 0 : index
    %c0_24 = arith.constant 0 : index
    %44 = vector.load %arg4[%c0_22, %c2, %c0_23, %c0_24] : memref<1x32x12x32xbf16, #tpu.memory_space<vmem>>, vector<1x1x12x32xbf16>
    %45 = vector.shape_cast %44 : vector<1x1x12x32xbf16> to vector<12x32xbf16>
    %46 = arith.extf %45 : vector<12x32xbf16> to vector<12x32xf32>
    %47 = vector.broadcast %43 : vector<12x1xf32> to vector<12x32xf32>
    %48 = arith.mulf %47, %46 : vector<12x32xf32>
    %49 = arith.addf %42, %48 : vector<12x32xf32>
    %50 = vector.extract_strided_slice %27 {offsets = [0, 3], sizes = [12, 1], strides = [1, 1]} : vector<12x32xf32> to vector<12x1xf32>
    %c0_25 = arith.constant 0 : index
    %c3 = arith.constant 3 : index
    %c0_26 = arith.constant 0 : index
    %c0_27 = arith.constant 0 : index
    %51 = vector.load %arg4[%c0_25, %c3, %c0_26, %c0_27] : memref<1x32x12x32xbf16, #tpu.memory_space<vmem>>, vector<1x1x12x32xbf16>
    %52 = vector.shape_cast %51 : vector<1x1x12x32xbf16> to vector<12x32xbf16>
    %53 = arith.extf %52 : vector<12x32xbf16> to vector<12x32xf32>
    %54 = vector.broadcast %50 : vector<12x1xf32> to vector<12x32xf32>
    %55 = arith.mulf %54, %53 : vector<12x32xf32>
    %56 = arith.addf %49, %55 : vector<12x32xf32>
    %57 = vector.extract_strided_slice %27 {offsets = [0, 4], sizes = [12, 1], strides = [1, 1]} : vector<12x32xf32> to vector<12x1xf32>
    %c0_28 = arith.constant 0 : index
    %c4 = arith.constant 4 : index
    %c0_29 = arith.constant 0 : index
    %c0_30 = arith.constant 0 : index
    %58 = vector.load %arg4[%c0_28, %c4, %c0_29, %c0_30] : memref<1x32x12x32xbf16, #tpu.memory_space<vmem>>, vector<1x1x12x32xbf16>
    %59 = vector.shape_cast %58 : vector<1x1x12x32xbf16> to vector<12x32xbf16>
    %60 = arith.extf %59 : vector<12x32xbf16> to vector<12x32xf32>
    %61 = vector.broadcast %57 : vector<12x1xf32> to vector<12x32xf32>
    %62 = arith.mulf %61, %60 : vector<12x32xf32>
    %63 = arith.addf %56, %62 : vector<12x32xf32>
    %64 = vector.extract_strided_slice %27 {offsets = [0, 5], sizes = [12, 1], strides = [1, 1]} : vector<12x32xf32> to vector<12x1xf32>
    %c0_31 = arith.constant 0 : index
    %c5 = arith.constant 5 : index
    %c0_32 = arith.constant 0 : index
    %c0_33 = arith.constant 0 : index
    %65 = vector.load %arg4[%c0_31, %c5, %c0_32, %c0_33] : memref<1x32x12x32xbf16, #tpu.memory_space<vmem>>, vector<1x1x12x32xbf16>
    %66 = vector.shape_cast %65 : vector<1x1x12x32xbf16> to vector<12x32xbf16>
    %67 = arith.extf %66 : vector<12x32xbf16> to vector<12x32xf32>
    %68 = vector.broadcast %64 : vector<12x1xf32> to vector<12x32xf32>
    %69 = arith.mulf %68, %67 : vector<12x32xf32>
    %70 = arith.addf %63, %69 : vector<12x32xf32>
    %71 = vector.extract_strided_slice %27 {offsets = [0, 6], sizes = [12, 1], strides = [1, 1]} : vector<12x32xf32> to vector<12x1xf32>
    %c0_34 = arith.constant 0 : index
    %c6 = arith.constant 6 : index
    %c0_35 = arith.constant 0 : index
    %c0_36 = arith.constant 0 : index
    %72 = vector.load %arg4[%c0_34, %c6, %c0_35, %c0_36] : memref<1x32x12x32xbf16, #tpu.memory_space<vmem>>, vector<1x1x12x32xbf16>
    %73 = vector.shape_cast %72 : vector<1x1x12x32xbf16> to vector<12x32xbf16>
    %74 = arith.extf %73 : vector<12x32xbf16> to vector<12x32xf32>
    %75 = vector.broadcast %71 : vector<12x1xf32> to vector<12x32xf32>
    %76 = arith.mulf %75, %74 : vector<12x32xf32>
    %77 = arith.addf %70, %76 : vector<12x32xf32>
    %78 = vector.extract_strided_slice %27 {offsets = [0, 7], sizes = [12, 1], strides = [1, 1]} : vector<12x32xf32> to vector<12x1xf32>
    %c0_37 = arith.constant 0 : index
    %c7 = arith.constant 7 : index
    %c0_38 = arith.constant 0 : index
    %c0_39 = arith.constant 0 : index
    %79 = vector.load %arg4[%c0_37, %c7, %c0_38, %c0_39] : memref<1x32x12x32xbf16, #tpu.memory_space<vmem>>, vector<1x1x12x32xbf16>
    %80 = vector.shape_cast %79 : vector<1x1x12x32xbf16> to vector<12x32xbf16>
    %81 = arith.extf %80 : vector<12x32xbf16> to vector<12x32xf32>
    %82 = vector.broadcast %78 : vector<12x1xf32> to vector<12x32xf32>
    %83 = arith.mulf %82, %81 : vector<12x32xf32>
    %84 = arith.addf %77, %83 : vector<12x32xf32>
    %85 = vector.extract_strided_slice %27 {offsets = [0, 8], sizes = [12, 1], strides = [1, 1]} : vector<12x32xf32> to vector<12x1xf32>
    %c0_40 = arith.constant 0 : index
    %c8 = arith.constant 8 : index
    %c0_41 = arith.constant 0 : index
    %c0_42 = arith.constant 0 : index
    %86 = vector.load %arg4[%c0_40, %c8, %c0_41, %c0_42] : memref<1x32x12x32xbf16, #tpu.memory_space<vmem>>, vector<1x1x12x32xbf16>
    %87 = vector.shape_cast %86 : vector<1x1x12x32xbf16> to vector<12x32xbf16>
    %88 = arith.extf %87 : vector<12x32xbf16> to vector<12x32xf32>
    %89 = vector.broadcast %85 : vector<12x1xf32> to vector<12x32xf32>
    %90 = arith.mulf %89, %88 : vector<12x32xf32>
    %91 = arith.addf %84, %90 : vector<12x32xf32>
    %92 = vector.extract_strided_slice %27 {offsets = [0, 9], sizes = [12, 1], strides = [1, 1]} : vector<12x32xf32> to vector<12x1xf32>
    %c0_43 = arith.constant 0 : index
    %c9 = arith.constant 9 : index
    %c0_44 = arith.constant 0 : index
    %c0_45 = arith.constant 0 : index
    %93 = vector.load %arg4[%c0_43, %c9, %c0_44, %c0_45] : memref<1x32x12x32xbf16, #tpu.memory_space<vmem>>, vector<1x1x12x32xbf16>
    %94 = vector.shape_cast %93 : vector<1x1x12x32xbf16> to vector<12x32xbf16>
    %95 = arith.extf %94 : vector<12x32xbf16> to vector<12x32xf32>
    %96 = vector.broadcast %92 : vector<12x1xf32> to vector<12x32xf32>
    %97 = arith.mulf %96, %95 : vector<12x32xf32>
    %98 = arith.addf %91, %97 : vector<12x32xf32>
    %99 = vector.extract_strided_slice %27 {offsets = [0, 10], sizes = [12, 1], strides = [1, 1]} : vector<12x32xf32> to vector<12x1xf32>
    %c0_46 = arith.constant 0 : index
    %c10 = arith.constant 10 : index
    %c0_47 = arith.constant 0 : index
    %c0_48 = arith.constant 0 : index
    %100 = vector.load %arg4[%c0_46, %c10, %c0_47, %c0_48] : memref<1x32x12x32xbf16, #tpu.memory_space<vmem>>, vector<1x1x12x32xbf16>
    %101 = vector.shape_cast %100 : vector<1x1x12x32xbf16> to vector<12x32xbf16>
    %102 = arith.extf %101 : vector<12x32xbf16> to vector<12x32xf32>
    %103 = vector.broadcast %99 : vector<12x1xf32> to vector<12x32xf32>
    %104 = arith.mulf %103, %102 : vector<12x32xf32>
    %105 = arith.addf %98, %104 : vector<12x32xf32>
    %106 = vector.extract_strided_slice %27 {offsets = [0, 11], sizes = [12, 1], strides = [1, 1]} : vector<12x32xf32> to vector<12x1xf32>
    %c0_49 = arith.constant 0 : index
    %c11 = arith.constant 11 : index
    %c0_50 = arith.constant 0 : index
    %c0_51 = arith.constant 0 : index
    %107 = vector.load %arg4[%c0_49, %c11, %c0_50, %c0_51] : memref<1x32x12x32xbf16, #tpu.memory_space<vmem>>, vector<1x1x12x32xbf16>
    %108 = vector.shape_cast %107 : vector<1x1x12x32xbf16> to vector<12x32xbf16>
    %109 = arith.extf %108 : vector<12x32xbf16> to vector<12x32xf32>
    %110 = vector.broadcast %106 : vector<12x1xf32> to vector<12x32xf32>
    %111 = arith.mulf %110, %109 : vector<12x32xf32>
    %112 = arith.addf %105, %111 : vector<12x32xf32>
    %113 = vector.extract_strided_slice %27 {offsets = [0, 12], sizes = [12, 1], strides = [1, 1]} : vector<12x32xf32> to vector<12x1xf32>
    %c0_52 = arith.constant 0 : index
    %c12 = arith.constant 12 : index
    %c0_53 = arith.constant 0 : index
    %c0_54 = arith.constant 0 : index
    %114 = vector.load %arg4[%c0_52, %c12, %c0_53, %c0_54] : memref<1x32x12x32xbf16, #tpu.memory_space<vmem>>, vector<1x1x12x32xbf16>
    %115 = vector.shape_cast %114 : vector<1x1x12x32xbf16> to vector<12x32xbf16>
    %116 = arith.extf %115 : vector<12x32xbf16> to vector<12x32xf32>
    %117 = vector.broadcast %113 : vector<12x1xf32> to vector<12x32xf32>
    %118 = arith.mulf %117, %116 : vector<12x32xf32>
    %119 = arith.addf %112, %118 : vector<12x32xf32>
    %120 = vector.extract_strided_slice %27 {offsets = [0, 13], sizes = [12, 1], strides = [1, 1]} : vector<12x32xf32> to vector<12x1xf32>
    %c0_55 = arith.constant 0 : index
    %c13 = arith.constant 13 : index
    %c0_56 = arith.constant 0 : index
    %c0_57 = arith.constant 0 : index
    %121 = vector.load %arg4[%c0_55, %c13, %c0_56, %c0_57] : memref<1x32x12x32xbf16, #tpu.memory_space<vmem>>, vector<1x1x12x32xbf16>
    %122 = vector.shape_cast %121 : vector<1x1x12x32xbf16> to vector<12x32xbf16>
    %123 = arith.extf %122 : vector<12x32xbf16> to vector<12x32xf32>
    %124 = vector.broadcast %120 : vector<12x1xf32> to vector<12x32xf32>
    %125 = arith.mulf %124, %123 : vector<12x32xf32>
    %126 = arith.addf %119, %125 : vector<12x32xf32>
    %127 = vector.extract_strided_slice %27 {offsets = [0, 14], sizes = [12, 1], strides = [1, 1]} : vector<12x32xf32> to vector<12x1xf32>
    %c0_58 = arith.constant 0 : index
    %c14 = arith.constant 14 : index
    %c0_59 = arith.constant 0 : index
    %c0_60 = arith.constant 0 : index
    %128 = vector.load %arg4[%c0_58, %c14, %c0_59, %c0_60] : memref<1x32x12x32xbf16, #tpu.memory_space<vmem>>, vector<1x1x12x32xbf16>
    %129 = vector.shape_cast %128 : vector<1x1x12x32xbf16> to vector<12x32xbf16>
    %130 = arith.extf %129 : vector<12x32xbf16> to vector<12x32xf32>
    %131 = vector.broadcast %127 : vector<12x1xf32> to vector<12x32xf32>
    %132 = arith.mulf %131, %130 : vector<12x32xf32>
    %133 = arith.addf %126, %132 : vector<12x32xf32>
    %134 = vector.extract_strided_slice %27 {offsets = [0, 15], sizes = [12, 1], strides = [1, 1]} : vector<12x32xf32> to vector<12x1xf32>
    %c0_61 = arith.constant 0 : index
    %c15 = arith.constant 15 : index
    %c0_62 = arith.constant 0 : index
    %c0_63 = arith.constant 0 : index
    %135 = vector.load %arg4[%c0_61, %c15, %c0_62, %c0_63] : memref<1x32x12x32xbf16, #tpu.memory_space<vmem>>, vector<1x1x12x32xbf16>
    %136 = vector.shape_cast %135 : vector<1x1x12x32xbf16> to vector<12x32xbf16>
    %137 = arith.extf %136 : vector<12x32xbf16> to vector<12x32xf32>
    %138 = vector.broadcast %134 : vector<12x1xf32> to vector<12x32xf32>
    %139 = arith.mulf %138, %137 : vector<12x32xf32>
    %140 = arith.addf %133, %139 : vector<12x32xf32>
    %141 = vector.extract_strided_slice %27 {offsets = [0, 16], sizes = [12, 1], strides = [1, 1]} : vector<12x32xf32> to vector<12x1xf32>
    %c0_64 = arith.constant 0 : index
    %c16 = arith.constant 16 : index
    %c0_65 = arith.constant 0 : index
    %c0_66 = arith.constant 0 : index
    %142 = vector.load %arg4[%c0_64, %c16, %c0_65, %c0_66] : memref<1x32x12x32xbf16, #tpu.memory_space<vmem>>, vector<1x1x12x32xbf16>
    %143 = vector.shape_cast %142 : vector<1x1x12x32xbf16> to vector<12x32xbf16>
    %144 = arith.extf %143 : vector<12x32xbf16> to vector<12x32xf32>
    %145 = vector.broadcast %141 : vector<12x1xf32> to vector<12x32xf32>
    %146 = arith.mulf %145, %144 : vector<12x32xf32>
    %147 = arith.addf %140, %146 : vector<12x32xf32>
    %148 = vector.extract_strided_slice %27 {offsets = [0, 17], sizes = [12, 1], strides = [1, 1]} : vector<12x32xf32> to vector<12x1xf32>
    %c0_67 = arith.constant 0 : index
    %c17 = arith.constant 17 : index
    %c0_68 = arith.constant 0 : index
    %c0_69 = arith.constant 0 : index
    %149 = vector.load %arg4[%c0_67, %c17, %c0_68, %c0_69] : memref<1x32x12x32xbf16, #tpu.memory_space<vmem>>, vector<1x1x12x32xbf16>
    %150 = vector.shape_cast %149 : vector<1x1x12x32xbf16> to vector<12x32xbf16>
    %151 = arith.extf %150 : vector<12x32xbf16> to vector<12x32xf32>
    %152 = vector.broadcast %148 : vector<12x1xf32> to vector<12x32xf32>
    %153 = arith.mulf %152, %151 : vector<12x32xf32>
    %154 = arith.addf %147, %153 : vector<12x32xf32>
    %155 = vector.extract_strided_slice %27 {offsets = [0, 18], sizes = [12, 1], strides = [1, 1]} : vector<12x32xf32> to vector<12x1xf32>
    %c0_70 = arith.constant 0 : index
    %c18 = arith.constant 18 : index
    %c0_71 = arith.constant 0 : index
    %c0_72 = arith.constant 0 : index
    %156 = vector.load %arg4[%c0_70, %c18, %c0_71, %c0_72] : memref<1x32x12x32xbf16, #tpu.memory_space<vmem>>, vector<1x1x12x32xbf16>
    %157 = vector.shape_cast %156 : vector<1x1x12x32xbf16> to vector<12x32xbf16>
    %158 = arith.extf %157 : vector<12x32xbf16> to vector<12x32xf32>
    %159 = vector.broadcast %155 : vector<12x1xf32> to vector<12x32xf32>
    %160 = arith.mulf %159, %158 : vector<12x32xf32>
    %161 = arith.addf %154, %160 : vector<12x32xf32>
    %162 = vector.extract_strided_slice %27 {offsets = [0, 19], sizes = [12, 1], strides = [1, 1]} : vector<12x32xf32> to vector<12x1xf32>
    %c0_73 = arith.constant 0 : index
    %c19 = arith.constant 19 : index
    %c0_74 = arith.constant 0 : index
    %c0_75 = arith.constant 0 : index
    %163 = vector.load %arg4[%c0_73, %c19, %c0_74, %c0_75] : memref<1x32x12x32xbf16, #tpu.memory_space<vmem>>, vector<1x1x12x32xbf16>
    %164 = vector.shape_cast %163 : vector<1x1x12x32xbf16> to vector<12x32xbf16>
    %165 = arith.extf %164 : vector<12x32xbf16> to vector<12x32xf32>
    %166 = vector.broadcast %162 : vector<12x1xf32> to vector<12x32xf32>
    %167 = arith.mulf %166, %165 : vector<12x32xf32>
    %168 = arith.addf %161, %167 : vector<12x32xf32>
    %169 = vector.extract_strided_slice %27 {offsets = [0, 20], sizes = [12, 1], strides = [1, 1]} : vector<12x32xf32> to vector<12x1xf32>
    %c0_76 = arith.constant 0 : index
    %c20 = arith.constant 20 : index
    %c0_77 = arith.constant 0 : index
    %c0_78 = arith.constant 0 : index
    %170 = vector.load %arg4[%c0_76, %c20, %c0_77, %c0_78] : memref<1x32x12x32xbf16, #tpu.memory_space<vmem>>, vector<1x1x12x32xbf16>
    %171 = vector.shape_cast %170 : vector<1x1x12x32xbf16> to vector<12x32xbf16>
    %172 = arith.extf %171 : vector<12x32xbf16> to vector<12x32xf32>
    %173 = vector.broadcast %169 : vector<12x1xf32> to vector<12x32xf32>
    %174 = arith.mulf %173, %172 : vector<12x32xf32>
    %175 = arith.addf %168, %174 : vector<12x32xf32>
    %176 = vector.extract_strided_slice %27 {offsets = [0, 21], sizes = [12, 1], strides = [1, 1]} : vector<12x32xf32> to vector<12x1xf32>
    %c0_79 = arith.constant 0 : index
    %c21 = arith.constant 21 : index
    %c0_80 = arith.constant 0 : index
    %c0_81 = arith.constant 0 : index
    %177 = vector.load %arg4[%c0_79, %c21, %c0_80, %c0_81] : memref<1x32x12x32xbf16, #tpu.memory_space<vmem>>, vector<1x1x12x32xbf16>
    %178 = vector.shape_cast %177 : vector<1x1x12x32xbf16> to vector<12x32xbf16>
    %179 = arith.extf %178 : vector<12x32xbf16> to vector<12x32xf32>
    %180 = vector.broadcast %176 : vector<12x1xf32> to vector<12x32xf32>
    %181 = arith.mulf %180, %179 : vector<12x32xf32>
    %182 = arith.addf %175, %181 : vector<12x32xf32>
    %183 = vector.extract_strided_slice %27 {offsets = [0, 22], sizes = [12, 1], strides = [1, 1]} : vector<12x32xf32> to vector<12x1xf32>
    %c0_82 = arith.constant 0 : index
    %c22 = arith.constant 22 : index
    %c0_83 = arith.constant 0 : index
    %c0_84 = arith.constant 0 : index
    %184 = vector.load %arg4[%c0_82, %c22, %c0_83, %c0_84] : memref<1x32x12x32xbf16, #tpu.memory_space<vmem>>, vector<1x1x12x32xbf16>
    %185 = vector.shape_cast %184 : vector<1x1x12x32xbf16> to vector<12x32xbf16>
    %186 = arith.extf %185 : vector<12x32xbf16> to vector<12x32xf32>
    %187 = vector.broadcast %183 : vector<12x1xf32> to vector<12x32xf32>
    %188 = arith.mulf %187, %186 : vector<12x32xf32>
    %189 = arith.addf %182, %188 : vector<12x32xf32>
    %190 = vector.extract_strided_slice %27 {offsets = [0, 23], sizes = [12, 1], strides = [1, 1]} : vector<12x32xf32> to vector<12x1xf32>
    %c0_85 = arith.constant 0 : index
    %c23 = arith.constant 23 : index
    %c0_86 = arith.constant 0 : index
    %c0_87 = arith.constant 0 : index
    %191 = vector.load %arg4[%c0_85, %c23, %c0_86, %c0_87] : memref<1x32x12x32xbf16, #tpu.memory_space<vmem>>, vector<1x1x12x32xbf16>
    %192 = vector.shape_cast %191 : vector<1x1x12x32xbf16> to vector<12x32xbf16>
    %193 = arith.extf %192 : vector<12x32xbf16> to vector<12x32xf32>
    %194 = vector.broadcast %190 : vector<12x1xf32> to vector<12x32xf32>
    %195 = arith.mulf %194, %193 : vector<12x32xf32>
    %196 = arith.addf %189, %195 : vector<12x32xf32>
    %197 = vector.extract_strided_slice %27 {offsets = [0, 24], sizes = [12, 1], strides = [1, 1]} : vector<12x32xf32> to vector<12x1xf32>
    %c0_88 = arith.constant 0 : index
    %c24 = arith.constant 24 : index
    %c0_89 = arith.constant 0 : index
    %c0_90 = arith.constant 0 : index
    %198 = vector.load %arg4[%c0_88, %c24, %c0_89, %c0_90] : memref<1x32x12x32xbf16, #tpu.memory_space<vmem>>, vector<1x1x12x32xbf16>
    %199 = vector.shape_cast %198 : vector<1x1x12x32xbf16> to vector<12x32xbf16>
    %200 = arith.extf %199 : vector<12x32xbf16> to vector<12x32xf32>
    %201 = vector.broadcast %197 : vector<12x1xf32> to vector<12x32xf32>
    %202 = arith.mulf %201, %200 : vector<12x32xf32>
    %203 = arith.addf %196, %202 : vector<12x32xf32>
    %204 = vector.extract_strided_slice %27 {offsets = [0, 25], sizes = [12, 1], strides = [1, 1]} : vector<12x32xf32> to vector<12x1xf32>
    %c0_91 = arith.constant 0 : index
    %c25 = arith.constant 25 : index
    %c0_92 = arith.constant 0 : index
    %c0_93 = arith.constant 0 : index
    %205 = vector.load %arg4[%c0_91, %c25, %c0_92, %c0_93] : memref<1x32x12x32xbf16, #tpu.memory_space<vmem>>, vector<1x1x12x32xbf16>
    %206 = vector.shape_cast %205 : vector<1x1x12x32xbf16> to vector<12x32xbf16>
    %207 = arith.extf %206 : vector<12x32xbf16> to vector<12x32xf32>
    %208 = vector.broadcast %204 : vector<12x1xf32> to vector<12x32xf32>
    %209 = arith.mulf %208, %207 : vector<12x32xf32>
    %210 = arith.addf %203, %209 : vector<12x32xf32>
    %211 = vector.extract_strided_slice %27 {offsets = [0, 26], sizes = [12, 1], strides = [1, 1]} : vector<12x32xf32> to vector<12x1xf32>
    %c0_94 = arith.constant 0 : index
    %c26 = arith.constant 26 : index
    %c0_95 = arith.constant 0 : index
    %c0_96 = arith.constant 0 : index
    %212 = vector.load %arg4[%c0_94, %c26, %c0_95, %c0_96] : memref<1x32x12x32xbf16, #tpu.memory_space<vmem>>, vector<1x1x12x32xbf16>
    %213 = vector.shape_cast %212 : vector<1x1x12x32xbf16> to vector<12x32xbf16>
    %214 = arith.extf %213 : vector<12x32xbf16> to vector<12x32xf32>
    %215 = vector.broadcast %211 : vector<12x1xf32> to vector<12x32xf32>
    %216 = arith.mulf %215, %214 : vector<12x32xf32>
    %217 = arith.addf %210, %216 : vector<12x32xf32>
    %218 = vector.extract_strided_slice %27 {offsets = [0, 27], sizes = [12, 1], strides = [1, 1]} : vector<12x32xf32> to vector<12x1xf32>
    %c0_97 = arith.constant 0 : index
    %c27 = arith.constant 27 : index
    %c0_98 = arith.constant 0 : index
    %c0_99 = arith.constant 0 : index
    %219 = vector.load %arg4[%c0_97, %c27, %c0_98, %c0_99] : memref<1x32x12x32xbf16, #tpu.memory_space<vmem>>, vector<1x1x12x32xbf16>
    %220 = vector.shape_cast %219 : vector<1x1x12x32xbf16> to vector<12x32xbf16>
    %221 = arith.extf %220 : vector<12x32xbf16> to vector<12x32xf32>
    %222 = vector.broadcast %218 : vector<12x1xf32> to vector<12x32xf32>
    %223 = arith.mulf %222, %221 : vector<12x32xf32>
    %224 = arith.addf %217, %223 : vector<12x32xf32>
    %225 = vector.extract_strided_slice %27 {offsets = [0, 28], sizes = [12, 1], strides = [1, 1]} : vector<12x32xf32> to vector<12x1xf32>
    %c0_100 = arith.constant 0 : index
    %c28 = arith.constant 28 : index
    %c0_101 = arith.constant 0 : index
    %c0_102 = arith.constant 0 : index
    %226 = vector.load %arg4[%c0_100, %c28, %c0_101, %c0_102] : memref<1x32x12x32xbf16, #tpu.memory_space<vmem>>, vector<1x1x12x32xbf16>
    %227 = vector.shape_cast %226 : vector<1x1x12x32xbf16> to vector<12x32xbf16>
    %228 = arith.extf %227 : vector<12x32xbf16> to vector<12x32xf32>
    %229 = vector.broadcast %225 : vector<12x1xf32> to vector<12x32xf32>
    %230 = arith.mulf %229, %228 : vector<12x32xf32>
    %231 = arith.addf %224, %230 : vector<12x32xf32>
    %232 = vector.extract_strided_slice %27 {offsets = [0, 29], sizes = [12, 1], strides = [1, 1]} : vector<12x32xf32> to vector<12x1xf32>
    %c0_103 = arith.constant 0 : index
    %c29 = arith.constant 29 : index
    %c0_104 = arith.constant 0 : index
    %c0_105 = arith.constant 0 : index
    %233 = vector.load %arg4[%c0_103, %c29, %c0_104, %c0_105] : memref<1x32x12x32xbf16, #tpu.memory_space<vmem>>, vector<1x1x12x32xbf16>
    %234 = vector.shape_cast %233 : vector<1x1x12x32xbf16> to vector<12x32xbf16>
    %235 = arith.extf %234 : vector<12x32xbf16> to vector<12x32xf32>
    %236 = vector.broadcast %232 : vector<12x1xf32> to vector<12x32xf32>
    %237 = arith.mulf %236, %235 : vector<12x32xf32>
    %238 = arith.addf %231, %237 : vector<12x32xf32>
    %239 = vector.extract_strided_slice %27 {offsets = [0, 30], sizes = [12, 1], strides = [1, 1]} : vector<12x32xf32> to vector<12x1xf32>
    %c0_106 = arith.constant 0 : index
    %c30 = arith.constant 30 : index
    %c0_107 = arith.constant 0 : index
    %c0_108 = arith.constant 0 : index
    %240 = vector.load %arg4[%c0_106, %c30, %c0_107, %c0_108] : memref<1x32x12x32xbf16, #tpu.memory_space<vmem>>, vector<1x1x12x32xbf16>
    %241 = vector.shape_cast %240 : vector<1x1x12x32xbf16> to vector<12x32xbf16>
    %242 = arith.extf %241 : vector<12x32xbf16> to vector<12x32xf32>
    %243 = vector.broadcast %239 : vector<12x1xf32> to vector<12x32xf32>
    %244 = arith.mulf %243, %242 : vector<12x32xf32>
    %245 = arith.addf %238, %244 : vector<12x32xf32>
    %246 = vector.extract_strided_slice %27 {offsets = [0, 31], sizes = [12, 1], strides = [1, 1]} : vector<12x32xf32> to vector<12x1xf32>
    %c0_109 = arith.constant 0 : index
    %c31 = arith.constant 31 : index
    %c0_110 = arith.constant 0 : index
    %c0_111 = arith.constant 0 : index
    %247 = vector.load %arg4[%c0_109, %c31, %c0_110, %c0_111] : memref<1x32x12x32xbf16, #tpu.memory_space<vmem>>, vector<1x1x12x32xbf16>
    %248 = vector.shape_cast %247 : vector<1x1x12x32xbf16> to vector<12x32xbf16>
    %249 = arith.extf %248 : vector<12x32xbf16> to vector<12x32xf32>
    %250 = vector.broadcast %246 : vector<12x1xf32> to vector<12x32xf32>
    %251 = arith.mulf %250, %249 : vector<12x32xf32>
    %252 = arith.addf %245, %251 : vector<12x32xf32>
    %c0_112 = arith.constant 0 : index
    %c0_113 = arith.constant 0 : index
    %c0_114 = arith.constant 0 : index
    %253 = vector.load %arg5[%c0_112, %c0_113, %c0_114] : memref<1x12x32xf32, #tpu.memory_space<vmem>>, vector<1x12x32xf32>
    %254 = vector.shape_cast %253 : vector<1x12x32xf32> to vector<12x32xf32>
    %255 = arith.mulf %252, %254 : vector<12x32xf32>
    %c0_115 = arith.constant 0 : index
    %c0_116 = arith.constant 0 : index
    %c0_117 = arith.constant 0 : index
    %256 = vector.load %arg3[%c0_115, %c0_116, %c0_117] : memref<1x8x12xbf16, #tpu.memory_space<vmem>>, vector<1x8x12xbf16>
    %257 = vector.shape_cast %256 : vector<1x8x12xbf16> to vector<8x12xbf16>
    %258 = arith.truncf %255 : vector<12x32xf32> to vector<12x32xbf16>
    %cst_118 = arith.constant dense<0.000000e+00> : vector<8x32xf32>
    %259 = tpu.matmul %257, %258, %cst_118 {dimension_numbers = #tpu.dot_dimension_numbers<[1], [0], [0], [1], [0, 0, 1, 1], [], []>} : vector<8x12xbf16>, vector<12x32xbf16>, vector<8x32xf32> -> vector<8x32xf32>
    %c0_119 = arith.constant 0 : index
    %c0_120 = arith.constant 0 : index
    %260 = vector.load %arg8[%c0_119, %c0_120] : memref<32x32xbf16, #tpu.memory_space<vmem>>, vector<32x32xbf16>
    %261 = arith.truncf %259 : vector<8x32xf32> to vector<8x32xbf16>
    %cst_121 = arith.constant dense<0.000000e+00> : vector<8x32xf32>
    %262 = tpu.matmul %261, %260, %cst_121 {dimension_numbers = #tpu.dot_dimension_numbers<[1], [0], [0], [1], [0, 0, 1, 1], [], []>} : vector<8x32xbf16>, vector<32x32xbf16>, vector<8x32xf32> -> vector<8x32xf32>
    %c0_122 = arith.constant 0 : index
    %c0_123 = arith.constant 0 : index
    %263 = vector.load %arg9[%c0_122, %c0_123] : memref<1x32xf32, #tpu.memory_space<vmem>>, vector<1x32xf32>
    %264 = vector.broadcast %263 : vector<1x32xf32> to vector<8x32xf32>
    %265 = arith.addf %262, %264 : vector<8x32xf32>
    %266 = arith.addf %1, %265 : vector<8x32xf32>
    %c0_124 = arith.constant 0 : index
    %c0_125 = arith.constant 0 : index
    %c0_126 = arith.constant 0 : index
    %267 = vector.load %arg10[%c0_124, %c0_125, %c0_126] : memref<1x8x32xf32, #tpu.memory_space<vmem>>, vector<1x8x32xf32>
    %268 = vector.shape_cast %267 : vector<1x8x32xf32> to vector<8x32xf32>
    %269 = vector.shape_cast %266 : vector<8x32xf32> to vector<1x8x32xf32>
    tpu.vector_store %arg10[%c0_124, %c0_125, %c0_126], %269 {strides = array<i32>} : memref<1x8x32xf32, #tpu.memory_space<vmem>>, vector<1x8x32xf32>,
    return
  }
  func.func @transform_0(%arg0: i32) -> (i32, i32, i32) {
    %c0_i32 = arith.constant 0 : i32
    %c0_i32_0 = arith.constant 0 : i32
    %c0_i32_1 = arith.constant 0 : i32
    return %arg0, %c0_i32, %c0_i32_0 : i32, i32, i32
  }
  func.func @transform_1(%arg0: i32) -> (i32, i32, i32) {
    %c0_i32 = arith.constant 0 : i32
    %c0_i32_0 = arith.constant 0 : i32
    %c0_i32_1 = arith.constant 0 : i32
    return %arg0, %c0_i32, %c0_i32_0 : i32, i32, i32
  }
  func.func @transform_2(%arg0: i32) -> (i32, i32, i32) {
    %c0_i32 = arith.constant 0 : i32
    %c0_i32_0 = arith.constant 0 : i32
    %c0_i32_1 = arith.constant 0 : i32
    return %arg0, %c0_i32, %c0_i32_0 : i32, i32, i32
  }
  func.func @transform_3(%arg0: i32) -> (i32, i32, i32, i32) {
    %c0_i32 = arith.constant 0 : i32
    %c0_i32_0 = arith.constant 0 : i32
    %c0_i32_1 = arith.constant 0 : i32
    %c0_i32_2 = arith.constant 0 : i32
    return %arg0, %c0_i32, %c0_i32_0, %c0_i32_1 : i32, i32, i32, i32
  }
  func.func @transform_4(%arg0: i32) -> (i32, i32, i32) {
    %c0_i32 = arith.constant 0 : i32
    %c0_i32_0 = arith.constant 0 : i32
    %c0_i32_1 = arith.constant 0 : i32
    return %arg0, %c0_i32, %c0_i32_0 : i32, i32, i32
  }
  func.func @transform_5(%arg0: i32) -> (i32, i32) {
    %c0_i32 = arith.constant 0 : i32
    %c0_i32_0 = arith.constant 0 : i32
    %c0_i32_1 = arith.constant 0 : i32
    return %c0_i32, %c0_i32_0 : i32, i32
  }
  func.func @transform_6(%arg0: i32) -> (i32, i32) {
    %c0_i32 = arith.constant 0 : i32
    %c0_i32_0 = arith.constant 0 : i32
    %c0_i32_1 = arith.constant 0 : i32
    return %c0_i32, %c0_i32_0 : i32, i32
  }
  func.func @transform_7(%arg0: i32) -> (i32, i32) {
    %c0_i32 = arith.constant 0 : i32
    %c0_i32_0 = arith.constant 0 : i32
    %c0_i32_1 = arith.constant 0 : i32
    return %c0_i32, %c0_i32_0 : i32, i32
  }
  func.func @transform_8(%arg0: i32) -> (i32, i32) {
    %c0_i32 = arith.constant 0 : i32
    %c0_i32_0 = arith.constant 0 : i32
    %c0_i32_1 = arith.constant 0 : i32
    return %c0_i32, %c0_i32_0 : i32, i32
  }
  func.func @transform_9(%arg0: i32) -> (i32, i32, i32) {
    %c0_i32 = arith.constant 0 : i32
    %c0_i32_0 = arith.constant 0 : i32
    %c0_i32_1 = arith.constant 0 : i32
    return %arg0, %c0_i32, %c0_i32_0 : i32, i32, i32
  }
}

module attributes {stable_mosaic.version = 11 : i64} {
  func.func @_linear_kernel(%arg0: memref<10x4xf32, #tpu.memory_space<vmem>>, %arg1: memref<4x1024xf32, #tpu.memory_space<vmem>>, %arg2: memref<1x1024xf32, #tpu.memory_space<vmem>>, %arg3: memref<10x1024xf32, #tpu.memory_space<vmem>>) attributes {dimension_semantics = [], scalar_prefetch = 0 : i64, scratch_operands = 0 : i64, tpu.core_type = #tpu.core_type<tc>} {
    %c0 = arith.constant 0 : index
    %c0_0 = arith.constant 0 : index
    %0 = vector.load %arg0[%c0, %c0_0] : memref<10x4xf32, #tpu.memory_space<vmem>>, vector<10x4xf32>
    %c0_1 = arith.constant 0 : index
    %c0_2 = arith.constant 0 : index
    %1 = vector.load %arg1[%c0_1, %c0_2] : memref<4x1024xf32, #tpu.memory_space<vmem>>, vector<4x1024xf32>
    %2 = arith.truncf %0 : vector<10x4xf32> to vector<10x4xbf16>
    %3 = arith.truncf %1 : vector<4x1024xf32> to vector<4x1024xbf16>
    %cst = arith.constant dense<0.000000e+00> : vector<10x1024xf32>
    %4 = tpu.matmul %2, %3, %cst {dimension_numbers = #tpu.dot_dimension_numbers<[1], [0], [0], [1], [0, 0, 1, 1], [], []>} : vector<10x4xbf16>, vector<4x1024xbf16>, vector<10x1024xf32> -> vector<10x1024xf32>
    %c0_3 = arith.constant 0 : index
    %c0_4 = arith.constant 0 : index
    %5 = vector.load %arg2[%c0_3, %c0_4] : memref<1x1024xf32, #tpu.memory_space<vmem>>, vector<1x1024xf32>
    %6 = vector.broadcast %5 : vector<1x1024xf32> to vector<10x1024xf32>
    %7 = arith.addf %4, %6 : vector<10x1024xf32>
    %c0_5 = arith.constant 0 : index
    %c0_6 = arith.constant 0 : index
    %8 = vector.load %arg3[%c0_5, %c0_6] : memref<10x1024xf32, #tpu.memory_space<vmem>>, vector<10x1024xf32>
    tpu.vector_store %arg3[%c0_5, %c0_6], %7 {strides = array<i32>} : memref<10x1024xf32, #tpu.memory_space<vmem>>, vector<10x1024xf32>,
    return
  }
}

module attributes {stable_mosaic.version = 11 : i64} {
  func.func @_msg_sublayer_kernel(%arg0: i32, %arg1: memref<1x8x32xf32, #tpu.memory_space<vmem>>, %arg2: memref<1x10x8xbf16, #tpu.memory_space<vmem>>, %arg3: memref<1x8x10xbf16, #tpu.memory_space<vmem>>, %arg4: memref<1x32x10x32xbf16, #tpu.memory_space<vmem>>, %arg5: memref<1x32xf32, #tpu.memory_space<vmem>>, %arg6: memref<1x32xf32, #tpu.memory_space<vmem>>, %arg7: memref<32x32xbf16, #tpu.memory_space<vmem>>, %arg8: memref<1x32xf32, #tpu.memory_space<vmem>>, %arg9: memref<1x8x32xf32, #tpu.memory_space<vmem>>) attributes {dimension_semantics = [#tpu.dimension_semantics<parallel>], iteration_bounds = array<i64: 2>, scalar_prefetch = 0 : i64, scratch_operands = 0 : i64, tpu.core_type = #tpu.core_type<tc>, window_params = [{transform_indices = @transform_0, window_bounds = array<i64: 1, 8, 32>}, {transform_indices = @transform_1, window_bounds = array<i64: 1, 10, 8>}, {transform_indices = @transform_2, window_bounds = array<i64: 1, 8, 10>}, {transform_indices = @transform_3, window_bounds = array<i64: 1, 32, 10, 32>}, {pipeline_mode = #tpu.pipeline_mode<synchronous>, transform_indices = @transform_4, window_bounds = array<i64: 1, 32>}, {pipeline_mode = #tpu.pipeline_mode<synchronous>, transform_indices = @transform_5, window_bounds = array<i64: 1, 32>}, {pipeline_mode = #tpu.pipeline_mode<synchronous>, transform_indices = @transform_6, window_bounds = array<i64: 32, 32>}, {pipeline_mode = #tpu.pipeline_mode<synchronous>, transform_indices = @transform_7, window_bounds = array<i64: 1, 32>}, {transform_indices = @transform_8, window_bounds = array<i64: 1, 8, 32>}]} {
    %c0 = arith.constant 0 : index
    %c0_0 = arith.constant 0 : index
    %c0_1 = arith.constant 0 : index
    %0 = vector.load %arg1[%c0, %c0_0, %c0_1] : memref<1x8x32xf32, #tpu.memory_space<vmem>>, vector<1x8x32xf32>
    %1 = vector.shape_cast %0 : vector<1x8x32xf32> to vector<8x32xf32>
    %c0_2 = arith.constant 0 : index
    %c0_3 = arith.constant 0 : index
    %2 = vector.load %arg5[%c0_2, %c0_3] : memref<1x32xf32, #tpu.memory_space<vmem>>, vector<1x32xf32>
    %c0_4 = arith.constant 0 : index
    %c0_5 = arith.constant 0 : index
    %3 = vector.load %arg6[%c0_4, %c0_5] : memref<1x32xf32, #tpu.memory_space<vmem>>, vector<1x32xf32>
    %cst = arith.constant dense<0.000000e+00> : vector<8xf32>
    %4 = vector.multi_reduction <add>, %1, %cst [1] : vector<8x32xf32> to vector<8xf32>
    %5 = vector.shape_cast %4 : vector<8xf32> to vector<8x1xf32>
    %cst_6 = arith.constant 3.200000e+01 : f32
    %6 = vector.broadcast %cst_6 : f32 to vector<8x1xf32>
    %7 = arith.divf %5, %6 : vector<8x1xf32>
    %8 = vector.broadcast %7 : vector<8x1xf32> to vector<8x32xf32>
    %9 = arith.subf %1, %8 : vector<8x32xf32>
    %10 = arith.mulf %9, %9 : vector<8x32xf32>
    %cst_7 = arith.constant dense<0.000000e+00> : vector<8xf32>
    %11 = vector.multi_reduction <add>, %10, %cst_7 [1] : vector<8x32xf32> to vector<8xf32>
    %12 = vector.shape_cast %11 : vector<8xf32> to vector<8x1xf32>
    %cst_8 = arith.constant 3.200000e+01 : f32
    %13 = vector.broadcast %cst_8 : f32 to vector<8x1xf32>
    %14 = arith.divf %12, %13 : vector<8x1xf32>
    %cst_9 = arith.constant 9.99999997E-7 : f32
    %15 = vector.broadcast %cst_9 : f32 to vector<8x1xf32>
    %16 = arith.addf %14, %15 : vector<8x1xf32>
    %17 = math.rsqrt %16 : vector<8x1xf32>
    %18 = vector.broadcast %17 : vector<8x1xf32> to vector<8x32xf32>
    %19 = arith.mulf %9, %18 : vector<8x32xf32>
    %20 = vector.broadcast %2 : vector<1x32xf32> to vector<8x32xf32>
    %21 = arith.mulf %19, %20 : vector<8x32xf32>
    %22 = vector.broadcast %3 : vector<1x32xf32> to vector<8x32xf32>
    %23 = arith.addf %21, %22 : vector<8x32xf32>
    %c0_10 = arith.constant 0 : index
    %c0_11 = arith.constant 0 : index
    %c0_12 = arith.constant 0 : index
    %24 = vector.load %arg2[%c0_10, %c0_11, %c0_12] : memref<1x10x8xbf16, #tpu.memory_space<vmem>>, vector<1x10x8xbf16>
    %25 = vector.shape_cast %24 : vector<1x10x8xbf16> to vector<10x8xbf16>
    %26 = arith.truncf %23 : vector<8x32xf32> to vector<8x32xbf16>
    %cst_13 = arith.constant dense<0.000000e+00> : vector<10x32xf32>
    %27 = tpu.matmul %25, %26, %cst_13 {dimension_numbers = #tpu.dot_dimension_numbers<[1], [0], [0], [1], [0, 0, 1, 1], [], []>} : vector<10x8xbf16>, vector<8x32xbf16>, vector<10x32xf32> -> vector<10x32xf32>
    %cst_14 = arith.constant 0.000000e+00 : f32
    %28 = vector.broadcast %cst_14 : f32 to vector<10x32xf32>
    %29 = vector.extract_strided_slice %27 {offsets = [0, 0], sizes = [10, 1], strides = [1, 1]} : vector<10x32xf32> to vector<10x1xf32>
    %c0_15 = arith.constant 0 : index
    %c0_16 = arith.constant 0 : index
    %c0_17 = arith.constant 0 : index
    %c0_18 = arith.constant 0 : index
    %30 = vector.load %arg4[%c0_15, %c0_16, %c0_17, %c0_18] : memref<1x32x10x32xbf16, #tpu.memory_space<vmem>>, vector<1x1x10x32xbf16>
    %31 = vector.shape_cast %30 : vector<1x1x10x32xbf16> to vector<10x32xbf16>
    %32 = arith.extf %31 : vector<10x32xbf16> to vector<10x32xf32>
    %33 = vector.broadcast %29 : vector<10x1xf32> to vector<10x32xf32>
    %34 = arith.mulf %33, %32 : vector<10x32xf32>
    %35 = arith.addf %28, %34 : vector<10x32xf32>
    %36 = vector.extract_strided_slice %27 {offsets = [0, 1], sizes = [10, 1], strides = [1, 1]} : vector<10x32xf32> to vector<10x1xf32>
    %c0_19 = arith.constant 0 : index
    %c1 = arith.constant 1 : index
    %c0_20 = arith.constant 0 : index
    %c0_21 = arith.constant 0 : index
    %37 = vector.load %arg4[%c0_19, %c1, %c0_20, %c0_21] : memref<1x32x10x32xbf16, #tpu.memory_space<vmem>>, vector<1x1x10x32xbf16>
    %38 = vector.shape_cast %37 : vector<1x1x10x32xbf16> to vector<10x32xbf16>
    %39 = arith.extf %38 : vector<10x32xbf16> to vector<10x32xf32>
    %40 = vector.broadcast %36 : vector<10x1xf32> to vector<10x32xf32>
    %41 = arith.mulf %40, %39 : vector<10x32xf32>
    %42 = arith.addf %35, %41 : vector<10x32xf32>
    %43 = vector.extract_strided_slice %27 {offsets = [0, 2], sizes = [10, 1], strides = [1, 1]} : vector<10x32xf32> to vector<10x1xf32>
    %c0_22 = arith.constant 0 : index
    %c2 = arith.constant 2 : index
    %c0_23 = arith.constant 0 : index
    %c0_24 = arith.constant 0 : index
    %44 = vector.load %arg4[%c0_22, %c2, %c0_23, %c0_24] : memref<1x32x10x32xbf16, #tpu.memory_space<vmem>>, vector<1x1x10x32xbf16>
    %45 = vector.shape_cast %44 : vector<1x1x10x32xbf16> to vector<10x32xbf16>
    %46 = arith.extf %45 : vector<10x32xbf16> to vector<10x32xf32>
    %47 = vector.broadcast %43 : vector<10x1xf32> to vector<10x32xf32>
    %48 = arith.mulf %47, %46 : vector<10x32xf32>
    %49 = arith.addf %42, %48 : vector<10x32xf32>
    %50 = vector.extract_strided_slice %27 {offsets = [0, 3], sizes = [10, 1], strides = [1, 1]} : vector<10x32xf32> to vector<10x1xf32>
    %c0_25 = arith.constant 0 : index
    %c3 = arith.constant 3 : index
    %c0_26 = arith.constant 0 : index
    %c0_27 = arith.constant 0 : index
    %51 = vector.load %arg4[%c0_25, %c3, %c0_26, %c0_27] : memref<1x32x10x32xbf16, #tpu.memory_space<vmem>>, vector<1x1x10x32xbf16>
    %52 = vector.shape_cast %51 : vector<1x1x10x32xbf16> to vector<10x32xbf16>
    %53 = arith.extf %52 : vector<10x32xbf16> to vector<10x32xf32>
    %54 = vector.broadcast %50 : vector<10x1xf32> to vector<10x32xf32>
    %55 = arith.mulf %54, %53 : vector<10x32xf32>
    %56 = arith.addf %49, %55 : vector<10x32xf32>
    %57 = vector.extract_strided_slice %27 {offsets = [0, 4], sizes = [10, 1], strides = [1, 1]} : vector<10x32xf32> to vector<10x1xf32>
    %c0_28 = arith.constant 0 : index
    %c4 = arith.constant 4 : index
    %c0_29 = arith.constant 0 : index
    %c0_30 = arith.constant 0 : index
    %58 = vector.load %arg4[%c0_28, %c4, %c0_29, %c0_30] : memref<1x32x10x32xbf16, #tpu.memory_space<vmem>>, vector<1x1x10x32xbf16>
    %59 = vector.shape_cast %58 : vector<1x1x10x32xbf16> to vector<10x32xbf16>
    %60 = arith.extf %59 : vector<10x32xbf16> to vector<10x32xf32>
    %61 = vector.broadcast %57 : vector<10x1xf32> to vector<10x32xf32>
    %62 = arith.mulf %61, %60 : vector<10x32xf32>
    %63 = arith.addf %56, %62 : vector<10x32xf32>
    %64 = vector.extract_strided_slice %27 {offsets = [0, 5], sizes = [10, 1], strides = [1, 1]} : vector<10x32xf32> to vector<10x1xf32>
    %c0_31 = arith.constant 0 : index
    %c5 = arith.constant 5 : index
    %c0_32 = arith.constant 0 : index
    %c0_33 = arith.constant 0 : index
    %65 = vector.load %arg4[%c0_31, %c5, %c0_32, %c0_33] : memref<1x32x10x32xbf16, #tpu.memory_space<vmem>>, vector<1x1x10x32xbf16>
    %66 = vector.shape_cast %65 : vector<1x1x10x32xbf16> to vector<10x32xbf16>
    %67 = arith.extf %66 : vector<10x32xbf16> to vector<10x32xf32>
    %68 = vector.broadcast %64 : vector<10x1xf32> to vector<10x32xf32>
    %69 = arith.mulf %68, %67 : vector<10x32xf32>
    %70 = arith.addf %63, %69 : vector<10x32xf32>
    %71 = vector.extract_strided_slice %27 {offsets = [0, 6], sizes = [10, 1], strides = [1, 1]} : vector<10x32xf32> to vector<10x1xf32>
    %c0_34 = arith.constant 0 : index
    %c6 = arith.constant 6 : index
    %c0_35 = arith.constant 0 : index
    %c0_36 = arith.constant 0 : index
    %72 = vector.load %arg4[%c0_34, %c6, %c0_35, %c0_36] : memref<1x32x10x32xbf16, #tpu.memory_space<vmem>>, vector<1x1x10x32xbf16>
    %73 = vector.shape_cast %72 : vector<1x1x10x32xbf16> to vector<10x32xbf16>
    %74 = arith.extf %73 : vector<10x32xbf16> to vector<10x32xf32>
    %75 = vector.broadcast %71 : vector<10x1xf32> to vector<10x32xf32>
    %76 = arith.mulf %75, %74 : vector<10x32xf32>
    %77 = arith.addf %70, %76 : vector<10x32xf32>
    %78 = vector.extract_strided_slice %27 {offsets = [0, 7], sizes = [10, 1], strides = [1, 1]} : vector<10x32xf32> to vector<10x1xf32>
    %c0_37 = arith.constant 0 : index
    %c7 = arith.constant 7 : index
    %c0_38 = arith.constant 0 : index
    %c0_39 = arith.constant 0 : index
    %79 = vector.load %arg4[%c0_37, %c7, %c0_38, %c0_39] : memref<1x32x10x32xbf16, #tpu.memory_space<vmem>>, vector<1x1x10x32xbf16>
    %80 = vector.shape_cast %79 : vector<1x1x10x32xbf16> to vector<10x32xbf16>
    %81 = arith.extf %80 : vector<10x32xbf16> to vector<10x32xf32>
    %82 = vector.broadcast %78 : vector<10x1xf32> to vector<10x32xf32>
    %83 = arith.mulf %82, %81 : vector<10x32xf32>
    %84 = arith.addf %77, %83 : vector<10x32xf32>
    %85 = vector.extract_strided_slice %27 {offsets = [0, 8], sizes = [10, 1], strides = [1, 1]} : vector<10x32xf32> to vector<10x1xf32>
    %c0_40 = arith.constant 0 : index
    %c8 = arith.constant 8 : index
    %c0_41 = arith.constant 0 : index
    %c0_42 = arith.constant 0 : index
    %86 = vector.load %arg4[%c0_40, %c8, %c0_41, %c0_42] : memref<1x32x10x32xbf16, #tpu.memory_space<vmem>>, vector<1x1x10x32xbf16>
    %87 = vector.shape_cast %86 : vector<1x1x10x32xbf16> to vector<10x32xbf16>
    %88 = arith.extf %87 : vector<10x32xbf16> to vector<10x32xf32>
    %89 = vector.broadcast %85 : vector<10x1xf32> to vector<10x32xf32>
    %90 = arith.mulf %89, %88 : vector<10x32xf32>
    %91 = arith.addf %84, %90 : vector<10x32xf32>
    %92 = vector.extract_strided_slice %27 {offsets = [0, 9], sizes = [10, 1], strides = [1, 1]} : vector<10x32xf32> to vector<10x1xf32>
    %c0_43 = arith.constant 0 : index
    %c9 = arith.constant 9 : index
    %c0_44 = arith.constant 0 : index
    %c0_45 = arith.constant 0 : index
    %93 = vector.load %arg4[%c0_43, %c9, %c0_44, %c0_45] : memref<1x32x10x32xbf16, #tpu.memory_space<vmem>>, vector<1x1x10x32xbf16>
    %94 = vector.shape_cast %93 : vector<1x1x10x32xbf16> to vector<10x32xbf16>
    %95 = arith.extf %94 : vector<10x32xbf16> to vector<10x32xf32>
    %96 = vector.broadcast %92 : vector<10x1xf32> to vector<10x32xf32>
    %97 = arith.mulf %96, %95 : vector<10x32xf32>
    %98 = arith.addf %91, %97 : vector<10x32xf32>
    %99 = vector.extract_strided_slice %27 {offsets = [0, 10], sizes = [10, 1], strides = [1, 1]} : vector<10x32xf32> to vector<10x1xf32>
    %c0_46 = arith.constant 0 : index
    %c10 = arith.constant 10 : index
    %c0_47 = arith.constant 0 : index
    %c0_48 = arith.constant 0 : index
    %100 = vector.load %arg4[%c0_46, %c10, %c0_47, %c0_48] : memref<1x32x10x32xbf16, #tpu.memory_space<vmem>>, vector<1x1x10x32xbf16>
    %101 = vector.shape_cast %100 : vector<1x1x10x32xbf16> to vector<10x32xbf16>
    %102 = arith.extf %101 : vector<10x32xbf16> to vector<10x32xf32>
    %103 = vector.broadcast %99 : vector<10x1xf32> to vector<10x32xf32>
    %104 = arith.mulf %103, %102 : vector<10x32xf32>
    %105 = arith.addf %98, %104 : vector<10x32xf32>
    %106 = vector.extract_strided_slice %27 {offsets = [0, 11], sizes = [10, 1], strides = [1, 1]} : vector<10x32xf32> to vector<10x1xf32>
    %c0_49 = arith.constant 0 : index
    %c11 = arith.constant 11 : index
    %c0_50 = arith.constant 0 : index
    %c0_51 = arith.constant 0 : index
    %107 = vector.load %arg4[%c0_49, %c11, %c0_50, %c0_51] : memref<1x32x10x32xbf16, #tpu.memory_space<vmem>>, vector<1x1x10x32xbf16>
    %108 = vector.shape_cast %107 : vector<1x1x10x32xbf16> to vector<10x32xbf16>
    %109 = arith.extf %108 : vector<10x32xbf16> to vector<10x32xf32>
    %110 = vector.broadcast %106 : vector<10x1xf32> to vector<10x32xf32>
    %111 = arith.mulf %110, %109 : vector<10x32xf32>
    %112 = arith.addf %105, %111 : vector<10x32xf32>
    %113 = vector.extract_strided_slice %27 {offsets = [0, 12], sizes = [10, 1], strides = [1, 1]} : vector<10x32xf32> to vector<10x1xf32>
    %c0_52 = arith.constant 0 : index
    %c12 = arith.constant 12 : index
    %c0_53 = arith.constant 0 : index
    %c0_54 = arith.constant 0 : index
    %114 = vector.load %arg4[%c0_52, %c12, %c0_53, %c0_54] : memref<1x32x10x32xbf16, #tpu.memory_space<vmem>>, vector<1x1x10x32xbf16>
    %115 = vector.shape_cast %114 : vector<1x1x10x32xbf16> to vector<10x32xbf16>
    %116 = arith.extf %115 : vector<10x32xbf16> to vector<10x32xf32>
    %117 = vector.broadcast %113 : vector<10x1xf32> to vector<10x32xf32>
    %118 = arith.mulf %117, %116 : vector<10x32xf32>
    %119 = arith.addf %112, %118 : vector<10x32xf32>
    %120 = vector.extract_strided_slice %27 {offsets = [0, 13], sizes = [10, 1], strides = [1, 1]} : vector<10x32xf32> to vector<10x1xf32>
    %c0_55 = arith.constant 0 : index
    %c13 = arith.constant 13 : index
    %c0_56 = arith.constant 0 : index
    %c0_57 = arith.constant 0 : index
    %121 = vector.load %arg4[%c0_55, %c13, %c0_56, %c0_57] : memref<1x32x10x32xbf16, #tpu.memory_space<vmem>>, vector<1x1x10x32xbf16>
    %122 = vector.shape_cast %121 : vector<1x1x10x32xbf16> to vector<10x32xbf16>
    %123 = arith.extf %122 : vector<10x32xbf16> to vector<10x32xf32>
    %124 = vector.broadcast %120 : vector<10x1xf32> to vector<10x32xf32>
    %125 = arith.mulf %124, %123 : vector<10x32xf32>
    %126 = arith.addf %119, %125 : vector<10x32xf32>
    %127 = vector.extract_strided_slice %27 {offsets = [0, 14], sizes = [10, 1], strides = [1, 1]} : vector<10x32xf32> to vector<10x1xf32>
    %c0_58 = arith.constant 0 : index
    %c14 = arith.constant 14 : index
    %c0_59 = arith.constant 0 : index
    %c0_60 = arith.constant 0 : index
    %128 = vector.load %arg4[%c0_58, %c14, %c0_59, %c0_60] : memref<1x32x10x32xbf16, #tpu.memory_space<vmem>>, vector<1x1x10x32xbf16>
    %129 = vector.shape_cast %128 : vector<1x1x10x32xbf16> to vector<10x32xbf16>
    %130 = arith.extf %129 : vector<10x32xbf16> to vector<10x32xf32>
    %131 = vector.broadcast %127 : vector<10x1xf32> to vector<10x32xf32>
    %132 = arith.mulf %131, %130 : vector<10x32xf32>
    %133 = arith.addf %126, %132 : vector<10x32xf32>
    %134 = vector.extract_strided_slice %27 {offsets = [0, 15], sizes = [10, 1], strides = [1, 1]} : vector<10x32xf32> to vector<10x1xf32>
    %c0_61 = arith.constant 0 : index
    %c15 = arith.constant 15 : index
    %c0_62 = arith.constant 0 : index
    %c0_63 = arith.constant 0 : index
    %135 = vector.load %arg4[%c0_61, %c15, %c0_62, %c0_63] : memref<1x32x10x32xbf16, #tpu.memory_space<vmem>>, vector<1x1x10x32xbf16>
    %136 = vector.shape_cast %135 : vector<1x1x10x32xbf16> to vector<10x32xbf16>
    %137 = arith.extf %136 : vector<10x32xbf16> to vector<10x32xf32>
    %138 = vector.broadcast %134 : vector<10x1xf32> to vector<10x32xf32>
    %139 = arith.mulf %138, %137 : vector<10x32xf32>
    %140 = arith.addf %133, %139 : vector<10x32xf32>
    %141 = vector.extract_strided_slice %27 {offsets = [0, 16], sizes = [10, 1], strides = [1, 1]} : vector<10x32xf32> to vector<10x1xf32>
    %c0_64 = arith.constant 0 : index
    %c16 = arith.constant 16 : index
    %c0_65 = arith.constant 0 : index
    %c0_66 = arith.constant 0 : index
    %142 = vector.load %arg4[%c0_64, %c16, %c0_65, %c0_66] : memref<1x32x10x32xbf16, #tpu.memory_space<vmem>>, vector<1x1x10x32xbf16>
    %143 = vector.shape_cast %142 : vector<1x1x10x32xbf16> to vector<10x32xbf16>
    %144 = arith.extf %143 : vector<10x32xbf16> to vector<10x32xf32>
    %145 = vector.broadcast %141 : vector<10x1xf32> to vector<10x32xf32>
    %146 = arith.mulf %145, %144 : vector<10x32xf32>
    %147 = arith.addf %140, %146 : vector<10x32xf32>
    %148 = vector.extract_strided_slice %27 {offsets = [0, 17], sizes = [10, 1], strides = [1, 1]} : vector<10x32xf32> to vector<10x1xf32>
    %c0_67 = arith.constant 0 : index
    %c17 = arith.constant 17 : index
    %c0_68 = arith.constant 0 : index
    %c0_69 = arith.constant 0 : index
    %149 = vector.load %arg4[%c0_67, %c17, %c0_68, %c0_69] : memref<1x32x10x32xbf16, #tpu.memory_space<vmem>>, vector<1x1x10x32xbf16>
    %150 = vector.shape_cast %149 : vector<1x1x10x32xbf16> to vector<10x32xbf16>
    %151 = arith.extf %150 : vector<10x32xbf16> to vector<10x32xf32>
    %152 = vector.broadcast %148 : vector<10x1xf32> to vector<10x32xf32>
    %153 = arith.mulf %152, %151 : vector<10x32xf32>
    %154 = arith.addf %147, %153 : vector<10x32xf32>
    %155 = vector.extract_strided_slice %27 {offsets = [0, 18], sizes = [10, 1], strides = [1, 1]} : vector<10x32xf32> to vector<10x1xf32>
    %c0_70 = arith.constant 0 : index
    %c18 = arith.constant 18 : index
    %c0_71 = arith.constant 0 : index
    %c0_72 = arith.constant 0 : index
    %156 = vector.load %arg4[%c0_70, %c18, %c0_71, %c0_72] : memref<1x32x10x32xbf16, #tpu.memory_space<vmem>>, vector<1x1x10x32xbf16>
    %157 = vector.shape_cast %156 : vector<1x1x10x32xbf16> to vector<10x32xbf16>
    %158 = arith.extf %157 : vector<10x32xbf16> to vector<10x32xf32>
    %159 = vector.broadcast %155 : vector<10x1xf32> to vector<10x32xf32>
    %160 = arith.mulf %159, %158 : vector<10x32xf32>
    %161 = arith.addf %154, %160 : vector<10x32xf32>
    %162 = vector.extract_strided_slice %27 {offsets = [0, 19], sizes = [10, 1], strides = [1, 1]} : vector<10x32xf32> to vector<10x1xf32>
    %c0_73 = arith.constant 0 : index
    %c19 = arith.constant 19 : index
    %c0_74 = arith.constant 0 : index
    %c0_75 = arith.constant 0 : index
    %163 = vector.load %arg4[%c0_73, %c19, %c0_74, %c0_75] : memref<1x32x10x32xbf16, #tpu.memory_space<vmem>>, vector<1x1x10x32xbf16>
    %164 = vector.shape_cast %163 : vector<1x1x10x32xbf16> to vector<10x32xbf16>
    %165 = arith.extf %164 : vector<10x32xbf16> to vector<10x32xf32>
    %166 = vector.broadcast %162 : vector<10x1xf32> to vector<10x32xf32>
    %167 = arith.mulf %166, %165 : vector<10x32xf32>
    %168 = arith.addf %161, %167 : vector<10x32xf32>
    %169 = vector.extract_strided_slice %27 {offsets = [0, 20], sizes = [10, 1], strides = [1, 1]} : vector<10x32xf32> to vector<10x1xf32>
    %c0_76 = arith.constant 0 : index
    %c20 = arith.constant 20 : index
    %c0_77 = arith.constant 0 : index
    %c0_78 = arith.constant 0 : index
    %170 = vector.load %arg4[%c0_76, %c20, %c0_77, %c0_78] : memref<1x32x10x32xbf16, #tpu.memory_space<vmem>>, vector<1x1x10x32xbf16>
    %171 = vector.shape_cast %170 : vector<1x1x10x32xbf16> to vector<10x32xbf16>
    %172 = arith.extf %171 : vector<10x32xbf16> to vector<10x32xf32>
    %173 = vector.broadcast %169 : vector<10x1xf32> to vector<10x32xf32>
    %174 = arith.mulf %173, %172 : vector<10x32xf32>
    %175 = arith.addf %168, %174 : vector<10x32xf32>
    %176 = vector.extract_strided_slice %27 {offsets = [0, 21], sizes = [10, 1], strides = [1, 1]} : vector<10x32xf32> to vector<10x1xf32>
    %c0_79 = arith.constant 0 : index
    %c21 = arith.constant 21 : index
    %c0_80 = arith.constant 0 : index
    %c0_81 = arith.constant 0 : index
    %177 = vector.load %arg4[%c0_79, %c21, %c0_80, %c0_81] : memref<1x32x10x32xbf16, #tpu.memory_space<vmem>>, vector<1x1x10x32xbf16>
    %178 = vector.shape_cast %177 : vector<1x1x10x32xbf16> to vector<10x32xbf16>
    %179 = arith.extf %178 : vector<10x32xbf16> to vector<10x32xf32>
    %180 = vector.broadcast %176 : vector<10x1xf32> to vector<10x32xf32>
    %181 = arith.mulf %180, %179 : vector<10x32xf32>
    %182 = arith.addf %175, %181 : vector<10x32xf32>
    %183 = vector.extract_strided_slice %27 {offsets = [0, 22], sizes = [10, 1], strides = [1, 1]} : vector<10x32xf32> to vector<10x1xf32>
    %c0_82 = arith.constant 0 : index
    %c22 = arith.constant 22 : index
    %c0_83 = arith.constant 0 : index
    %c0_84 = arith.constant 0 : index
    %184 = vector.load %arg4[%c0_82, %c22, %c0_83, %c0_84] : memref<1x32x10x32xbf16, #tpu.memory_space<vmem>>, vector<1x1x10x32xbf16>
    %185 = vector.shape_cast %184 : vector<1x1x10x32xbf16> to vector<10x32xbf16>
    %186 = arith.extf %185 : vector<10x32xbf16> to vector<10x32xf32>
    %187 = vector.broadcast %183 : vector<10x1xf32> to vector<10x32xf32>
    %188 = arith.mulf %187, %186 : vector<10x32xf32>
    %189 = arith.addf %182, %188 : vector<10x32xf32>
    %190 = vector.extract_strided_slice %27 {offsets = [0, 23], sizes = [10, 1], strides = [1, 1]} : vector<10x32xf32> to vector<10x1xf32>
    %c0_85 = arith.constant 0 : index
    %c23 = arith.constant 23 : index
    %c0_86 = arith.constant 0 : index
    %c0_87 = arith.constant 0 : index
    %191 = vector.load %arg4[%c0_85, %c23, %c0_86, %c0_87] : memref<1x32x10x32xbf16, #tpu.memory_space<vmem>>, vector<1x1x10x32xbf16>
    %192 = vector.shape_cast %191 : vector<1x1x10x32xbf16> to vector<10x32xbf16>
    %193 = arith.extf %192 : vector<10x32xbf16> to vector<10x32xf32>
    %194 = vector.broadcast %190 : vector<10x1xf32> to vector<10x32xf32>
    %195 = arith.mulf %194, %193 : vector<10x32xf32>
    %196 = arith.addf %189, %195 : vector<10x32xf32>
    %197 = vector.extract_strided_slice %27 {offsets = [0, 24], sizes = [10, 1], strides = [1, 1]} : vector<10x32xf32> to vector<10x1xf32>
    %c0_88 = arith.constant 0 : index
    %c24 = arith.constant 24 : index
    %c0_89 = arith.constant 0 : index
    %c0_90 = arith.constant 0 : index
    %198 = vector.load %arg4[%c0_88, %c24, %c0_89, %c0_90] : memref<1x32x10x32xbf16, #tpu.memory_space<vmem>>, vector<1x1x10x32xbf16>
    %199 = vector.shape_cast %198 : vector<1x1x10x32xbf16> to vector<10x32xbf16>
    %200 = arith.extf %199 : vector<10x32xbf16> to vector<10x32xf32>
    %201 = vector.broadcast %197 : vector<10x1xf32> to vector<10x32xf32>
    %202 = arith.mulf %201, %200 : vector<10x32xf32>
    %203 = arith.addf %196, %202 : vector<10x32xf32>
    %204 = vector.extract_strided_slice %27 {offsets = [0, 25], sizes = [10, 1], strides = [1, 1]} : vector<10x32xf32> to vector<10x1xf32>
    %c0_91 = arith.constant 0 : index
    %c25 = arith.constant 25 : index
    %c0_92 = arith.constant 0 : index
    %c0_93 = arith.constant 0 : index
    %205 = vector.load %arg4[%c0_91, %c25, %c0_92, %c0_93] : memref<1x32x10x32xbf16, #tpu.memory_space<vmem>>, vector<1x1x10x32xbf16>
    %206 = vector.shape_cast %205 : vector<1x1x10x32xbf16> to vector<10x32xbf16>
    %207 = arith.extf %206 : vector<10x32xbf16> to vector<10x32xf32>
    %208 = vector.broadcast %204 : vector<10x1xf32> to vector<10x32xf32>
    %209 = arith.mulf %208, %207 : vector<10x32xf32>
    %210 = arith.addf %203, %209 : vector<10x32xf32>
    %211 = vector.extract_strided_slice %27 {offsets = [0, 26], sizes = [10, 1], strides = [1, 1]} : vector<10x32xf32> to vector<10x1xf32>
    %c0_94 = arith.constant 0 : index
    %c26 = arith.constant 26 : index
    %c0_95 = arith.constant 0 : index
    %c0_96 = arith.constant 0 : index
    %212 = vector.load %arg4[%c0_94, %c26, %c0_95, %c0_96] : memref<1x32x10x32xbf16, #tpu.memory_space<vmem>>, vector<1x1x10x32xbf16>
    %213 = vector.shape_cast %212 : vector<1x1x10x32xbf16> to vector<10x32xbf16>
    %214 = arith.extf %213 : vector<10x32xbf16> to vector<10x32xf32>
    %215 = vector.broadcast %211 : vector<10x1xf32> to vector<10x32xf32>
    %216 = arith.mulf %215, %214 : vector<10x32xf32>
    %217 = arith.addf %210, %216 : vector<10x32xf32>
    %218 = vector.extract_strided_slice %27 {offsets = [0, 27], sizes = [10, 1], strides = [1, 1]} : vector<10x32xf32> to vector<10x1xf32>
    %c0_97 = arith.constant 0 : index
    %c27 = arith.constant 27 : index
    %c0_98 = arith.constant 0 : index
    %c0_99 = arith.constant 0 : index
    %219 = vector.load %arg4[%c0_97, %c27, %c0_98, %c0_99] : memref<1x32x10x32xbf16, #tpu.memory_space<vmem>>, vector<1x1x10x32xbf16>
    %220 = vector.shape_cast %219 : vector<1x1x10x32xbf16> to vector<10x32xbf16>
    %221 = arith.extf %220 : vector<10x32xbf16> to vector<10x32xf32>
    %222 = vector.broadcast %218 : vector<10x1xf32> to vector<10x32xf32>
    %223 = arith.mulf %222, %221 : vector<10x32xf32>
    %224 = arith.addf %217, %223 : vector<10x32xf32>
    %225 = vector.extract_strided_slice %27 {offsets = [0, 28], sizes = [10, 1], strides = [1, 1]} : vector<10x32xf32> to vector<10x1xf32>
    %c0_100 = arith.constant 0 : index
    %c28 = arith.constant 28 : index
    %c0_101 = arith.constant 0 : index
    %c0_102 = arith.constant 0 : index
    %226 = vector.load %arg4[%c0_100, %c28, %c0_101, %c0_102] : memref<1x32x10x32xbf16, #tpu.memory_space<vmem>>, vector<1x1x10x32xbf16>
    %227 = vector.shape_cast %226 : vector<1x1x10x32xbf16> to vector<10x32xbf16>
    %228 = arith.extf %227 : vector<10x32xbf16> to vector<10x32xf32>
    %229 = vector.broadcast %225 : vector<10x1xf32> to vector<10x32xf32>
    %230 = arith.mulf %229, %228 : vector<10x32xf32>
    %231 = arith.addf %224, %230 : vector<10x32xf32>
    %232 = vector.extract_strided_slice %27 {offsets = [0, 29], sizes = [10, 1], strides = [1, 1]} : vector<10x32xf32> to vector<10x1xf32>
    %c0_103 = arith.constant 0 : index
    %c29 = arith.constant 29 : index
    %c0_104 = arith.constant 0 : index
    %c0_105 = arith.constant 0 : index
    %233 = vector.load %arg4[%c0_103, %c29, %c0_104, %c0_105] : memref<1x32x10x32xbf16, #tpu.memory_space<vmem>>, vector<1x1x10x32xbf16>
    %234 = vector.shape_cast %233 : vector<1x1x10x32xbf16> to vector<10x32xbf16>
    %235 = arith.extf %234 : vector<10x32xbf16> to vector<10x32xf32>
    %236 = vector.broadcast %232 : vector<10x1xf32> to vector<10x32xf32>
    %237 = arith.mulf %236, %235 : vector<10x32xf32>
    %238 = arith.addf %231, %237 : vector<10x32xf32>
    %239 = vector.extract_strided_slice %27 {offsets = [0, 30], sizes = [10, 1], strides = [1, 1]} : vector<10x32xf32> to vector<10x1xf32>
    %c0_106 = arith.constant 0 : index
    %c30 = arith.constant 30 : index
    %c0_107 = arith.constant 0 : index
    %c0_108 = arith.constant 0 : index
    %240 = vector.load %arg4[%c0_106, %c30, %c0_107, %c0_108] : memref<1x32x10x32xbf16, #tpu.memory_space<vmem>>, vector<1x1x10x32xbf16>
    %241 = vector.shape_cast %240 : vector<1x1x10x32xbf16> to vector<10x32xbf16>
    %242 = arith.extf %241 : vector<10x32xbf16> to vector<10x32xf32>
    %243 = vector.broadcast %239 : vector<10x1xf32> to vector<10x32xf32>
    %244 = arith.mulf %243, %242 : vector<10x32xf32>
    %245 = arith.addf %238, %244 : vector<10x32xf32>
    %246 = vector.extract_strided_slice %27 {offsets = [0, 31], sizes = [10, 1], strides = [1, 1]} : vector<10x32xf32> to vector<10x1xf32>
    %c0_109 = arith.constant 0 : index
    %c31 = arith.constant 31 : index
    %c0_110 = arith.constant 0 : index
    %c0_111 = arith.constant 0 : index
    %247 = vector.load %arg4[%c0_109, %c31, %c0_110, %c0_111] : memref<1x32x10x32xbf16, #tpu.memory_space<vmem>>, vector<1x1x10x32xbf16>
    %248 = vector.shape_cast %247 : vector<1x1x10x32xbf16> to vector<10x32xbf16>
    %249 = arith.extf %248 : vector<10x32xbf16> to vector<10x32xf32>
    %250 = vector.broadcast %246 : vector<10x1xf32> to vector<10x32xf32>
    %251 = arith.mulf %250, %249 : vector<10x32xf32>
    %252 = arith.addf %245, %251 : vector<10x32xf32>
    %c0_112 = arith.constant 0 : index
    %c0_113 = arith.constant 0 : index
    %c0_114 = arith.constant 0 : index
    %253 = vector.load %arg3[%c0_112, %c0_113, %c0_114] : memref<1x8x10xbf16, #tpu.memory_space<vmem>>, vector<1x8x10xbf16>
    %254 = vector.shape_cast %253 : vector<1x8x10xbf16> to vector<8x10xbf16>
    %255 = arith.truncf %252 : vector<10x32xf32> to vector<10x32xbf16>
    %cst_115 = arith.constant dense<0.000000e+00> : vector<8x32xf32>
    %256 = tpu.matmul %254, %255, %cst_115 {dimension_numbers = #tpu.dot_dimension_numbers<[1], [0], [0], [1], [0, 0, 1, 1], [], []>} : vector<8x10xbf16>, vector<10x32xbf16>, vector<8x32xf32> -> vector<8x32xf32>
    %c0_116 = arith.constant 0 : index
    %c0_117 = arith.constant 0 : index
    %257 = vector.load %arg7[%c0_116, %c0_117] : memref<32x32xbf16, #tpu.memory_space<vmem>>, vector<32x32xbf16>
    %258 = arith.truncf %256 : vector<8x32xf32> to vector<8x32xbf16>
    %cst_118 = arith.constant dense<0.000000e+00> : vector<8x32xf32>
    %259 = tpu.matmul %258, %257, %cst_118 {dimension_numbers = #tpu.dot_dimension_numbers<[1], [0], [0], [1], [0, 0, 1, 1], [], []>} : vector<8x32xbf16>, vector<32x32xbf16>, vector<8x32xf32> -> vector<8x32xf32>
    %c0_119 = arith.constant 0 : index
    %c0_120 = arith.constant 0 : index
    %260 = vector.load %arg8[%c0_119, %c0_120] : memref<1x32xf32, #tpu.memory_space<vmem>>, vector<1x32xf32>
    %261 = vector.broadcast %260 : vector<1x32xf32> to vector<8x32xf32>
    %262 = arith.addf %259, %261 : vector<8x32xf32>
    %263 = arith.addf %1, %262 : vector<8x32xf32>
    %c0_121 = arith.constant 0 : index
    %c0_122 = arith.constant 0 : index
    %c0_123 = arith.constant 0 : index
    %264 = vector.load %arg9[%c0_121, %c0_122, %c0_123] : memref<1x8x32xf32, #tpu.memory_space<vmem>>, vector<1x8x32xf32>
    %265 = vector.shape_cast %264 : vector<1x8x32xf32> to vector<8x32xf32>
    %266 = vector.shape_cast %263 : vector<8x32xf32> to vector<1x8x32xf32>
    tpu.vector_store %arg9[%c0_121, %c0_122, %c0_123], %266 {strides = array<i32>} : memref<1x8x32xf32, #tpu.memory_space<vmem>>, vector<1x8x32xf32>,
    return
  }
  func.func @transform_0(%arg0: i32) -> (i32, i32, i32) {
    %c0_i32 = arith.constant 0 : i32
    %c0_i32_0 = arith.constant 0 : i32
    %c0_i32_1 = arith.constant 0 : i32
    return %arg0, %c0_i32, %c0_i32_0 : i32, i32, i32
  }
  func.func @transform_1(%arg0: i32) -> (i32, i32, i32) {
    %c0_i32 = arith.constant 0 : i32
    %c0_i32_0 = arith.constant 0 : i32
    %c0_i32_1 = arith.constant 0 : i32
    return %arg0, %c0_i32, %c0_i32_0 : i32, i32, i32
  }
  func.func @transform_2(%arg0: i32) -> (i32, i32, i32) {
    %c0_i32 = arith.constant 0 : i32
    %c0_i32_0 = arith.constant 0 : i32
    %c0_i32_1 = arith.constant 0 : i32
    return %arg0, %c0_i32, %c0_i32_0 : i32, i32, i32
  }
  func.func @transform_3(%arg0: i32) -> (i32, i32, i32, i32) {
    %c0_i32 = arith.constant 0 : i32
    %c0_i32_0 = arith.constant 0 : i32
    %c0_i32_1 = arith.constant 0 : i32
    %c0_i32_2 = arith.constant 0 : i32
    return %arg0, %c0_i32, %c0_i32_0, %c0_i32_1 : i32, i32, i32, i32
  }
  func.func @transform_4(%arg0: i32) -> (i32, i32) {
    %c0_i32 = arith.constant 0 : i32
    %c0_i32_0 = arith.constant 0 : i32
    %c0_i32_1 = arith.constant 0 : i32
    return %c0_i32, %c0_i32_0 : i32, i32
  }
  func.func @transform_5(%arg0: i32) -> (i32, i32) {
    %c0_i32 = arith.constant 0 : i32
    %c0_i32_0 = arith.constant 0 : i32
    %c0_i32_1 = arith.constant 0 : i32
    return %c0_i32, %c0_i32_0 : i32, i32
  }
  func.func @transform_6(%arg0: i32) -> (i32, i32) {
    %c0_i32 = arith.constant 0 : i32
    %c0_i32_0 = arith.constant 0 : i32
    %c0_i32_1 = arith.constant 0 : i32
    return %c0_i32, %c0_i32_0 : i32, i32
  }
  func.func @transform_7(%arg0: i32) -> (i32, i32) {
    %c0_i32 = arith.constant 0 : i32
    %c0_i32_0 = arith.constant 0 : i32
    %c0_i32_1 = arith.constant 0 : i32
    return %c0_i32, %c0_i32_0 : i32, i32
  }
  func.func @transform_8(%arg0: i32) -> (i32, i32, i32) {
    %c0_i32 = arith.constant 0 : i32
    %c0_i32_0 = arith.constant 0 : i32
    %c0_i32_1 = arith.constant 0 : i32
    return %arg0, %c0_i32, %c0_i32_0 : i32, i32, i32
  }
}

module attributes {stable_mosaic.version = 11 : i64} {
  func.func @_attending_layer_kernel(%arg0: i32, %arg1: memref<1x8x32xf32, #tpu.memory_space<vmem>>, %arg2: memref<1x1x8xf32, #tpu.memory_space<vmem>>, %arg3: memref<1x32xf32, #tpu.memory_space<vmem>>, %arg4: memref<1x32xf32, #tpu.memory_space<vmem>>, %arg5: memref<32x96xbf16, #tpu.memory_space<vmem>>, %arg6: memref<1x96xf32, #tpu.memory_space<vmem>>, %arg7: memref<32x32xbf16, #tpu.memory_space<vmem>>, %arg8: memref<1x32xf32, #tpu.memory_space<vmem>>, %arg9: memref<1x32xf32, #tpu.memory_space<vmem>>, %arg10: memref<1x32xf32, #tpu.memory_space<vmem>>, %arg11: memref<32x64xbf16, #tpu.memory_space<vmem>>, %arg12: memref<1x64xf32, #tpu.memory_space<vmem>>, %arg13: memref<64x32xbf16, #tpu.memory_space<vmem>>, %arg14: memref<1x32xf32, #tpu.memory_space<vmem>>, %arg15: memref<1x8x32xf32, #tpu.memory_space<vmem>>) attributes {dimension_semantics = [#tpu.dimension_semantics<parallel>], iteration_bounds = array<i64: 2>, scalar_prefetch = 0 : i64, scratch_operands = 0 : i64, tpu.core_type = #tpu.core_type<tc>, window_params = [{transform_indices = @transform_0, window_bounds = array<i64: 1, 8, 32>}, {transform_indices = @transform_1, window_bounds = array<i64: 1, 1, 8>}, {pipeline_mode = #tpu.pipeline_mode<synchronous>, transform_indices = @transform_2, window_bounds = array<i64: 1, 32>}, {pipeline_mode = #tpu.pipeline_mode<synchronous>, transform_indices = @transform_3, window_bounds = array<i64: 1, 32>}, {pipeline_mode = #tpu.pipeline_mode<synchronous>, transform_indices = @transform_4, window_bounds = array<i64: 32, 96>}, {pipeline_mode = #tpu.pipeline_mode<synchronous>, transform_indices = @transform_5, window_bounds = array<i64: 1, 96>}, {pipeline_mode = #tpu.pipeline_mode<synchronous>, transform_indices = @transform_6, window_bounds = array<i64: 32, 32>}, {pipeline_mode = #tpu.pipeline_mode<synchronous>, transform_indices = @transform_7, window_bounds = array<i64: 1, 32>}, {pipeline_mode = #tpu.pipeline_mode<synchronous>, transform_indices = @transform_8, window_bounds = array<i64: 1, 32>}, {pipeline_mode = #tpu.pipeline_mode<synchronous>, transform_indices = @transform_9, window_bounds = array<i64: 1, 32>}, {pipeline_mode = #tpu.pipeline_mode<synchronous>, transform_indices = @transform_10, window_bounds = array<i64: 32, 64>}, {pipeline_mode = #tpu.pipeline_mode<synchronous>, transform_indices = @transform_11, window_bounds = array<i64: 1, 64>}, {pipeline_mode = #tpu.pipeline_mode<synchronous>, transform_indices = @transform_12, window_bounds = array<i64: 64, 32>}, {pipeline_mode = #tpu.pipeline_mode<synchronous>, transform_indices = @transform_13, window_bounds = array<i64: 1, 32>}, {transform_indices = @transform_14, window_bounds = array<i64: 1, 8, 32>}]} {
    %c0 = arith.constant 0 : index
    %c0_0 = arith.constant 0 : index
    %c0_1 = arith.constant 0 : index
    %0 = vector.load %arg1[%c0, %c0_0, %c0_1] : memref<1x8x32xf32, #tpu.memory_space<vmem>>, vector<1x8x32xf32>
    %1 = vector.shape_cast %0 : vector<1x8x32xf32> to vector<8x32xf32>
    %c0_2 = arith.constant 0 : index
    %c0_3 = arith.constant 0 : index
    %c0_4 = arith.constant 0 : index
    %2 = vector.load %arg2[%c0_2, %c0_3, %c0_4] : memref<1x1x8xf32, #tpu.memory_space<vmem>>, vector<1x1x8xf32>
    %3 = vector.shape_cast %2 : vector<1x1x8xf32> to vector<1x8xf32>
    %c0_5 = arith.constant 0 : index
    %c0_6 = arith.constant 0 : index
    %4 = vector.load %arg3[%c0_5, %c0_6] : memref<1x32xf32, #tpu.memory_space<vmem>>, vector<1x32xf32>
    %c0_7 = arith.constant 0 : index
    %c0_8 = arith.constant 0 : index
    %5 = vector.load %arg4[%c0_7, %c0_8] : memref<1x32xf32, #tpu.memory_space<vmem>>, vector<1x32xf32>
    %cst = arith.constant dense<0.000000e+00> : vector<8xf32>
    %6 = vector.multi_reduction <add>, %1, %cst [1] : vector<8x32xf32> to vector<8xf32>
    %7 = vector.shape_cast %6 : vector<8xf32> to vector<8x1xf32>
    %cst_9 = arith.constant 3.200000e+01 : f32
    %8 = vector.broadcast %cst_9 : f32 to vector<8x1xf32>
    %9 = arith.divf %7, %8 : vector<8x1xf32>
    %10 = vector.broadcast %9 : vector<8x1xf32> to vector<8x32xf32>
    %11 = arith.subf %1, %10 : vector<8x32xf32>
    %12 = arith.mulf %11, %11 : vector<8x32xf32>
    %cst_10 = arith.constant dense<0.000000e+00> : vector<8xf32>
    %13 = vector.multi_reduction <add>, %12, %cst_10 [1] : vector<8x32xf32> to vector<8xf32>
    %14 = vector.shape_cast %13 : vector<8xf32> to vector<8x1xf32>
    %cst_11 = arith.constant 3.200000e+01 : f32
    %15 = vector.broadcast %cst_11 : f32 to vector<8x1xf32>
    %16 = arith.divf %14, %15 : vector<8x1xf32>
    %cst_12 = arith.constant 9.99999997E-7 : f32
    %17 = vector.broadcast %cst_12 : f32 to vector<8x1xf32>
    %18 = arith.addf %16, %17 : vector<8x1xf32>
    %19 = math.rsqrt %18 : vector<8x1xf32>
    %20 = vector.broadcast %19 : vector<8x1xf32> to vector<8x32xf32>
    %21 = arith.mulf %11, %20 : vector<8x32xf32>
    %22 = vector.broadcast %4 : vector<1x32xf32> to vector<8x32xf32>
    %23 = arith.mulf %21, %22 : vector<8x32xf32>
    %24 = vector.broadcast %5 : vector<1x32xf32> to vector<8x32xf32>
    %25 = arith.addf %23, %24 : vector<8x32xf32>
    %c0_13 = arith.constant 0 : index
    %c0_14 = arith.constant 0 : index
    %26 = vector.load %arg5[%c0_13, %c0_14] : memref<32x96xbf16, #tpu.memory_space<vmem>>, vector<32x96xbf16>
    %27 = arith.truncf %25 : vector<8x32xf32> to vector<8x32xbf16>
    %cst_15 = arith.constant dense<0.000000e+00> : vector<8x96xf32>
    %28 = tpu.matmul %27, %26, %cst_15 {dimension_numbers = #tpu.dot_dimension_numbers<[1], [0], [0], [1], [0, 0, 1, 1], [], []>} : vector<8x32xbf16>, vector<32x96xbf16>, vector<8x96xf32> -> vector<8x96xf32>
    %c0_16 = arith.constant 0 : index
    %c0_17 = arith.constant 0 : index
    %29 = vector.load %arg6[%c0_16, %c0_17] : memref<1x96xf32, #tpu.memory_space<vmem>>, vector<1x96xf32>
    %30 = vector.broadcast %29 : vector<1x96xf32> to vector<8x96xf32>
    %31 = arith.addf %28, %30 : vector<8x96xf32>
    %32 = vector.extract_strided_slice %31 {offsets = [0, 0], sizes = [8, 32], strides = [1, 1]} : vector<8x96xf32> to vector<8x32xf32>
    %33 = vector.extract_strided_slice %31 {offsets = [0, 32], sizes = [8, 32], strides = [1, 1]} : vector<8x96xf32> to vector<8x32xf32>
    %34 = vector.extract_strided_slice %31 {offsets = [0, 64], sizes = [8, 32], strides = [1, 1]} : vector<8x96xf32> to vector<8x32xf32>
    %35 = vector.extract_strided_slice %32 {offsets = [0, 0], sizes = [8, 8], strides = [1, 1]} : vector<8x32xf32> to vector<8x8xf32>
    %36 = arith.truncf %35 : vector<8x8xf32> to vector<8x8xbf16>
    %37 = vector.extract_strided_slice %33 {offsets = [0, 0], sizes = [8, 8], strides = [1, 1]} : vector<8x32xf32> to vector<8x8xf32>
    %38 = arith.truncf %37 : vector<8x8xf32> to vector<8x8xbf16>
    %39 = vector.extract_strided_slice %34 {offsets = [0, 0], sizes = [8, 8], strides = [1, 1]} : vector<8x32xf32> to vector<8x8xf32>
    %40 = arith.truncf %39 : vector<8x8xf32> to vector<8x8xbf16>
    %cst_18 = arith.constant dense<0.000000e+00> : vector<8x8xf32>
    %41 = tpu.matmul %36, %38, %cst_18 {dimension_numbers = #tpu.dot_dimension_numbers<[1], [1], [0], [0], [0, 0, 1, 0], [], []>} : vector<8x8xbf16>, vector<8x8xbf16>, vector<8x8xf32> -> vector<8x8xf32>
    %cst_19 = arith.constant 0.353553385 : f32
    %42 = vector.broadcast %cst_19 : f32 to vector<8x8xf32>
    %43 = arith.mulf %41, %42 : vector<8x8xf32>
    %cst_20 = arith.constant 0.000000e+00 : f32
    %44 = vector.broadcast %cst_20 : f32 to vector<1x8xf32>
    %45 = arith.cmpf oeq, %3, %44 : vector<1x8xf32>
    %cst_21 = arith.constant -1.000000e+09 : f32
    %46 = vector.shape_cast %45 : vector<1x8xi1> to vector<1x8xi1>
    %47 = vector.broadcast %46 : vector<1x8xi1> to vector<8x8xi1>
    %48 = vector.broadcast %cst_21 : f32 to vector<8x8xf32>
    %49 = arith.select %47, %48, %43 : vector<8x8xi1>, vector<8x8xf32>
    %cst_22 = arith.constant dense<0xFF800000> : vector<8xf32>
    %50 = vector.multi_reduction <maximumf>, %49, %cst_22 [1] : vector<8x8xf32> to vector<8xf32>
    %51 = vector.shape_cast %50 : vector<8xf32> to vector<8x1xf32>
    %52 = vector.broadcast %51 : vector<8x1xf32> to vector<8x8xf32>
    %53 = arith.subf %49, %52 : vector<8x8xf32>
    %54 = math.exp %53 : vector<8x8xf32>
    %cst_23 = arith.constant dense<0.000000e+00> : vector<8xf32>
    %55 = vector.multi_reduction <add>, %54, %cst_23 [1] : vector<8x8xf32> to vector<8xf32>
    %56 = vector.shape_cast %55 : vector<8xf32> to vector<8x1xf32>
    %57 = vector.broadcast %56 : vector<8x1xf32> to vector<8x8xf32>
    %58 = arith.divf %54, %57 : vector<8x8xf32>
    %cst_24 = arith.constant 0.000000e+00 : f32
    %59 = vector.broadcast %cst_24 : f32 to vector<1x8xf32>
    %60 = arith.cmpf oeq, %3, %59 : vector<1x8xf32>
    %cst_25 = arith.constant 0.000000e+00 : f32
    %61 = vector.shape_cast %60 : vector<1x8xi1> to vector<1x8xi1>
    %62 = vector.broadcast %61 : vector<1x8xi1> to vector<8x8xi1>
    %63 = vector.broadcast %cst_25 : f32 to vector<8x8xf32>
    %64 = arith.select %62, %63, %58 : vector<8x8xi1>, vector<8x8xf32>
    %65 = arith.truncf %64 : vector<8x8xf32> to vector<8x8xbf16>
    %cst_26 = arith.constant dense<0.000000e+00> : vector<8x8xf32>
    %66 = tpu.matmul %65, %40, %cst_26 {dimension_numbers = #tpu.dot_dimension_numbers<[1], [0], [0], [1], [0, 0, 1, 1], [], []>} : vector<8x8xbf16>, vector<8x8xbf16>, vector<8x8xf32> -> vector<8x8xf32>
    %67 = vector.extract_strided_slice %32 {offsets = [0, 8], sizes = [8, 8], strides = [1, 1]} : vector<8x32xf32> to vector<8x8xf32>
    %68 = arith.truncf %67 : vector<8x8xf32> to vector<8x8xbf16>
    %69 = vector.extract_strided_slice %33 {offsets = [0, 8], sizes = [8, 8], strides = [1, 1]} : vector<8x32xf32> to vector<8x8xf32>
    %70 = arith.truncf %69 : vector<8x8xf32> to vector<8x8xbf16>
    %71 = vector.extract_strided_slice %34 {offsets = [0, 8], sizes = [8, 8], strides = [1, 1]} : vector<8x32xf32> to vector<8x8xf32>
    %72 = arith.truncf %71 : vector<8x8xf32> to vector<8x8xbf16>
    %cst_27 = arith.constant dense<0.000000e+00> : vector<8x8xf32>
    %73 = tpu.matmul %68, %70, %cst_27 {dimension_numbers = #tpu.dot_dimension_numbers<[1], [1], [0], [0], [0, 0, 1, 0], [], []>} : vector<8x8xbf16>, vector<8x8xbf16>, vector<8x8xf32> -> vector<8x8xf32>
    %cst_28 = arith.constant 0.353553385 : f32
    %74 = vector.broadcast %cst_28 : f32 to vector<8x8xf32>
    %75 = arith.mulf %73, %74 : vector<8x8xf32>
    %cst_29 = arith.constant 0.000000e+00 : f32
    %76 = vector.broadcast %cst_29 : f32 to vector<1x8xf32>
    %77 = arith.cmpf oeq, %3, %76 : vector<1x8xf32>
    %cst_30 = arith.constant -1.000000e+09 : f32
    %78 = vector.shape_cast %77 : vector<1x8xi1> to vector<1x8xi1>
    %79 = vector.broadcast %78 : vector<1x8xi1> to vector<8x8xi1>
    %80 = vector.broadcast %cst_30 : f32 to vector<8x8xf32>
    %81 = arith.select %79, %80, %75 : vector<8x8xi1>, vector<8x8xf32>
    %cst_31 = arith.constant dense<0xFF800000> : vector<8xf32>
    %82 = vector.multi_reduction <maximumf>, %81, %cst_31 [1] : vector<8x8xf32> to vector<8xf32>
    %83 = vector.shape_cast %82 : vector<8xf32> to vector<8x1xf32>
    %84 = vector.broadcast %83 : vector<8x1xf32> to vector<8x8xf32>
    %85 = arith.subf %81, %84 : vector<8x8xf32>
    %86 = math.exp %85 : vector<8x8xf32>
    %cst_32 = arith.constant dense<0.000000e+00> : vector<8xf32>
    %87 = vector.multi_reduction <add>, %86, %cst_32 [1] : vector<8x8xf32> to vector<8xf32>
    %88 = vector.shape_cast %87 : vector<8xf32> to vector<8x1xf32>
    %89 = vector.broadcast %88 : vector<8x1xf32> to vector<8x8xf32>
    %90 = arith.divf %86, %89 : vector<8x8xf32>
    %cst_33 = arith.constant 0.000000e+00 : f32
    %91 = vector.broadcast %cst_33 : f32 to vector<1x8xf32>
    %92 = arith.cmpf oeq, %3, %91 : vector<1x8xf32>
    %cst_34 = arith.constant 0.000000e+00 : f32
    %93 = vector.shape_cast %92 : vector<1x8xi1> to vector<1x8xi1>
    %94 = vector.broadcast %93 : vector<1x8xi1> to vector<8x8xi1>
    %95 = vector.broadcast %cst_34 : f32 to vector<8x8xf32>
    %96 = arith.select %94, %95, %90 : vector<8x8xi1>, vector<8x8xf32>
    %97 = arith.truncf %96 : vector<8x8xf32> to vector<8x8xbf16>
    %cst_35 = arith.constant dense<0.000000e+00> : vector<8x8xf32>
    %98 = tpu.matmul %97, %72, %cst_35 {dimension_numbers = #tpu.dot_dimension_numbers<[1], [0], [0], [1], [0, 0, 1, 1], [], []>} : vector<8x8xbf16>, vector<8x8xbf16>, vector<8x8xf32> -> vector<8x8xf32>
    %99 = vector.extract_strided_slice %32 {offsets = [0, 16], sizes = [8, 8], strides = [1, 1]} : vector<8x32xf32> to vector<8x8xf32>
    %100 = arith.truncf %99 : vector<8x8xf32> to vector<8x8xbf16>
    %101 = vector.extract_strided_slice %33 {offsets = [0, 16], sizes = [8, 8], strides = [1, 1]} : vector<8x32xf32> to vector<8x8xf32>
    %102 = arith.truncf %101 : vector<8x8xf32> to vector<8x8xbf16>
    %103 = vector.extract_strided_slice %34 {offsets = [0, 16], sizes = [8, 8], strides = [1, 1]} : vector<8x32xf32> to vector<8x8xf32>
    %104 = arith.truncf %103 : vector<8x8xf32> to vector<8x8xbf16>
    %cst_36 = arith.constant dense<0.000000e+00> : vector<8x8xf32>
    %105 = tpu.matmul %100, %102, %cst_36 {dimension_numbers = #tpu.dot_dimension_numbers<[1], [1], [0], [0], [0, 0, 1, 0], [], []>} : vector<8x8xbf16>, vector<8x8xbf16>, vector<8x8xf32> -> vector<8x8xf32>
    %cst_37 = arith.constant 0.353553385 : f32
    %106 = vector.broadcast %cst_37 : f32 to vector<8x8xf32>
    %107 = arith.mulf %105, %106 : vector<8x8xf32>
    %cst_38 = arith.constant 0.000000e+00 : f32
    %108 = vector.broadcast %cst_38 : f32 to vector<1x8xf32>
    %109 = arith.cmpf oeq, %3, %108 : vector<1x8xf32>
    %cst_39 = arith.constant -1.000000e+09 : f32
    %110 = vector.shape_cast %109 : vector<1x8xi1> to vector<1x8xi1>
    %111 = vector.broadcast %110 : vector<1x8xi1> to vector<8x8xi1>
    %112 = vector.broadcast %cst_39 : f32 to vector<8x8xf32>
    %113 = arith.select %111, %112, %107 : vector<8x8xi1>, vector<8x8xf32>
    %cst_40 = arith.constant dense<0xFF800000> : vector<8xf32>
    %114 = vector.multi_reduction <maximumf>, %113, %cst_40 [1] : vector<8x8xf32> to vector<8xf32>
    %115 = vector.shape_cast %114 : vector<8xf32> to vector<8x1xf32>
    %116 = vector.broadcast %115 : vector<8x1xf32> to vector<8x8xf32>
    %117 = arith.subf %113, %116 : vector<8x8xf32>
    %118 = math.exp %117 : vector<8x8xf32>
    %cst_41 = arith.constant dense<0.000000e+00> : vector<8xf32>
    %119 = vector.multi_reduction <add>, %118, %cst_41 [1] : vector<8x8xf32> to vector<8xf32>
    %120 = vector.shape_cast %119 : vector<8xf32> to vector<8x1xf32>
    %121 = vector.broadcast %120 : vector<8x1xf32> to vector<8x8xf32>
    %122 = arith.divf %118, %121 : vector<8x8xf32>
    %cst_42 = arith.constant 0.000000e+00 : f32
    %123 = vector.broadcast %cst_42 : f32 to vector<1x8xf32>
    %124 = arith.cmpf oeq, %3, %123 : vector<1x8xf32>
    %cst_43 = arith.constant 0.000000e+00 : f32
    %125 = vector.shape_cast %124 : vector<1x8xi1> to vector<1x8xi1>
    %126 = vector.broadcast %125 : vector<1x8xi1> to vector<8x8xi1>
    %127 = vector.broadcast %cst_43 : f32 to vector<8x8xf32>
    %128 = arith.select %126, %127, %122 : vector<8x8xi1>, vector<8x8xf32>
    %129 = arith.truncf %128 : vector<8x8xf32> to vector<8x8xbf16>
    %cst_44 = arith.constant dense<0.000000e+00> : vector<8x8xf32>
    %130 = tpu.matmul %129, %104, %cst_44 {dimension_numbers = #tpu.dot_dimension_numbers<[1], [0], [0], [1], [0, 0, 1, 1], [], []>} : vector<8x8xbf16>, vector<8x8xbf16>, vector<8x8xf32> -> vector<8x8xf32>
    %131 = vector.extract_strided_slice %32 {offsets = [0, 24], sizes = [8, 8], strides = [1, 1]} : vector<8x32xf32> to vector<8x8xf32>
    %132 = arith.truncf %131 : vector<8x8xf32> to vector<8x8xbf16>
    %133 = vector.extract_strided_slice %33 {offsets = [0, 24], sizes = [8, 8], strides = [1, 1]} : vector<8x32xf32> to vector<8x8xf32>
    %134 = arith.truncf %133 : vector<8x8xf32> to vector<8x8xbf16>
    %135 = vector.extract_strided_slice %34 {offsets = [0, 24], sizes = [8, 8], strides = [1, 1]} : vector<8x32xf32> to vector<8x8xf32>
    %136 = arith.truncf %135 : vector<8x8xf32> to vector<8x8xbf16>
    %cst_45 = arith.constant dense<0.000000e+00> : vector<8x8xf32>
    %137 = tpu.matmul %132, %134, %cst_45 {dimension_numbers = #tpu.dot_dimension_numbers<[1], [1], [0], [0], [0, 0, 1, 0], [], []>} : vector<8x8xbf16>, vector<8x8xbf16>, vector<8x8xf32> -> vector<8x8xf32>
    %cst_46 = arith.constant 0.353553385 : f32
    %138 = vector.broadcast %cst_46 : f32 to vector<8x8xf32>
    %139 = arith.mulf %137, %138 : vector<8x8xf32>
    %cst_47 = arith.constant 0.000000e+00 : f32
    %140 = vector.broadcast %cst_47 : f32 to vector<1x8xf32>
    %141 = arith.cmpf oeq, %3, %140 : vector<1x8xf32>
    %cst_48 = arith.constant -1.000000e+09 : f32
    %142 = vector.shape_cast %141 : vector<1x8xi1> to vector<1x8xi1>
    %143 = vector.broadcast %142 : vector<1x8xi1> to vector<8x8xi1>
    %144 = vector.broadcast %cst_48 : f32 to vector<8x8xf32>
    %145 = arith.select %143, %144, %139 : vector<8x8xi1>, vector<8x8xf32>
    %cst_49 = arith.constant dense<0xFF800000> : vector<8xf32>
    %146 = vector.multi_reduction <maximumf>, %145, %cst_49 [1] : vector<8x8xf32> to vector<8xf32>
    %147 = vector.shape_cast %146 : vector<8xf32> to vector<8x1xf32>
    %148 = vector.broadcast %147 : vector<8x1xf32> to vector<8x8xf32>
    %149 = arith.subf %145, %148 : vector<8x8xf32>
    %150 = math.exp %149 : vector<8x8xf32>
    %cst_50 = arith.constant dense<0.000000e+00> : vector<8xf32>
    %151 = vector.multi_reduction <add>, %150, %cst_50 [1] : vector<8x8xf32> to vector<8xf32>
    %152 = vector.shape_cast %151 : vector<8xf32> to vector<8x1xf32>
    %153 = vector.broadcast %152 : vector<8x1xf32> to vector<8x8xf32>
    %154 = arith.divf %150, %153 : vector<8x8xf32>
    %cst_51 = arith.constant 0.000000e+00 : f32
    %155 = vector.broadcast %cst_51 : f32 to vector<1x8xf32>
    %156 = arith.cmpf oeq, %3, %155 : vector<1x8xf32>
    %cst_52 = arith.constant 0.000000e+00 : f32
    %157 = vector.shape_cast %156 : vector<1x8xi1> to vector<1x8xi1>
    %158 = vector.broadcast %157 : vector<1x8xi1> to vector<8x8xi1>
    %159 = vector.broadcast %cst_52 : f32 to vector<8x8xf32>
    %160 = arith.select %158, %159, %154 : vector<8x8xi1>, vector<8x8xf32>
    %161 = arith.truncf %160 : vector<8x8xf32> to vector<8x8xbf16>
    %cst_53 = arith.constant dense<0.000000e+00> : vector<8x8xf32>
    %162 = tpu.matmul %161, %136, %cst_53 {dimension_numbers = #tpu.dot_dimension_numbers<[1], [0], [0], [1], [0, 0, 1, 1], [], []>} : vector<8x8xbf16>, vector<8x8xbf16>, vector<8x8xf32> -> vector<8x8xf32>
    %163 = tpu.concatenate %66, %98, %130, %162 in 1 : vector<8x8xf32>, vector<8x8xf32>, vector<8x8xf32>, vector<8x8xf32> -> vector<8x32xf32>
    %c0_54 = arith.constant 0 : index
    %c0_55 = arith.constant 0 : index
    %164 = vector.load %arg7[%c0_54, %c0_55] : memref<32x32xbf16, #tpu.memory_space<vmem>>, vector<32x32xbf16>
    %165 = arith.truncf %163 : vector<8x32xf32> to vector<8x32xbf16>
    %cst_56 = arith.constant dense<0.000000e+00> : vector<8x32xf32>
    %166 = tpu.matmul %165, %164, %cst_56 {dimension_numbers = #tpu.dot_dimension_numbers<[1], [0], [0], [1], [0, 0, 1, 1], [], []>} : vector<8x32xbf16>, vector<32x32xbf16>, vector<8x32xf32> -> vector<8x32xf32>
    %c0_57 = arith.constant 0 : index
    %c0_58 = arith.constant 0 : index
    %167 = vector.load %arg8[%c0_57, %c0_58] : memref<1x32xf32, #tpu.memory_space<vmem>>, vector<1x32xf32>
    %168 = vector.broadcast %167 : vector<1x32xf32> to vector<8x32xf32>
    %169 = arith.addf %166, %168 : vector<8x32xf32>
    %170 = arith.addf %1, %169 : vector<8x32xf32>
    %c0_59 = arith.constant 0 : index
    %c0_60 = arith.constant 0 : index
    %171 = vector.load %arg9[%c0_59, %c0_60] : memref<1x32xf32, #tpu.memory_space<vmem>>, vector<1x32xf32>
    %c0_61 = arith.constant 0 : index
    %c0_62 = arith.constant 0 : index
    %172 = vector.load %arg10[%c0_61, %c0_62] : memref<1x32xf32, #tpu.memory_space<vmem>>, vector<1x32xf32>
    %cst_63 = arith.constant dense<0.000000e+00> : vector<8xf32>
    %173 = vector.multi_reduction <add>, %170, %cst_63 [1] : vector<8x32xf32> to vector<8xf32>
    %174 = vector.shape_cast %173 : vector<8xf32> to vector<8x1xf32>
    %cst_64 = arith.constant 3.200000e+01 : f32
    %175 = vector.broadcast %cst_64 : f32 to vector<8x1xf32>
    %176 = arith.divf %174, %175 : vector<8x1xf32>
    %177 = vector.broadcast %176 : vector<8x1xf32> to vector<8x32xf32>
    %178 = arith.subf %170, %177 : vector<8x32xf32>
    %179 = arith.mulf %178, %178 : vector<8x32xf32>
    %cst_65 = arith.constant dense<0.000000e+00> : vector<8xf32>
    %180 = vector.multi_reduction <add>, %179, %cst_65 [1] : vector<8x32xf32> to vector<8xf32>
    %181 = vector.shape_cast %180 : vector<8xf32> to vector<8x1xf32>
    %cst_66 = arith.constant 3.200000e+01 : f32
    %182 = vector.broadcast %cst_66 : f32 to vector<8x1xf32>
    %183 = arith.divf %181, %182 : vector<8x1xf32>
    %cst_67 = arith.constant 9.99999997E-7 : f32
    %184 = vector.broadcast %cst_67 : f32 to vector<8x1xf32>
    %185 = arith.addf %183, %184 : vector<8x1xf32>
    %186 = math.rsqrt %185 : vector<8x1xf32>
    %187 = vector.broadcast %186 : vector<8x1xf32> to vector<8x32xf32>
    %188 = arith.mulf %178, %187 : vector<8x32xf32>
    %189 = vector.broadcast %171 : vector<1x32xf32> to vector<8x32xf32>
    %190 = arith.mulf %188, %189 : vector<8x32xf32>
    %191 = vector.broadcast %172 : vector<1x32xf32> to vector<8x32xf32>
    %192 = arith.addf %190, %191 : vector<8x32xf32>
    %c0_68 = arith.constant 0 : index
    %c0_69 = arith.constant 0 : index
    %193 = vector.load %arg11[%c0_68, %c0_69] : memref<32x64xbf16, #tpu.memory_space<vmem>>, vector<32x64xbf16>
    %194 = arith.truncf %192 : vector<8x32xf32> to vector<8x32xbf16>
    %cst_70 = arith.constant dense<0.000000e+00> : vector<8x64xf32>
    %195 = tpu.matmul %194, %193, %cst_70 {dimension_numbers = #tpu.dot_dimension_numbers<[1], [0], [0], [1], [0, 0, 1, 1], [], []>} : vector<8x32xbf16>, vector<32x64xbf16>, vector<8x64xf32> -> vector<8x64xf32>
    %c0_71 = arith.constant 0 : index
    %c0_72 = arith.constant 0 : index
    %196 = vector.load %arg12[%c0_71, %c0_72] : memref<1x64xf32, #tpu.memory_space<vmem>>, vector<1x64xf32>
    %197 = vector.broadcast %196 : vector<1x64xf32> to vector<8x64xf32>
    %198 = arith.addf %195, %197 : vector<8x64xf32>
    %cst_73 = arith.constant 0.000000e+00 : f32
    %199 = vector.broadcast %cst_73 : f32 to vector<8x64xf32>
    %200 = arith.maximumf %198, %199 : vector<8x64xf32>
    %c0_74 = arith.constant 0 : index
    %c0_75 = arith.constant 0 : index
    %201 = vector.load %arg13[%c0_74, %c0_75] : memref<64x32xbf16, #tpu.memory_space<vmem>>, vector<64x32xbf16>
    %202 = arith.truncf %200 : vector<8x64xf32> to vector<8x64xbf16>
    %cst_76 = arith.constant dense<0.000000e+00> : vector<8x32xf32>
    %203 = tpu.matmul %202, %201, %cst_76 {dimension_numbers = #tpu.dot_dimension_numbers<[1], [0], [0], [1], [0, 0, 1, 1], [], []>} : vector<8x64xbf16>, vector<64x32xbf16>, vector<8x32xf32> -> vector<8x32xf32>
    %c0_77 = arith.constant 0 : index
    %c0_78 = arith.constant 0 : index
    %204 = vector.load %arg14[%c0_77, %c0_78] : memref<1x32xf32, #tpu.memory_space<vmem>>, vector<1x32xf32>
    %205 = vector.broadcast %204 : vector<1x32xf32> to vector<8x32xf32>
    %206 = arith.addf %203, %205 : vector<8x32xf32>
    %207 = arith.addf %170, %206 : vector<8x32xf32>
    %c0_79 = arith.constant 0 : index
    %c0_80 = arith.constant 0 : index
    %c0_81 = arith.constant 0 : index
    %208 = vector.load %arg15[%c0_79, %c0_80, %c0_81] : memref<1x8x32xf32, #tpu.memory_space<vmem>>, vector<1x8x32xf32>
    %209 = vector.shape_cast %208 : vector<1x8x32xf32> to vector<8x32xf32>
    %210 = vector.shape_cast %207 : vector<8x32xf32> to vector<1x8x32xf32>
    tpu.vector_store %arg15[%c0_79, %c0_80, %c0_81], %210 {strides = array<i32>} : memref<1x8x32xf32, #tpu.memory_space<vmem>>, vector<1x8x32xf32>,
    return
  }
  func.func @transform_0(%arg0: i32) -> (i32, i32, i32) {
    %c0_i32 = arith.constant 0 : i32
    %c0_i32_0 = arith.constant 0 : i32
    %c0_i32_1 = arith.constant 0 : i32
    return %arg0, %c0_i32, %c0_i32_0 : i32, i32, i32
  }
  func.func @transform_1(%arg0: i32) -> (i32, i32, i32) {
    %c0_i32 = arith.constant 0 : i32
    %c0_i32_0 = arith.constant 0 : i32
    %c0_i32_1 = arith.constant 0 : i32
    return %arg0, %c0_i32, %c0_i32_0 : i32, i32, i32
  }
  func.func @transform_2(%arg0: i32) -> (i32, i32) {
    %c0_i32 = arith.constant 0 : i32
    %c0_i32_0 = arith.constant 0 : i32
    %c0_i32_1 = arith.constant 0 : i32
    return %c0_i32, %c0_i32_0 : i32, i32
  }
  func.func @transform_3(%arg0: i32) -> (i32, i32) {
    %c0_i32 = arith.constant 0 : i32
    %c0_i32_0 = arith.constant 0 : i32
    %c0_i32_1 = arith.constant 0 : i32
    return %c0_i32, %c0_i32_0 : i32, i32
  }
  func.func @transform_4(%arg0: i32) -> (i32, i32) {
    %c0_i32 = arith.constant 0 : i32
    %c0_i32_0 = arith.constant 0 : i32
    %c0_i32_1 = arith.constant 0 : i32
    return %c0_i32, %c0_i32_0 : i32, i32
  }
  func.func @transform_5(%arg0: i32) -> (i32, i32) {
    %c0_i32 = arith.constant 0 : i32
    %c0_i32_0 = arith.constant 0 : i32
    %c0_i32_1 = arith.constant 0 : i32
    return %c0_i32, %c0_i32_0 : i32, i32
  }
  func.func @transform_6(%arg0: i32) -> (i32, i32) {
    %c0_i32 = arith.constant 0 : i32
    %c0_i32_0 = arith.constant 0 : i32
    %c0_i32_1 = arith.constant 0 : i32
    return %c0_i32, %c0_i32_0 : i32, i32
  }
  func.func @transform_7(%arg0: i32) -> (i32, i32) {
    %c0_i32 = arith.constant 0 : i32
    %c0_i32_0 = arith.constant 0 : i32
    %c0_i32_1 = arith.constant 0 : i32
    return %c0_i32, %c0_i32_0 : i32, i32
  }
  func.func @transform_8(%arg0: i32) -> (i32, i32) {
    %c0_i32 = arith.constant 0 : i32
    %c0_i32_0 = arith.constant 0 : i32
    %c0_i32_1 = arith.constant 0 : i32
    return %c0_i32, %c0_i32_0 : i32, i32
  }
  func.func @transform_9(%arg0: i32) -> (i32, i32) {
    %c0_i32 = arith.constant 0 : i32
    %c0_i32_0 = arith.constant 0 : i32
    %c0_i32_1 = arith.constant 0 : i32
    return %c0_i32, %c0_i32_0 : i32, i32
  }
  func.func @transform_10(%arg0: i32) -> (i32, i32) {
    %c0_i32 = arith.constant 0 : i32
    %c0_i32_0 = arith.constant 0 : i32
    %c0_i32_1 = arith.constant 0 : i32
    return %c0_i32, %c0_i32_0 : i32, i32
  }
  func.func @transform_11(%arg0: i32) -> (i32, i32) {
    %c0_i32 = arith.constant 0 : i32
    %c0_i32_0 = arith.constant 0 : i32
    %c0_i32_1 = arith.constant 0 : i32
    return %c0_i32, %c0_i32_0 : i32, i32
  }
  func.func @transform_12(%arg0: i32) -> (i32, i32) {
    %c0_i32 = arith.constant 0 : i32
    %c0_i32_0 = arith.constant 0 : i32
    %c0_i32_1 = arith.constant 0 : i32
    return %c0_i32, %c0_i32_0 : i32, i32
  }
  func.func @transform_13(%arg0: i32) -> (i32, i32) {
    %c0_i32 = arith.constant 0 : i32
    %c0_i32_0 = arith.constant 0 : i32
    %c0_i32_1 = arith.constant 0 : i32
    return %c0_i32, %c0_i32_0 : i32, i32
  }
  func.func @transform_14(%arg0: i32) -> (i32, i32, i32) {
    %c0_i32 = arith.constant 0 : i32
    %c0_i32_0 = arith.constant 0 : i32
    %c0_i32_1 = arith.constant 0 : i32
    return %arg0, %c0_i32, %c0_i32_0 : i32, i32, i32
  }
}

module attributes {stable_mosaic.version = 11 : i64} {
  func.func @_layernorm_kernel(%arg0: memref<16x32xf32, #tpu.memory_space<vmem>>, %arg1: memref<1x32xf32, #tpu.memory_space<vmem>>, %arg2: memref<1x32xf32, #tpu.memory_space<vmem>>, %arg3: memref<16x32xf32, #tpu.memory_space<vmem>>) attributes {dimension_semantics = [], scalar_prefetch = 0 : i64, scratch_operands = 0 : i64, tpu.core_type = #tpu.core_type<tc>} {
    %c0 = arith.constant 0 : index
    %c0_0 = arith.constant 0 : index
    %0 = vector.load %arg0[%c0, %c0_0] : memref<16x32xf32, #tpu.memory_space<vmem>>, vector<16x32xf32>
    %c0_1 = arith.constant 0 : index
    %c0_2 = arith.constant 0 : index
    %1 = vector.load %arg1[%c0_1, %c0_2] : memref<1x32xf32, #tpu.memory_space<vmem>>, vector<1x32xf32>
    %c0_3 = arith.constant 0 : index
    %c0_4 = arith.constant 0 : index
    %2 = vector.load %arg2[%c0_3, %c0_4] : memref<1x32xf32, #tpu.memory_space<vmem>>, vector<1x32xf32>
    %cst = arith.constant dense<0.000000e+00> : vector<16xf32>
    %3 = vector.multi_reduction <add>, %0, %cst [1] : vector<16x32xf32> to vector<16xf32>
    %4 = vector.shape_cast %3 : vector<16xf32> to vector<16x1xf32>
    %cst_5 = arith.constant 3.200000e+01 : f32
    %5 = vector.broadcast %cst_5 : f32 to vector<16x1xf32>
    %6 = arith.divf %4, %5 : vector<16x1xf32>
    %7 = vector.broadcast %6 : vector<16x1xf32> to vector<16x32xf32>
    %8 = arith.subf %0, %7 : vector<16x32xf32>
    %9 = arith.mulf %8, %8 : vector<16x32xf32>
    %cst_6 = arith.constant dense<0.000000e+00> : vector<16xf32>
    %10 = vector.multi_reduction <add>, %9, %cst_6 [1] : vector<16x32xf32> to vector<16xf32>
    %11 = vector.shape_cast %10 : vector<16xf32> to vector<16x1xf32>
    %cst_7 = arith.constant 3.200000e+01 : f32
    %12 = vector.broadcast %cst_7 : f32 to vector<16x1xf32>
    %13 = arith.divf %11, %12 : vector<16x1xf32>
    %cst_8 = arith.constant 9.99999997E-7 : f32
    %14 = vector.broadcast %cst_8 : f32 to vector<16x1xf32>
    %15 = arith.addf %13, %14 : vector<16x1xf32>
    %16 = math.rsqrt %15 : vector<16x1xf32>
    %17 = vector.broadcast %16 : vector<16x1xf32> to vector<16x32xf32>
    %18 = arith.mulf %8, %17 : vector<16x32xf32>
    %19 = vector.broadcast %1 : vector<1x32xf32> to vector<16x32xf32>
    %20 = arith.mulf %18, %19 : vector<16x32xf32>
    %21 = vector.broadcast %2 : vector<1x32xf32> to vector<16x32xf32>
    %22 = arith.addf %20, %21 : vector<16x32xf32>
    %c0_9 = arith.constant 0 : index
    %c0_10 = arith.constant 0 : index
    %23 = vector.load %arg3[%c0_9, %c0_10] : memref<16x32xf32, #tpu.memory_space<vmem>>, vector<16x32xf32>
    tpu.vector_store %arg3[%c0_9, %c0_10], %22 {strides = array<i32>} : memref<16x32xf32, #tpu.memory_space<vmem>>, vector<16x32xf32>,
    return
  }
}

module attributes {stable_mosaic.version = 11 : i64} {
  func.func @_head_kernel(%arg0: memref<10x67xf32, #tpu.memory_space<vmem>>, %arg1: memref<10x1xi32, #tpu.memory_space<vmem>>, %arg2: memref<67x64xbf16, #tpu.memory_space<vmem>>, %arg3: memref<1x64xf32, #tpu.memory_space<vmem>>, %arg4: memref<1x64xf32, #tpu.memory_space<vmem>>, %arg5: memref<1x64xf32, #tpu.memory_space<vmem>>, %arg6: memref<8x64x67xbf16, #tpu.memory_space<vmem>>, %arg7: memref<8x1x67xf32, #tpu.memory_space<vmem>>, %arg8: memref<8x1x67xf32, #tpu.memory_space<vmem>>, %arg9: memref<8x1x67xf32, #tpu.memory_space<vmem>>, %arg10: memref<67x16xbf16, #tpu.memory_space<vmem>>, %arg11: memref<1x16xf32, #tpu.memory_space<vmem>>, %arg12: memref<1x16xf32, #tpu.memory_space<vmem>>, %arg13: memref<1x16xf32, #tpu.memory_space<vmem>>, %arg14: memref<16x1xbf16, #tpu.memory_space<vmem>>, %arg15: memref<1x1xf32, #tpu.memory_space<vmem>>, %arg16: memref<10x1xf32, #tpu.memory_space<vmem>>) attributes {dimension_semantics = [], scalar_prefetch = 0 : i64, scratch_operands = 0 : i64, tpu.core_type = #tpu.core_type<tc>} {
    %c0 = arith.constant 0 : index
    %c0_0 = arith.constant 0 : index
    %0 = vector.load %arg0[%c0, %c0_0] : memref<10x67xf32, #tpu.memory_space<vmem>>, vector<10x67xf32>
    %c0_1 = arith.constant 0 : index
    %c0_2 = arith.constant 0 : index
    %1 = vector.load %arg1[%c0_1, %c0_2] : memref<10x1xi32, #tpu.memory_space<vmem>>, vector<10x1xi32>
    %c0_3 = arith.constant 0 : index
    %c0_4 = arith.constant 0 : index
    %2 = vector.load %arg2[%c0_3, %c0_4] : memref<67x64xbf16, #tpu.memory_space<vmem>>, vector<67x64xbf16>
    %3 = arith.truncf %0 : vector<10x67xf32> to vector<10x67xbf16>
    %cst = arith.constant dense<0.000000e+00> : vector<10x64xf32>
    %4 = tpu.matmul %3, %2, %cst {dimension_numbers = #tpu.dot_dimension_numbers<[1], [0], [0], [1], [0, 0, 1, 1], [], []>} : vector<10x67xbf16>, vector<67x64xbf16>, vector<10x64xf32> -> vector<10x64xf32>
    %c0_5 = arith.constant 0 : index
    %c0_6 = arith.constant 0 : index
    %5 = vector.load %arg3[%c0_5, %c0_6] : memref<1x64xf32, #tpu.memory_space<vmem>>, vector<1x64xf32>
    %6 = vector.broadcast %5 : vector<1x64xf32> to vector<10x64xf32>
    %7 = arith.addf %4, %6 : vector<10x64xf32>
    %c0_7 = arith.constant 0 : index
    %c0_8 = arith.constant 0 : index
    %8 = vector.load %arg4[%c0_7, %c0_8] : memref<1x64xf32, #tpu.memory_space<vmem>>, vector<1x64xf32>
    %c0_9 = arith.constant 0 : index
    %c0_10 = arith.constant 0 : index
    %9 = vector.load %arg5[%c0_9, %c0_10] : memref<1x64xf32, #tpu.memory_space<vmem>>, vector<1x64xf32>
    %cst_11 = arith.constant dense<0.000000e+00> : vector<10xf32>
    %10 = vector.multi_reduction <add>, %7, %cst_11 [1] : vector<10x64xf32> to vector<10xf32>
    %11 = vector.shape_cast %10 : vector<10xf32> to vector<10x1xf32>
    %cst_12 = arith.constant 6.400000e+01 : f32
    %12 = vector.broadcast %cst_12 : f32 to vector<10x1xf32>
    %13 = arith.divf %11, %12 : vector<10x1xf32>
    %14 = vector.broadcast %13 : vector<10x1xf32> to vector<10x64xf32>
    %15 = arith.subf %7, %14 : vector<10x64xf32>
    %16 = arith.mulf %15, %15 : vector<10x64xf32>
    %cst_13 = arith.constant dense<0.000000e+00> : vector<10xf32>
    %17 = vector.multi_reduction <add>, %16, %cst_13 [1] : vector<10x64xf32> to vector<10xf32>
    %18 = vector.shape_cast %17 : vector<10xf32> to vector<10x1xf32>
    %cst_14 = arith.constant 6.400000e+01 : f32
    %19 = vector.broadcast %cst_14 : f32 to vector<10x1xf32>
    %20 = arith.divf %18, %19 : vector<10x1xf32>
    %cst_15 = arith.constant 9.99999997E-7 : f32
    %21 = vector.broadcast %cst_15 : f32 to vector<10x1xf32>
    %22 = arith.addf %20, %21 : vector<10x1xf32>
    %23 = math.rsqrt %22 : vector<10x1xf32>
    %24 = vector.broadcast %23 : vector<10x1xf32> to vector<10x64xf32>
    %25 = arith.mulf %15, %24 : vector<10x64xf32>
    %26 = vector.broadcast %8 : vector<1x64xf32> to vector<10x64xf32>
    %27 = arith.mulf %25, %26 : vector<10x64xf32>
    %28 = vector.broadcast %9 : vector<1x64xf32> to vector<10x64xf32>
    %29 = arith.addf %27, %28 : vector<10x64xf32>
    %cst_16 = arith.constant 0.000000e+00 : f32
    %30 = vector.broadcast %cst_16 : f32 to vector<10x64xf32>
    %31 = arith.maximumf %29, %30 : vector<10x64xf32>
    %cst_17 = arith.constant 0.000000e+00 : f32
    %32 = vector.broadcast %cst_17 : f32 to vector<10x67xf32>
    %c0_18 = arith.constant 0 : index
    %c0_19 = arith.constant 0 : index
    %c0_20 = arith.constant 0 : index
    %33 = vector.load %arg6[%c0_18, %c0_19, %c0_20] : memref<8x64x67xbf16, #tpu.memory_space<vmem>>, vector<1x64x67xbf16>
    %34 = vector.shape_cast %33 : vector<1x64x67xbf16> to vector<64x67xbf16>
    %35 = arith.truncf %31 : vector<10x64xf32> to vector<10x64xbf16>
    %cst_21 = arith.constant dense<0.000000e+00> : vector<10x67xf32>
    %36 = tpu.matmul %35, %34, %cst_21 {dimension_numbers = #tpu.dot_dimension_numbers<[1], [0], [0], [1], [0, 0, 1, 1], [], []>} : vector<10x64xbf16>, vector<64x67xbf16>, vector<10x67xf32> -> vector<10x67xf32>
    %c0_22 = arith.constant 0 : index
    %c0_23 = arith.constant 0 : index
    %c0_24 = arith.constant 0 : index
    %37 = vector.load %arg7[%c0_22, %c0_23, %c0_24] : memref<8x1x67xf32, #tpu.memory_space<vmem>>, vector<1x1x67xf32>
    %38 = vector.shape_cast %37 : vector<1x1x67xf32> to vector<1x67xf32>
    %39 = vector.broadcast %38 : vector<1x67xf32> to vector<10x67xf32>
    %40 = arith.addf %36, %39 : vector<10x67xf32>
    %c0_25 = arith.constant 0 : index
    %c0_26 = arith.constant 0 : index
    %c0_27 = arith.constant 0 : index
    %41 = vector.load %arg8[%c0_25, %c0_26, %c0_27] : memref<8x1x67xf32, #tpu.memory_space<vmem>>, vector<1x1x67xf32>
    %42 = vector.shape_cast %41 : vector<1x1x67xf32> to vector<1x67xf32>
    %c0_28 = arith.constant 0 : index
    %c0_29 = arith.constant 0 : index
    %c0_30 = arith.constant 0 : index
    %43 = vector.load %arg9[%c0_28, %c0_29, %c0_30] : memref<8x1x67xf32, #tpu.memory_space<vmem>>, vector<1x1x67xf32>
    %44 = vector.shape_cast %43 : vector<1x1x67xf32> to vector<1x67xf32>
    %cst_31 = arith.constant dense<0.000000e+00> : vector<10xf32>
    %45 = vector.multi_reduction <add>, %40, %cst_31 [1] : vector<10x67xf32> to vector<10xf32>
    %46 = vector.shape_cast %45 : vector<10xf32> to vector<10x1xf32>
    %cst_32 = arith.constant 6.700000e+01 : f32
    %47 = vector.broadcast %cst_32 : f32 to vector<10x1xf32>
    %48 = arith.divf %46, %47 : vector<10x1xf32>
    %49 = vector.broadcast %48 : vector<10x1xf32> to vector<10x67xf32>
    %50 = arith.subf %40, %49 : vector<10x67xf32>
    %51 = arith.mulf %50, %50 : vector<10x67xf32>
    %cst_33 = arith.constant dense<0.000000e+00> : vector<10xf32>
    %52 = vector.multi_reduction <add>, %51, %cst_33 [1] : vector<10x67xf32> to vector<10xf32>
    %53 = vector.shape_cast %52 : vector<10xf32> to vector<10x1xf32>
    %cst_34 = arith.constant 6.700000e+01 : f32
    %54 = vector.broadcast %cst_34 : f32 to vector<10x1xf32>
    %55 = arith.divf %53, %54 : vector<10x1xf32>
    %cst_35 = arith.constant 9.99999997E-7 : f32
    %56 = vector.broadcast %cst_35 : f32 to vector<10x1xf32>
    %57 = arith.addf %55, %56 : vector<10x1xf32>
    %58 = math.rsqrt %57 : vector<10x1xf32>
    %59 = vector.broadcast %58 : vector<10x1xf32> to vector<10x67xf32>
    %60 = arith.mulf %50, %59 : vector<10x67xf32>
    %61 = vector.broadcast %42 : vector<1x67xf32> to vector<10x67xf32>
    %62 = arith.mulf %60, %61 : vector<10x67xf32>
    %63 = vector.broadcast %44 : vector<1x67xf32> to vector<10x67xf32>
    %64 = arith.addf %62, %63 : vector<10x67xf32>
    %cst_36 = arith.constant 0.000000e+00 : f32
    %65 = vector.broadcast %cst_36 : f32 to vector<10x67xf32>
    %66 = arith.maximumf %64, %65 : vector<10x67xf32>
    %c0_i32 = arith.constant 0 : i32
    %67 = vector.broadcast %c0_i32 : i32 to vector<10x1xi32>
    %68 = arith.cmpi eq, %1, %67 : vector<10x1xi32>
    %69 = vector.shape_cast %68 : vector<10x1xi1> to vector<10x1xi1>
    %70 = vector.broadcast %69 : vector<10x1xi1> to vector<10x67xi1>
    %71 = arith.select %70, %66, %32 : vector<10x67xi1>, vector<10x67xf32>
    %c1 = arith.constant 1 : index
    %c0_37 = arith.constant 0 : index
    %c0_38 = arith.constant 0 : index
    %72 = vector.load %arg6[%c1, %c0_37, %c0_38] : memref<8x64x67xbf16, #tpu.memory_space<vmem>>, vector<1x64x67xbf16>
    %73 = vector.shape_cast %72 : vector<1x64x67xbf16> to vector<64x67xbf16>
    %74 = arith.truncf %31 : vector<10x64xf32> to vector<10x64xbf16>
    %cst_39 = arith.constant dense<0.000000e+00> : vector<10x67xf32>
    %75 = tpu.matmul %74, %73, %cst_39 {dimension_numbers = #tpu.dot_dimension_numbers<[1], [0], [0], [1], [0, 0, 1, 1], [], []>} : vector<10x64xbf16>, vector<64x67xbf16>, vector<10x67xf32> -> vector<10x67xf32>
    %c1_40 = arith.constant 1 : index
    %c0_41 = arith.constant 0 : index
    %c0_42 = arith.constant 0 : index
    %76 = vector.load %arg7[%c1_40, %c0_41, %c0_42] : memref<8x1x67xf32, #tpu.memory_space<vmem>>, vector<1x1x67xf32>
    %77 = vector.shape_cast %76 : vector<1x1x67xf32> to vector<1x67xf32>
    %78 = vector.broadcast %77 : vector<1x67xf32> to vector<10x67xf32>
    %79 = arith.addf %75, %78 : vector<10x67xf32>
    %c1_43 = arith.constant 1 : index
    %c0_44 = arith.constant 0 : index
    %c0_45 = arith.constant 0 : index
    %80 = vector.load %arg8[%c1_43, %c0_44, %c0_45] : memref<8x1x67xf32, #tpu.memory_space<vmem>>, vector<1x1x67xf32>
    %81 = vector.shape_cast %80 : vector<1x1x67xf32> to vector<1x67xf32>
    %c1_46 = arith.constant 1 : index
    %c0_47 = arith.constant 0 : index
    %c0_48 = arith.constant 0 : index
    %82 = vector.load %arg9[%c1_46, %c0_47, %c0_48] : memref<8x1x67xf32, #tpu.memory_space<vmem>>, vector<1x1x67xf32>
    %83 = vector.shape_cast %82 : vector<1x1x67xf32> to vector<1x67xf32>
    %cst_49 = arith.constant dense<0.000000e+00> : vector<10xf32>
    %84 = vector.multi_reduction <add>, %79, %cst_49 [1] : vector<10x67xf32> to vector<10xf32>
    %85 = vector.shape_cast %84 : vector<10xf32> to vector<10x1xf32>
    %cst_50 = arith.constant 6.700000e+01 : f32
    %86 = vector.broadcast %cst_50 : f32 to vector<10x1xf32>
    %87 = arith.divf %85, %86 : vector<10x1xf32>
    %88 = vector.broadcast %87 : vector<10x1xf32> to vector<10x67xf32>
    %89 = arith.subf %79, %88 : vector<10x67xf32>
    %90 = arith.mulf %89, %89 : vector<10x67xf32>
    %cst_51 = arith.constant dense<0.000000e+00> : vector<10xf32>
    %91 = vector.multi_reduction <add>, %90, %cst_51 [1] : vector<10x67xf32> to vector<10xf32>
    %92 = vector.shape_cast %91 : vector<10xf32> to vector<10x1xf32>
    %cst_52 = arith.constant 6.700000e+01 : f32
    %93 = vector.broadcast %cst_52 : f32 to vector<10x1xf32>
    %94 = arith.divf %92, %93 : vector<10x1xf32>
    %cst_53 = arith.constant 9.99999997E-7 : f32
    %95 = vector.broadcast %cst_53 : f32 to vector<10x1xf32>
    %96 = arith.addf %94, %95 : vector<10x1xf32>
    %97 = math.rsqrt %96 : vector<10x1xf32>
    %98 = vector.broadcast %97 : vector<10x1xf32> to vector<10x67xf32>
    %99 = arith.mulf %89, %98 : vector<10x67xf32>
    %100 = vector.broadcast %81 : vector<1x67xf32> to vector<10x67xf32>
    %101 = arith.mulf %99, %100 : vector<10x67xf32>
    %102 = vector.broadcast %83 : vector<1x67xf32> to vector<10x67xf32>
    %103 = arith.addf %101, %102 : vector<10x67xf32>
    %cst_54 = arith.constant 0.000000e+00 : f32
    %104 = vector.broadcast %cst_54 : f32 to vector<10x67xf32>
    %105 = arith.maximumf %103, %104 : vector<10x67xf32>
    %c1_i32 = arith.constant 1 : i32
    %106 = vector.broadcast %c1_i32 : i32 to vector<10x1xi32>
    %107 = arith.cmpi eq, %1, %106 : vector<10x1xi32>
    %108 = vector.shape_cast %107 : vector<10x1xi1> to vector<10x1xi1>
    %109 = vector.broadcast %108 : vector<10x1xi1> to vector<10x67xi1>
    %110 = arith.select %109, %105, %71 : vector<10x67xi1>, vector<10x67xf32>
    %c2 = arith.constant 2 : index
    %c0_55 = arith.constant 0 : index
    %c0_56 = arith.constant 0 : index
    %111 = vector.load %arg6[%c2, %c0_55, %c0_56] : memref<8x64x67xbf16, #tpu.memory_space<vmem>>, vector<1x64x67xbf16>
    %112 = vector.shape_cast %111 : vector<1x64x67xbf16> to vector<64x67xbf16>
    %113 = arith.truncf %31 : vector<10x64xf32> to vector<10x64xbf16>
    %cst_57 = arith.constant dense<0.000000e+00> : vector<10x67xf32>
    %114 = tpu.matmul %113, %112, %cst_57 {dimension_numbers = #tpu.dot_dimension_numbers<[1], [0], [0], [1], [0, 0, 1, 1], [], []>} : vector<10x64xbf16>, vector<64x67xbf16>, vector<10x67xf32> -> vector<10x67xf32>
    %c2_58 = arith.constant 2 : index
    %c0_59 = arith.constant 0 : index
    %c0_60 = arith.constant 0 : index
    %115 = vector.load %arg7[%c2_58, %c0_59, %c0_60] : memref<8x1x67xf32, #tpu.memory_space<vmem>>, vector<1x1x67xf32>
    %116 = vector.shape_cast %115 : vector<1x1x67xf32> to vector<1x67xf32>
    %117 = vector.broadcast %116 : vector<1x67xf32> to vector<10x67xf32>
    %118 = arith.addf %114, %117 : vector<10x67xf32>
    %c2_61 = arith.constant 2 : index
    %c0_62 = arith.constant 0 : index
    %c0_63 = arith.constant 0 : index
    %119 = vector.load %arg8[%c2_61, %c0_62, %c0_63] : memref<8x1x67xf32, #tpu.memory_space<vmem>>, vector<1x1x67xf32>
    %120 = vector.shape_cast %119 : vector<1x1x67xf32> to vector<1x67xf32>
    %c2_64 = arith.constant 2 : index
    %c0_65 = arith.constant 0 : index
    %c0_66 = arith.constant 0 : index
    %121 = vector.load %arg9[%c2_64, %c0_65, %c0_66] : memref<8x1x67xf32, #tpu.memory_space<vmem>>, vector<1x1x67xf32>
    %122 = vector.shape_cast %121 : vector<1x1x67xf32> to vector<1x67xf32>
    %cst_67 = arith.constant dense<0.000000e+00> : vector<10xf32>
    %123 = vector.multi_reduction <add>, %118, %cst_67 [1] : vector<10x67xf32> to vector<10xf32>
    %124 = vector.shape_cast %123 : vector<10xf32> to vector<10x1xf32>
    %cst_68 = arith.constant 6.700000e+01 : f32
    %125 = vector.broadcast %cst_68 : f32 to vector<10x1xf32>
    %126 = arith.divf %124, %125 : vector<10x1xf32>
    %127 = vector.broadcast %126 : vector<10x1xf32> to vector<10x67xf32>
    %128 = arith.subf %118, %127 : vector<10x67xf32>
    %129 = arith.mulf %128, %128 : vector<10x67xf32>
    %cst_69 = arith.constant dense<0.000000e+00> : vector<10xf32>
    %130 = vector.multi_reduction <add>, %129, %cst_69 [1] : vector<10x67xf32> to vector<10xf32>
    %131 = vector.shape_cast %130 : vector<10xf32> to vector<10x1xf32>
    %cst_70 = arith.constant 6.700000e+01 : f32
    %132 = vector.broadcast %cst_70 : f32 to vector<10x1xf32>
    %133 = arith.divf %131, %132 : vector<10x1xf32>
    %cst_71 = arith.constant 9.99999997E-7 : f32
    %134 = vector.broadcast %cst_71 : f32 to vector<10x1xf32>
    %135 = arith.addf %133, %134 : vector<10x1xf32>
    %136 = math.rsqrt %135 : vector<10x1xf32>
    %137 = vector.broadcast %136 : vector<10x1xf32> to vector<10x67xf32>
    %138 = arith.mulf %128, %137 : vector<10x67xf32>
    %139 = vector.broadcast %120 : vector<1x67xf32> to vector<10x67xf32>
    %140 = arith.mulf %138, %139 : vector<10x67xf32>
    %141 = vector.broadcast %122 : vector<1x67xf32> to vector<10x67xf32>
    %142 = arith.addf %140, %141 : vector<10x67xf32>
    %cst_72 = arith.constant 0.000000e+00 : f32
    %143 = vector.broadcast %cst_72 : f32 to vector<10x67xf32>
    %144 = arith.maximumf %142, %143 : vector<10x67xf32>
    %c2_i32 = arith.constant 2 : i32
    %145 = vector.broadcast %c2_i32 : i32 to vector<10x1xi32>
    %146 = arith.cmpi eq, %1, %145 : vector<10x1xi32>
    %147 = vector.shape_cast %146 : vector<10x1xi1> to vector<10x1xi1>
    %148 = vector.broadcast %147 : vector<10x1xi1> to vector<10x67xi1>
    %149 = arith.select %148, %144, %110 : vector<10x67xi1>, vector<10x67xf32>
    %c3 = arith.constant 3 : index
    %c0_73 = arith.constant 0 : index
    %c0_74 = arith.constant 0 : index
    %150 = vector.load %arg6[%c3, %c0_73, %c0_74] : memref<8x64x67xbf16, #tpu.memory_space<vmem>>, vector<1x64x67xbf16>
    %151 = vector.shape_cast %150 : vector<1x64x67xbf16> to vector<64x67xbf16>
    %152 = arith.truncf %31 : vector<10x64xf32> to vector<10x64xbf16>
    %cst_75 = arith.constant dense<0.000000e+00> : vector<10x67xf32>
    %153 = tpu.matmul %152, %151, %cst_75 {dimension_numbers = #tpu.dot_dimension_numbers<[1], [0], [0], [1], [0, 0, 1, 1], [], []>} : vector<10x64xbf16>, vector<64x67xbf16>, vector<10x67xf32> -> vector<10x67xf32>
    %c3_76 = arith.constant 3 : index
    %c0_77 = arith.constant 0 : index
    %c0_78 = arith.constant 0 : index
    %154 = vector.load %arg7[%c3_76, %c0_77, %c0_78] : memref<8x1x67xf32, #tpu.memory_space<vmem>>, vector<1x1x67xf32>
    %155 = vector.shape_cast %154 : vector<1x1x67xf32> to vector<1x67xf32>
    %156 = vector.broadcast %155 : vector<1x67xf32> to vector<10x67xf32>
    %157 = arith.addf %153, %156 : vector<10x67xf32>
    %c3_79 = arith.constant 3 : index
    %c0_80 = arith.constant 0 : index
    %c0_81 = arith.constant 0 : index
    %158 = vector.load %arg8[%c3_79, %c0_80, %c0_81] : memref<8x1x67xf32, #tpu.memory_space<vmem>>, vector<1x1x67xf32>
    %159 = vector.shape_cast %158 : vector<1x1x67xf32> to vector<1x67xf32>
    %c3_82 = arith.constant 3 : index
    %c0_83 = arith.constant 0 : index
    %c0_84 = arith.constant 0 : index
    %160 = vector.load %arg9[%c3_82, %c0_83, %c0_84] : memref<8x1x67xf32, #tpu.memory_space<vmem>>, vector<1x1x67xf32>
    %161 = vector.shape_cast %160 : vector<1x1x67xf32> to vector<1x67xf32>
    %cst_85 = arith.constant dense<0.000000e+00> : vector<10xf32>
    %162 = vector.multi_reduction <add>, %157, %cst_85 [1] : vector<10x67xf32> to vector<10xf32>
    %163 = vector.shape_cast %162 : vector<10xf32> to vector<10x1xf32>
    %cst_86 = arith.constant 6.700000e+01 : f32
    %164 = vector.broadcast %cst_86 : f32 to vector<10x1xf32>
    %165 = arith.divf %163, %164 : vector<10x1xf32>
    %166 = vector.broadcast %165 : vector<10x1xf32> to vector<10x67xf32>
    %167 = arith.subf %157, %166 : vector<10x67xf32>
    %168 = arith.mulf %167, %167 : vector<10x67xf32>
    %cst_87 = arith.constant dense<0.000000e+00> : vector<10xf32>
    %169 = vector.multi_reduction <add>, %168, %cst_87 [1] : vector<10x67xf32> to vector<10xf32>
    %170 = vector.shape_cast %169 : vector<10xf32> to vector<10x1xf32>
    %cst_88 = arith.constant 6.700000e+01 : f32
    %171 = vector.broadcast %cst_88 : f32 to vector<10x1xf32>
    %172 = arith.divf %170, %171 : vector<10x1xf32>
    %cst_89 = arith.constant 9.99999997E-7 : f32
    %173 = vector.broadcast %cst_89 : f32 to vector<10x1xf32>
    %174 = arith.addf %172, %173 : vector<10x1xf32>
    %175 = math.rsqrt %174 : vector<10x1xf32>
    %176 = vector.broadcast %175 : vector<10x1xf32> to vector<10x67xf32>
    %177 = arith.mulf %167, %176 : vector<10x67xf32>
    %178 = vector.broadcast %159 : vector<1x67xf32> to vector<10x67xf32>
    %179 = arith.mulf %177, %178 : vector<10x67xf32>
    %180 = vector.broadcast %161 : vector<1x67xf32> to vector<10x67xf32>
    %181 = arith.addf %179, %180 : vector<10x67xf32>
    %cst_90 = arith.constant 0.000000e+00 : f32
    %182 = vector.broadcast %cst_90 : f32 to vector<10x67xf32>
    %183 = arith.maximumf %181, %182 : vector<10x67xf32>
    %c3_i32 = arith.constant 3 : i32
    %184 = vector.broadcast %c3_i32 : i32 to vector<10x1xi32>
    %185 = arith.cmpi eq, %1, %184 : vector<10x1xi32>
    %186 = vector.shape_cast %185 : vector<10x1xi1> to vector<10x1xi1>
    %187 = vector.broadcast %186 : vector<10x1xi1> to vector<10x67xi1>
    %188 = arith.select %187, %183, %149 : vector<10x67xi1>, vector<10x67xf32>
    %c4 = arith.constant 4 : index
    %c0_91 = arith.constant 0 : index
    %c0_92 = arith.constant 0 : index
    %189 = vector.load %arg6[%c4, %c0_91, %c0_92] : memref<8x64x67xbf16, #tpu.memory_space<vmem>>, vector<1x64x67xbf16>
    %190 = vector.shape_cast %189 : vector<1x64x67xbf16> to vector<64x67xbf16>
    %191 = arith.truncf %31 : vector<10x64xf32> to vector<10x64xbf16>
    %cst_93 = arith.constant dense<0.000000e+00> : vector<10x67xf32>
    %192 = tpu.matmul %191, %190, %cst_93 {dimension_numbers = #tpu.dot_dimension_numbers<[1], [0], [0], [1], [0, 0, 1, 1], [], []>} : vector<10x64xbf16>, vector<64x67xbf16>, vector<10x67xf32> -> vector<10x67xf32>
    %c4_94 = arith.constant 4 : index
    %c0_95 = arith.constant 0 : index
    %c0_96 = arith.constant 0 : index
    %193 = vector.load %arg7[%c4_94, %c0_95, %c0_96] : memref<8x1x67xf32, #tpu.memory_space<vmem>>, vector<1x1x67xf32>
    %194 = vector.shape_cast %193 : vector<1x1x67xf32> to vector<1x67xf32>
    %195 = vector.broadcast %194 : vector<1x67xf32> to vector<10x67xf32>
    %196 = arith.addf %192, %195 : vector<10x67xf32>
    %c4_97 = arith.constant 4 : index
    %c0_98 = arith.constant 0 : index
    %c0_99 = arith.constant 0 : index
    %197 = vector.load %arg8[%c4_97, %c0_98, %c0_99] : memref<8x1x67xf32, #tpu.memory_space<vmem>>, vector<1x1x67xf32>
    %198 = vector.shape_cast %197 : vector<1x1x67xf32> to vector<1x67xf32>
    %c4_100 = arith.constant 4 : index
    %c0_101 = arith.constant 0 : index
    %c0_102 = arith.constant 0 : index
    %199 = vector.load %arg9[%c4_100, %c0_101, %c0_102] : memref<8x1x67xf32, #tpu.memory_space<vmem>>, vector<1x1x67xf32>
    %200 = vector.shape_cast %199 : vector<1x1x67xf32> to vector<1x67xf32>
    %cst_103 = arith.constant dense<0.000000e+00> : vector<10xf32>
    %201 = vector.multi_reduction <add>, %196, %cst_103 [1] : vector<10x67xf32> to vector<10xf32>
    %202 = vector.shape_cast %201 : vector<10xf32> to vector<10x1xf32>
    %cst_104 = arith.constant 6.700000e+01 : f32
    %203 = vector.broadcast %cst_104 : f32 to vector<10x1xf32>
    %204 = arith.divf %202, %203 : vector<10x1xf32>
    %205 = vector.broadcast %204 : vector<10x1xf32> to vector<10x67xf32>
    %206 = arith.subf %196, %205 : vector<10x67xf32>
    %207 = arith.mulf %206, %206 : vector<10x67xf32>
    %cst_105 = arith.constant dense<0.000000e+00> : vector<10xf32>
    %208 = vector.multi_reduction <add>, %207, %cst_105 [1] : vector<10x67xf32> to vector<10xf32>
    %209 = vector.shape_cast %208 : vector<10xf32> to vector<10x1xf32>
    %cst_106 = arith.constant 6.700000e+01 : f32
    %210 = vector.broadcast %cst_106 : f32 to vector<10x1xf32>
    %211 = arith.divf %209, %210 : vector<10x1xf32>
    %cst_107 = arith.constant 9.99999997E-7 : f32
    %212 = vector.broadcast %cst_107 : f32 to vector<10x1xf32>
    %213 = arith.addf %211, %212 : vector<10x1xf32>
    %214 = math.rsqrt %213 : vector<10x1xf32>
    %215 = vector.broadcast %214 : vector<10x1xf32> to vector<10x67xf32>
    %216 = arith.mulf %206, %215 : vector<10x67xf32>
    %217 = vector.broadcast %198 : vector<1x67xf32> to vector<10x67xf32>
    %218 = arith.mulf %216, %217 : vector<10x67xf32>
    %219 = vector.broadcast %200 : vector<1x67xf32> to vector<10x67xf32>
    %220 = arith.addf %218, %219 : vector<10x67xf32>
    %cst_108 = arith.constant 0.000000e+00 : f32
    %221 = vector.broadcast %cst_108 : f32 to vector<10x67xf32>
    %222 = arith.maximumf %220, %221 : vector<10x67xf32>
    %c4_i32 = arith.constant 4 : i32
    %223 = vector.broadcast %c4_i32 : i32 to vector<10x1xi32>
    %224 = arith.cmpi eq, %1, %223 : vector<10x1xi32>
    %225 = vector.shape_cast %224 : vector<10x1xi1> to vector<10x1xi1>
    %226 = vector.broadcast %225 : vector<10x1xi1> to vector<10x67xi1>
    %227 = arith.select %226, %222, %188 : vector<10x67xi1>, vector<10x67xf32>
    %c5 = arith.constant 5 : index
    %c0_109 = arith.constant 0 : index
    %c0_110 = arith.constant 0 : index
    %228 = vector.load %arg6[%c5, %c0_109, %c0_110] : memref<8x64x67xbf16, #tpu.memory_space<vmem>>, vector<1x64x67xbf16>
    %229 = vector.shape_cast %228 : vector<1x64x67xbf16> to vector<64x67xbf16>
    %230 = arith.truncf %31 : vector<10x64xf32> to vector<10x64xbf16>
    %cst_111 = arith.constant dense<0.000000e+00> : vector<10x67xf32>
    %231 = tpu.matmul %230, %229, %cst_111 {dimension_numbers = #tpu.dot_dimension_numbers<[1], [0], [0], [1], [0, 0, 1, 1], [], []>} : vector<10x64xbf16>, vector<64x67xbf16>, vector<10x67xf32> -> vector<10x67xf32>
    %c5_112 = arith.constant 5 : index
    %c0_113 = arith.constant 0 : index
    %c0_114 = arith.constant 0 : index
    %232 = vector.load %arg7[%c5_112, %c0_113, %c0_114] : memref<8x1x67xf32, #tpu.memory_space<vmem>>, vector<1x1x67xf32>
    %233 = vector.shape_cast %232 : vector<1x1x67xf32> to vector<1x67xf32>
    %234 = vector.broadcast %233 : vector<1x67xf32> to vector<10x67xf32>
    %235 = arith.addf %231, %234 : vector<10x67xf32>
    %c5_115 = arith.constant 5 : index
    %c0_116 = arith.constant 0 : index
    %c0_117 = arith.constant 0 : index
    %236 = vector.load %arg8[%c5_115, %c0_116, %c0_117] : memref<8x1x67xf32, #tpu.memory_space<vmem>>, vector<1x1x67xf32>
    %237 = vector.shape_cast %236 : vector<1x1x67xf32> to vector<1x67xf32>
    %c5_118 = arith.constant 5 : index
    %c0_119 = arith.constant 0 : index
    %c0_120 = arith.constant 0 : index
    %238 = vector.load %arg9[%c5_118, %c0_119, %c0_120] : memref<8x1x67xf32, #tpu.memory_space<vmem>>, vector<1x1x67xf32>
    %239 = vector.shape_cast %238 : vector<1x1x67xf32> to vector<1x67xf32>
    %cst_121 = arith.constant dense<0.000000e+00> : vector<10xf32>
    %240 = vector.multi_reduction <add>, %235, %cst_121 [1] : vector<10x67xf32> to vector<10xf32>
    %241 = vector.shape_cast %240 : vector<10xf32> to vector<10x1xf32>
    %cst_122 = arith.constant 6.700000e+01 : f32
    %242 = vector.broadcast %cst_122 : f32 to vector<10x1xf32>
    %243 = arith.divf %241, %242 : vector<10x1xf32>
    %244 = vector.broadcast %243 : vector<10x1xf32> to vector<10x67xf32>
    %245 = arith.subf %235, %244 : vector<10x67xf32>
    %246 = arith.mulf %245, %245 : vector<10x67xf32>
    %cst_123 = arith.constant dense<0.000000e+00> : vector<10xf32>
    %247 = vector.multi_reduction <add>, %246, %cst_123 [1] : vector<10x67xf32> to vector<10xf32>
    %248 = vector.shape_cast %247 : vector<10xf32> to vector<10x1xf32>
    %cst_124 = arith.constant 6.700000e+01 : f32
    %249 = vector.broadcast %cst_124 : f32 to vector<10x1xf32>
    %250 = arith.divf %248, %249 : vector<10x1xf32>
    %cst_125 = arith.constant 9.99999997E-7 : f32
    %251 = vector.broadcast %cst_125 : f32 to vector<10x1xf32>
    %252 = arith.addf %250, %251 : vector<10x1xf32>
    %253 = math.rsqrt %252 : vector<10x1xf32>
    %254 = vector.broadcast %253 : vector<10x1xf32> to vector<10x67xf32>
    %255 = arith.mulf %245, %254 : vector<10x67xf32>
    %256 = vector.broadcast %237 : vector<1x67xf32> to vector<10x67xf32>
    %257 = arith.mulf %255, %256 : vector<10x67xf32>
    %258 = vector.broadcast %239 : vector<1x67xf32> to vector<10x67xf32>
    %259 = arith.addf %257, %258 : vector<10x67xf32>
    %cst_126 = arith.constant 0.000000e+00 : f32
    %260 = vector.broadcast %cst_126 : f32 to vector<10x67xf32>
    %261 = arith.maximumf %259, %260 : vector<10x67xf32>
    %c5_i32 = arith.constant 5 : i32
    %262 = vector.broadcast %c5_i32 : i32 to vector<10x1xi32>
    %263 = arith.cmpi eq, %1, %262 : vector<10x1xi32>
    %264 = vector.shape_cast %263 : vector<10x1xi1> to vector<10x1xi1>
    %265 = vector.broadcast %264 : vector<10x1xi1> to vector<10x67xi1>
    %266 = arith.select %265, %261, %227 : vector<10x67xi1>, vector<10x67xf32>
    %c6 = arith.constant 6 : index
    %c0_127 = arith.constant 0 : index
    %c0_128 = arith.constant 0 : index
    %267 = vector.load %arg6[%c6, %c0_127, %c0_128] : memref<8x64x67xbf16, #tpu.memory_space<vmem>>, vector<1x64x67xbf16>
    %268 = vector.shape_cast %267 : vector<1x64x67xbf16> to vector<64x67xbf16>
    %269 = arith.truncf %31 : vector<10x64xf32> to vector<10x64xbf16>
    %cst_129 = arith.constant dense<0.000000e+00> : vector<10x67xf32>
    %270 = tpu.matmul %269, %268, %cst_129 {dimension_numbers = #tpu.dot_dimension_numbers<[1], [0], [0], [1], [0, 0, 1, 1], [], []>} : vector<10x64xbf16>, vector<64x67xbf16>, vector<10x67xf32> -> vector<10x67xf32>
    %c6_130 = arith.constant 6 : index
    %c0_131 = arith.constant 0 : index
    %c0_132 = arith.constant 0 : index
    %271 = vector.load %arg7[%c6_130, %c0_131, %c0_132] : memref<8x1x67xf32, #tpu.memory_space<vmem>>, vector<1x1x67xf32>
    %272 = vector.shape_cast %271 : vector<1x1x67xf32> to vector<1x67xf32>
    %273 = vector.broadcast %272 : vector<1x67xf32> to vector<10x67xf32>
    %274 = arith.addf %270, %273 : vector<10x67xf32>
    %c6_133 = arith.constant 6 : index
    %c0_134 = arith.constant 0 : index
    %c0_135 = arith.constant 0 : index
    %275 = vector.load %arg8[%c6_133, %c0_134, %c0_135] : memref<8x1x67xf32, #tpu.memory_space<vmem>>, vector<1x1x67xf32>
    %276 = vector.shape_cast %275 : vector<1x1x67xf32> to vector<1x67xf32>
    %c6_136 = arith.constant 6 : index
    %c0_137 = arith.constant 0 : index
    %c0_138 = arith.constant 0 : index
    %277 = vector.load %arg9[%c6_136, %c0_137, %c0_138] : memref<8x1x67xf32, #tpu.memory_space<vmem>>, vector<1x1x67xf32>
    %278 = vector.shape_cast %277 : vector<1x1x67xf32> to vector<1x67xf32>
    %cst_139 = arith.constant dense<0.000000e+00> : vector<10xf32>
    %279 = vector.multi_reduction <add>, %274, %cst_139 [1] : vector<10x67xf32> to vector<10xf32>
    %280 = vector.shape_cast %279 : vector<10xf32> to vector<10x1xf32>
    %cst_140 = arith.constant 6.700000e+01 : f32
    %281 = vector.broadcast %cst_140 : f32 to vector<10x1xf32>
    %282 = arith.divf %280, %281 : vector<10x1xf32>
    %283 = vector.broadcast %282 : vector<10x1xf32> to vector<10x67xf32>
    %284 = arith.subf %274, %283 : vector<10x67xf32>
    %285 = arith.mulf %284, %284 : vector<10x67xf32>
    %cst_141 = arith.constant dense<0.000000e+00> : vector<10xf32>
    %286 = vector.multi_reduction <add>, %285, %cst_141 [1] : vector<10x67xf32> to vector<10xf32>
    %287 = vector.shape_cast %286 : vector<10xf32> to vector<10x1xf32>
    %cst_142 = arith.constant 6.700000e+01 : f32
    %288 = vector.broadcast %cst_142 : f32 to vector<10x1xf32>
    %289 = arith.divf %287, %288 : vector<10x1xf32>
    %cst_143 = arith.constant 9.99999997E-7 : f32
    %290 = vector.broadcast %cst_143 : f32 to vector<10x1xf32>
    %291 = arith.addf %289, %290 : vector<10x1xf32>
    %292 = math.rsqrt %291 : vector<10x1xf32>
    %293 = vector.broadcast %292 : vector<10x1xf32> to vector<10x67xf32>
    %294 = arith.mulf %284, %293 : vector<10x67xf32>
    %295 = vector.broadcast %276 : vector<1x67xf32> to vector<10x67xf32>
    %296 = arith.mulf %294, %295 : vector<10x67xf32>
    %297 = vector.broadcast %278 : vector<1x67xf32> to vector<10x67xf32>
    %298 = arith.addf %296, %297 : vector<10x67xf32>
    %cst_144 = arith.constant 0.000000e+00 : f32
    %299 = vector.broadcast %cst_144 : f32 to vector<10x67xf32>
    %300 = arith.maximumf %298, %299 : vector<10x67xf32>
    %c6_i32 = arith.constant 6 : i32
    %301 = vector.broadcast %c6_i32 : i32 to vector<10x1xi32>
    %302 = arith.cmpi eq, %1, %301 : vector<10x1xi32>
    %303 = vector.shape_cast %302 : vector<10x1xi1> to vector<10x1xi1>
    %304 = vector.broadcast %303 : vector<10x1xi1> to vector<10x67xi1>
    %305 = arith.select %304, %300, %266 : vector<10x67xi1>, vector<10x67xf32>
    %c7 = arith.constant 7 : index
    %c0_145 = arith.constant 0 : index
    %c0_146 = arith.constant 0 : index
    %306 = vector.load %arg6[%c7, %c0_145, %c0_146] : memref<8x64x67xbf16, #tpu.memory_space<vmem>>, vector<1x64x67xbf16>
    %307 = vector.shape_cast %306 : vector<1x64x67xbf16> to vector<64x67xbf16>
    %308 = arith.truncf %31 : vector<10x64xf32> to vector<10x64xbf16>
    %cst_147 = arith.constant dense<0.000000e+00> : vector<10x67xf32>
    %309 = tpu.matmul %308, %307, %cst_147 {dimension_numbers = #tpu.dot_dimension_numbers<[1], [0], [0], [1], [0, 0, 1, 1], [], []>} : vector<10x64xbf16>, vector<64x67xbf16>, vector<10x67xf32> -> vector<10x67xf32>
    %c7_148 = arith.constant 7 : index
    %c0_149 = arith.constant 0 : index
    %c0_150 = arith.constant 0 : index
    %310 = vector.load %arg7[%c7_148, %c0_149, %c0_150] : memref<8x1x67xf32, #tpu.memory_space<vmem>>, vector<1x1x67xf32>
    %311 = vector.shape_cast %310 : vector<1x1x67xf32> to vector<1x67xf32>
    %312 = vector.broadcast %311 : vector<1x67xf32> to vector<10x67xf32>
    %313 = arith.addf %309, %312 : vector<10x67xf32>
    %c7_151 = arith.constant 7 : index
    %c0_152 = arith.constant 0 : index
    %c0_153 = arith.constant 0 : index
    %314 = vector.load %arg8[%c7_151, %c0_152, %c0_153] : memref<8x1x67xf32, #tpu.memory_space<vmem>>, vector<1x1x67xf32>
    %315 = vector.shape_cast %314 : vector<1x1x67xf32> to vector<1x67xf32>
    %c7_154 = arith.constant 7 : index
    %c0_155 = arith.constant 0 : index
    %c0_156 = arith.constant 0 : index
    %316 = vector.load %arg9[%c7_154, %c0_155, %c0_156] : memref<8x1x67xf32, #tpu.memory_space<vmem>>, vector<1x1x67xf32>
    %317 = vector.shape_cast %316 : vector<1x1x67xf32> to vector<1x67xf32>
    %cst_157 = arith.constant dense<0.000000e+00> : vector<10xf32>
    %318 = vector.multi_reduction <add>, %313, %cst_157 [1] : vector<10x67xf32> to vector<10xf32>
    %319 = vector.shape_cast %318 : vector<10xf32> to vector<10x1xf32>
    %cst_158 = arith.constant 6.700000e+01 : f32
    %320 = vector.broadcast %cst_158 : f32 to vector<10x1xf32>
    %321 = arith.divf %319, %320 : vector<10x1xf32>
    %322 = vector.broadcast %321 : vector<10x1xf32> to vector<10x67xf32>
    %323 = arith.subf %313, %322 : vector<10x67xf32>
    %324 = arith.mulf %323, %323 : vector<10x67xf32>
    %cst_159 = arith.constant dense<0.000000e+00> : vector<10xf32>
    %325 = vector.multi_reduction <add>, %324, %cst_159 [1] : vector<10x67xf32> to vector<10xf32>
    %326 = vector.shape_cast %325 : vector<10xf32> to vector<10x1xf32>
    %cst_160 = arith.constant 6.700000e+01 : f32
    %327 = vector.broadcast %cst_160 : f32 to vector<10x1xf32>
    %328 = arith.divf %326, %327 : vector<10x1xf32>
    %cst_161 = arith.constant 9.99999997E-7 : f32
    %329 = vector.broadcast %cst_161 : f32 to vector<10x1xf32>
    %330 = arith.addf %328, %329 : vector<10x1xf32>
    %331 = math.rsqrt %330 : vector<10x1xf32>
    %332 = vector.broadcast %331 : vector<10x1xf32> to vector<10x67xf32>
    %333 = arith.mulf %323, %332 : vector<10x67xf32>
    %334 = vector.broadcast %315 : vector<1x67xf32> to vector<10x67xf32>
    %335 = arith.mulf %333, %334 : vector<10x67xf32>
    %336 = vector.broadcast %317 : vector<1x67xf32> to vector<10x67xf32>
    %337 = arith.addf %335, %336 : vector<10x67xf32>
    %cst_162 = arith.constant 0.000000e+00 : f32
    %338 = vector.broadcast %cst_162 : f32 to vector<10x67xf32>
    %339 = arith.maximumf %337, %338 : vector<10x67xf32>
    %c7_i32 = arith.constant 7 : i32
    %340 = vector.broadcast %c7_i32 : i32 to vector<10x1xi32>
    %341 = arith.cmpi eq, %1, %340 : vector<10x1xi32>
    %342 = vector.shape_cast %341 : vector<10x1xi1> to vector<10x1xi1>
    %343 = vector.broadcast %342 : vector<10x1xi1> to vector<10x67xi1>
    %344 = arith.select %343, %339, %305 : vector<10x67xi1>, vector<10x67xf32>
    %345 = arith.addf %0, %344 : vector<10x67xf32>
    %c0_163 = arith.constant 0 : index
    %c0_164 = arith.constant 0 : index
    %346 = vector.load %arg10[%c0_163, %c0_164] : memref<67x16xbf16, #tpu.memory_space<vmem>>, vector<67x16xbf16>
    %347 = arith.truncf %345 : vector<10x67xf32> to vector<10x67xbf16>
    %cst_165 = arith.constant dense<0.000000e+00> : vector<10x16xf32>
    %348 = tpu.matmul %347, %346, %cst_165 {dimension_numbers = #tpu.dot_dimension_numbers<[1], [0], [0], [1], [0, 0, 1, 1], [], []>} : vector<10x67xbf16>, vector<67x16xbf16>, vector<10x16xf32> -> vector<10x16xf32>
    %c0_166 = arith.constant 0 : index
    %c0_167 = arith.constant 0 : index
    %349 = vector.load %arg11[%c0_166, %c0_167] : memref<1x16xf32, #tpu.memory_space<vmem>>, vector<1x16xf32>
    %350 = vector.broadcast %349 : vector<1x16xf32> to vector<10x16xf32>
    %351 = arith.addf %348, %350 : vector<10x16xf32>
    %c0_168 = arith.constant 0 : index
    %c0_169 = arith.constant 0 : index
    %352 = vector.load %arg12[%c0_168, %c0_169] : memref<1x16xf32, #tpu.memory_space<vmem>>, vector<1x16xf32>
    %c0_170 = arith.constant 0 : index
    %c0_171 = arith.constant 0 : index
    %353 = vector.load %arg13[%c0_170, %c0_171] : memref<1x16xf32, #tpu.memory_space<vmem>>, vector<1x16xf32>
    %cst_172 = arith.constant dense<0.000000e+00> : vector<10xf32>
    %354 = vector.multi_reduction <add>, %351, %cst_172 [1] : vector<10x16xf32> to vector<10xf32>
    %355 = vector.shape_cast %354 : vector<10xf32> to vector<10x1xf32>
    %cst_173 = arith.constant 1.600000e+01 : f32
    %356 = vector.broadcast %cst_173 : f32 to vector<10x1xf32>
    %357 = arith.divf %355, %356 : vector<10x1xf32>
    %358 = vector.broadcast %357 : vector<10x1xf32> to vector<10x16xf32>
    %359 = arith.subf %351, %358 : vector<10x16xf32>
    %360 = arith.mulf %359, %359 : vector<10x16xf32>
    %cst_174 = arith.constant dense<0.000000e+00> : vector<10xf32>
    %361 = vector.multi_reduction <add>, %360, %cst_174 [1] : vector<10x16xf32> to vector<10xf32>
    %362 = vector.shape_cast %361 : vector<10xf32> to vector<10x1xf32>
    %cst_175 = arith.constant 1.600000e+01 : f32
    %363 = vector.broadcast %cst_175 : f32 to vector<10x1xf32>
    %364 = arith.divf %362, %363 : vector<10x1xf32>
    %cst_176 = arith.constant 9.99999997E-7 : f32
    %365 = vector.broadcast %cst_176 : f32 to vector<10x1xf32>
    %366 = arith.addf %364, %365 : vector<10x1xf32>
    %367 = math.rsqrt %366 : vector<10x1xf32>
    %368 = vector.broadcast %367 : vector<10x1xf32> to vector<10x16xf32>
    %369 = arith.mulf %359, %368 : vector<10x16xf32>
    %370 = vector.broadcast %352 : vector<1x16xf32> to vector<10x16xf32>
    %371 = arith.mulf %369, %370 : vector<10x16xf32>
    %372 = vector.broadcast %353 : vector<1x16xf32> to vector<10x16xf32>
    %373 = arith.addf %371, %372 : vector<10x16xf32>
    %cst_177 = arith.constant 0.000000e+00 : f32
    %374 = vector.broadcast %cst_177 : f32 to vector<10x16xf32>
    %375 = arith.maximumf %373, %374 : vector<10x16xf32>
    %c0_178 = arith.constant 0 : index
    %c0_179 = arith.constant 0 : index
    %376 = vector.load %arg14[%c0_178, %c0_179] : memref<16x1xbf16, #tpu.memory_space<vmem>>, vector<16x1xbf16>
    %377 = arith.truncf %375 : vector<10x16xf32> to vector<10x16xbf16>
    %cst_180 = arith.constant dense<0.000000e+00> : vector<10x1xf32>
    %378 = tpu.matmul %377, %376, %cst_180 {dimension_numbers = #tpu.dot_dimension_numbers<[1], [0], [0], [1], [0, 0, 1, 1], [], []>} : vector<10x16xbf16>, vector<16x1xbf16>, vector<10x1xf32> -> vector<10x1xf32>
    %c0_181 = arith.constant 0 : index
    %c0_182 = arith.constant 0 : index
    %379 = vector.load %arg15[%c0_181, %c0_182] : memref<1x1xf32, #tpu.memory_space<vmem>>, vector<1x1xf32>
    %380 = vector.broadcast %379 : vector<1x1xf32> to vector<10x1xf32>
    %381 = arith.addf %378, %380 : vector<10x1xf32>
    %c0_183 = arith.constant 0 : index
    %c0_184 = arith.constant 0 : index
    %382 = vector.load %arg16[%c0_183, %c0_184] : memref<10x1xf32, #tpu.memory_space<vmem>>, vector<10x1xf32>
    tpu.vector_store %arg16[%c0_183, %c0_184], %381 {strides = array<i32>} : memref<10x1xf32, #tpu.memory_space<vmem>>, vector<10x1xf32>,
    return
  }
}

</mosaic_0001>

<llo_original>
// kernel: fwd.12
$region0: #{fwd.12}
  #allocation0 [shape = 'u32[]', space=smem, size = 0x4, offset = 0x4, fixed_abs, tag = 'smem constant byte address 0x4 - core index']
  #allocation1 [shape = 'u32[144,128]{1,0:T(1,128)}', space=vmem, size = 0x12000, scoped, tag = 'internal scratch']
  %s0 = inlined_call_operand.vmem [shape: f32[12,5], index: 0, kind: input, shape index: {}]
  %s1 = inlined_call_operand.vmem [shape: f32[5,1024], index: 1, kind: input, shape index: {}]
  %s2 = inlined_call_operand.vmem [shape: f32[1,1024], index: 2, kind: input, shape index: {}]
  %s3 = inlined_call_operand.vmem [shape: f32[12,1024], index: 3, kind: output, shape index: {}]
  %s4 = sld [smem:[#allocation0]]
  $region22: #{fwd.12} parent=0
    _
  %s6 = ssub.s32 1, %s4
  %s7 = scalar_select 0, %s6, %s4
  // Predicated region
  $region2: #{fwd.12} parent=0 // pred_check
    _
  $region3: #{fwd.12} parent=0 // pred_check_branch
    %9 = sbr.rel (0) target = $region5
  $region4: #{fwd.12} parent=0 // pred_region
    _
  $region5: #{fwd.12} parent=0 // pred_fallthru
    _
  // Predicated region
  $region6: #{fwd.12} parent=0 // pred_check
    _
  $region7: #{fwd.12} parent=0 // pred_check_branch
    %11 = sbr.rel (0) target = $region9
  $region8: #{fwd.12} parent=0 // pred_region
    _
  $region9: #{fwd.12} parent=0 // pred_fallthru
    _
  // Predicated region
  $region10: #{fwd.12} parent=0 // pred_check
    _
  $region11: #{fwd.12} parent=0 // pred_check_branch
    %13 = sbr.rel (0) target = $region13
  $region12: #{fwd.12} parent=0 // pred_region
    _
  $region13: #{fwd.12} parent=0 // pred_fallthru
    _
  %v15 = vld [vmem:[%s0] sm:$0xff]
  %v16 = vld [vmem:[%s0 + $0x8] sm:$0xf]
  %v17 = vld [vmem:[%s1] sm:$0x1f]
  %v18 = vld [vmem:[%s1 + $0x8] sm:$0x1f]
  %v19 = vld [vmem:[%s1 + $0x10] sm:$0x1f]
  %v20 = vld [vmem:[%s1 + $0x18] sm:$0x1f]
  %v21 = vld [vmem:[%s1 + $0x20] sm:$0x1f]
  %v22 = vld [vmem:[%s1 + $0x28] sm:$0x1f]
  %v23 = vld [vmem:[%s1 + $0x30] sm:$0x1f]
  %v24 = vld [vmem:[%s1 + $0x38] sm:$0x1f]
  %v25 = vpack.c.bf16 %v16, %v15
  %v26 = vpack.c.bf16 %v17, %v17
  %v27 = vpack.c.bf16 %v18, %v18
  %v28 = vpack.c.bf16 %v19, %v19
  %v29 = vpack.c.bf16 %v20, %v20
  %v30 = vpack.c.bf16 %v21, %v21
  %v31 = vpack.c.bf16 %v22, %v22
  %v32 = vpack.c.bf16 %v23, %v23
  %v33 = vpack.c.bf16 %v24, %v24
  %v34 = vld [vmem:[%s2] sm:$0xff]
  %v36 = vlaneseq
  %v37 = vshrl.u32 %v36, 7
  %v38 = vsub.s32 0, %v37
  %v39 = vrot.slane %v34, %v38
  %v40 = vlaneseq
  %v41 = vshrl.u32 %v40, 7
  %v42 = vsub.s32 1, %v41
  %v43 = vrot.slane %v34, %v42
  %v44 = vlaneseq
  %v45 = vshrl.u32 %v44, 7
  %v46 = vsub.s32 2, %v45
  %v47 = vrot.slane %v34, %v46
  %v48 = vlaneseq
  %v49 = vshrl.u32 %v48, 7
  %v50 = vsub.s32 3, %v49
  %v51 = vrot.slane %v34, %v50
  %v52 = vlaneseq
  %v53 = vshrl.u32 %v52, 7
  %v54 = vsub.s32 4, %v53
  %v55 = vrot.slane %v34, %v54
  %v56 = vlaneseq
  %v57 = vshrl.u32 %v56, 7
  %v58 = vsub.s32 5, %v57
  %v59 = vrot.slane %v34, %v58
  %v60 = vlaneseq
  %v61 = vshrl.u32 %v60, 7
  %v62 = vsub.s32 6, %v61
  %v63 = vrot.slane %v34, %v62
  %v64 = vlaneseq
  %v65 = vshrl.u32 %v64, 7
  %v66 = vsub.s32 7, %v65
  %v67 = vrot.slane %v34, %v66
  %vm76 = vcmask 39936
  %v78 = vsel %vm76, %v25, 0
  %vm80 = vcmask 1041408
  %vm81 = vcmask 1042432
  %v82 = vsel %vm80, 4294967295, 65535
  %v83 = vsel %vm81, %v82, 0
  %v85 = vand.u32 %v26, %v83
  %v88 = vand.u32 %v27, %v83
  %v91 = vand.u32 %v28, %v83
  %v94 = vand.u32 %v29, %v83
  %v97 = vand.u32 %v30, %v83
  %v100 = vand.u32 %v31, %v83
  %v103 = vand.u32 %v32, %v83
  %v106 = vand.u32 %v33, %v83
  %108 = vmatprep.subr.bf16.mxu0 %v88
  %109 = vmatpush1.bf16.msra.mxu0 %v85
  %110 = vmatprep.subr.bf16.mxu0 0
  %111 = vmatpush1.bf16.msra.mxu0 0
  %112 = vmatprep.subr.bf16.mxu0 0
  %113 = vmatpush1.bf16.msra.mxu0 0
  %114 = vmatprep.subr.bf16.mxu0 0
  %115 = vmatpush1.bf16.msra.mxu0 0
  %116 = vmatprep.subr.bf16.mxu0 0
  %117 = vmatpush1.bf16.msra.mxu0 0
  %118 = vmatprep.subr.bf16.mxu0 0
  %119 = vmatpush1.bf16.msra.mxu0 0
  %120 = vmatprep.subr.bf16.mxu0 0
  %121 = vmatpush1.bf16.msra.mxu0 0
  %122 = vmatprep.subr.bf16.mxu0 0
  %123 = vmatpush1.bf16.msra.mxu0 0
  %124 = vmatprep.subr.bf16.mxu0 0
  %125 = vmatpush1.bf16.msra.mxu0 0
  %126 = vmatprep.subr.bf16.mxu0 0
  %127 = vmatpush1.bf16.msra.mxu0 0
  %128 = vmatprep.subr.bf16.mxu0 0
  %129 = vmatpush1.bf16.msra.mxu0 0
  %130 = vmatprep.subr.bf16.mxu0 0
  %131 = vmatpush1.bf16.msra.mxu0 0
  %132 = vmatprep.subr.bf16.mxu0 0
  %133 = vmatpush1.bf16.msra.mxu0 0
  %134 = vmatprep.subr.bf16.mxu0 0
  %135 = vmatpush1.bf16.msra.mxu0 0
  %136 = vmatprep.subr.bf16.mxu0 0
  %137 = vmatpush1.bf16.msra.mxu0 0
  %138 = vmatprep.subr.bf16.mxu0 0
  %139 = vmatpush1.bf16.msra.mxu0 0
  %140 = vmatprep.mubr.bf16.mxu0 0
  %141 = vmatmul.mubr.bf16.gmra.mrb[0].mxu0 %v78
  %v142 = vpop.f32.mrb[0].mxu0
  %v143 = vadd.f32 %v39, %v142
  %v144 = vpop.f32.mrb[0].mxu0
  %v145 = vadd.f32 %v43, %v144
  %v146 = vpop.f32.mrb[0].mxu0
  %v147 = vadd.f32 %v39, %v146
  %v148 = vpop.f32.mrb[0].mxu0
  %v149 = vadd.f32 %v43, %v148
  %150 = vdwg.mxu0
  %151 = vmatprep.subr.bf16.mxu0 %v94
  %152 = vmatpush1.bf16.msra.mxu0 %v91
  %153 = vmatprep.subr.bf16.mxu0 0
  %154 = vmatpush1.bf16.msra.mxu0 0
  %155 = vmatprep.subr.bf16.mxu0 0
  %156 = vmatpush1.bf16.msra.mxu0 0
  %157 = vmatprep.subr.bf16.mxu0 0
  %158 = vmatpush1.bf16.msra.mxu0 0
  %159 = vmatprep.subr.bf16.mxu0 0
  %160 = vmatpush1.bf16.msra.mxu0 0
  %161 = vmatprep.subr.bf16.mxu0 0
  %162 = vmatpush1.bf16.msra.mxu0 0
  %163 = vmatprep.subr.bf16.mxu0 0
  %164 = vmatpush1.bf16.msra.mxu0 0
  %165 = vmatprep.subr.bf16.mxu0 0
  %166 = vmatpush1.bf16.msra.mxu0 0
  %167 = vmatprep.subr.bf16.mxu0 0
  %168 = vmatpush1.bf16.msra.mxu0 0
  %169 = vmatprep.subr.bf16.mxu0 0
  %170 = vmatpush1.bf16.msra.mxu0 0
  %171 = vmatprep.subr.bf16.mxu0 0
  %172 = vmatpush1.bf16.msra.mxu0 0
  %173 = vmatprep.subr.bf16.mxu0 0
  %174 = vmatpush1.bf16.msra.mxu0 0
  %175 = vmatprep.subr.bf16.mxu0 0
  %176 = vmatpush1.bf16.msra.mxu0 0
  %177 = vmatprep.subr.bf16.mxu0 0
  %178 = vmatpush1.bf16.msra.mxu0 0
  %179 = vmatprep.subr.bf16.mxu0 0
  %180 = vmatpush1.bf16.msra.mxu0 0
  %181 = vmatprep.subr.bf16.mxu0 0
  %182 = vmatpush1.bf16.msra.mxu0 0
  %183 = vmatprep.mubr.bf16.mxu0 0
  %184 = vmatmul.mubr.bf16.gmra.mrb[0].mxu0 %v78
  %v185 = vpop.f32.mrb[0].mxu0
  %v186 = vadd.f32 %v47, %v185
  %v187 = vpop.f32.mrb[0].mxu0
  %v188 = vadd.f32 %v51, %v187
  %v189 = vpop.f32.mrb[0].mxu0
  %v190 = vadd.f32 %v47, %v189
  %v191 = vpop.f32.mrb[0].mxu0
  %v192 = vadd.f32 %v51, %v191
  %193 = vdwg.mxu0
  %194 = vmatprep.subr.bf16.mxu0 %v100
  %195 = vmatpush1.bf16.msra.mxu0 %v97
  %196 = vmatprep.subr.bf16.mxu0 0
  %197 = vmatpush1.bf16.msra.mxu0 0
  %198 = vmatprep.subr.bf16.mxu0 0
  %199 = vmatpush1.bf16.msra.mxu0 0
  %200 = vmatprep.subr.bf16.mxu0 0
  %201 = vmatpush1.bf16.msra.mxu0 0
  %202 = vmatprep.subr.bf16.mxu0 0
  %203 = vmatpush1.bf16.msra.mxu0 0
  %204 = vmatprep.subr.bf16.mxu0 0
  %205 = vmatpush1.bf16.msra.mxu0 0
  %206 = vmatprep.subr.bf16.mxu0 0
  %207 = vmatpush1.bf16.msra.mxu0 0
  %208 = vmatprep.subr.bf16.mxu0 0
  %209 = vmatpush1.bf16.msra.mxu0 0
  %210 = vmatprep.subr.bf16.mxu0 0
  %211 = vmatpush1.bf16.msra.mxu0 0
  %212 = vmatprep.subr.bf16.mxu0 0
  %213 = vmatpush1.bf16.msra.mxu0 0
  %214 = vmatprep.subr.bf16.mxu0 0
  %215 = vmatpush1.bf16.msra.mxu0 0
  %216 = vmatprep.subr.bf16.mxu0 0
  %217 = vmatpush1.bf16.msra.mxu0 0
  %218 = vmatprep.subr.bf16.mxu0 0
  %219 = vmatpush1.bf16.msra.mxu0 0
  %220 = vmatprep.subr.bf16.mxu0 0
  %221 = vmatpush1.bf16.msra.mxu0 0
  %222 = vmatprep.subr.bf16.mxu0 0
  %223 = vmatpush1.bf16.msra.mxu0 0
  %224 = vmatprep.subr.bf16.mxu0 0
  %225 = vmatpush1.bf16.msra.mxu0 0
  %226 = vmatprep.mubr.bf16.mxu0 0
  %227 = vmatmul.mubr.bf16.gmra.mrb[0].mxu0 %v78
  %v228 = vpop.f32.mrb[0].mxu0
  %v229 = vadd.f32 %v55, %v228
  %v230 = vpop.f32.mrb[0].mxu0
  %v231 = vadd.f32 %v59, %v230
  %v232 = vpop.f32.mrb[0].mxu0
  %v233 = vadd.f32 %v55, %v232
  %v234 = vpop.f32.mrb[0].mxu0
  %v235 = vadd.f32 %v59, %v234
  %236 = vdwg.mxu0
  %237 = vmatprep.subr.bf16.mxu0 %v106
  %238 = vmatpush1.bf16.msra.mxu0 %v103
  %239 = vmatprep.subr.bf16.mxu0 0
  %240 = vmatpush1.bf16.msra.mxu0 0
  %241 = vmatprep.subr.bf16.mxu0 0
  %242 = vmatpush1.bf16.msra.mxu0 0
  %243 = vmatprep.subr.bf16.mxu0 0
  %244 = vmatpush1.bf16.msra.mxu0 0
  %245 = vmatprep.subr.bf16.mxu0 0
  %246 = vmatpush1.bf16.msra.mxu0 0
  %247 = vmatprep.subr.bf16.mxu0 0
  %248 = vmatpush1.bf16.msra.mxu0 0
  %249 = vmatprep.subr.bf16.mxu0 0
  %250 = vmatpush1.bf16.msra.mxu0 0
  %251 = vmatprep.subr.bf16.mxu0 0
  %252 = vmatpush1.bf16.msra.mxu0 0
  %253 = vmatprep.subr.bf16.mxu0 0
  %254 = vmatpush1.bf16.msra.mxu0 0
  %255 = vmatprep.subr.bf16.mxu0 0
  %256 = vmatpush1.bf16.msra.mxu0 0
  %257 = vmatprep.subr.bf16.mxu0 0
  %258 = vmatpush1.bf16.msra.mxu0 0
  %259 = vmatprep.subr.bf16.mxu0 0
  %260 = vmatpush1.bf16.msra.mxu0 0
  %261 = vmatprep.subr.bf16.mxu0 0
  %262 = vmatpush1.bf16.msra.mxu0 0
  %263 = vmatprep.subr.bf16.mxu0 0
  %264 = vmatpush1.bf16.msra.mxu0 0
  %265 = vmatprep.subr.bf16.mxu0 0
  %266 = vmatpush1.bf16.msra.mxu0 0
  %267 = vmatprep.subr.bf16.mxu0 0
  %268 = vmatpush1.bf16.msra.mxu0 0
  %269 = vmatprep.mubr.bf16.mxu0 0
  %270 = vmatmul.mubr.bf16.gmra.mrb[0].mxu0 %v78
  %v271 = vpop.f32.mrb[0].mxu0
  %v272 = vadd.f32 %v63, %v271
  %v273 = vpop.f32.mrb[0].mxu0
  %v274 = vadd.f32 %v67, %v273
  %v275 = vpop.f32.mrb[0].mxu0
  %v276 = vadd.f32 %v63, %v275
  %v277 = vpop.f32.mrb[0].mxu0
  %v278 = vadd.f32 %v67, %v277
  %279 = vdwg.mxu0
  %280 = vst [vmem:[%s3] sm:$0xff] %v143
  %281 = vst [vmem:[%s3 + $0x8] sm:$0xff] %v145
  %282 = vst [vmem:[%s3 + $0x10] sm:$0xff] %v186
  %283 = vst [vmem:[%s3 + $0x18] sm:$0xff] %v188
  %284 = vst [vmem:[%s3 + $0x20] sm:$0xff] %v229
  %285 = vst [vmem:[%s3 + $0x28] sm:$0xff] %v231
  %286 = vst [vmem:[%s3 + $0x30] sm:$0xff] %v272
  %287 = vst [vmem:[%s3 + $0x38] sm:$0xff] %v274
  %288 = vst [vmem:[%s3 + $0x40] sm:$0xf] %v147
  %289 = vst [vmem:[%s3 + $0x48] sm:$0xf] %v149
  %290 = vst [vmem:[%s3 + $0x50] sm:$0xf] %v190
  %291 = vst [vmem:[%s3 + $0x58] sm:$0xf] %v192
  %292 = vst [vmem:[%s3 + $0x60] sm:$0xf] %v233
  %293 = vst [vmem:[%s3 + $0x68] sm:$0xf] %v235
  %294 = vst [vmem:[%s3 + $0x70] sm:$0xf] %v276
  %295 = vst [vmem:[%s3 + $0x78] sm:$0xf] %v278
  // Predicated region
  $region14: #{fwd.12} parent=0 // pred_check
    _
  $region15: #{fwd.12} parent=0 // pred_check_branch
    %297 = sbr.rel (0) target = $region17
  $region16: #{fwd.12} parent=0 // pred_region
    _
  $region17: #{fwd.12} parent=0 // pred_fallthru
    _
  // Predicated region
  $region18: #{fwd.12} parent=0 // pred_check
    _
  $region19: #{fwd.12} parent=0 // pred_check_branch
    %299 = sbr.rel (0) target = $region21
  $region20: #{fwd.12} parent=0 // pred_region
    _
  $region21: #{fwd.12} parent=0 // pred_fallthru
    _

// kernel: fwd.11
$region0: #{fwd.11}
  #allocation0 [shape = 'u32[]', space=smem, size = 0x4, offset = 0x4, fixed_abs, tag = 'smem constant byte address 0x4 - core index']
  #allocation1 [shape = 'u32[144,128]{1,0:T(1,128)}', space=vmem, size = 0x12000, scoped, tag = 'internal scratch']
  %s0 = inlined_call_operand.vmem [shape: f32[16,6], index: 0, kind: input, shape index: {}]
  %s1 = inlined_call_operand.vmem [shape: f32[6,32], index: 1, kind: input, shape index: {}]
  %s2 = inlined_call_operand.vmem [shape: f32[1,32], index: 2, kind: input, shape index: {}]
  %s3 = inlined_call_operand.vmem [shape: f32[16,32], index: 3, kind: output, shape index: {}]
  %s4 = sld [smem:[#allocation0]]
  $region22: #{fwd.11} parent=0
    _
  %s6 = ssub.s32 1, %s4
  %s7 = scalar_select 0, %s6, %s4
  // Predicated region
  $region2: #{fwd.11} parent=0 // pred_check
    _
  $region3: #{fwd.11} parent=0 // pred_check_branch
    %9 = sbr.rel (0) target = $region5
  $region4: #{fwd.11} parent=0 // pred_region
    _
  $region5: #{fwd.11} parent=0 // pred_fallthru
    _
  // Predicated region
  $region6: #{fwd.11} parent=0 // pred_check
    _
  $region7: #{fwd.11} parent=0 // pred_check_branch
    %11 = sbr.rel (0) target = $region9
  $region8: #{fwd.11} parent=0 // pred_region
    _
  $region9: #{fwd.11} parent=0 // pred_fallthru
    _
  // Predicated region
  $region10: #{fwd.11} parent=0 // pred_check
    _
  $region11: #{fwd.11} parent=0 // pred_check_branch
    %13 = sbr.rel (0) target = $region13
  $region12: #{fwd.11} parent=0 // pred_region
    _
  $region13: #{fwd.11} parent=0 // pred_fallthru
    _
  %v15 = vld [vmem:[%s0] sm:$0xff]
  %v16 = vld [vmem:[%s0 + $0x8] sm:$0xff]
  %v17 = vld [vmem:[%s1] sm:$0x3f]
  %v18 = vpack.c.bf16 %v16, %v15
  %v19 = vpack.c.bf16 %v17, %v17
  %v20 = vld [vmem:[%s2] sm:$0x1]
  %v22 = vlaneseq
  %v23 = vshrl.u32 %v22, 7
  %v24 = vsub.s32 0, %v23
  %v25 = vrot.slane %v20, %v24
  %vm27 = vcmask 48128
  %v29 = vsel %vm27, %v18, 0
  %vm31 = vcmask 1042432
  %v33 = vsel %vm31, %v19, 0
  %35 = vmatprep.subr.bf16.mxu0 0
  %36 = vmatpush1.bf16.msra.mxu0 %v33
  %37 = vmatprep.subr.bf16.mxu0 0
  %38 = vmatpush1.bf16.msra.mxu0 0
  %39 = vmatprep.subr.bf16.mxu0 0
  %40 = vmatpush1.bf16.msra.mxu0 0
  %41 = vmatprep.subr.bf16.mxu0 0
  %42 = vmatpush1.bf16.msra.mxu0 0
  %43 = vmatprep.subr.bf16.mxu0 0
  %44 = vmatpush1.bf16.msra.mxu0 0
  %45 = vmatprep.subr.bf16.mxu0 0
  %46 = vmatpush1.bf16.msra.mxu0 0
  %47 = vmatprep.subr.bf16.mxu0 0
  %48 = vmatpush1.bf16.msra.mxu0 0
  %49 = vmatprep.subr.bf16.mxu0 0
  %50 = vmatpush1.bf16.msra.mxu0 0
  %51 = vmatprep.subr.bf16.mxu0 0
  %52 = vmatpush1.bf16.msra.mxu0 0
  %53 = vmatprep.subr.bf16.mxu0 0
  %54 = vmatpush1.bf16.msra.mxu0 0
  %55 = vmatprep.subr.bf16.mxu0 0
  %56 = vmatpush1.bf16.msra.mxu0 0
  %57 = vmatprep.subr.bf16.mxu0 0
  %58 = vmatpush1.bf16.msra.mxu0 0
  %59 = vmatprep.subr.bf16.mxu0 0
  %60 = vmatpush1.bf16.msra.mxu0 0
  %61 = vmatprep.subr.bf16.mxu0 0
  %62 = vmatpush1.bf16.msra.mxu0 0
  %63 = vmatprep.subr.bf16.mxu0 0
  %64 = vmatpush1.bf16.msra.mxu0 0
  %65 = vmatprep.subr.bf16.mxu0 0
  %66 = vmatpush1.bf16.msra.mxu0 0
  %67 = vmatprep.mubr.bf16.mxu0 0
  %68 = vmatmul.mubr.bf16.gmra.mrb[0].mxu0 %v29
  %v69 = vpop.f32.mrb[0].mxu0
  %v70 = vadd.f32 %v25, %v69
  %v71 = vpop.f32.mrb[0].mxu0
  %v72 = vpop.f32.mrb[0].mxu0
  %v73 = vadd.f32 %v25, %v72
  %v74 = vpop.f32.mrb[0].mxu0
  %75 = vdwg.mxu0
  %vm76 = vcmask 261120
  %77 = vst.msk [vmem:[%s3] sm:$0xff] %vm76, %v70
  %78 = vst.msk [vmem:[%s3 + $0x8] sm:$0xff] %vm76, %v73
  // Predicated region
  $region14: #{fwd.11} parent=0 // pred_check
    _
  $region15: #{fwd.11} parent=0 // pred_check_branch
    %80 = sbr.rel (0) target = $region17
  $region16: #{fwd.11} parent=0 // pred_region
    _
  $region17: #{fwd.11} parent=0 // pred_fallthru
    _
  // Predicated region
  $region18: #{fwd.11} parent=0 // pred_check
    _
  $region19: #{fwd.11} parent=0 // pred_check_branch
    %82 = sbr.rel (0) target = $region21
  $region20: #{fwd.11} parent=0 // pred_region
    _
  $region21: #{fwd.11} parent=0 // pred_fallthru
    _

// kernel: fwd.13
$region0: #{fwd.13}
  #allocation0 [shape = 'u32[]', space=smem, size = 0x4, offset = 0x4, fixed_abs, tag = 'smem constant byte address 0x4 - core index']
  #allocation1 [shape = 'u32[144,128]{1,0:T(1,128)}', space=vmem, size = 0x12000, scoped, tag = 'internal scratch']
  %s0 = inlined_call_operand.vmem [shape: f32[10,4], index: 0, kind: input, shape index: {}]
  %s1 = inlined_call_operand.vmem [shape: f32[4,1024], index: 1, kind: input, shape index: {}]
  %s2 = inlined_call_operand.vmem [shape: f32[1,1024], index: 2, kind: input, shape index: {}]
  %s3 = inlined_call_operand.vmem [shape: f32[10,1024], index: 3, kind: output, shape index: {}]
  %s4 = sld [smem:[#allocation0]]
  $region22: #{fwd.13} parent=0
    _
  %s6 = ssub.s32 1, %s4
  %s7 = scalar_select 0, %s6, %s4
  // Predicated region
  $region2: #{fwd.13} parent=0 // pred_check
    _
  $region3: #{fwd.13} parent=0 // pred_check_branch
    %9 = sbr.rel (0) target = $region5
  $region4: #{fwd.13} parent=0 // pred_region
    _
  $region5: #{fwd.13} parent=0 // pred_fallthru
    _
  // Predicated region
  $region6: #{fwd.13} parent=0 // pred_check
    _
  $region7: #{fwd.13} parent=0 // pred_check_branch
    %11 = sbr.rel (0) target = $region9
  $region8: #{fwd.13} parent=0 // pred_region
    _
  $region9: #{fwd.13} parent=0 // pred_fallthru
    _
  // Predicated region
  $region10: #{fwd.13} parent=0 // pred_check
    _
  $region11: #{fwd.13} parent=0 // pred_check_branch
    %13 = sbr.rel (0) target = $region13
  $region12: #{fwd.13} parent=0 // pred_region
    _
  $region13: #{fwd.13} parent=0 // pred_fallthru
    _
  %v15 = vld [vmem:[%s0] sm:$0xff]
  %v16 = vld [vmem:[%s0 + $0x8] sm:$0x3]
  %v17 = vld [vmem:[%s1] sm:$0xff]
  %v18 = vld [vmem:[%s1 + $0x8] sm:$0xff]
  %v19 = vld [vmem:[%s1 + $0x10] sm:$0xff]
  %v20 = vld [vmem:[%s1 + $0x18] sm:$0xff]
  %v21 = vpack.c.bf16 %v16, %v15
  %v26 = vcombine.high %v17, %v17
  %v27 = vcombine.high %v18, %v18
  %v28 = vcombine.high %v19, %v19
  %v29 = vcombine.high %v20, %v20
  %v34 = vpack.c.bf16 %v17, %v17
  %v35 = vpack.c.bf16 %v26, %v26
  %v36 = vpack.c.bf16 %v18, %v18
  %v37 = vpack.c.bf16 %v27, %v27
  %v38 = vpack.c.bf16 %v19, %v19
  %v39 = vpack.c.bf16 %v28, %v28
  %v40 = vpack.c.bf16 %v20, %v20
  %v41 = vpack.c.bf16 %v29, %v29
  %v42 = vld [vmem:[%s2] sm:$0xff]
  %v44 = vlaneseq
  %v45 = vshrl.u32 %v44, 7
  %v46 = vsub.s32 0, %v45
  %v47 = vrot.slane %v42, %v46
  %v48 = vlaneseq
  %v49 = vshrl.u32 %v48, 7
  %v50 = vsub.s32 1, %v49
  %v51 = vrot.slane %v42, %v50
  %v52 = vlaneseq
  %v53 = vshrl.u32 %v52, 7
  %v54 = vsub.s32 2, %v53
  %v55 = vrot.slane %v42, %v54
  %v56 = vlaneseq
  %v57 = vshrl.u32 %v56, 7
  %v58 = vsub.s32 3, %v57
  %v59 = vrot.slane %v42, %v58
  %v60 = vlaneseq
  %v61 = vshrl.u32 %v60, 7
  %v62 = vsub.s32 4, %v61
  %v63 = vrot.slane %v42, %v62
  %v64 = vlaneseq
  %v65 = vshrl.u32 %v64, 7
  %v66 = vsub.s32 5, %v65
  %v67 = vrot.slane %v42, %v66
  %v68 = vlaneseq
  %v69 = vshrl.u32 %v68, 7
  %v70 = vsub.s32 6, %v69
  %v71 = vrot.slane %v42, %v70
  %v72 = vlaneseq
  %v73 = vshrl.u32 %v72, 7
  %v74 = vsub.s32 7, %v73
  %v75 = vrot.slane %v42, %v74
  %vm84 = vcmask 31744
  %v86 = vsel %vm84, %v21, 0
  %vm88 = vcmask 1041408
  %v90 = vsel %vm88, %v34, 0
  %v93 = vsel %vm88, %v35, 0
  %v96 = vsel %vm88, %v36, 0
  %v99 = vsel %vm88, %v37, 0
  %v102 = vsel %vm88, %v38, 0
  %v105 = vsel %vm88, %v39, 0
  %v108 = vsel %vm88, %v40, 0
  %v111 = vsel %vm88, %v41, 0
  %113 = vmatprep.subr.bf16.mxu0 %v93
  %114 = vmatpush1.bf16.msra.mxu0 %v90
  %115 = vmatprep.subr.bf16.mxu0 0
  %116 = vmatpush1.bf16.msra.mxu0 0
  %117 = vmatprep.subr.bf16.mxu0 0
  %118 = vmatpush1.bf16.msra.mxu0 0
  %119 = vmatprep.subr.bf16.mxu0 0
  %120 = vmatpush1.bf16.msra.mxu0 0
  %121 = vmatprep.subr.bf16.mxu0 0
  %122 = vmatpush1.bf16.msra.mxu0 0
  %123 = vmatprep.subr.bf16.mxu0 0
  %124 = vmatpush1.bf16.msra.mxu0 0
  %125 = vmatprep.subr.bf16.mxu0 0
  %126 = vmatpush1.bf16.msra.mxu0 0
  %127 = vmatprep.subr.bf16.mxu0 0
  %128 = vmatpush1.bf16.msra.mxu0 0
  %129 = vmatprep.subr.bf16.mxu0 0
  %130 = vmatpush1.bf16.msra.mxu0 0
  %131 = vmatprep.subr.bf16.mxu0 0
  %132 = vmatpush1.bf16.msra.mxu0 0
  %133 = vmatprep.subr.bf16.mxu0 0
  %134 = vmatpush1.bf16.msra.mxu0 0
  %135 = vmatprep.subr.bf16.mxu0 0
  %136 = vmatpush1.bf16.msra.mxu0 0
  %137 = vmatprep.subr.bf16.mxu0 0
  %138 = vmatpush1.bf16.msra.mxu0 0
  %139 = vmatprep.subr.bf16.mxu0 0
  %140 = vmatpush1.bf16.msra.mxu0 0
  %141 = vmatprep.subr.bf16.mxu0 0
  %142 = vmatpush1.bf16.msra.mxu0 0
  %143 = vmatprep.subr.bf16.mxu0 0
  %144 = vmatpush1.bf16.msra.mxu0 0
  %145 = vmatprep.mubr.bf16.mxu0 0
  %146 = vmatmul.mubr.bf16.gmra.mrb[0].mxu0 %v86
  %v147 = vpop.f32.mrb[0].mxu0
  %v148 = vadd.f32 %v47, %v147
  %v149 = vpop.f32.mrb[0].mxu0
  %v150 = vadd.f32 %v51, %v149
  %v151 = vpop.f32.mrb[0].mxu0
  %v152 = vadd.f32 %v47, %v151
  %v153 = vpop.f32.mrb[0].mxu0
  %v154 = vadd.f32 %v51, %v153
  %155 = vdwg.mxu0
  %156 = vmatprep.subr.bf16.mxu0 %v99
  %157 = vmatpush1.bf16.msra.mxu0 %v96
  %158 = vmatprep.subr.bf16.mxu0 0
  %159 = vmatpush1.bf16.msra.mxu0 0
  %160 = vmatprep.subr.bf16.mxu0 0
  %161 = vmatpush1.bf16.msra.mxu0 0
  %162 = vmatprep.subr.bf16.mxu0 0
  %163 = vmatpush1.bf16.msra.mxu0 0
  %164 = vmatprep.subr.bf16.mxu0 0
  %165 = vmatpush1.bf16.msra.mxu0 0
  %166 = vmatprep.subr.bf16.mxu0 0
  %167 = vmatpush1.bf16.msra.mxu0 0
  %168 = vmatprep.subr.bf16.mxu0 0
  %169 = vmatpush1.bf16.msra.mxu0 0
  %170 = vmatprep.subr.bf16.mxu0 0
  %171 = vmatpush1.bf16.msra.mxu0 0
  %172 = vmatprep.subr.bf16.mxu0 0
  %173 = vmatpush1.bf16.msra.mxu0 0
  %174 = vmatprep.subr.bf16.mxu0 0
  %175 = vmatpush1.bf16.msra.mxu0 0
  %176 = vmatprep.subr.bf16.mxu0 0
  %177 = vmatpush1.bf16.msra.mxu0 0
  %178 = vmatprep.subr.bf16.mxu0 0
  %179 = vmatpush1.bf16.msra.mxu0 0
  %180 = vmatprep.subr.bf16.mxu0 0
  %181 = vmatpush1.bf16.msra.mxu0 0
  %182 = vmatprep.subr.bf16.mxu0 0
  %183 = vmatpush1.bf16.msra.mxu0 0
  %184 = vmatprep.subr.bf16.mxu0 0
  %185 = vmatpush1.bf16.msra.mxu0 0
  %186 = vmatprep.subr.bf16.mxu0 0
  %187 = vmatpush1.bf16.msra.mxu0 0
  %188 = vmatprep.mubr.bf16.mxu0 0
  %189 = vmatmul.mubr.bf16.gmra.mrb[0].mxu0 %v86
  %v190 = vpop.f32.mrb[0].mxu0
  %v191 = vadd.f32 %v55, %v190
  %v192 = vpop.f32.mrb[0].mxu0
  %v193 = vadd.f32 %v59, %v192
  %v194 = vpop.f32.mrb[0].mxu0
  %v195 = vadd.f32 %v55, %v194
  %v196 = vpop.f32.mrb[0].mxu0
  %v197 = vadd.f32 %v59, %v196
  %198 = vdwg.mxu0
  %199 = vmatprep.subr.bf16.mxu0 %v105
  %200 = vmatpush1.bf16.msra.mxu0 %v102
  %201 = vmatprep.subr.bf16.mxu0 0
  %202 = vmatpush1.bf16.msra.mxu0 0
  %203 = vmatprep.subr.bf16.mxu0 0
  %204 = vmatpush1.bf16.msra.mxu0 0
  %205 = vmatprep.subr.bf16.mxu0 0
  %206 = vmatpush1.bf16.msra.mxu0 0
  %207 = vmatprep.subr.bf16.mxu0 0
  %208 = vmatpush1.bf16.msra.mxu0 0
  %209 = vmatprep.subr.bf16.mxu0 0
  %210 = vmatpush1.bf16.msra.mxu0 0
  %211 = vmatprep.subr.bf16.mxu0 0
  %212 = vmatpush1.bf16.msra.mxu0 0
  %213 = vmatprep.subr.bf16.mxu0 0
  %214 = vmatpush1.bf16.msra.mxu0 0
  %215 = vmatprep.subr.bf16.mxu0 0
  %216 = vmatpush1.bf16.msra.mxu0 0
  %217 = vmatprep.subr.bf16.mxu0 0
  %218 = vmatpush1.bf16.msra.mxu0 0
  %219 = vmatprep.subr.bf16.mxu0 0
  %220 = vmatpush1.bf16.msra.mxu0 0
  %221 = vmatprep.subr.bf16.mxu0 0
  %222 = vmatpush1.bf16.msra.mxu0 0
  %223 = vmatprep.subr.bf16.mxu0 0
  %224 = vmatpush1.bf16.msra.mxu0 0
  %225 = vmatprep.subr.bf16.mxu0 0
  %226 = vmatpush1.bf16.msra.mxu0 0
  %227 = vmatprep.subr.bf16.mxu0 0
  %228 = vmatpush1.bf16.msra.mxu0 0
  %229 = vmatprep.subr.bf16.mxu0 0
  %230 = vmatpush1.bf16.msra.mxu0 0
  %231 = vmatprep.mubr.bf16.mxu0 0
  %232 = vmatmul.mubr.bf16.gmra.mrb[0].mxu0 %v86
  %v233 = vpop.f32.mrb[0].mxu0
  %v234 = vadd.f32 %v63, %v233
  %v235 = vpop.f32.mrb[0].mxu0
  %v236 = vadd.f32 %v67, %v235
  %v237 = vpop.f32.mrb[0].mxu0
  %v238 = vadd.f32 %v63, %v237
  %v239 = vpop.f32.mrb[0].mxu0
  %v240 = vadd.f32 %v67, %v239
  %241 = vdwg.mxu0
  %242 = vmatprep.subr.bf16.mxu0 %v111
  %243 = vmatpush1.bf16.msra.mxu0 %v108
  %244 = vmatprep.subr.bf16.mxu0 0
  %245 = vmatpush1.bf16.msra.mxu0 0
  %246 = vmatprep.subr.bf16.mxu0 0
  %247 = vmatpush1.bf16.msra.mxu0 0
  %248 = vmatprep.subr.bf16.mxu0 0
  %249 = vmatpush1.bf16.msra.mxu0 0
  %250 = vmatprep.subr.bf16.mxu0 0
  %251 = vmatpush1.bf16.msra.mxu0 0
  %252 = vmatprep.subr.bf16.mxu0 0
  %253 = vmatpush1.bf16.msra.mxu0 0
  %254 = vmatprep.subr.bf16.mxu0 0
  %255 = vmatpush1.bf16.msra.mxu0 0
  %256 = vmatprep.subr.bf16.mxu0 0
  %257 = vmatpush1.bf16.msra.mxu0 0
  %258 = vmatprep.subr.bf16.mxu0 0
  %259 = vmatpush1.bf16.msra.mxu0 0
  %260 = vmatprep.subr.bf16.mxu0 0
  %261 = vmatpush1.bf16.msra.mxu0 0
  %262 = vmatprep.subr.bf16.mxu0 0
  %263 = vmatpush1.bf16.msra.mxu0 0
  %264 = vmatprep.subr.bf16.mxu0 0
  %265 = vmatpush1.bf16.msra.mxu0 0
  %266 = vmatprep.subr.bf16.mxu0 0
  %267 = vmatpush1.bf16.msra.mxu0 0
  %268 = vmatprep.subr.bf16.mxu0 0
  %269 = vmatpush1.bf16.msra.mxu0 0
  %270 = vmatprep.subr.bf16.mxu0 0
  %271 = vmatpush1.bf16.msra.mxu0 0
  %272 = vmatprep.subr.bf16.mxu0 0
  %273 = vmatpush1.bf16.msra.mxu0 0
  %274 = vmatprep.mubr.bf16.mxu0 0
  %275 = vmatmul.mubr.bf16.gmra.mrb[0].mxu0 %v86
  %v276 = vpop.f32.mrb[0].mxu0
  %v277 = vadd.f32 %v71, %v276
  %v278 = vpop.f32.mrb[0].mxu0
  %v279 = vadd.f32 %v75, %v278
  %v280 = vpop.f32.mrb[0].mxu0
  %v281 = vadd.f32 %v71, %v280
  %v282 = vpop.f32.mrb[0].mxu0
  %v283 = vadd.f32 %v75, %v282
  %284 = vdwg.mxu0
  %285 = vst [vmem:[%s3] sm:$0xff] %v148
  %286 = vst [vmem:[%s3 + $0x8] sm:$0xff] %v150
  %287 = vst [vmem:[%s3 + $0x10] sm:$0xff] %v191
  %288 = vst [vmem:[%s3 + $0x18] sm:$0xff] %v193
  %289 = vst [vmem:[%s3 + $0x20] sm:$0xff] %v234
  %290 = vst [vmem:[%s3 + $0x28] sm:$0xff] %v236
  %291 = vst [vmem:[%s3 + $0x30] sm:$0xff] %v277
  %292 = vst [vmem:[%s3 + $0x38] sm:$0xff] %v279
  %293 = vst [vmem:[%s3 + $0x40] sm:$0x3] %v152
  %294 = vst [vmem:[%s3 + $0x48] sm:$0x3] %v154
  %295 = vst [vmem:[%s3 + $0x50] sm:$0x3] %v195
  %296 = vst [vmem:[%s3 + $0x58] sm:$0x3] %v197
  %297 = vst [vmem:[%s3 + $0x60] sm:$0x3] %v238
  %298 = vst [vmem:[%s3 + $0x68] sm:$0x3] %v240
  %299 = vst [vmem:[%s3 + $0x70] sm:$0x3] %v281
  %300 = vst [vmem:[%s3 + $0x78] sm:$0x3] %v283
  // Predicated region
  $region14: #{fwd.13} parent=0 // pred_check
    _
  $region15: #{fwd.13} parent=0 // pred_check_branch
    %302 = sbr.rel (0) target = $region17
  $region16: #{fwd.13} parent=0 // pred_region
    _
  $region17: #{fwd.13} parent=0 // pred_fallthru
    _
  // Predicated region
  $region18: #{fwd.13} parent=0 // pred_check
    _
  $region19: #{fwd.13} parent=0 // pred_check_branch
    %304 = sbr.rel (0) target = $region21
  $region20: #{fwd.13} parent=0 // pred_region
    _
  $region21: #{fwd.13} parent=0 // pred_fallthru
    _

// kernel: fwd.14
$region0: #{fwd.14}
  #allocation0 [shape = 'u32[]', space=smem, size = 0x4, offset = 0x4, fixed_abs, tag = 'smem constant byte address 0x4 - core index']
  #allocation1 [shape = 'u32[144,128]{1,0:T(1,128)}', space=vmem, size = 0x12000, scoped, tag = 'internal scratch']
  %s0 = inlined_call_operand.vmem [shape: f32[2,8,32], index: 0, kind: input, shape index: {}]
  %s1 = inlined_call_operand.vmem [shape: bf16[2,12,8], index: 1, kind: input, shape index: {}]
  %s2 = inlined_call_operand.vmem [shape: bf16[2,8,12], index: 2, kind: input, shape index: {}]
  %s3 = inlined_call_operand.vmem [shape: bf16[2,32,12,32], index: 3, kind: input, shape index: {}]
  %s4 = inlined_call_operand.vmem [shape: f32[2,12,32], index: 4, kind: input, shape index: {}]
  %s5 = inlined_call_operand.vmem [shape: f32[1,32], index: 5, kind: input, shape index: {}]
  %s6 = inlined_call_operand.vmem [shape: f32[1,32], index: 6, kind: input, shape index: {}]
  %s7 = inlined_call_operand.vmem [shape: bf16[32,32], index: 7, kind: input, shape index: {}]
  %s8 = inlined_call_operand.vmem [shape: f32[1,32], index: 8, kind: input, shape index: {}]
  %s9 = inlined_call_operand.vmem [shape: f32[2,8,32], index: 9, kind: output, shape index: {}]
  %s10 = sld [smem:[#allocation0]]
  $region69: #{fwd.14} parent=0
    _
  %s12 = ssub.s32 1, %s10
  %s13 = scalar_select 0, %s12, %s10
  loop: start=0, step=1, limit=4
  $region2: #{fwd.14} parent=0 // loop_pre_header
    _
  $region3: #{fwd.14} parent=0 // loop_header
    %s15 = sphi 0, %s19
    %p16 = scmp.ge.s32.totalorder %s15, 4
    %s25 = sphi 0, %s27
    %s28 = sphi 0, %s25
    %s29 = sphi 0, %s28
    %s45 = sphi 0, %s29
    %s51 = sphi 0, %s53
    %s54 = sphi 0, %s51
    %s55 = sphi 0, %s54
    %s71 = sphi 0, %s55
    %s77 = sphi 0, %s79
    %s80 = sphi 0, %s77
    %s81 = sphi 0, %s80
    %s97 = sphi 0, %s81
    %s103 = sphi 0, %s105
    %s106 = sphi 0, %s103
    %s107 = sphi 0, %s106
    %s123 = sphi 0, %s107
    %s129 = sphi 0, %s131
    %s132 = sphi 0, %s129
    %s133 = sphi 0, %s132
    %s149 = sphi 0, %s133
    %s153 = sphi 0, %s153
    %s155 = sphi 0, %s153
    %s156 = sphi 0, %s155
    %s170 = sphi 0, %s156
    %s174 = sphi 0, %s174
    %s176 = sphi 0, %s174
    %s177 = sphi 0, %s176
    %s191 = sphi 0, %s177
    %s195 = sphi 0, %s195
    %s197 = sphi 0, %s195
    %s198 = sphi 0, %s197
    %s212 = sphi 0, %s198
    %s216 = sphi 0, %s216
    %s218 = sphi 0, %s216
    %s219 = sphi 0, %s218
    %s233 = sphi 0, %s219
    %s239 = sphi 0, %s241
    %s242 = sphi 0, %s239
    %s243 = sphi 0, %s242
    %s259 = sphi 0, %s243
  $region4: #{fwd.14} parent=0 // loop_header_branch
    %18 = sbr.rel (%p16) target = $region8
  $region5: #{fwd.14} parent=0 // loop_body
    %s20 = ssub.s32 %s15, 1
    %s21 = ssub.s32 %s15, 2
    %s22 = sadd.s32 %s15, 1
    %s23 = ssub.s32 %s15, %s22
    %p24 = scmp.eq.s32.totalorder %s23, 0
    %s26 = sadd.s32 %s25, 1
    %s27 = scalar_select %p24, %s25, %s26
    %p30 = pneg %p24
    %p31 = scmp.eq.s32.totalorder %s15, 1
    %p32 = por %p30, %p31
    %p33 = scmp.ne.s32.totalorder %s25, %s28
    %p34 = scmp.eq.s32.totalorder %s15, 0
    %p35 = por %p33, %p34
    %p36 = scmp.ne.s32.totalorder %s25, %s28
    %p37 = scmp.eq.s32.totalorder %s20, 1
    %p38 = por %p36, %p37
    %p39 = scmp.ne.s32.totalorder %s28, %s29
    %p40 = scmp.eq.s32.totalorder %s20, 0
    %p41 = por %p39, %p40
    %p42 = scmp.ne.s32.totalorder %s28, %s29
    %p43 = scmp.eq.s32.totalorder %s21, 1
    %p44 = por %p42, %p43
    %p46 = scmp.ne.s32.totalorder %s29, %s45
    %p47 = scmp.eq.s32.totalorder %s21, 0
    %p48 = por %p46, %p47
    %s49 = ssub.s32 %s15, %s22
    %p50 = scmp.eq.s32.totalorder %s49, 0
    %s52 = sadd.s32 %s51, 1
    %s53 = scalar_select %p50, %s51, %s52
    %p56 = pneg %p50
    %p57 = scmp.eq.s32.totalorder %s15, 1
    %p58 = por %p56, %p57
    %p59 = scmp.ne.s32.totalorder %s51, %s54
    %p60 = scmp.eq.s32.totalorder %s15, 0
    %p61 = por %p59, %p60
    %p62 = scmp.ne.s32.totalorder %s51, %s54
    %p63 = scmp.eq.s32.totalorder %s20, 1
    %p64 = por %p62, %p63
    %p65 = scmp.ne.s32.totalorder %s54, %s55
    %p66 = scmp.eq.s32.totalorder %s20, 0
    %p67 = por %p65, %p66
    %p68 = scmp.ne.s32.totalorder %s54, %s55
    %p69 = scmp.eq.s32.totalorder %s21, 1
    %p70 = por %p68, %p69
    %p72 = scmp.ne.s32.totalorder %s55, %s71
    %p73 = scmp.eq.s32.totalorder %s21, 0
    %p74 = por %p72, %p73
    %s75 = ssub.s32 %s15, %s22
    %p76 = scmp.eq.s32.totalorder %s75, 0
    %s78 = sadd.s32 %s77, 1
    %s79 = scalar_select %p76, %s77, %s78
    %p82 = pneg %p76
    %p83 = scmp.eq.s32.totalorder %s15, 1
    %p84 = por %p82, %p83
    %p85 = scmp.ne.s32.totalorder %s77, %s80
    %p86 = scmp.eq.s32.totalorder %s15, 0
    %p87 = por %p85, %p86
    %p88 = scmp.ne.s32.totalorder %s77, %s80
    %p89 = scmp.eq.s32.totalorder %s20, 1
    %p90 = por %p88, %p89
    %p91 = scmp.ne.s32.totalorder %s80, %s81
    %p92 = scmp.eq.s32.totalorder %s20, 0
    %p93 = por %p91, %p92
    %p94 = scmp.ne.s32.totalorder %s80, %s81
    %p95 = scmp.eq.s32.totalorder %s21, 1
    %p96 = por %p94, %p95
    %p98 = scmp.ne.s32.totalorder %s81, %s97
    %p99 = scmp.eq.s32.totalorder %s21, 0
    %p100 = por %p98, %p99
    %s101 = ssub.s32 %s15, %s22
    %p102 = scmp.eq.s32.totalorder %s101, 0
    %s104 = sadd.s32 %s103, 1
    %s105 = scalar_select %p102, %s103, %s104
    %p108 = pneg %p102
    %p109 = scmp.eq.s32.totalorder %s15, 1
    %p110 = por %p108, %p109
    %p111 = scmp.ne.s32.totalorder %s103, %s106
    %p112 = scmp.eq.s32.totalorder %s15, 0
    %p113 = por %p111, %p112
    %p114 = scmp.ne.s32.totalorder %s103, %s106
    %p115 = scmp.eq.s32.totalorder %s20, 1
    %p116 = por %p114, %p115
    %p117 = scmp.ne.s32.totalorder %s106, %s107
    %p118 = scmp.eq.s32.totalorder %s20, 0
    %p119 = por %p117, %p118
    %p120 = scmp.ne.s32.totalorder %s106, %s107
    %p121 = scmp.eq.s32.totalorder %s21, 1
    %p122 = por %p120, %p121
    %p124 = scmp.ne.s32.totalorder %s107, %s123
    %p125 = scmp.eq.s32.totalorder %s21, 0
    %p126 = por %p124, %p125
    %s127 = ssub.s32 %s15, %s22
    %p128 = scmp.eq.s32.totalorder %s127, 0
    %s130 = sadd.s32 %s129, 1
    %s131 = scalar_select %p128, %s129, %s130
    %p134 = pneg %p128
    %p135 = scmp.eq.s32.totalorder %s15, 1
    %p136 = por %p134, %p135
    %p137 = scmp.ne.s32.totalorder %s129, %s132
    %p138 = scmp.eq.s32.totalorder %s15, 0
    %p139 = por %p137, %p138
    %p140 = scmp.ne.s32.totalorder %s129, %s132
    %p141 = scmp.eq.s32.totalorder %s20, 1
    %p142 = por %p140, %p141
    %p143 = scmp.ne.s32.totalorder %s132, %s133
    %p144 = scmp.eq.s32.totalorder %s20, 0
    %p145 = por %p143, %p144
    %p146 = scmp.ne.s32.totalorder %s132, %s133
    %p147 = scmp.eq.s32.totalorder %s21, 1
    %p148 = por %p146, %p147
    %p150 = scmp.ne.s32.totalorder %s133, %s149
    %p151 = scmp.eq.s32.totalorder %s21, 0
    %p152 = por %p150, %p151
    %s154 = sadd.s32 %s153, 1
    %p157 = scmp.eq.s32.totalorder %s15, 1
    %p158 = scmp.ne.s32.totalorder %s153, %s155
    %p159 = scmp.eq.s32.totalorder %s15, 0
    %p160 = por %p158, %p159
    %p161 = scmp.ne.s32.totalorder %s153, %s155
    %p162 = scmp.eq.s32.totalorder %s20, 1
    %p163 = por %p161, %p162
    %p164 = scmp.ne.s32.totalorder %s155, %s156
    %p165 = scmp.eq.s32.totalorder %s20, 0
    %p166 = por %p164, %p165
    %p167 = scmp.ne.s32.totalorder %s155, %s156
    %p168 = scmp.eq.s32.totalorder %s21, 1
    %p169 = por %p167, %p168
    %p171 = scmp.ne.s32.totalorder %s156, %s170
    %p172 = scmp.eq.s32.totalorder %s21, 0
    %p173 = por %p171, %p172
    %s175 = sadd.s32 %s174, 1
    %p178 = scmp.eq.s32.totalorder %s15, 1
    %p179 = scmp.ne.s32.totalorder %s174, %s176
    %p180 = scmp.eq.s32.totalorder %s15, 0
    %p181 = por %p179, %p180
    %p182 = scmp.ne.s32.totalorder %s174, %s176
    %p183 = scmp.eq.s32.totalorder %s20, 1
    %p184 = por %p182, %p183
    %p185 = scmp.ne.s32.totalorder %s176, %s177
    %p186 = scmp.eq.s32.totalorder %s20, 0
    %p187 = por %p185, %p186
    %p188 = scmp.ne.s32.totalorder %s176, %s177
    %p189 = scmp.eq.s32.totalorder %s21, 1
    %p190 = por %p188, %p189
    %p192 = scmp.ne.s32.totalorder %s177, %s191
    %p193 = scmp.eq.s32.totalorder %s21, 0
    %p194 = por %p192, %p193
    %s196 = sadd.s32 %s195, 1
    %p199 = scmp.eq.s32.totalorder %s15, 1
    %p200 = scmp.ne.s32.totalorder %s195, %s197
    %p201 = scmp.eq.s32.totalorder %s15, 0
    %p202 = por %p200, %p201
    %p203 = scmp.ne.s32.totalorder %s195, %s197
    %p204 = scmp.eq.s32.totalorder %s20, 1
    %p205 = por %p203, %p204
    %p206 = scmp.ne.s32.totalorder %s197, %s198
    %p207 = scmp.eq.s32.totalorder %s20, 0
    %p208 = por %p206, %p207
    %p209 = scmp.ne.s32.totalorder %s197, %s198
    %p210 = scmp.eq.s32.totalorder %s21, 1
    %p211 = por %p209, %p210
    %p213 = scmp.ne.s32.totalorder %s198, %s212
    %p214 = scmp.eq.s32.totalorder %s21, 0
    %p215 = por %p213, %p214
    %s217 = sadd.s32 %s216, 1
    %p220 = scmp.eq.s32.totalorder %s15, 1
    %p221 = scmp.ne.s32.totalorder %s216, %s218
    %p222 = scmp.eq.s32.totalorder %s15, 0
    %p223 = por %p221, %p222
    %p224 = scmp.ne.s32.totalorder %s216, %s218
    %p225 = scmp.eq.s32.totalorder %s20, 1
    %p226 = por %p224, %p225
    %p227 = scmp.ne.s32.totalorder %s218, %s219
    %p228 = scmp.eq.s32.totalorder %s20, 0
    %p229 = por %p227, %p228
    %p230 = scmp.ne.s32.totalorder %s218, %s219
    %p231 = scmp.eq.s32.totalorder %s21, 1
    %p232 = por %p230, %p231
    %p234 = scmp.ne.s32.totalorder %s219, %s233
    %p235 = scmp.eq.s32.totalorder %s21, 0
    %p236 = por %p234, %p235
    %s237 = ssub.s32 %s15, %s22
    %p238 = scmp.eq.s32.totalorder %s237, 0
    %s240 = sadd.s32 %s239, 1
    %s241 = scalar_select %p238, %s239, %s240
    %p244 = pneg %p238
    %p245 = scmp.eq.s32.totalorder %s15, 1
    %p246 = por %p244, %p245
    %p247 = scmp.ne.s32.totalorder %s239, %s242
    %p248 = scmp.eq.s32.totalorder %s15, 0
    %p249 = por %p247, %p248
    %p250 = scmp.ne.s32.totalorder %s239, %s242
    %p251 = scmp.eq.s32.totalorder %s20, 1
    %p252 = por %p250, %p251
    %p253 = scmp.ne.s32.totalorder %s242, %s243
    %p254 = scmp.eq.s32.totalorder %s20, 0
    %p255 = por %p253, %p254
    %p256 = scmp.ne.s32.totalorder %s242, %s243
    %p257 = scmp.eq.s32.totalorder %s21, 1
    %p258 = por %p256, %p257
    %p260 = scmp.ne.s32.totalorder %s243, %s259
    %p261 = scmp.eq.s32.totalorder %s21, 0
    %p262 = por %p260, %p261
    %p263 = scmp.le.s32.totalorder 1, %s15
    %p264 = scmp.lt.s32.totalorder %s15, 3
    %p265 = pnand %p263, %p264
    %p266 = pneg %p265
    // Predicated region
    $region9: #{fwd.14} parent=5 // pred_check
      _
    $region10: #{fwd.14} parent=5 // pred_check_branch
      %268 = sbr.rel (%p265) target = $region12
    $region11: #{fwd.14} parent=5 // pred_region
      %s269 = ssub.s32 %s15, 1
      // Predicated region
      $region13: #{fwd.14} parent=11 // pred_check
        %p270 = pneg %p166
      $region14: #{fwd.14} parent=11 // pred_check_branch
        %272 = sbr.rel (%p270) target = $region16
      $region15: #{fwd.14} parent=11 // pred_region
        _
      $region16: #{fwd.14} parent=11 // pred_fallthru
        _
      // Predicated region
      $region17: #{fwd.14} parent=11 // pred_check
        %p273 = pneg %p187
      $region18: #{fwd.14} parent=11 // pred_check_branch
        %275 = sbr.rel (%p273) target = $region20
      $region19: #{fwd.14} parent=11 // pred_region
        _
      $region20: #{fwd.14} parent=11 // pred_fallthru
        _
      // Predicated region
      $region21: #{fwd.14} parent=11 // pred_check
        %p276 = pneg %p208
      $region22: #{fwd.14} parent=11 // pred_check_branch
        %278 = sbr.rel (%p276) target = $region24
      $region23: #{fwd.14} parent=11 // pred_region
        _
      $region24: #{fwd.14} parent=11 // pred_fallthru
        _
      // Predicated region
      $region25: #{fwd.14} parent=11 // pred_check
        %p279 = pneg %p229
      $region26: #{fwd.14} parent=11 // pred_check_branch
        %281 = sbr.rel (%p279) target = $region28
      $region27: #{fwd.14} parent=11 // pred_region
        _
      $region28: #{fwd.14} parent=11 // pred_fallthru
        _
    $region12: #{fwd.14} parent=5 // pred_fallthru
      _
    %p282 = scmp.lt.s32.totalorder %s15, 2
    // Predicated region
    $region29: #{fwd.14} parent=5 // pred_check
      %p283 = pneg %p282
    $region30: #{fwd.14} parent=5 // pred_check_branch
      %285 = sbr.rel (%p283) target = $region32
    $region31: #{fwd.14} parent=5 // pred_region
      // Predicated region
      $region33: #{fwd.14} parent=31 // pred_check
        %p286 = pneg %p35
      $region34: #{fwd.14} parent=31 // pred_check_branch
        %288 = sbr.rel (%p286) target = $region36
      $region35: #{fwd.14} parent=31 // pred_region
        %p289 = scmp.lt.s32.totalorder %s15, 1
        %s290 = scalar_select %p289, %s15, 1
        %s291 = smul.addr %s290, 8
        %s292 = scalar_lea.vmem %s0, %s291
      $region36: #{fwd.14} parent=31 // pred_fallthru
        _
      // Predicated region
      $region37: #{fwd.14} parent=31 // pred_check
        %p293 = pneg %p61
      $region38: #{fwd.14} parent=31 // pred_check_branch
        %295 = sbr.rel (%p293) target = $region40
      $region39: #{fwd.14} parent=31 // pred_region
        %p296 = scmp.lt.s32.totalorder %s15, 1
        %s297 = scalar_select %p296, %s15, 1
        %s298 = smul.addr %s297, 2
        %s299 = smul.addr %s298, 4
        %s300 = scalar_lea.vmem %s1, %s299
      $region40: #{fwd.14} parent=31 // pred_fallthru
        _
      // Predicated region
      $region41: #{fwd.14} parent=31 // pred_check
        %p301 = pneg %p87
      $region42: #{fwd.14} parent=31 // pred_check_branch
        %303 = sbr.rel (%p301) target = $region44
      $region43: #{fwd.14} parent=31 // pred_region
        %p304 = scmp.lt.s32.totalorder %s15, 1
        %s305 = scalar_select %p304, %s15, 1
        %s306 = smul.addr %s305, 4
        %s307 = scalar_lea.vmem %s2, %s306
      $region44: #{fwd.14} parent=31 // pred_fallthru
        _
      // Predicated region
      $region45: #{fwd.14} parent=31 // pred_check
        %p308 = pneg %p113
      $region46: #{fwd.14} parent=31 // pred_check_branch
        %310 = sbr.rel (%p308) target = $region48
      $region47: #{fwd.14} parent=31 // pred_region
        %p311 = scmp.lt.s32.totalorder %s15, 1
        %s312 = scalar_select %p311, %s15, 1
        %s313 = smul.addr %s312, 64
        %s314 = smul.addr %s313, 4
        %s315 = scalar_lea.vmem %s3, %s314
      $region48: #{fwd.14} parent=31 // pred_fallthru
        _
      // Predicated region
      $region49: #{fwd.14} parent=31 // pred_check
        %p316 = pneg %p139
      $region50: #{fwd.14} parent=31 // pred_check_branch
        %318 = sbr.rel (%p316) target = $region52
      $region51: #{fwd.14} parent=31 // pred_region
        %p319 = scmp.lt.s32.totalorder %s15, 1
        %s320 = scalar_select %p319, %s15, 1
        %s321 = smul.addr %s320, 2
        %s322 = smul.addr %s321, 8
        %s323 = scalar_lea.vmem %s4, %s322
      $region52: #{fwd.14} parent=31 // pred_fallthru
        _
    $region32: #{fwd.14} parent=5 // pred_fallthru
      _
    %p324 = scmp.le.s32.totalorder 1, %s15
    %p325 = scmp.lt.s32.totalorder %s15, 3
    %p326 = pnand %p324, %p325
    %p327 = pneg %p326
    // Predicated region
    $region53: #{fwd.14} parent=5 // pred_check
      _
    $region54: #{fwd.14} parent=5 // pred_check_branch
      %329 = sbr.rel (%p326) target = $region56
    $region55: #{fwd.14} parent=5 // pred_region
      %s330 = ssub.s32 %s15, 1
      %p331 = scmp.lt.s32.totalorder %s20, 1
      %s332 = scalar_select %p331, %s20, 1
      %s333 = smul.addr %s332, 8
      %s334 = scalar_lea.vmem %s0, %s333
      %p335 = pneg %p41
      %p336 = pneg %p38
      %p337 = scmp.lt.s32.totalorder %s20, 1
      %s338 = scalar_select %p337, %s20, 1
      %s339 = smul.addr %s338, 2
      %s340 = smul.addr %s339, 4
      %s341 = scalar_lea.vmem %s1, %s340
      %p342 = pneg %p67
      %p343 = pneg %p64
      %p344 = scmp.lt.s32.totalorder %s20, 1
      %s345 = scalar_select %p344, %s20, 1
      %s346 = smul.addr %s345, 4
      %s347 = scalar_lea.vmem %s2, %s346
      %p348 = pneg %p93
      %p349 = pneg %p90
      %p350 = scmp.lt.s32.totalorder %s20, 1
      %s351 = scalar_select %p350, %s20, 1
      %s352 = smul.addr %s351, 64
      %s353 = smul.addr %s352, 4
      %s354 = scalar_lea.vmem %s3, %s353
      %p355 = pneg %p119
      %p356 = pneg %p116
      %p357 = scmp.lt.s32.totalorder %s20, 1
      %s358 = scalar_select %p357, %s20, 1
      %s359 = smul.addr %s358, 2
      %s360 = smul.addr %s359, 8
      %s361 = scalar_lea.vmem %s4, %s360
      %p362 = pneg %p145
      %p363 = pneg %p142
      %p364 = pneg %p166
      %p365 = pneg %p163
      %p366 = pneg %p187
      %p367 = pneg %p184
      %p368 = pneg %p208
      %p369 = pneg %p205
      %p370 = pneg %p229
      %p371 = pneg %p226
      %p372 = pneg %p255
      %p373 = pneg %p252
      %p374 = scmp.lt.s32.totalorder %s20, 1
      %s375 = scalar_select %p374, %s20, 1
      %s376 = smul.addr %s375, 8
      %s377 = scalar_lea.vmem %s9, %s376
      %p378 = scmp.lt.s32.totalorder %s20, 1
      %s379 = scalar_select %p378, %s20, 1
      %s380 = smul.addr %s379, 8
      %s381 = scalar_lea.vmem %s0, %s380
      %p382 = scmp.lt.s32.totalorder %s20, 1
      %s383 = scalar_select %p382, %s20, 1
      %s384 = smul.addr %s383, 2
      %s385 = smul.addr %s384, 4
      %s386 = scalar_lea.vmem %s1, %s385
      %p387 = scmp.lt.s32.totalorder %s20, 1
      %s388 = scalar_select %p387, %s20, 1
      %s389 = smul.addr %s388, 4
      %s390 = scalar_lea.vmem %s2, %s389
      %p391 = scmp.lt.s32.totalorder %s20, 1
      %s392 = scalar_select %p391, %s20, 1
      %s393 = smul.addr %s392, 64
      %s394 = smul.addr %s393, 4
      %s395 = scalar_lea.vmem %s3, %s394
      %p396 = scmp.lt.s32.totalorder %s20, 1
      %s397 = scalar_select %p396, %s20, 1
      %s398 = smul.addr %s397, 2
      %s399 = smul.addr %s398, 8
      %s400 = scalar_lea.vmem %s4, %s399
      %p401 = scmp.lt.s32.totalorder %s20, 1
      %s402 = scalar_select %p401, %s20, 1
      %s403 = smul.addr %s402, 8
      %s404 = scalar_lea.vmem %s9, %s403
      %v406 = vld [vmem:[%s381] sm:$0xff]
      %v407 = vld [vmem:[%s5] sm:$0x1]
      %v408 = vld [vmem:[%s6] sm:$0x1]
      %vm409 = vcmask 261120
      %v410 = vsel %vm409, %v406, 0.0
      %411 = vadd.xlane.f32.xlu0 %v410
      %v412 = vpop.xlane.xlu0 %411
      %v413 = vrcp.pop 32.0
      %v414 = vmul.f32 %v412, %v413
      %v415 = vsub.f32 %v406, %v414
      %v416 = vmul.f32 %v415, %v415
      %v417 = vsel %vm409, %v416, 0.0
      %418 = vadd.xlane.f32.xlu0 %v417
      %v419 = vpop.xlane.xlu0 %418
      %v420 = vmul.f32 %v419, %v413
      %v421 = vadd.f32 %v420, 1e-06
      %v422 = vrsqrt.pop %v421
      %v423 = vmul.f32 %v415, %v422
      %v425 = vlaneseq
      %v426 = vshrl.u32 %v425, 7
      %v427 = vsub.s32 0, %v426
      %v428 = vrot.slane %v407, %v427
      %v430 = vmul.f32 %v423, %v428
      %v432 = vlaneseq
      %v433 = vshrl.u32 %v432, 7
      %v434 = vsub.s32 0, %v433
      %v435 = vrot.slane %v408, %v434
      %v437 = vadd.f32 %v430, %v435
      %v438 = vld [vmem:[%s386] sm:$0xf]
      %v439 = vld [vmem:[%s386 + $0x4] sm:$0x3]
      %v440 = vpack.c.bf16 %v437, %v437
      %v443 = vunpack.c.l.b16 %v438
      %v444 = vunpack.c.l.b16 %v439
      %v445 = vpack.c.b16 %v444, %v443
      %vm446 = vcmask 64512
      %v448 = vsel %vm446, %v445, 0
      %vm450 = vcmask 1043456
      %v452 = vsel %vm450, %v440, 0
      %454 = vmatprep.subr.bf16.mxu0 0
      %455 = vmatpush1.bf16.msra.mxu0 %v452
      %456 = vmatprep.subr.bf16.mxu0 0
      %457 = vmatpush1.bf16.msra.mxu0 0
      %458 = vmatprep.subr.bf16.mxu0 0
      %459 = vmatpush1.bf16.msra.mxu0 0
      %460 = vmatprep.subr.bf16.mxu0 0
      %461 = vmatpush1.bf16.msra.mxu0 0
      %462 = vmatprep.subr.bf16.mxu0 0
      %463 = vmatpush1.bf16.msra.mxu0 0
      %464 = vmatprep.subr.bf16.mxu0 0
      %465 = vmatpush1.bf16.msra.mxu0 0
      %466 = vmatprep.subr.bf16.mxu0 0
      %467 = vmatpush1.bf16.msra.mxu0 0
      %468 = vmatprep.subr.bf16.mxu0 0
      %469 = vmatpush1.bf16.msra.mxu0 0
      %470 = vmatprep.subr.bf16.mxu0 0
      %471 = vmatpush1.bf16.msra.mxu0 0
      %472 = vmatprep.subr.bf16.mxu0 0
      %473 = vmatpush1.bf16.msra.mxu0 0
      %474 = vmatprep.subr.bf16.mxu0 0
      %475 = vmatpush1.bf16.msra.mxu0 0
      %476 = vmatprep.subr.bf16.mxu0 0
      %477 = vmatpush1.bf16.msra.mxu0 0
      %478 = vmatprep.subr.bf16.mxu0 0
      %479 = vmatpush1.bf16.msra.mxu0 0
      %480 = vmatprep.subr.bf16.mxu0 0
      %481 = vmatpush1.bf16.msra.mxu0 0
      %482 = vmatprep.subr.bf16.mxu0 0
      %483 = vmatpush1.bf16.msra.mxu0 0
      %484 = vmatprep.subr.bf16.mxu0 0
      %485 = vmatpush1.bf16.msra.mxu0 0
      %486 = vmatprep.mubr.bf16.mxu0 0
      %487 = vmatmul.mubr.bf16.gmra.mrb[0].mxu0 %v448
      %v488 = vpop.f32.mrb[0].mxu0
      %v489 = vadd.f32 0.0, %v488
      %v490 = vpop.f32.mrb[0].mxu0
      %v491 = vpop.f32.mrb[0].mxu0
      %v492 = vadd.f32 0.0, %v491
      %v493 = vpop.f32.mrb[0].mxu0
      %494 = vdwg.mxu0
      %v495 = vld [vmem:[%s395] sm:$0xf]
      %v496 = vld [vmem:[%s395 + $0x4] sm:$0x3]
      %v497 = vunpack.c.l.bf16 %v495
      %v498 = vunpack.c.l.bf16 %v496
      %500 = vset.pattern.permute.xlu0 0
      %501 = vperm.xlu0 %500, %v489
      %v502 = vpop.permute.xlu0 %501
      %505 = vset.pattern.permute.xlu0 0
      %506 = vperm.xlu0 %505, %v492
      %v507 = vpop.permute.xlu0 %506
      %v509 = vmul.f32 %v502, %v497
      %v510 = vmul.f32 %v507, %v498
      %v511 = vadd.f32 %v509, 0.0
      %v512 = vadd.f32 %v510, 0.0
      %s513 = scalar_lea.vmem %s395, 8
      %v514 = vld [vmem:[%s513] sm:$0xf]
      %v515 = vld [vmem:[%s513 + $0x4] sm:$0x3]
      %v516 = vunpack.c.l.bf16 %v514
      %v517 = vunpack.c.l.bf16 %v515
      %518 = vset.pattern.permute.xlu0 1
      %519 = vperm.xlu0 %518, %v489
      %v520 = vpop.permute.xlu0 %519
      %522 = vset.pattern.permute.xlu0 1
      %523 = vperm.xlu0 %522, %v492
      %v524 = vpop.permute.xlu0 %523
      %v526 = vmul.f32 %v520, %v516
      %v527 = vmul.f32 %v524, %v517
      %v528 = vadd.f32 %v511, %v526
      %v529 = vadd.f32 %v512, %v527
      %s530 = scalar_lea.vmem %s395, 16
      %v531 = vld [vmem:[%s530] sm:$0xf]
      %v532 = vld [vmem:[%s530 + $0x4] sm:$0x3]
      %v533 = vunpack.c.l.bf16 %v531
      %v534 = vunpack.c.l.bf16 %v532
      %535 = vset.pattern.permute.xlu0 2
      %536 = vperm.xlu0 %535, %v489
      %v537 = vpop.permute.xlu0 %536
      %539 = vset.pattern.permute.xlu0 2
      %540 = vperm.xlu0 %539, %v492
      %v541 = vpop.permute.xlu0 %540
      %v543 = vmul.f32 %v537, %v533
      %v544 = vmul.f32 %v541, %v534
      %v545 = vadd.f32 %v528, %v543
      %v546 = vadd.f32 %v529, %v544
      %s547 = scalar_lea.vmem %s395, 24
      %v548 = vld [vmem:[%s547] sm:$0xf]
      %v549 = vld [vmem:[%s547 + $0x4] sm:$0x3]
      %v550 = vunpack.c.l.bf16 %v548
      %v551 = vunpack.c.l.bf16 %v549
      %552 = vset.pattern.permute.xlu0 3
      %553 = vperm.xlu0 %552, %v489
      %v554 = vpop.permute.xlu0 %553
      %556 = vset.pattern.permute.xlu0 3
      %557 = vperm.xlu0 %556, %v492
      %v558 = vpop.permute.xlu0 %557
      %v560 = vmul.f32 %v554, %v550
      %v561 = vmul.f32 %v558, %v551
      %v562 = vadd.f32 %v545, %v560
      %v563 = vadd.f32 %v546, %v561
      %s564 = scalar_lea.vmem %s395, 32
      %v565 = vld [vmem:[%s564] sm:$0xf]
      %v566 = vld [vmem:[%s564 + $0x4] sm:$0x3]
      %v567 = vunpack.c.l.bf16 %v565
      %v568 = vunpack.c.l.bf16 %v566
      %569 = vset.pattern.permute.xlu0 4
      %570 = vperm.xlu0 %569, %v489
      %v571 = vpop.permute.xlu0 %570
      %573 = vset.pattern.permute.xlu0 4
      %574 = vperm.xlu0 %573, %v492
      %v575 = vpop.permute.xlu0 %574
      %v577 = vmul.f32 %v571, %v567
      %v578 = vmul.f32 %v575, %v568
      %v579 = vadd.f32 %v562, %v577
      %v580 = vadd.f32 %v563, %v578
      %s581 = scalar_lea.vmem %s395, 40
      %v582 = vld [vmem:[%s581] sm:$0xf]
      %v583 = vld [vmem:[%s581 + $0x4] sm:$0x3]
      %v584 = vunpack.c.l.bf16 %v582
      %v585 = vunpack.c.l.bf16 %v583
      %586 = vset.pattern.permute.xlu0 5
      %587 = vperm.xlu0 %586, %v489
      %v588 = vpop.permute.xlu0 %587
      %590 = vset.pattern.permute.xlu0 5
      %591 = vperm.xlu0 %590, %v492
      %v592 = vpop.permute.xlu0 %591
      %v594 = vmul.f32 %v588, %v584
      %v595 = vmul.f32 %v592, %v585
      %v596 = vadd.f32 %v579, %v594
      %v597 = vadd.f32 %v580, %v595
      %s598 = scalar_lea.vmem %s395, 48
      %v599 = vld [vmem:[%s598] sm:$0xf]
      %v600 = vld [vmem:[%s598 + $0x4] sm:$0x3]
      %v601 = vunpack.c.l.bf16 %v599
      %v602 = vunpack.c.l.bf16 %v600
      %603 = vset.pattern.permute.xlu0 6
      %604 = vperm.xlu0 %603, %v489
      %v605 = vpop.permute.xlu0 %604
      %607 = vset.pattern.permute.xlu0 6
      %608 = vperm.xlu0 %607, %v492
      %v609 = vpop.permute.xlu0 %608
      %v611 = vmul.f32 %v605, %v601
      %v612 = vmul.f32 %v609, %v602
      %v613 = vadd.f32 %v596, %v611
      %v614 = vadd.f32 %v597, %v612
      %s615 = scalar_lea.vmem %s395, 56
      %v616 = vld [vmem:[%s615] sm:$0xf]
      %v617 = vld [vmem:[%s615 + $0x4] sm:$0x3]
      %v618 = vunpack.c.l.bf16 %v616
      %v619 = vunpack.c.l.bf16 %v617
      %620 = vset.pattern.permute.xlu0 7
      %621 = vperm.xlu0 %620, %v489
      %v622 = vpop.permute.xlu0 %621
      %624 = vset.pattern.permute.xlu0 7
      %625 = vperm.xlu0 %624, %v492
      %v626 = vpop.permute.xlu0 %625
      %v628 = vmul.f32 %v622, %v618
      %v629 = vmul.f32 %v626, %v619
      %v630 = vadd.f32 %v613, %v628
      %v631 = vadd.f32 %v614, %v629
      %s632 = scalar_lea.vmem %s395, 64
      %v633 = vld [vmem:[%s632] sm:$0xf]
      %v634 = vld [vmem:[%s632 + $0x4] sm:$0x3]
      %v635 = vunpack.c.l.bf16 %v633
      %v636 = vunpack.c.l.bf16 %v634
      %637 = vset.pattern.permute.xlu0 8
      %638 = vperm.xlu0 %637, %v489
      %v639 = vpop.permute.xlu0 %638
      %641 = vset.pattern.permute.xlu0 8
      %642 = vperm.xlu0 %641, %v492
      %v643 = vpop.permute.xlu0 %642
      %v645 = vmul.f32 %v639, %v635
      %v646 = vmul.f32 %v643, %v636
      %v647 = vadd.f32 %v630, %v645
      %v648 = vadd.f32 %v631, %v646
      %s649 = scalar_lea.vmem %s395, 72
      %v650 = vld [vmem:[%s649] sm:$0xf]
      %v651 = vld [vmem:[%s649 + $0x4] sm:$0x3]
      %v652 = vunpack.c.l.bf16 %v650
      %v653 = vunpack.c.l.bf16 %v651
      %654 = vset.pattern.permute.xlu0 9
      %655 = vperm.xlu0 %654, %v489
      %v656 = vpop.permute.xlu0 %655
      %658 = vset.pattern.permute.xlu0 9
      %659 = vperm.xlu0 %658, %v492
      %v660 = vpop.permute.xlu0 %659
      %v662 = vmul.f32 %v656, %v652
      %v663 = vmul.f32 %v660, %v653
      %v664 = vadd.f32 %v647, %v662
      %v665 = vadd.f32 %v648, %v663
      %s666 = scalar_lea.vmem %s395, 80
      %v667 = vld [vmem:[%s666] sm:$0xf]
      %v668 = vld [vmem:[%s666 + $0x4] sm:$0x3]
      %v669 = vunpack.c.l.bf16 %v667
      %v670 = vunpack.c.l.bf16 %v668
      %671 = vset.pattern.permute.xlu0 10
      %672 = vperm.xlu0 %671, %v489
      %v673 = vpop.permute.xlu0 %672
      %675 = vset.pattern.permute.xlu0 10
      %676 = vperm.xlu0 %675, %v492
      %v677 = vpop.permute.xlu0 %676
      %v679 = vmul.f32 %v673, %v669
      %v680 = vmul.f32 %v677, %v670
      %v681 = vadd.f32 %v664, %v679
      %v682 = vadd.f32 %v665, %v680
      %s683 = scalar_lea.vmem %s395, 88
      %v684 = vld [vmem:[%s683] sm:$0xf]
      %v685 = vld [vmem:[%s683 + $0x4] sm:$0x3]
      %v686 = vunpack.c.l.bf16 %v684
      %v687 = vunpack.c.l.bf16 %v685
      %688 = vset.pattern.permute.xlu0 11
      %689 = vperm.xlu0 %688, %v489
      %v690 = vpop.permute.xlu0 %689
      %692 = vset.pattern.permute.xlu0 11
      %693 = vperm.xlu0 %692, %v492
      %v694 = vpop.permute.xlu0 %693
      %v696 = vmul.f32 %v690, %v686
      %v697 = vmul.f32 %v694, %v687
      %v698 = vadd.f32 %v681, %v696
      %v699 = vadd.f32 %v682, %v697
      %s700 = scalar_lea.vmem %s395, 96
      %v701 = vld [vmem:[%s700] sm:$0xf]
      %v702 = vld [vmem:[%s700 + $0x4] sm:$0x3]
      %v703 = vunpack.c.l.bf16 %v701
      %v704 = vunpack.c.l.bf16 %v702
      %705 = vset.pattern.permute.xlu0 12
      %706 = vperm.xlu0 %705, %v489
      %v707 = vpop.permute.xlu0 %706
      %709 = vset.pattern.permute.xlu0 12
      %710 = vperm.xlu0 %709, %v492
      %v711 = vpop.permute.xlu0 %710
      %v713 = vmul.f32 %v707, %v703
      %v714 = vmul.f32 %v711, %v704
      %v715 = vadd.f32 %v698, %v713
      %v716 = vadd.f32 %v699, %v714
      %s717 = scalar_lea.vmem %s395, 104
      %v718 = vld [vmem:[%s717] sm:$0xf]
      %v719 = vld [vmem:[%s717 + $0x4] sm:$0x3]
      %v720 = vunpack.c.l.bf16 %v718
      %v721 = vunpack.c.l.bf16 %v719
      %722 = vset.pattern.permute.xlu0 13
      %723 = vperm.xlu0 %722, %v489
      %v724 = vpop.permute.xlu0 %723
      %726 = vset.pattern.permute.xlu0 13
      %727 = vperm.xlu0 %726, %v492
      %v728 = vpop.permute.xlu0 %727
      %v730 = vmul.f32 %v724, %v720
      %v731 = vmul.f32 %v728, %v721
      %v732 = vadd.f32 %v715, %v730
      %v733 = vadd.f32 %v716, %v731
      %s734 = scalar_lea.vmem %s395, 112
      %v735 = vld [vmem:[%s734] sm:$0xf]
      %v736 = vld [vmem:[%s734 + $0x4] sm:$0x3]
      %v737 = vunpack.c.l.bf16 %v735
      %v738 = vunpack.c.l.bf16 %v736
      %739 = vset.pattern.permute.xlu0 14
      %740 = vperm.xlu0 %739, %v489
      %v741 = vpop.permute.xlu0 %740
      %743 = vset.pattern.permute.xlu0 14
      %744 = vperm.xlu0 %743, %v492
      %v745 = vpop.permute.xlu0 %744
      %v747 = vmul.f32 %v741, %v737
      %v748 = vmul.f32 %v745, %v738
      %v749 = vadd.f32 %v732, %v747
      %v750 = vadd.f32 %v733, %v748
      %s751 = scalar_lea.vmem %s395, 120
      %v752 = vld [vmem:[%s751] sm:$0xf]
      %v753 = vld [vmem:[%s751 + $0x4] sm:$0x3]
      %v754 = vunpack.c.l.bf16 %v752
      %v755 = vunpack.c.l.bf16 %v753
      %756 = vset.pattern.permute.xlu0 15
      %757 = vperm.xlu0 %756, %v489
      %v758 = vpop.permute.xlu0 %757
      %760 = vset.pattern.permute.xlu0 15
      %761 = vperm.xlu0 %760, %v492
      %v762 = vpop.permute.xlu0 %761
      %v764 = vmul.f32 %v758, %v754
      %v765 = vmul.f32 %v762, %v755
      %v766 = vadd.f32 %v749, %v764
      %v767 = vadd.f32 %v750, %v765
      %s768 = scalar_lea.vmem %s395, 128
      %v769 = vld [vmem:[%s768] sm:$0xf]
      %v770 = vld [vmem:[%s768 + $0x4] sm:$0x3]
      %v771 = vunpack.c.l.bf16 %v769
      %v772 = vunpack.c.l.bf16 %v770
      %773 = vset.pattern.permute.xlu0 16
      %774 = vperm.xlu0 %773, %v489
      %v775 = vpop.permute.xlu0 %774
      %777 = vset.pattern.permute.xlu0 16
      %778 = vperm.xlu0 %777, %v492
      %v779 = vpop.permute.xlu0 %778
      %v781 = vmul.f32 %v775, %v771
      %v782 = vmul.f32 %v779, %v772
      %v783 = vadd.f32 %v766, %v781
      %v784 = vadd.f32 %v767, %v782
      %s785 = scalar_lea.vmem %s395, 136
      %v786 = vld [vmem:[%s785] sm:$0xf]
      %v787 = vld [vmem:[%s785 + $0x4] sm:$0x3]
      %v788 = vunpack.c.l.bf16 %v786
      %v789 = vunpack.c.l.bf16 %v787
      %790 = vset.pattern.permute.xlu0 17
      %791 = vperm.xlu0 %790, %v489
      %v792 = vpop.permute.xlu0 %791
      %794 = vset.pattern.permute.xlu0 17
      %795 = vperm.xlu0 %794, %v492
      %v796 = vpop.permute.xlu0 %795
      %v798 = vmul.f32 %v792, %v788
      %v799 = vmul.f32 %v796, %v789
      %v800 = vadd.f32 %v783, %v798
      %v801 = vadd.f32 %v784, %v799
      %s802 = scalar_lea.vmem %s395, 144
      %v803 = vld [vmem:[%s802] sm:$0xf]
      %v804 = vld [vmem:[%s802 + $0x4] sm:$0x3]
      %v805 = vunpack.c.l.bf16 %v803
      %v806 = vunpack.c.l.bf16 %v804
      %807 = vset.pattern.permute.xlu0 18
      %808 = vperm.xlu0 %807, %v489
      %v809 = vpop.permute.xlu0 %808
      %811 = vset.pattern.permute.xlu0 18
      %812 = vperm.xlu0 %811, %v492
      %v813 = vpop.permute.xlu0 %812
      %v815 = vmul.f32 %v809, %v805
      %v816 = vmul.f32 %v813, %v806
      %v817 = vadd.f32 %v800, %v815
      %v818 = vadd.f32 %v801, %v816
      %s819 = scalar_lea.vmem %s395, 152
      %v820 = vld [vmem:[%s819] sm:$0xf]
      %v821 = vld [vmem:[%s819 + $0x4] sm:$0x3]
      %v822 = vunpack.c.l.bf16 %v820
      %v823 = vunpack.c.l.bf16 %v821
      %824 = vset.pattern.permute.xlu0 19
      %825 = vperm.xlu0 %824, %v489
      %v826 = vpop.permute.xlu0 %825
      %828 = vset.pattern.permute.xlu0 19
      %829 = vperm.xlu0 %828, %v492
      %v830 = vpop.permute.xlu0 %829
      %v832 = vmul.f32 %v826, %v822
      %v833 = vmul.f32 %v830, %v823
      %v834 = vadd.f32 %v817, %v832
      %v835 = vadd.f32 %v818, %v833
      %s836 = scalar_lea.vmem %s395, 160
      %v837 = vld [vmem:[%s836] sm:$0xf]
      %v838 = vld [vmem:[%s836 + $0x4] sm:$0x3]
      %v839 = vunpack.c.l.bf16 %v837
      %v840 = vunpack.c.l.bf16 %v838
      %841 = vset.pattern.permute.xlu0 20
      %842 = vperm.xlu0 %841, %v489
      %v843 = vpop.permute.xlu0 %842
      %845 = vset.pattern.permute.xlu0 20
      %846 = vperm.xlu0 %845, %v492
      %v847 = vpop.permute.xlu0 %846
      %v849 = vmul.f32 %v843, %v839
      %v850 = vmul.f32 %v847, %v840
      %v851 = vadd.f32 %v834, %v849
      %v852 = vadd.f32 %v835, %v850
      %s853 = scalar_lea.vmem %s395, 168
      %v854 = vld [vmem:[%s853] sm:$0xf]
      %v855 = vld [vmem:[%s853 + $0x4] sm:$0x3]
      %v856 = vunpack.c.l.bf16 %v854
      %v857 = vunpack.c.l.bf16 %v855
      %858 = vset.pattern.permute.xlu0 21
      %859 = vperm.xlu0 %858, %v489
      %v860 = vpop.permute.xlu0 %859
      %862 = vset.pattern.permute.xlu0 21
      %863 = vperm.xlu0 %862, %v492
      %v864 = vpop.permute.xlu0 %863
      %v866 = vmul.f32 %v860, %v856
      %v867 = vmul.f32 %v864, %v857
      %v868 = vadd.f32 %v851, %v866
      %v869 = vadd.f32 %v852, %v867
      %s870 = scalar_lea.vmem %s395, 176
      %v871 = vld [vmem:[%s870] sm:$0xf]
      %v872 = vld [vmem:[%s870 + $0x4] sm:$0x3]
      %v873 = vunpack.c.l.bf16 %v871
      %v874 = vunpack.c.l.bf16 %v872
      %875 = vset.pattern.permute.xlu0 22
      %876 = vperm.xlu0 %875, %v489
      %v877 = vpop.permute.xlu0 %876
      %879 = vset.pattern.permute.xlu0 22
      %880 = vperm.xlu0 %879, %v492
      %v881 = vpop.permute.xlu0 %880
      %v883 = vmul.f32 %v877, %v873
      %v884 = vmul.f32 %v881, %v874
      %v885 = vadd.f32 %v868, %v883
      %v886 = vadd.f32 %v869, %v884
      %s887 = scalar_lea.vmem %s395, 184
      %v888 = vld [vmem:[%s887] sm:$0xf]
      %v889 = vld [vmem:[%s887 + $0x4] sm:$0x3]
      %v890 = vunpack.c.l.bf16 %v888
      %v891 = vunpack.c.l.bf16 %v889
      %892 = vset.pattern.permute.xlu0 23
      %893 = vperm.xlu0 %892, %v489
      %v894 = vpop.permute.xlu0 %893
      %896 = vset.pattern.permute.xlu0 23
      %897 = vperm.xlu0 %896, %v492
      %v898 = vpop.permute.xlu0 %897
      %v900 = vmul.f32 %v894, %v890
      %v901 = vmul.f32 %v898, %v891
      %v902 = vadd.f32 %v885, %v900
      %v903 = vadd.f32 %v886, %v901
      %s904 = scalar_lea.vmem %s395, 192
      %v905 = vld [vmem:[%s904] sm:$0xf]
      %v906 = vld [vmem:[%s904 + $0x4] sm:$0x3]
      %v907 = vunpack.c.l.bf16 %v905
      %v908 = vunpack.c.l.bf16 %v906
      %909 = vset.pattern.permute.xlu0 24
      %910 = vperm.xlu0 %909, %v489
      %v911 = vpop.permute.xlu0 %910
      %913 = vset.pattern.permute.xlu0 24
      %914 = vperm.xlu0 %913, %v492
      %v915 = vpop.permute.xlu0 %914
      %v917 = vmul.f32 %v911, %v907
      %v918 = vmul.f32 %v915, %v908
      %v919 = vadd.f32 %v902, %v917
      %v920 = vadd.f32 %v903, %v918
      %s921 = scalar_lea.vmem %s395, 200
      %v922 = vld [vmem:[%s921] sm:$0xf]
      %v923 = vld [vmem:[%s921 + $0x4] sm:$0x3]
      %v924 = vunpack.c.l.bf16 %v922
      %v925 = vunpack.c.l.bf16 %v923
      %926 = vset.pattern.permute.xlu0 25
      %927 = vperm.xlu0 %926, %v489
      %v928 = vpop.permute.xlu0 %927
      %930 = vset.pattern.permute.xlu0 25
      %931 = vperm.xlu0 %930, %v492
      %v932 = vpop.permute.xlu0 %931
      %v934 = vmul.f32 %v928, %v924
      %v935 = vmul.f32 %v932, %v925
      %v936 = vadd.f32 %v919, %v934
      %v937 = vadd.f32 %v920, %v935
      %s938 = scalar_lea.vmem %s395, 208
      %v939 = vld [vmem:[%s938] sm:$0xf]
      %v940 = vld [vmem:[%s938 + $0x4] sm:$0x3]
      %v941 = vunpack.c.l.bf16 %v939
      %v942 = vunpack.c.l.bf16 %v940
      %943 = vset.pattern.permute.xlu0 26
      %944 = vperm.xlu0 %943, %v489
      %v945 = vpop.permute.xlu0 %944
      %947 = vset.pattern.permute.xlu0 26
      %948 = vperm.xlu0 %947, %v492
      %v949 = vpop.permute.xlu0 %948
      %v951 = vmul.f32 %v945, %v941
      %v952 = vmul.f32 %v949, %v942
      %v953 = vadd.f32 %v936, %v951
      %v954 = vadd.f32 %v937, %v952
      %s955 = scalar_lea.vmem %s395, 216
      %v956 = vld [vmem:[%s955] sm:$0xf]
      %v957 = vld [vmem:[%s955 + $0x4] sm:$0x3]
      %v958 = vunpack.c.l.bf16 %v956
      %v959 = vunpack.c.l.bf16 %v957
      %960 = vset.pattern.permute.xlu0 27
      %961 = vperm.xlu0 %960, %v489
      %v962 = vpop.permute.xlu0 %961
      %964 = vset.pattern.permute.xlu0 27
      %965 = vperm.xlu0 %964, %v492
      %v966 = vpop.permute.xlu0 %965
      %v968 = vmul.f32 %v962, %v958
      %v969 = vmul.f32 %v966, %v959
      %v970 = vadd.f32 %v953, %v968
      %v971 = vadd.f32 %v954, %v969
      %s972 = scalar_lea.vmem %s395, 224
      %v973 = vld [vmem:[%s972] sm:$0xf]
      %v974 = vld [vmem:[%s972 + $0x4] sm:$0x3]
      %v975 = vunpack.c.l.bf16 %v973
      %v976 = vunpack.c.l.bf16 %v974
      %977 = vset.pattern.permute.xlu0 28
      %978 = vperm.xlu0 %977, %v489
      %v979 = vpop.permute.xlu0 %978
      %981 = vset.pattern.permute.xlu0 28
      %982 = vperm.xlu0 %981, %v492
      %v983 = vpop.permute.xlu0 %982
      %v985 = vmul.f32 %v979, %v975
      %v986 = vmul.f32 %v983, %v976
      %v987 = vadd.f32 %v970, %v985
      %v988 = vadd.f32 %v971, %v986
      %s989 = scalar_lea.vmem %s395, 232
      %v990 = vld [vmem:[%s989] sm:$0xf]
      %v991 = vld [vmem:[%s989 + $0x4] sm:$0x3]
      %v992 = vunpack.c.l.bf16 %v990
      %v993 = vunpack.c.l.bf16 %v991
      %994 = vset.pattern.permute.xlu0 29
      %995 = vperm.xlu0 %994, %v489
      %v996 = vpop.permute.xlu0 %995
      %998 = vset.pattern.permute.xlu0 29
      %999 = vperm.xlu0 %998, %v492
      %v1000 = vpop.permute.xlu0 %999
      %v1002 = vmul.f32 %v996, %v992
      %v1003 = vmul.f32 %v1000, %v993
      %v1004 = vadd.f32 %v987, %v1002
      %v1005 = vadd.f32 %v988, %v1003
      %s1006 = scalar_lea.vmem %s395, 240
      %v1007 = vld [vmem:[%s1006] sm:$0xf]
      %v1008 = vld [vmem:[%s1006 + $0x4] sm:$0x3]
      %v1009 = vunpack.c.l.bf16 %v1007
      %v1010 = vunpack.c.l.bf16 %v1008
      %1011 = vset.pattern.permute.xlu0 30
      %1012 = vperm.xlu0 %1011, %v489
      %v1013 = vpop.permute.xlu0 %1012
      %1015 = vset.pattern.permute.xlu0 30
      %1016 = vperm.xlu0 %1015, %v492
      %v1017 = vpop.permute.xlu0 %1016
      %v1019 = vmul.f32 %v1013, %v1009
      %v1020 = vmul.f32 %v1017, %v1010
      %v1021 = vadd.f32 %v1004, %v1019
      %v1022 = vadd.f32 %v1005, %v1020
      %s1023 = scalar_lea.vmem %s395, 248
      %v1024 = vld [vmem:[%s1023] sm:$0xf]
      %v1025 = vld [vmem:[%s1023 + $0x4] sm:$0x3]
      %v1026 = vunpack.c.l.bf16 %v1024
      %v1027 = vunpack.c.l.bf16 %v1025
      %1028 = vset.pattern.permute.xlu0 31
      %1029 = vperm.xlu0 %1028, %v489
      %v1030 = vpop.permute.xlu0 %1029
      %1032 = vset.pattern.permute.xlu0 31
      %1033 = vperm.xlu0 %1032, %v492
      %v1034 = vpop.permute.xlu0 %1033
      %v1036 = vmul.f32 %v1030, %v1026
      %v1037 = vmul.f32 %v1034, %v1027
      %v1038 = vadd.f32 %v1021, %v1036
      %v1039 = vadd.f32 %v1022, %v1037
      %v1040 = vld [vmem:[%s400] sm:$0xff]
      %v1041 = vld [vmem:[%s400 + $0x8] sm:$0xf]
      %v1042 = vmul.f32 %v1038, %v1040
      %v1043 = vmul.f32 %v1039, %v1041
      %v1044 = vld [vmem:[%s390] sm:$0xf]
      %v1045 = vpack.c.bf16 %v1043, %v1042
      %vm1046 = vcmask 97280
      %v1048 = vsel %vm1046, %v1044, 0
      %vm1050 = vcmask 1045504
      %v1052 = vsel %vm1050, %v1045, 0
      %1054 = vmatprep.subr.bf16.mxu0 0
      %1055 = vmatpush1.bf16.msra.mxu0 %v1052
      %1056 = vmatprep.subr.bf16.mxu0 0
      %1057 = vmatpush1.bf16.msra.mxu0 0
      %1058 = vmatprep.subr.bf16.mxu0 0
      %1059 = vmatpush1.bf16.msra.mxu0 0
      %1060 = vmatprep.subr.bf16.mxu0 0
      %1061 = vmatpush1.bf16.msra.mxu0 0
      %1062 = vmatprep.subr.bf16.mxu0 0
      %1063 = vmatpush1.bf16.msra.mxu0 0
      %1064 = vmatprep.subr.bf16.mxu0 0
      %1065 = vmatpush1.bf16.msra.mxu0 0
      %1066 = vmatprep.subr.bf16.mxu0 0
      %1067 = vmatpush1.bf16.msra.mxu0 0
      %1068 = vmatprep.subr.bf16.mxu0 0
      %1069 = vmatpush1.bf16.msra.mxu0 0
      %1070 = vmatprep.subr.bf16.mxu0 0
      %1071 = vmatpush1.bf16.msra.mxu0 0
      %1072 = vmatprep.subr.bf16.mxu0 0
      %1073 = vmatpush1.bf16.msra.mxu0 0
      %1074 = vmatprep.subr.bf16.mxu0 0
      %1075 = vmatpush1.bf16.msra.mxu0 0
      %1076 = vmatprep.subr.bf16.mxu0 0
      %1077 = vmatpush1.bf16.msra.mxu0 0
      %1078 = vmatprep.subr.bf16.mxu0 0
      %1079 = vmatpush1.bf16.msra.mxu0 0
      %1080 = vmatprep.subr.bf16.mxu0 0
      %1081 = vmatpush1.bf16.msra.mxu0 0
      %1082 = vmatprep.subr.bf16.mxu0 0
      %1083 = vmatpush1.bf16.msra.mxu0 0
      %1084 = vmatprep.subr.bf16.mxu0 0
      %1085 = vmatpush1.bf16.msra.mxu0 0
      %1086 = vmatprep.mubr.bf16.mxu0 0
      %1087 = vmatmul.mubr.bf16.gmra.mrb[0].mxu0 %v1048
      %v1088 = vpop.f32.mrb[0].mxu0
      %v1089 = vadd.f32 0.0, %v1088
      %v1090 = vpop.f32.mrb[0].mxu0
      %v1091 = vpop.f32.mrb[0].mxu0
      %v1092 = vpop.f32.mrb[0].mxu0
      %1093 = vdwg.mxu0
      %v1094 = vld [vmem:[%s7] sm:$0xf]
      %v1095 = vld [vmem:[%s7 + $0x4] sm:$0xf]
      %v1096 = vld [vmem:[%s7 + $0x8] sm:$0xf]
      %v1097 = vld [vmem:[%s7 + $0xc] sm:$0xf]
      %v1098 = vpack.c.bf16 %v1089, %v1089
      %v1099 = vld [vmem:[%s8] sm:$0x1]
      %v1101 = vlaneseq
      %v1102 = vshrl.u32 %v1101, 7
      %v1103 = vsub.s32 0, %v1102
      %v1104 = vrot.slane %v1099, %v1103
      %v1110 = vunpack.c.l.b16 %v1094
      %v1111 = vunpack.c.l.b16 %v1095
      %v1112 = vunpack.c.l.b16 %v1096
      %v1113 = vunpack.c.l.b16 %v1097
      %v1114 = vpack.c.b16 %v1111, %v1110
      %v1115 = vpack.c.b16 %v1113, %v1112
      %v1119 = vsel %vm409, %v1098, 0
      %1121 = vmatprep.subr.bf16.mxu0 0
      %1122 = vmatpush1.bf16.msra.mxu0 %v1114
      %1123 = vmatprep.subr.bf16.mxu0 0
      %1124 = vmatpush1.bf16.msra.mxu0 %v1115
      %1125 = vmatprep.subr.bf16.mxu0 0
      %1126 = vmatpush1.bf16.msra.mxu0 0
      %1127 = vmatprep.subr.bf16.mxu0 0
      %1128 = vmatpush1.bf16.msra.mxu0 0
      %1129 = vmatprep.subr.bf16.mxu0 0
      %1130 = vmatpush1.bf16.msra.mxu0 0
      %1131 = vmatprep.subr.bf16.mxu0 0
      %1132 = vmatpush1.bf16.msra.mxu0 0
      %1133 = vmatprep.subr.bf16.mxu0 0
      %1134 = vmatpush1.bf16.msra.mxu0 0
      %1135 = vmatprep.subr.bf16.mxu0 0
      %1136 = vmatpush1.bf16.msra.mxu0 0
      %1137 = vmatprep.subr.bf16.mxu0 0
      %1138 = vmatpush1.bf16.msra.mxu0 0
      %1139 = vmatprep.subr.bf16.mxu0 0
      %1140 = vmatpush1.bf16.msra.mxu0 0
      %1141 = vmatprep.subr.bf16.mxu0 0
      %1142 = vmatpush1.bf16.msra.mxu0 0
      %1143 = vmatprep.subr.bf16.mxu0 0
      %1144 = vmatpush1.bf16.msra.mxu0 0
      %1145 = vmatprep.subr.bf16.mxu0 0
      %1146 = vmatpush1.bf16.msra.mxu0 0
      %1147 = vmatprep.subr.bf16.mxu0 0
      %1148 = vmatpush1.bf16.msra.mxu0 0
      %1149 = vmatprep.subr.bf16.mxu0 0
      %1150 = vmatpush1.bf16.msra.mxu0 0
      %1151 = vmatprep.subr.bf16.mxu0 0
      %1152 = vmatpush1.bf16.msra.mxu0 0
      %1153 = vmatprep.mubr.bf16.mxu0 0
      %1154 = vmatmul.mubr.bf16.gmra.mrb[0].mxu0 %v1119
      %v1155 = vpop.f32.mrb[0].mxu0
      %v1156 = vadd.f32 %v1104, %v1155
      %v1157 = vpop.f32.mrb[0].mxu0
      %v1158 = vpop.f32.mrb[0].mxu0
      %v1159 = vpop.f32.mrb[0].mxu0
      %1160 = vdwg.mxu0
      %v1161 = vadd.f32 %v406, %v1156
      %1162 = vst.msk [vmem:[%s404] sm:$0xff] %vm409, %v1161
      %p1163 = scmp.lt.s32.totalorder %s20, 1
      %s1164 = scalar_select %p1163, %s20, 1
      %s1165 = smul.addr %s1164, 8
      %s1166 = scalar_lea.vmem %s9, %s1165
      // Predicated region
      $region57: #{fwd.14} parent=55 // pred_check
        %p1167 = pneg %p252
      $region58: #{fwd.14} parent=55 // pred_check_branch
        %1169 = sbr.rel (%p1167) target = $region60
      $region59: #{fwd.14} parent=55 // pred_region
        _
      $region60: #{fwd.14} parent=55 // pred_fallthru
        _
    $region56: #{fwd.14} parent=5 // pred_fallthru
      _
    %p1170 = scmp.le.s32.totalorder 2, %s15
    // Predicated region
    $region61: #{fwd.14} parent=5 // pred_check
      %p1171 = pneg %p1170
    $region62: #{fwd.14} parent=5 // pred_check_branch
      %1173 = sbr.rel (%p1171) target = $region64
    $region63: #{fwd.14} parent=5 // pred_region
      %s1174 = ssub.s32 %s15, 2
      // Predicated region
      $region65: #{fwd.14} parent=63 // pred_check
        %p1175 = pneg %p258
      $region66: #{fwd.14} parent=63 // pred_check_branch
        %1177 = sbr.rel (%p1175) target = $region68
      $region67: #{fwd.14} parent=63 // pred_region
        %p1178 = scmp.lt.s32.totalorder %s21, 1
        %s1179 = scalar_select %p1178, %s21, 1
        %s1180 = smul.addr %s1179, 8
        %s1181 = scalar_lea.vmem %s9, %s1180
      $region68: #{fwd.14} parent=63 // pred_fallthru
        _
    $region64: #{fwd.14} parent=5 // pred_fallthru
      _
  $region6: #{fwd.14} parent=0 // loop_footer
    %s19 = sadd.s32 1, %s15
  $region7: #{fwd.14} parent=0 // loop_footer_branch
    %14 = sbr.rel target = $region3
  $region8: #{fwd.14} parent=0 // loop_exit
    _

// kernel: fwd.20
$region0: #{fwd.20}
  #allocation0 [shape = 'u32[]', space=smem, size = 0x4, offset = 0x4, fixed_abs, tag = 'smem constant byte address 0x4 - core index']
  #allocation1 [shape = 'u32[144,128]{1,0:T(1,128)}', space=vmem, size = 0x12000, scoped, tag = 'internal scratch']
  %s0 = inlined_call_operand.vmem [shape: f32[16,32], index: 0, kind: input, shape index: {}]
  %s1 = inlined_call_operand.vmem [shape: f32[1,32], index: 1, kind: input, shape index: {}]
  %s2 = inlined_call_operand.vmem [shape: f32[1,32], index: 2, kind: input, shape index: {}]
  %s3 = inlined_call_operand.vmem [shape: f32[16,32], index: 3, kind: output, shape index: {}]
  %s4 = sld [smem:[#allocation0]]
  $region22: #{fwd.20} parent=0
    _
  %s6 = ssub.s32 1, %s4
  %s7 = scalar_select 0, %s6, %s4
  // Predicated region
  $region2: #{fwd.20} parent=0 // pred_check
    _
  $region3: #{fwd.20} parent=0 // pred_check_branch
    %9 = sbr.rel (0) target = $region5
  $region4: #{fwd.20} parent=0 // pred_region
    _
  $region5: #{fwd.20} parent=0 // pred_fallthru
    _
  // Predicated region
  $region6: #{fwd.20} parent=0 // pred_check
    _
  $region7: #{fwd.20} parent=0 // pred_check_branch
    %11 = sbr.rel (0) target = $region9
  $region8: #{fwd.20} parent=0 // pred_region
    _
  $region9: #{fwd.20} parent=0 // pred_fallthru
    _
  // Predicated region
  $region10: #{fwd.20} parent=0 // pred_check
    _
  $region11: #{fwd.20} parent=0 // pred_check_branch
    %13 = sbr.rel (0) target = $region13
  $region12: #{fwd.20} parent=0 // pred_region
    _
  $region13: #{fwd.20} parent=0 // pred_fallthru
    _
  %v14 = vld [vmem:[%s0] sm:$0xff]
  %v15 = vld [vmem:[%s0 + $0x8] sm:$0xff]
  %v16 = vld [vmem:[%s1] sm:$0x1]
  %v17 = vld [vmem:[%s2] sm:$0x1]
  %vm18 = vcmask 261120
  %v19 = vsel %vm18, %v14, 0.0
  %20 = vadd.xlane.f32.xlu0 %v19
  %v21 = vpop.xlane.xlu0 %20
  %v22 = vsel %vm18, %v15, 0.0
  %23 = vadd.xlane.f32.xlu0 %v22
  %v24 = vpop.xlane.xlu0 %23
  %v25 = vrcp.pop 32.0
  %v26 = vmul.f32 %v21, %v25
  %v27 = vmul.f32 %v24, %v25
  %v28 = vsub.f32 %v14, %v26
  %v29 = vsub.f32 %v15, %v27
  %v30 = vmul.f32 %v28, %v28
  %v31 = vmul.f32 %v29, %v29
  %v32 = vsel %vm18, %v30, 0.0
  %33 = vadd.xlane.f32.xlu0 %v32
  %v34 = vpop.xlane.xlu0 %33
  %v35 = vsel %vm18, %v31, 0.0
  %36 = vadd.xlane.f32.xlu0 %v35
  %v37 = vpop.xlane.xlu0 %36
  %v38 = vmul.f32 %v34, %v25
  %v39 = vmul.f32 %v37, %v25
  %v40 = vadd.f32 %v38, 1e-06
  %v41 = vadd.f32 %v39, 1e-06
  %v42 = vrsqrt.pop %v40
  %v43 = vrsqrt.pop %v41
  %v44 = vmul.f32 %v28, %v42
  %v45 = vmul.f32 %v29, %v43
  %v47 = vlaneseq
  %v48 = vshrl.u32 %v47, 7
  %v49 = vsub.s32 0, %v48
  %v50 = vrot.slane %v16, %v49
  %v52 = vmul.f32 %v44, %v50
  %v53 = vmul.f32 %v45, %v50
  %v55 = vlaneseq
  %v56 = vshrl.u32 %v55, 7
  %v57 = vsub.s32 0, %v56
  %v58 = vrot.slane %v17, %v57
  %v60 = vadd.f32 %v52, %v58
  %v61 = vadd.f32 %v53, %v58
  %62 = vst.msk [vmem:[%s3] sm:$0xff] %vm18, %v60
  %63 = vst.msk [vmem:[%s3 + $0x8] sm:$0xff] %vm18, %v61
  // Predicated region
  $region14: #{fwd.20} parent=0 // pred_check
    _
  $region15: #{fwd.20} parent=0 // pred_check_branch
    %65 = sbr.rel (0) target = $region17
  $region16: #{fwd.20} parent=0 // pred_region
    _
  $region17: #{fwd.20} parent=0 // pred_fallthru
    _
  // Predicated region
  $region18: #{fwd.20} parent=0 // pred_check
    _
  $region19: #{fwd.20} parent=0 // pred_check_branch
    %67 = sbr.rel (0) target = $region21
  $region20: #{fwd.20} parent=0 // pred_region
    _
  $region21: #{fwd.20} parent=0 // pred_fallthru
    _

// kernel: fwd.15
$region0: #{fwd.15}
  #allocation0 [shape = 'u32[]', space=smem, size = 0x4, offset = 0x4, fixed_abs, tag = 'smem constant byte address 0x4 - core index']
  #allocation1 [shape = 'u32[144,128]{1,0:T(1,128)}', space=vmem, size = 0x12000, scoped, tag = 'internal scratch']
  %s0 = inlined_call_operand.vmem [shape: f32[2,8,32], index: 0, kind: input, shape index: {}]
  %s1 = inlined_call_operand.vmem [shape: bf16[2,10,8], index: 1, kind: input, shape index: {}]
  %s2 = inlined_call_operand.vmem [shape: bf16[2,8,10], index: 2, kind: input, shape index: {}]
  %s3 = inlined_call_operand.vmem [shape: bf16[2,32,10,32], index: 3, kind: input, shape index: {}]
  %s4 = inlined_call_operand.vmem [shape: f32[1,32], index: 4, kind: input, shape index: {}]
  %s5 = inlined_call_operand.vmem [shape: f32[1,32], index: 5, kind: input, shape index: {}]
  %s6 = inlined_call_operand.vmem [shape: bf16[32,32], index: 6, kind: input, shape index: {}]
  %s7 = inlined_call_operand.vmem [shape: f32[1,32], index: 7, kind: input, shape index: {}]
  %s8 = inlined_call_operand.vmem [shape: f32[2,8,32], index: 8, kind: output, shape index: {}]
  %s9 = sld [smem:[#allocation0]]
  $region65: #{fwd.15} parent=0
    _
  %s11 = ssub.s32 1, %s9
  %s12 = scalar_select 0, %s11, %s9
  loop: start=0, step=1, limit=4
  $region2: #{fwd.15} parent=0 // loop_pre_header
    _
  $region3: #{fwd.15} parent=0 // loop_header
    %s14 = sphi 0, %s18
    %p15 = scmp.ge.s32.totalorder %s14, 4
    %s24 = sphi 0, %s26
    %s27 = sphi 0, %s24
    %s28 = sphi 0, %s27
    %s44 = sphi 0, %s28
    %s50 = sphi 0, %s52
    %s53 = sphi 0, %s50
    %s54 = sphi 0, %s53
    %s70 = sphi 0, %s54
    %s76 = sphi 0, %s78
    %s79 = sphi 0, %s76
    %s80 = sphi 0, %s79
    %s96 = sphi 0, %s80
    %s102 = sphi 0, %s104
    %s105 = sphi 0, %s102
    %s106 = sphi 0, %s105
    %s122 = sphi 0, %s106
    %s126 = sphi 0, %s126
    %s128 = sphi 0, %s126
    %s129 = sphi 0, %s128
    %s143 = sphi 0, %s129
    %s147 = sphi 0, %s147
    %s149 = sphi 0, %s147
    %s150 = sphi 0, %s149
    %s164 = sphi 0, %s150
    %s168 = sphi 0, %s168
    %s170 = sphi 0, %s168
    %s171 = sphi 0, %s170
    %s185 = sphi 0, %s171
    %s189 = sphi 0, %s189
    %s191 = sphi 0, %s189
    %s192 = sphi 0, %s191
    %s206 = sphi 0, %s192
    %s212 = sphi 0, %s214
    %s215 = sphi 0, %s212
    %s216 = sphi 0, %s215
    %s232 = sphi 0, %s216
  $region4: #{fwd.15} parent=0 // loop_header_branch
    %17 = sbr.rel (%p15) target = $region8
  $region5: #{fwd.15} parent=0 // loop_body
    %s19 = ssub.s32 %s14, 1
    %s20 = ssub.s32 %s14, 2
    %s21 = sadd.s32 %s14, 1
    %s22 = ssub.s32 %s14, %s21
    %p23 = scmp.eq.s32.totalorder %s22, 0
    %s25 = sadd.s32 %s24, 1
    %s26 = scalar_select %p23, %s24, %s25
    %p29 = pneg %p23
    %p30 = scmp.eq.s32.totalorder %s14, 1
    %p31 = por %p29, %p30
    %p32 = scmp.ne.s32.totalorder %s24, %s27
    %p33 = scmp.eq.s32.totalorder %s14, 0
    %p34 = por %p32, %p33
    %p35 = scmp.ne.s32.totalorder %s24, %s27
    %p36 = scmp.eq.s32.totalorder %s19, 1
    %p37 = por %p35, %p36
    %p38 = scmp.ne.s32.totalorder %s27, %s28
    %p39 = scmp.eq.s32.totalorder %s19, 0
    %p40 = por %p38, %p39
    %p41 = scmp.ne.s32.totalorder %s27, %s28
    %p42 = scmp.eq.s32.totalorder %s20, 1
    %p43 = por %p41, %p42
    %p45 = scmp.ne.s32.totalorder %s28, %s44
    %p46 = scmp.eq.s32.totalorder %s20, 0
    %p47 = por %p45, %p46
    %s48 = ssub.s32 %s14, %s21
    %p49 = scmp.eq.s32.totalorder %s48, 0
    %s51 = sadd.s32 %s50, 1
    %s52 = scalar_select %p49, %s50, %s51
    %p55 = pneg %p49
    %p56 = scmp.eq.s32.totalorder %s14, 1
    %p57 = por %p55, %p56
    %p58 = scmp.ne.s32.totalorder %s50, %s53
    %p59 = scmp.eq.s32.totalorder %s14, 0
    %p60 = por %p58, %p59
    %p61 = scmp.ne.s32.totalorder %s50, %s53
    %p62 = scmp.eq.s32.totalorder %s19, 1
    %p63 = por %p61, %p62
    %p64 = scmp.ne.s32.totalorder %s53, %s54
    %p65 = scmp.eq.s32.totalorder %s19, 0
    %p66 = por %p64, %p65
    %p67 = scmp.ne.s32.totalorder %s53, %s54
    %p68 = scmp.eq.s32.totalorder %s20, 1
    %p69 = por %p67, %p68
    %p71 = scmp.ne.s32.totalorder %s54, %s70
    %p72 = scmp.eq.s32.totalorder %s20, 0
    %p73 = por %p71, %p72
    %s74 = ssub.s32 %s14, %s21
    %p75 = scmp.eq.s32.totalorder %s74, 0
    %s77 = sadd.s32 %s76, 1
    %s78 = scalar_select %p75, %s76, %s77
    %p81 = pneg %p75
    %p82 = scmp.eq.s32.totalorder %s14, 1
    %p83 = por %p81, %p82
    %p84 = scmp.ne.s32.totalorder %s76, %s79
    %p85 = scmp.eq.s32.totalorder %s14, 0
    %p86 = por %p84, %p85
    %p87 = scmp.ne.s32.totalorder %s76, %s79
    %p88 = scmp.eq.s32.totalorder %s19, 1
    %p89 = por %p87, %p88
    %p90 = scmp.ne.s32.totalorder %s79, %s80
    %p91 = scmp.eq.s32.totalorder %s19, 0
    %p92 = por %p90, %p91
    %p93 = scmp.ne.s32.totalorder %s79, %s80
    %p94 = scmp.eq.s32.totalorder %s20, 1
    %p95 = por %p93, %p94
    %p97 = scmp.ne.s32.totalorder %s80, %s96
    %p98 = scmp.eq.s32.totalorder %s20, 0
    %p99 = por %p97, %p98
    %s100 = ssub.s32 %s14, %s21
    %p101 = scmp.eq.s32.totalorder %s100, 0
    %s103 = sadd.s32 %s102, 1
    %s104 = scalar_select %p101, %s102, %s103
    %p107 = pneg %p101
    %p108 = scmp.eq.s32.totalorder %s14, 1
    %p109 = por %p107, %p108
    %p110 = scmp.ne.s32.totalorder %s102, %s105
    %p111 = scmp.eq.s32.totalorder %s14, 0
    %p112 = por %p110, %p111
    %p113 = scmp.ne.s32.totalorder %s102, %s105
    %p114 = scmp.eq.s32.totalorder %s19, 1
    %p115 = por %p113, %p114
    %p116 = scmp.ne.s32.totalorder %s105, %s106
    %p117 = scmp.eq.s32.totalorder %s19, 0
    %p118 = por %p116, %p117
    %p119 = scmp.ne.s32.totalorder %s105, %s106
    %p120 = scmp.eq.s32.totalorder %s20, 1
    %p121 = por %p119, %p120
    %p123 = scmp.ne.s32.totalorder %s106, %s122
    %p124 = scmp.eq.s32.totalorder %s20, 0
    %p125 = por %p123, %p124
    %s127 = sadd.s32 %s126, 1
    %p130 = scmp.eq.s32.totalorder %s14, 1
    %p131 = scmp.ne.s32.totalorder %s126, %s128
    %p132 = scmp.eq.s32.totalorder %s14, 0
    %p133 = por %p131, %p132
    %p134 = scmp.ne.s32.totalorder %s126, %s128
    %p135 = scmp.eq.s32.totalorder %s19, 1
    %p136 = por %p134, %p135
    %p137 = scmp.ne.s32.totalorder %s128, %s129
    %p138 = scmp.eq.s32.totalorder %s19, 0
    %p139 = por %p137, %p138
    %p140 = scmp.ne.s32.totalorder %s128, %s129
    %p141 = scmp.eq.s32.totalorder %s20, 1
    %p142 = por %p140, %p141
    %p144 = scmp.ne.s32.totalorder %s129, %s143
    %p145 = scmp.eq.s32.totalorder %s20, 0
    %p146 = por %p144, %p145
    %s148 = sadd.s32 %s147, 1
    %p151 = scmp.eq.s32.totalorder %s14, 1
    %p152 = scmp.ne.s32.totalorder %s147, %s149
    %p153 = scmp.eq.s32.totalorder %s14, 0
    %p154 = por %p152, %p153
    %p155 = scmp.ne.s32.totalorder %s147, %s149
    %p156 = scmp.eq.s32.totalorder %s19, 1
    %p157 = por %p155, %p156
    %p158 = scmp.ne.s32.totalorder %s149, %s150
    %p159 = scmp.eq.s32.totalorder %s19, 0
    %p160 = por %p158, %p159
    %p161 = scmp.ne.s32.totalorder %s149, %s150
    %p162 = scmp.eq.s32.totalorder %s20, 1
    %p163 = por %p161, %p162
    %p165 = scmp.ne.s32.totalorder %s150, %s164
    %p166 = scmp.eq.s32.totalorder %s20, 0
    %p167 = por %p165, %p166
    %s169 = sadd.s32 %s168, 1
    %p172 = scmp.eq.s32.totalorder %s14, 1
    %p173 = scmp.ne.s32.totalorder %s168, %s170
    %p174 = scmp.eq.s32.totalorder %s14, 0
    %p175 = por %p173, %p174
    %p176 = scmp.ne.s32.totalorder %s168, %s170
    %p177 = scmp.eq.s32.totalorder %s19, 1
    %p178 = por %p176, %p177
    %p179 = scmp.ne.s32.totalorder %s170, %s171
    %p180 = scmp.eq.s32.totalorder %s19, 0
    %p181 = por %p179, %p180
    %p182 = scmp.ne.s32.totalorder %s170, %s171
    %p183 = scmp.eq.s32.totalorder %s20, 1
    %p184 = por %p182, %p183
    %p186 = scmp.ne.s32.totalorder %s171, %s185
    %p187 = scmp.eq.s32.totalorder %s20, 0
    %p188 = por %p186, %p187
    %s190 = sadd.s32 %s189, 1
    %p193 = scmp.eq.s32.totalorder %s14, 1
    %p194 = scmp.ne.s32.totalorder %s189, %s191
    %p195 = scmp.eq.s32.totalorder %s14, 0
    %p196 = por %p194, %p195
    %p197 = scmp.ne.s32.totalorder %s189, %s191
    %p198 = scmp.eq.s32.totalorder %s19, 1
    %p199 = por %p197, %p198
    %p200 = scmp.ne.s32.totalorder %s191, %s192
    %p201 = scmp.eq.s32.totalorder %s19, 0
    %p202 = por %p200, %p201
    %p203 = scmp.ne.s32.totalorder %s191, %s192
    %p204 = scmp.eq.s32.totalorder %s20, 1
    %p205 = por %p203, %p204
    %p207 = scmp.ne.s32.totalorder %s192, %s206
    %p208 = scmp.eq.s32.totalorder %s20, 0
    %p209 = por %p207, %p208
    %s210 = ssub.s32 %s14, %s21
    %p211 = scmp.eq.s32.totalorder %s210, 0
    %s213 = sadd.s32 %s212, 1
    %s214 = scalar_select %p211, %s212, %s213
    %p217 = pneg %p211
    %p218 = scmp.eq.s32.totalorder %s14, 1
    %p219 = por %p217, %p218
    %p220 = scmp.ne.s32.totalorder %s212, %s215
    %p221 = scmp.eq.s32.totalorder %s14, 0
    %p222 = por %p220, %p221
    %p223 = scmp.ne.s32.totalorder %s212, %s215
    %p224 = scmp.eq.s32.totalorder %s19, 1
    %p225 = por %p223, %p224
    %p226 = scmp.ne.s32.totalorder %s215, %s216
    %p227 = scmp.eq.s32.totalorder %s19, 0
    %p228 = por %p226, %p227
    %p229 = scmp.ne.s32.totalorder %s215, %s216
    %p230 = scmp.eq.s32.totalorder %s20, 1
    %p231 = por %p229, %p230
    %p233 = scmp.ne.s32.totalorder %s216, %s232
    %p234 = scmp.eq.s32.totalorder %s20, 0
    %p235 = por %p233, %p234
    %p236 = scmp.le.s32.totalorder 1, %s14
    %p237 = scmp.lt.s32.totalorder %s14, 3
    %p238 = pnand %p236, %p237
    %p239 = pneg %p238
    // Predicated region
    $region9: #{fwd.15} parent=5 // pred_check
      _
    $region10: #{fwd.15} parent=5 // pred_check_branch
      %241 = sbr.rel (%p238) target = $region12
    $region11: #{fwd.15} parent=5 // pred_region
      %s242 = ssub.s32 %s14, 1
      // Predicated region
      $region13: #{fwd.15} parent=11 // pred_check
        %p243 = pneg %p139
      $region14: #{fwd.15} parent=11 // pred_check_branch
        %245 = sbr.rel (%p243) target = $region16
      $region15: #{fwd.15} parent=11 // pred_region
        _
      $region16: #{fwd.15} parent=11 // pred_fallthru
        _
      // Predicated region
      $region17: #{fwd.15} parent=11 // pred_check
        %p246 = pneg %p160
      $region18: #{fwd.15} parent=11 // pred_check_branch
        %248 = sbr.rel (%p246) target = $region20
      $region19: #{fwd.15} parent=11 // pred_region
        _
      $region20: #{fwd.15} parent=11 // pred_fallthru
        _
      // Predicated region
      $region21: #{fwd.15} parent=11 // pred_check
        %p249 = pneg %p181
      $region22: #{fwd.15} parent=11 // pred_check_branch
        %251 = sbr.rel (%p249) target = $region24
      $region23: #{fwd.15} parent=11 // pred_region
        _
      $region24: #{fwd.15} parent=11 // pred_fallthru
        _
      // Predicated region
      $region25: #{fwd.15} parent=11 // pred_check
        %p252 = pneg %p202
      $region26: #{fwd.15} parent=11 // pred_check_branch
        %254 = sbr.rel (%p252) target = $region28
      $region27: #{fwd.15} parent=11 // pred_region
        _
      $region28: #{fwd.15} parent=11 // pred_fallthru
        _
    $region12: #{fwd.15} parent=5 // pred_fallthru
      _
    %p255 = scmp.lt.s32.totalorder %s14, 2
    // Predicated region
    $region29: #{fwd.15} parent=5 // pred_check
      %p256 = pneg %p255
    $region30: #{fwd.15} parent=5 // pred_check_branch
      %258 = sbr.rel (%p256) target = $region32
    $region31: #{fwd.15} parent=5 // pred_region
      // Predicated region
      $region33: #{fwd.15} parent=31 // pred_check
        %p259 = pneg %p34
      $region34: #{fwd.15} parent=31 // pred_check_branch
        %261 = sbr.rel (%p259) target = $region36
      $region35: #{fwd.15} parent=31 // pred_region
        %p262 = scmp.lt.s32.totalorder %s14, 1
        %s263 = scalar_select %p262, %s14, 1
        %s264 = smul.addr %s263, 8
        %s265 = scalar_lea.vmem %s0, %s264
      $region36: #{fwd.15} parent=31 // pred_fallthru
        _
      // Predicated region
      $region37: #{fwd.15} parent=31 // pred_check
        %p266 = pneg %p60
      $region38: #{fwd.15} parent=31 // pred_check_branch
        %268 = sbr.rel (%p266) target = $region40
      $region39: #{fwd.15} parent=31 // pred_region
        %p269 = scmp.lt.s32.totalorder %s14, 1
        %s270 = scalar_select %p269, %s14, 1
        %s271 = smul.addr %s270, 2
        %s272 = smul.addr %s271, 4
        %s273 = scalar_lea.vmem %s1, %s272
      $region40: #{fwd.15} parent=31 // pred_fallthru
        _
      // Predicated region
      $region41: #{fwd.15} parent=31 // pred_check
        %p274 = pneg %p86
      $region42: #{fwd.15} parent=31 // pred_check_branch
        %276 = sbr.rel (%p274) target = $region44
      $region43: #{fwd.15} parent=31 // pred_region
        %p277 = scmp.lt.s32.totalorder %s14, 1
        %s278 = scalar_select %p277, %s14, 1
        %s279 = smul.addr %s278, 4
        %s280 = scalar_lea.vmem %s2, %s279
      $region44: #{fwd.15} parent=31 // pred_fallthru
        _
      // Predicated region
      $region45: #{fwd.15} parent=31 // pred_check
        %p281 = pneg %p112
      $region46: #{fwd.15} parent=31 // pred_check_branch
        %283 = sbr.rel (%p281) target = $region48
      $region47: #{fwd.15} parent=31 // pred_region
        %p284 = scmp.lt.s32.totalorder %s14, 1
        %s285 = scalar_select %p284, %s14, 1
        %s286 = smul.addr %s285, 64
        %s287 = smul.addr %s286, 4
        %s288 = scalar_lea.vmem %s3, %s287
      $region48: #{fwd.15} parent=31 // pred_fallthru
        _
    $region32: #{fwd.15} parent=5 // pred_fallthru
      _
    %p289 = scmp.le.s32.totalorder 1, %s14
    %p290 = scmp.lt.s32.totalorder %s14, 3
    %p291 = pnand %p289, %p290
    %p292 = pneg %p291
    // Predicated region
    $region49: #{fwd.15} parent=5 // pred_check
      _
    $region50: #{fwd.15} parent=5 // pred_check_branch
      %294 = sbr.rel (%p291) target = $region52
    $region51: #{fwd.15} parent=5 // pred_region
      %s295 = ssub.s32 %s14, 1
      %p296 = scmp.lt.s32.totalorder %s19, 1
      %s297 = scalar_select %p296, %s19, 1
      %s298 = smul.addr %s297, 8
      %s299 = scalar_lea.vmem %s0, %s298
      %p300 = pneg %p40
      %p301 = pneg %p37
      %p302 = scmp.lt.s32.totalorder %s19, 1
      %s303 = scalar_select %p302, %s19, 1
      %s304 = smul.addr %s303, 2
      %s305 = smul.addr %s304, 4
      %s306 = scalar_lea.vmem %s1, %s305
      %p307 = pneg %p66
      %p308 = pneg %p63
      %p309 = scmp.lt.s32.totalorder %s19, 1
      %s310 = scalar_select %p309, %s19, 1
      %s311 = smul.addr %s310, 4
      %s312 = scalar_lea.vmem %s2, %s311
      %p313 = pneg %p92
      %p314 = pneg %p89
      %p315 = scmp.lt.s32.totalorder %s19, 1
      %s316 = scalar_select %p315, %s19, 1
      %s317 = smul.addr %s316, 64
      %s318 = smul.addr %s317, 4
      %s319 = scalar_lea.vmem %s3, %s318
      %p320 = pneg %p118
      %p321 = pneg %p115
      %p322 = pneg %p139
      %p323 = pneg %p136
      %p324 = pneg %p160
      %p325 = pneg %p157
      %p326 = pneg %p181
      %p327 = pneg %p178
      %p328 = pneg %p202
      %p329 = pneg %p199
      %p330 = pneg %p228
      %p331 = pneg %p225
      %p332 = scmp.lt.s32.totalorder %s19, 1
      %s333 = scalar_select %p332, %s19, 1
      %s334 = smul.addr %s333, 8
      %s335 = scalar_lea.vmem %s8, %s334
      %p336 = scmp.lt.s32.totalorder %s19, 1
      %s337 = scalar_select %p336, %s19, 1
      %s338 = smul.addr %s337, 8
      %s339 = scalar_lea.vmem %s0, %s338
      %p340 = scmp.lt.s32.totalorder %s19, 1
      %s341 = scalar_select %p340, %s19, 1
      %s342 = smul.addr %s341, 2
      %s343 = smul.addr %s342, 4
      %s344 = scalar_lea.vmem %s1, %s343
      %p345 = scmp.lt.s32.totalorder %s19, 1
      %s346 = scalar_select %p345, %s19, 1
      %s347 = smul.addr %s346, 4
      %s348 = scalar_lea.vmem %s2, %s347
      %p349 = scmp.lt.s32.totalorder %s19, 1
      %s350 = scalar_select %p349, %s19, 1
      %s351 = smul.addr %s350, 64
      %s352 = smul.addr %s351, 4
      %s353 = scalar_lea.vmem %s3, %s352
      %p354 = scmp.lt.s32.totalorder %s19, 1
      %s355 = scalar_select %p354, %s19, 1
      %s356 = smul.addr %s355, 8
      %s357 = scalar_lea.vmem %s8, %s356
      %v359 = vld [vmem:[%s339] sm:$0xff]
      %v360 = vld [vmem:[%s4] sm:$0x1]
      %v361 = vld [vmem:[%s5] sm:$0x1]
      %vm362 = vcmask 261120
      %v363 = vsel %vm362, %v359, 0.0
      %364 = vadd.xlane.f32.xlu0 %v363
      %v365 = vpop.xlane.xlu0 %364
      %v366 = vrcp.pop 32.0
      %v367 = vmul.f32 %v365, %v366
      %v368 = vsub.f32 %v359, %v367
      %v369 = vmul.f32 %v368, %v368
      %v370 = vsel %vm362, %v369, 0.0
      %371 = vadd.xlane.f32.xlu0 %v370
      %v372 = vpop.xlane.xlu0 %371
      %v373 = vmul.f32 %v372, %v366
      %v374 = vadd.f32 %v373, 1e-06
      %v375 = vrsqrt.pop %v374
      %v376 = vmul.f32 %v368, %v375
      %v378 = vlaneseq
      %v379 = vshrl.u32 %v378, 7
      %v380 = vsub.s32 0, %v379
      %v381 = vrot.slane %v360, %v380
      %v383 = vmul.f32 %v376, %v381
      %v385 = vlaneseq
      %v386 = vshrl.u32 %v385, 7
      %v387 = vsub.s32 0, %v386
      %v388 = vrot.slane %v361, %v387
      %v390 = vadd.f32 %v383, %v388
      %v391 = vld [vmem:[%s344] sm:$0xf]
      %v392 = vld [vmem:[%s344 + $0x4] sm:$0x1]
      %v393 = vpack.c.bf16 %v390, %v390
      %v396 = vunpack.c.l.b16 %v391
      %v397 = vunpack.c.l.b16 %v392
      %v398 = vpack.c.b16 %v397, %v396
      %vm399 = vcmask 64512
      %v401 = vsel %vm399, %v398, 0
      %vm403 = vcmask 1043456
      %v405 = vsel %vm403, %v393, 0
      %407 = vmatprep.subr.bf16.mxu0 0
      %408 = vmatpush1.bf16.msra.mxu0 %v405
      %409 = vmatprep.subr.bf16.mxu0 0
      %410 = vmatpush1.bf16.msra.mxu0 0
      %411 = vmatprep.subr.bf16.mxu0 0
      %412 = vmatpush1.bf16.msra.mxu0 0
      %413 = vmatprep.subr.bf16.mxu0 0
      %414 = vmatpush1.bf16.msra.mxu0 0
      %415 = vmatprep.subr.bf16.mxu0 0
      %416 = vmatpush1.bf16.msra.mxu0 0
      %417 = vmatprep.subr.bf16.mxu0 0
      %418 = vmatpush1.bf16.msra.mxu0 0
      %419 = vmatprep.subr.bf16.mxu0 0
      %420 = vmatpush1.bf16.msra.mxu0 0
      %421 = vmatprep.subr.bf16.mxu0 0
      %422 = vmatpush1.bf16.msra.mxu0 0
      %423 = vmatprep.subr.bf16.mxu0 0
      %424 = vmatpush1.bf16.msra.mxu0 0
      %425 = vmatprep.subr.bf16.mxu0 0
      %426 = vmatpush1.bf16.msra.mxu0 0
      %427 = vmatprep.subr.bf16.mxu0 0
      %428 = vmatpush1.bf16.msra.mxu0 0
      %429 = vmatprep.subr.bf16.mxu0 0
      %430 = vmatpush1.bf16.msra.mxu0 0
      %431 = vmatprep.subr.bf16.mxu0 0
      %432 = vmatpush1.bf16.msra.mxu0 0
      %433 = vmatprep.subr.bf16.mxu0 0
      %434 = vmatpush1.bf16.msra.mxu0 0
      %435 = vmatprep.subr.bf16.mxu0 0
      %436 = vmatpush1.bf16.msra.mxu0 0
      %437 = vmatprep.subr.bf16.mxu0 0
      %438 = vmatpush1.bf16.msra.mxu0 0
      %439 = vmatprep.mubr.bf16.mxu0 0
      %440 = vmatmul.mubr.bf16.gmra.mrb[0].mxu0 %v401
      %v441 = vpop.f32.mrb[0].mxu0
      %v442 = vadd.f32 0.0, %v441
      %v443 = vpop.f32.mrb[0].mxu0
      %v444 = vpop.f32.mrb[0].mxu0
      %v445 = vadd.f32 0.0, %v444
      %v446 = vpop.f32.mrb[0].mxu0
      %447 = vdwg.mxu0
      %v448 = vld [vmem:[%s353] sm:$0xf]
      %v449 = vld [vmem:[%s353 + $0x4] sm:$0x1]
      %v450 = vunpack.c.l.bf16 %v448
      %v451 = vunpack.c.l.bf16 %v449
      %453 = vset.pattern.permute.xlu0 0
      %454 = vperm.xlu0 %453, %v442
      %v455 = vpop.permute.xlu0 %454
      %458 = vset.pattern.permute.xlu0 0
      %459 = vperm.xlu0 %458, %v445
      %v460 = vpop.permute.xlu0 %459
      %v462 = vmul.f32 %v455, %v450
      %v463 = vmul.f32 %v460, %v451
      %v464 = vadd.f32 %v462, 0.0
      %v465 = vadd.f32 %v463, 0.0
      %s466 = scalar_lea.vmem %s353, 8
      %v467 = vld [vmem:[%s466] sm:$0xf]
      %v468 = vld [vmem:[%s466 + $0x4] sm:$0x1]
      %v469 = vunpack.c.l.bf16 %v467
      %v470 = vunpack.c.l.bf16 %v468
      %471 = vset.pattern.permute.xlu0 1
      %472 = vperm.xlu0 %471, %v442
      %v473 = vpop.permute.xlu0 %472
      %475 = vset.pattern.permute.xlu0 1
      %476 = vperm.xlu0 %475, %v445
      %v477 = vpop.permute.xlu0 %476
      %v479 = vmul.f32 %v473, %v469
      %v480 = vmul.f32 %v477, %v470
      %v481 = vadd.f32 %v464, %v479
      %v482 = vadd.f32 %v465, %v480
      %s483 = scalar_lea.vmem %s353, 16
      %v484 = vld [vmem:[%s483] sm:$0xf]
      %v485 = vld [vmem:[%s483 + $0x4] sm:$0x1]
      %v486 = vunpack.c.l.bf16 %v484
      %v487 = vunpack.c.l.bf16 %v485
      %488 = vset.pattern.permute.xlu0 2
      %489 = vperm.xlu0 %488, %v442
      %v490 = vpop.permute.xlu0 %489
      %492 = vset.pattern.permute.xlu0 2
      %493 = vperm.xlu0 %492, %v445
      %v494 = vpop.permute.xlu0 %493
      %v496 = vmul.f32 %v490, %v486
      %v497 = vmul.f32 %v494, %v487
      %v498 = vadd.f32 %v481, %v496
      %v499 = vadd.f32 %v482, %v497
      %s500 = scalar_lea.vmem %s353, 24
      %v501 = vld [vmem:[%s500] sm:$0xf]
      %v502 = vld [vmem:[%s500 + $0x4] sm:$0x1]
      %v503 = vunpack.c.l.bf16 %v501
      %v504 = vunpack.c.l.bf16 %v502
      %505 = vset.pattern.permute.xlu0 3
      %506 = vperm.xlu0 %505, %v442
      %v507 = vpop.permute.xlu0 %506
      %509 = vset.pattern.permute.xlu0 3
      %510 = vperm.xlu0 %509, %v445
      %v511 = vpop.permute.xlu0 %510
      %v513 = vmul.f32 %v507, %v503
      %v514 = vmul.f32 %v511, %v504
      %v515 = vadd.f32 %v498, %v513
      %v516 = vadd.f32 %v499, %v514
      %s517 = scalar_lea.vmem %s353, 32
      %v518 = vld [vmem:[%s517] sm:$0xf]
      %v519 = vld [vmem:[%s517 + $0x4] sm:$0x1]
      %v520 = vunpack.c.l.bf16 %v518
      %v521 = vunpack.c.l.bf16 %v519
      %522 = vset.pattern.permute.xlu0 4
      %523 = vperm.xlu0 %522, %v442
      %v524 = vpop.permute.xlu0 %523
      %526 = vset.pattern.permute.xlu0 4
      %527 = vperm.xlu0 %526, %v445
      %v528 = vpop.permute.xlu0 %527
      %v530 = vmul.f32 %v524, %v520
      %v531 = vmul.f32 %v528, %v521
      %v532 = vadd.f32 %v515, %v530
      %v533 = vadd.f32 %v516, %v531
      %s534 = scalar_lea.vmem %s353, 40
      %v535 = vld [vmem:[%s534] sm:$0xf]
      %v536 = vld [vmem:[%s534 + $0x4] sm:$0x1]
      %v537 = vunpack.c.l.bf16 %v535
      %v538 = vunpack.c.l.bf16 %v536
      %539 = vset.pattern.permute.xlu0 5
      %540 = vperm.xlu0 %539, %v442
      %v541 = vpop.permute.xlu0 %540
      %543 = vset.pattern.permute.xlu0 5
      %544 = vperm.xlu0 %543, %v445
      %v545 = vpop.permute.xlu0 %544
      %v547 = vmul.f32 %v541, %v537
      %v548 = vmul.f32 %v545, %v538
      %v549 = vadd.f32 %v532, %v547
      %v550 = vadd.f32 %v533, %v548
      %s551 = scalar_lea.vmem %s353, 48
      %v552 = vld [vmem:[%s551] sm:$0xf]
      %v553 = vld [vmem:[%s551 + $0x4] sm:$0x1]
      %v554 = vunpack.c.l.bf16 %v552
      %v555 = vunpack.c.l.bf16 %v553
      %556 = vset.pattern.permute.xlu0 6
      %557 = vperm.xlu0 %556, %v442
      %v558 = vpop.permute.xlu0 %557
      %560 = vset.pattern.permute.xlu0 6
      %561 = vperm.xlu0 %560, %v445
      %v562 = vpop.permute.xlu0 %561
      %v564 = vmul.f32 %v558, %v554
      %v565 = vmul.f32 %v562, %v555
      %v566 = vadd.f32 %v549, %v564
      %v567 = vadd.f32 %v550, %v565
      %s568 = scalar_lea.vmem %s353, 56
      %v569 = vld [vmem:[%s568] sm:$0xf]
      %v570 = vld [vmem:[%s568 + $0x4] sm:$0x1]
      %v571 = vunpack.c.l.bf16 %v569
      %v572 = vunpack.c.l.bf16 %v570
      %573 = vset.pattern.permute.xlu0 7
      %574 = vperm.xlu0 %573, %v442
      %v575 = vpop.permute.xlu0 %574
      %577 = vset.pattern.permute.xlu0 7
      %578 = vperm.xlu0 %577, %v445
      %v579 = vpop.permute.xlu0 %578
      %v581 = vmul.f32 %v575, %v571
      %v582 = vmul.f32 %v579, %v572
      %v583 = vadd.f32 %v566, %v581
      %v584 = vadd.f32 %v567, %v582
      %s585 = scalar_lea.vmem %s353, 64
      %v586 = vld [vmem:[%s585] sm:$0xf]
      %v587 = vld [vmem:[%s585 + $0x4] sm:$0x1]
      %v588 = vunpack.c.l.bf16 %v586
      %v589 = vunpack.c.l.bf16 %v587
      %590 = vset.pattern.permute.xlu0 8
      %591 = vperm.xlu0 %590, %v442
      %v592 = vpop.permute.xlu0 %591
      %594 = vset.pattern.permute.xlu0 8
      %595 = vperm.xlu0 %594, %v445
      %v596 = vpop.permute.xlu0 %595
      %v598 = vmul.f32 %v592, %v588
      %v599 = vmul.f32 %v596, %v589
      %v600 = vadd.f32 %v583, %v598
      %v601 = vadd.f32 %v584, %v599
      %s602 = scalar_lea.vmem %s353, 72
      %v603 = vld [vmem:[%s602] sm:$0xf]
      %v604 = vld [vmem:[%s602 + $0x4] sm:$0x1]
      %v605 = vunpack.c.l.bf16 %v603
      %v606 = vunpack.c.l.bf16 %v604
      %607 = vset.pattern.permute.xlu0 9
      %608 = vperm.xlu0 %607, %v442
      %v609 = vpop.permute.xlu0 %608
      %611 = vset.pattern.permute.xlu0 9
      %612 = vperm.xlu0 %611, %v445
      %v613 = vpop.permute.xlu0 %612
      %v615 = vmul.f32 %v609, %v605
      %v616 = vmul.f32 %v613, %v606
      %v617 = vadd.f32 %v600, %v615
      %v618 = vadd.f32 %v601, %v616
      %s619 = scalar_lea.vmem %s353, 80
      %v620 = vld [vmem:[%s619] sm:$0xf]
      %v621 = vld [vmem:[%s619 + $0x4] sm:$0x1]
      %v622 = vunpack.c.l.bf16 %v620
      %v623 = vunpack.c.l.bf16 %v621
      %624 = vset.pattern.permute.xlu0 10
      %625 = vperm.xlu0 %624, %v442
      %v626 = vpop.permute.xlu0 %625
      %628 = vset.pattern.permute.xlu0 10
      %629 = vperm.xlu0 %628, %v445
      %v630 = vpop.permute.xlu0 %629
      %v632 = vmul.f32 %v626, %v622
      %v633 = vmul.f32 %v630, %v623
      %v634 = vadd.f32 %v617, %v632
      %v635 = vadd.f32 %v618, %v633
      %s636 = scalar_lea.vmem %s353, 88
      %v637 = vld [vmem:[%s636] sm:$0xf]
      %v638 = vld [vmem:[%s636 + $0x4] sm:$0x1]
      %v639 = vunpack.c.l.bf16 %v637
      %v640 = vunpack.c.l.bf16 %v638
      %641 = vset.pattern.permute.xlu0 11
      %642 = vperm.xlu0 %641, %v442
      %v643 = vpop.permute.xlu0 %642
      %645 = vset.pattern.permute.xlu0 11
      %646 = vperm.xlu0 %645, %v445
      %v647 = vpop.permute.xlu0 %646
      %v649 = vmul.f32 %v643, %v639
      %v650 = vmul.f32 %v647, %v640
      %v651 = vadd.f32 %v634, %v649
      %v652 = vadd.f32 %v635, %v650
      %s653 = scalar_lea.vmem %s353, 96
      %v654 = vld [vmem:[%s653] sm:$0xf]
      %v655 = vld [vmem:[%s653 + $0x4] sm:$0x1]
      %v656 = vunpack.c.l.bf16 %v654
      %v657 = vunpack.c.l.bf16 %v655
      %658 = vset.pattern.permute.xlu0 12
      %659 = vperm.xlu0 %658, %v442
      %v660 = vpop.permute.xlu0 %659
      %662 = vset.pattern.permute.xlu0 12
      %663 = vperm.xlu0 %662, %v445
      %v664 = vpop.permute.xlu0 %663
      %v666 = vmul.f32 %v660, %v656
      %v667 = vmul.f32 %v664, %v657
      %v668 = vadd.f32 %v651, %v666
      %v669 = vadd.f32 %v652, %v667
      %s670 = scalar_lea.vmem %s353, 104
      %v671 = vld [vmem:[%s670] sm:$0xf]
      %v672 = vld [vmem:[%s670 + $0x4] sm:$0x1]
      %v673 = vunpack.c.l.bf16 %v671
      %v674 = vunpack.c.l.bf16 %v672
      %675 = vset.pattern.permute.xlu0 13
      %676 = vperm.xlu0 %675, %v442
      %v677 = vpop.permute.xlu0 %676
      %679 = vset.pattern.permute.xlu0 13
      %680 = vperm.xlu0 %679, %v445
      %v681 = vpop.permute.xlu0 %680
      %v683 = vmul.f32 %v677, %v673
      %v684 = vmul.f32 %v681, %v674
      %v685 = vadd.f32 %v668, %v683
      %v686 = vadd.f32 %v669, %v684
      %s687 = scalar_lea.vmem %s353, 112
      %v688 = vld [vmem:[%s687] sm:$0xf]
      %v689 = vld [vmem:[%s687 + $0x4] sm:$0x1]
      %v690 = vunpack.c.l.bf16 %v688
      %v691 = vunpack.c.l.bf16 %v689
      %692 = vset.pattern.permute.xlu0 14
      %693 = vperm.xlu0 %692, %v442
      %v694 = vpop.permute.xlu0 %693
      %696 = vset.pattern.permute.xlu0 14
      %697 = vperm.xlu0 %696, %v445
      %v698 = vpop.permute.xlu0 %697
      %v700 = vmul.f32 %v694, %v690
      %v701 = vmul.f32 %v698, %v691
      %v702 = vadd.f32 %v685, %v700
      %v703 = vadd.f32 %v686, %v701
      %s704 = scalar_lea.vmem %s353, 120
      %v705 = vld [vmem:[%s704] sm:$0xf]
      %v706 = vld [vmem:[%s704 + $0x4] sm:$0x1]
      %v707 = vunpack.c.l.bf16 %v705
      %v708 = vunpack.c.l.bf16 %v706
      %709 = vset.pattern.permute.xlu0 15
      %710 = vperm.xlu0 %709, %v442
      %v711 = vpop.permute.xlu0 %710
      %713 = vset.pattern.permute.xlu0 15
      %714 = vperm.xlu0 %713, %v445
      %v715 = vpop.permute.xlu0 %714
      %v717 = vmul.f32 %v711, %v707
      %v718 = vmul.f32 %v715, %v708
      %v719 = vadd.f32 %v702, %v717
      %v720 = vadd.f32 %v703, %v718
      %s721 = scalar_lea.vmem %s353, 128
      %v722 = vld [vmem:[%s721] sm:$0xf]
      %v723 = vld [vmem:[%s721 + $0x4] sm:$0x1]
      %v724 = vunpack.c.l.bf16 %v722
      %v725 = vunpack.c.l.bf16 %v723
      %726 = vset.pattern.permute.xlu0 16
      %727 = vperm.xlu0 %726, %v442
      %v728 = vpop.permute.xlu0 %727
      %730 = vset.pattern.permute.xlu0 16
      %731 = vperm.xlu0 %730, %v445
      %v732 = vpop.permute.xlu0 %731
      %v734 = vmul.f32 %v728, %v724
      %v735 = vmul.f32 %v732, %v725
      %v736 = vadd.f32 %v719, %v734
      %v737 = vadd.f32 %v720, %v735
      %s738 = scalar_lea.vmem %s353, 136
      %v739 = vld [vmem:[%s738] sm:$0xf]
      %v740 = vld [vmem:[%s738 + $0x4] sm:$0x1]
      %v741 = vunpack.c.l.bf16 %v739
      %v742 = vunpack.c.l.bf16 %v740
      %743 = vset.pattern.permute.xlu0 17
      %744 = vperm.xlu0 %743, %v442
      %v745 = vpop.permute.xlu0 %744
      %747 = vset.pattern.permute.xlu0 17
      %748 = vperm.xlu0 %747, %v445
      %v749 = vpop.permute.xlu0 %748
      %v751 = vmul.f32 %v745, %v741
      %v752 = vmul.f32 %v749, %v742
      %v753 = vadd.f32 %v736, %v751
      %v754 = vadd.f32 %v737, %v752
      %s755 = scalar_lea.vmem %s353, 144
      %v756 = vld [vmem:[%s755] sm:$0xf]
      %v757 = vld [vmem:[%s755 + $0x4] sm:$0x1]
      %v758 = vunpack.c.l.bf16 %v756
      %v759 = vunpack.c.l.bf16 %v757
      %760 = vset.pattern.permute.xlu0 18
      %761 = vperm.xlu0 %760, %v442
      %v762 = vpop.permute.xlu0 %761
      %764 = vset.pattern.permute.xlu0 18
      %765 = vperm.xlu0 %764, %v445
      %v766 = vpop.permute.xlu0 %765
      %v768 = vmul.f32 %v762, %v758
      %v769 = vmul.f32 %v766, %v759
      %v770 = vadd.f32 %v753, %v768
      %v771 = vadd.f32 %v754, %v769
      %s772 = scalar_lea.vmem %s353, 152
      %v773 = vld [vmem:[%s772] sm:$0xf]
      %v774 = vld [vmem:[%s772 + $0x4] sm:$0x1]
      %v775 = vunpack.c.l.bf16 %v773
      %v776 = vunpack.c.l.bf16 %v774
      %777 = vset.pattern.permute.xlu0 19
      %778 = vperm.xlu0 %777, %v442
      %v779 = vpop.permute.xlu0 %778
      %781 = vset.pattern.permute.xlu0 19
      %782 = vperm.xlu0 %781, %v445
      %v783 = vpop.permute.xlu0 %782
      %v785 = vmul.f32 %v779, %v775
      %v786 = vmul.f32 %v783, %v776
      %v787 = vadd.f32 %v770, %v785
      %v788 = vadd.f32 %v771, %v786
      %s789 = scalar_lea.vmem %s353, 160
      %v790 = vld [vmem:[%s789] sm:$0xf]
      %v791 = vld [vmem:[%s789 + $0x4] sm:$0x1]
      %v792 = vunpack.c.l.bf16 %v790
      %v793 = vunpack.c.l.bf16 %v791
      %794 = vset.pattern.permute.xlu0 20
      %795 = vperm.xlu0 %794, %v442
      %v796 = vpop.permute.xlu0 %795
      %798 = vset.pattern.permute.xlu0 20
      %799 = vperm.xlu0 %798, %v445
      %v800 = vpop.permute.xlu0 %799
      %v802 = vmul.f32 %v796, %v792
      %v803 = vmul.f32 %v800, %v793
      %v804 = vadd.f32 %v787, %v802
      %v805 = vadd.f32 %v788, %v803
      %s806 = scalar_lea.vmem %s353, 168
      %v807 = vld [vmem:[%s806] sm:$0xf]
      %v808 = vld [vmem:[%s806 + $0x4] sm:$0x1]
      %v809 = vunpack.c.l.bf16 %v807
      %v810 = vunpack.c.l.bf16 %v808
      %811 = vset.pattern.permute.xlu0 21
      %812 = vperm.xlu0 %811, %v442
      %v813 = vpop.permute.xlu0 %812
      %815 = vset.pattern.permute.xlu0 21
      %816 = vperm.xlu0 %815, %v445
      %v817 = vpop.permute.xlu0 %816
      %v819 = vmul.f32 %v813, %v809
      %v820 = vmul.f32 %v817, %v810
      %v821 = vadd.f32 %v804, %v819
      %v822 = vadd.f32 %v805, %v820
      %s823 = scalar_lea.vmem %s353, 176
      %v824 = vld [vmem:[%s823] sm:$0xf]
      %v825 = vld [vmem:[%s823 + $0x4] sm:$0x1]
      %v826 = vunpack.c.l.bf16 %v824
      %v827 = vunpack.c.l.bf16 %v825
      %828 = vset.pattern.permute.xlu0 22
      %829 = vperm.xlu0 %828, %v442
      %v830 = vpop.permute.xlu0 %829
      %832 = vset.pattern.permute.xlu0 22
      %833 = vperm.xlu0 %832, %v445
      %v834 = vpop.permute.xlu0 %833
      %v836 = vmul.f32 %v830, %v826
      %v837 = vmul.f32 %v834, %v827
      %v838 = vadd.f32 %v821, %v836
      %v839 = vadd.f32 %v822, %v837
      %s840 = scalar_lea.vmem %s353, 184
      %v841 = vld [vmem:[%s840] sm:$0xf]
      %v842 = vld [vmem:[%s840 + $0x4] sm:$0x1]
      %v843 = vunpack.c.l.bf16 %v841
      %v844 = vunpack.c.l.bf16 %v842
      %845 = vset.pattern.permute.xlu0 23
      %846 = vperm.xlu0 %845, %v442
      %v847 = vpop.permute.xlu0 %846
      %849 = vset.pattern.permute.xlu0 23
      %850 = vperm.xlu0 %849, %v445
      %v851 = vpop.permute.xlu0 %850
      %v853 = vmul.f32 %v847, %v843
      %v854 = vmul.f32 %v851, %v844
      %v855 = vadd.f32 %v838, %v853
      %v856 = vadd.f32 %v839, %v854
      %s857 = scalar_lea.vmem %s353, 192
      %v858 = vld [vmem:[%s857] sm:$0xf]
      %v859 = vld [vmem:[%s857 + $0x4] sm:$0x1]
      %v860 = vunpack.c.l.bf16 %v858
      %v861 = vunpack.c.l.bf16 %v859
      %862 = vset.pattern.permute.xlu0 24
      %863 = vperm.xlu0 %862, %v442
      %v864 = vpop.permute.xlu0 %863
      %866 = vset.pattern.permute.xlu0 24
      %867 = vperm.xlu0 %866, %v445
      %v868 = vpop.permute.xlu0 %867
      %v870 = vmul.f32 %v864, %v860
      %v871 = vmul.f32 %v868, %v861
      %v872 = vadd.f32 %v855, %v870
      %v873 = vadd.f32 %v856, %v871
      %s874 = scalar_lea.vmem %s353, 200
      %v875 = vld [vmem:[%s874] sm:$0xf]
      %v876 = vld [vmem:[%s874 + $0x4] sm:$0x1]
      %v877 = vunpack.c.l.bf16 %v875
      %v878 = vunpack.c.l.bf16 %v876
      %879 = vset.pattern.permute.xlu0 25
      %880 = vperm.xlu0 %879, %v442
      %v881 = vpop.permute.xlu0 %880
      %883 = vset.pattern.permute.xlu0 25
      %884 = vperm.xlu0 %883, %v445
      %v885 = vpop.permute.xlu0 %884
      %v887 = vmul.f32 %v881, %v877
      %v888 = vmul.f32 %v885, %v878
      %v889 = vadd.f32 %v872, %v887
      %v890 = vadd.f32 %v873, %v888
      %s891 = scalar_lea.vmem %s353, 208
      %v892 = vld [vmem:[%s891] sm:$0xf]
      %v893 = vld [vmem:[%s891 + $0x4] sm:$0x1]
      %v894 = vunpack.c.l.bf16 %v892
      %v895 = vunpack.c.l.bf16 %v893
      %896 = vset.pattern.permute.xlu0 26
      %897 = vperm.xlu0 %896, %v442
      %v898 = vpop.permute.xlu0 %897
      %900 = vset.pattern.permute.xlu0 26
      %901 = vperm.xlu0 %900, %v445
      %v902 = vpop.permute.xlu0 %901
      %v904 = vmul.f32 %v898, %v894
      %v905 = vmul.f32 %v902, %v895
      %v906 = vadd.f32 %v889, %v904
      %v907 = vadd.f32 %v890, %v905
      %s908 = scalar_lea.vmem %s353, 216
      %v909 = vld [vmem:[%s908] sm:$0xf]
      %v910 = vld [vmem:[%s908 + $0x4] sm:$0x1]
      %v911 = vunpack.c.l.bf16 %v909
      %v912 = vunpack.c.l.bf16 %v910
      %913 = vset.pattern.permute.xlu0 27
      %914 = vperm.xlu0 %913, %v442
      %v915 = vpop.permute.xlu0 %914
      %917 = vset.pattern.permute.xlu0 27
      %918 = vperm.xlu0 %917, %v445
      %v919 = vpop.permute.xlu0 %918
      %v921 = vmul.f32 %v915, %v911
      %v922 = vmul.f32 %v919, %v912
      %v923 = vadd.f32 %v906, %v921
      %v924 = vadd.f32 %v907, %v922
      %s925 = scalar_lea.vmem %s353, 224
      %v926 = vld [vmem:[%s925] sm:$0xf]
      %v927 = vld [vmem:[%s925 + $0x4] sm:$0x1]
      %v928 = vunpack.c.l.bf16 %v926
      %v929 = vunpack.c.l.bf16 %v927
      %930 = vset.pattern.permute.xlu0 28
      %931 = vperm.xlu0 %930, %v442
      %v932 = vpop.permute.xlu0 %931
      %934 = vset.pattern.permute.xlu0 28
      %935 = vperm.xlu0 %934, %v445
      %v936 = vpop.permute.xlu0 %935
      %v938 = vmul.f32 %v932, %v928
      %v939 = vmul.f32 %v936, %v929
      %v940 = vadd.f32 %v923, %v938
      %v941 = vadd.f32 %v924, %v939
      %s942 = scalar_lea.vmem %s353, 232
      %v943 = vld [vmem:[%s942] sm:$0xf]
      %v944 = vld [vmem:[%s942 + $0x4] sm:$0x1]
      %v945 = vunpack.c.l.bf16 %v943
      %v946 = vunpack.c.l.bf16 %v944
      %947 = vset.pattern.permute.xlu0 29
      %948 = vperm.xlu0 %947, %v442
      %v949 = vpop.permute.xlu0 %948
      %951 = vset.pattern.permute.xlu0 29
      %952 = vperm.xlu0 %951, %v445
      %v953 = vpop.permute.xlu0 %952
      %v955 = vmul.f32 %v949, %v945
      %v956 = vmul.f32 %v953, %v946
      %v957 = vadd.f32 %v940, %v955
      %v958 = vadd.f32 %v941, %v956
      %s959 = scalar_lea.vmem %s353, 240
      %v960 = vld [vmem:[%s959] sm:$0xf]
      %v961 = vld [vmem:[%s959 + $0x4] sm:$0x1]
      %v962 = vunpack.c.l.bf16 %v960
      %v963 = vunpack.c.l.bf16 %v961
      %964 = vset.pattern.permute.xlu0 30
      %965 = vperm.xlu0 %964, %v442
      %v966 = vpop.permute.xlu0 %965
      %968 = vset.pattern.permute.xlu0 30
      %969 = vperm.xlu0 %968, %v445
      %v970 = vpop.permute.xlu0 %969
      %v972 = vmul.f32 %v966, %v962
      %v973 = vmul.f32 %v970, %v963
      %v974 = vadd.f32 %v957, %v972
      %v975 = vadd.f32 %v958, %v973
      %s976 = scalar_lea.vmem %s353, 248
      %v977 = vld [vmem:[%s976] sm:$0xf]
      %v978 = vld [vmem:[%s976 + $0x4] sm:$0x1]
      %v979 = vunpack.c.l.bf16 %v977
      %v980 = vunpack.c.l.bf16 %v978
      %981 = vset.pattern.permute.xlu0 31
      %982 = vperm.xlu0 %981, %v442
      %v983 = vpop.permute.xlu0 %982
      %985 = vset.pattern.permute.xlu0 31
      %986 = vperm.xlu0 %985, %v445
      %v987 = vpop.permute.xlu0 %986
      %v989 = vmul.f32 %v983, %v979
      %v990 = vmul.f32 %v987, %v980
      %v991 = vadd.f32 %v974, %v989
      %v992 = vadd.f32 %v975, %v990
      %v993 = vld [vmem:[%s348] sm:$0xf]
      %v994 = vpack.c.bf16 %v992, %v991
      %vm995 = vcmask 80896
      %v997 = vsel %vm995, %v993, 0
      %vm999 = vcmask 1044480
      %v1001 = vsel %vm999, %v994, 0
      %1003 = vmatprep.subr.bf16.mxu0 0
      %1004 = vmatpush1.bf16.msra.mxu0 %v1001
      %1005 = vmatprep.subr.bf16.mxu0 0
      %1006 = vmatpush1.bf16.msra.mxu0 0
      %1007 = vmatprep.subr.bf16.mxu0 0
      %1008 = vmatpush1.bf16.msra.mxu0 0
      %1009 = vmatprep.subr.bf16.mxu0 0
      %1010 = vmatpush1.bf16.msra.mxu0 0
      %1011 = vmatprep.subr.bf16.mxu0 0
      %1012 = vmatpush1.bf16.msra.mxu0 0
      %1013 = vmatprep.subr.bf16.mxu0 0
      %1014 = vmatpush1.bf16.msra.mxu0 0
      %1015 = vmatprep.subr.bf16.mxu0 0
      %1016 = vmatpush1.bf16.msra.mxu0 0
      %1017 = vmatprep.subr.bf16.mxu0 0
      %1018 = vmatpush1.bf16.msra.mxu0 0
      %1019 = vmatprep.subr.bf16.mxu0 0
      %1020 = vmatpush1.bf16.msra.mxu0 0
      %1021 = vmatprep.subr.bf16.mxu0 0
      %1022 = vmatpush1.bf16.msra.mxu0 0
      %1023 = vmatprep.subr.bf16.mxu0 0
      %1024 = vmatpush1.bf16.msra.mxu0 0
      %1025 = vmatprep.subr.bf16.mxu0 0
      %1026 = vmatpush1.bf16.msra.mxu0 0
      %1027 = vmatprep.subr.bf16.mxu0 0
      %1028 = vmatpush1.bf16.msra.mxu0 0
      %1029 = vmatprep.subr.bf16.mxu0 0
      %1030 = vmatpush1.bf16.msra.mxu0 0
      %1031 = vmatprep.subr.bf16.mxu0 0
      %1032 = vmatpush1.bf16.msra.mxu0 0
      %1033 = vmatprep.subr.bf16.mxu0 0
      %1034 = vmatpush1.bf16.msra.mxu0 0
      %1035 = vmatprep.mubr.bf16.mxu0 0
      %1036 = vmatmul.mubr.bf16.gmra.mrb[0].mxu0 %v997
      %v1037 = vpop.f32.mrb[0].mxu0
      %v1038 = vadd.f32 0.0, %v1037
      %v1039 = vpop.f32.mrb[0].mxu0
      %v1040 = vpop.f32.mrb[0].mxu0
      %v1041 = vpop.f32.mrb[0].mxu0
      %1042 = vdwg.mxu0
      %v1043 = vld [vmem:[%s6] sm:$0xf]
      %v1044 = vld [vmem:[%s6 + $0x4] sm:$0xf]
      %v1045 = vld [vmem:[%s6 + $0x8] sm:$0xf]
      %v1046 = vld [vmem:[%s6 + $0xc] sm:$0xf]
      %v1047 = vpack.c.bf16 %v1038, %v1038
      %v1048 = vld [vmem:[%s7] sm:$0x1]
      %v1050 = vlaneseq
      %v1051 = vshrl.u32 %v1050, 7
      %v1052 = vsub.s32 0, %v1051
      %v1053 = vrot.slane %v1048, %v1052
      %v1059 = vunpack.c.l.b16 %v1043
      %v1060 = vunpack.c.l.b16 %v1044
      %v1061 = vunpack.c.l.b16 %v1045
      %v1062 = vunpack.c.l.b16 %v1046
      %v1063 = vpack.c.b16 %v1060, %v1059
      %v1064 = vpack.c.b16 %v1062, %v1061
      %v1068 = vsel %vm362, %v1047, 0
      %1070 = vmatprep.subr.bf16.mxu0 0
      %1071 = vmatpush1.bf16.msra.mxu0 %v1063
      %1072 = vmatprep.subr.bf16.mxu0 0
      %1073 = vmatpush1.bf16.msra.mxu0 %v1064
      %1074 = vmatprep.subr.bf16.mxu0 0
      %1075 = vmatpush1.bf16.msra.mxu0 0
      %1076 = vmatprep.subr.bf16.mxu0 0
      %1077 = vmatpush1.bf16.msra.mxu0 0
      %1078 = vmatprep.subr.bf16.mxu0 0
      %1079 = vmatpush1.bf16.msra.mxu0 0
      %1080 = vmatprep.subr.bf16.mxu0 0
      %1081 = vmatpush1.bf16.msra.mxu0 0
      %1082 = vmatprep.subr.bf16.mxu0 0
      %1083 = vmatpush1.bf16.msra.mxu0 0
      %1084 = vmatprep.subr.bf16.mxu0 0
      %1085 = vmatpush1.bf16.msra.mxu0 0
      %1086 = vmatprep.subr.bf16.mxu0 0
      %1087 = vmatpush1.bf16.msra.mxu0 0
      %1088 = vmatprep.subr.bf16.mxu0 0
      %1089 = vmatpush1.bf16.msra.mxu0 0
      %1090 = vmatprep.subr.bf16.mxu0 0
      %1091 = vmatpush1.bf16.msra.mxu0 0
      %1092 = vmatprep.subr.bf16.mxu0 0
      %1093 = vmatpush1.bf16.msra.mxu0 0
      %1094 = vmatprep.subr.bf16.mxu0 0
      %1095 = vmatpush1.bf16.msra.mxu0 0
      %1096 = vmatprep.subr.bf16.mxu0 0
      %1097 = vmatpush1.bf16.msra.mxu0 0
      %1098 = vmatprep.subr.bf16.mxu0 0
      %1099 = vmatpush1.bf16.msra.mxu0 0
      %1100 = vmatprep.subr.bf16.mxu0 0
      %1101 = vmatpush1.bf16.msra.mxu0 0
      %1102 = vmatprep.mubr.bf16.mxu0 0
      %1103 = vmatmul.mubr.bf16.gmra.mrb[0].mxu0 %v1068
      %v1104 = vpop.f32.mrb[0].mxu0
      %v1105 = vadd.f32 %v1053, %v1104
      %v1106 = vpop.f32.mrb[0].mxu0
      %v1107 = vpop.f32.mrb[0].mxu0
      %v1108 = vpop.f32.mrb[0].mxu0
      %1109 = vdwg.mxu0
      %v1110 = vadd.f32 %v359, %v1105
      %1111 = vst.msk [vmem:[%s357] sm:$0xff] %vm362, %v1110
      %p1112 = scmp.lt.s32.totalorder %s19, 1
      %s1113 = scalar_select %p1112, %s19, 1
      %s1114 = smul.addr %s1113, 8
      %s1115 = scalar_lea.vmem %s8, %s1114
      // Predicated region
      $region53: #{fwd.15} parent=51 // pred_check
        %p1116 = pneg %p225
      $region54: #{fwd.15} parent=51 // pred_check_branch
        %1118 = sbr.rel (%p1116) target = $region56
      $region55: #{fwd.15} parent=51 // pred_region
        _
      $region56: #{fwd.15} parent=51 // pred_fallthru
        _
    $region52: #{fwd.15} parent=5 // pred_fallthru
      _
    %p1119 = scmp.le.s32.totalorder 2, %s14
    // Predicated region
    $region57: #{fwd.15} parent=5 // pred_check
      %p1120 = pneg %p1119
    $region58: #{fwd.15} parent=5 // pred_check_branch
      %1122 = sbr.rel (%p1120) target = $region60
    $region59: #{fwd.15} parent=5 // pred_region
      %s1123 = ssub.s32 %s14, 2
      // Predicated region
      $region61: #{fwd.15} parent=59 // pred_check
        %p1124 = pneg %p231
      $region62: #{fwd.15} parent=59 // pred_check_branch
        %1126 = sbr.rel (%p1124) target = $region64
      $region63: #{fwd.15} parent=59 // pred_region
        %p1127 = scmp.lt.s32.totalorder %s20, 1
        %s1128 = scalar_select %p1127, %s20, 1
        %s1129 = smul.addr %s1128, 8
        %s1130 = scalar_lea.vmem %s8, %s1129
      $region64: #{fwd.15} parent=59 // pred_fallthru
        _
    $region60: #{fwd.15} parent=5 // pred_fallthru
      _
  $region6: #{fwd.15} parent=0 // loop_footer
    %s18 = sadd.s32 1, %s14
  $region7: #{fwd.15} parent=0 // loop_footer_branch
    %13 = sbr.rel target = $region3
  $region8: #{fwd.15} parent=0 // loop_exit
    _

// kernel: fwd.16
$region0: #{fwd.16}
  #allocation0 [shape = 'u32[]', space=smem, size = 0x4, offset = 0x4, fixed_abs, tag = 'smem constant byte address 0x4 - core index']
  #allocation1 [shape = 'u32[144,128]{1,0:T(1,128)}', space=vmem, size = 0x12000, scoped, tag = 'internal scratch']
  %s0 = inlined_call_operand.vmem [shape: f32[2,8,32], index: 0, kind: input, shape index: {}]
  %s1 = inlined_call_operand.vmem [shape: f32[2,1,8], index: 1, kind: input, shape index: {}]
  %s2 = inlined_call_operand.vmem [shape: f32[1,32], index: 2, kind: input, shape index: {}, may-alias: {2,8}]
  %s3 = inlined_call_operand.vmem [shape: f32[1,32], index: 3, kind: input, shape index: {}, may-alias: {3,9}]
  %s4 = inlined_call_operand.vmem [shape: bf16[32,96], index: 4, kind: input, shape index: {}]
  %s5 = inlined_call_operand.vmem [shape: f32[1,96], index: 5, kind: input, shape index: {}]
  %s6 = inlined_call_operand.vmem [shape: bf16[32,32], index: 6, kind: input, shape index: {}]
  %s7 = inlined_call_operand.vmem [shape: f32[1,32], index: 7, kind: input, shape index: {}]
  %s8 = inlined_call_operand.vmem [shape: f32[1,32], index: 8, kind: input, shape index: {}, may-alias: {2,8}]
  %s9 = inlined_call_operand.vmem [shape: f32[1,32], index: 9, kind: input, shape index: {}, may-alias: {3,9}]
  %s10 = inlined_call_operand.vmem [shape: bf16[32,64], index: 10, kind: input, shape index: {}]
  %s11 = inlined_call_operand.vmem [shape: f32[1,64], index: 11, kind: input, shape index: {}]
  %s12 = inlined_call_operand.vmem [shape: bf16[64,32], index: 12, kind: input, shape index: {}]
  %s13 = inlined_call_operand.vmem [shape: f32[1,32], index: 13, kind: input, shape index: {}]
  %s14 = inlined_call_operand.vmem [shape: f32[2,8,32], index: 14, kind: output, shape index: {}]
  %s15 = sld [smem:[#allocation0]]
  $region89: #{fwd.16} parent=0
    _
  %s17 = ssub.s32 1, %s15
  %s18 = scalar_select 0, %s17, %s15
  loop: start=0, step=1, limit=4
  $region2: #{fwd.16} parent=0 // loop_pre_header
    _
  $region3: #{fwd.16} parent=0 // loop_header
    %s20 = sphi 0, %s24
    %p21 = scmp.ge.s32.totalorder %s20, 4
    %s30 = sphi 0, %s32
    %s33 = sphi 0, %s30
    %s34 = sphi 0, %s33
    %s50 = sphi 0, %s34
    %s56 = sphi 0, %s58
    %s59 = sphi 0, %s56
    %s60 = sphi 0, %s59
    %s76 = sphi 0, %s60
    %s80 = sphi 0, %s80
    %s82 = sphi 0, %s80
    %s83 = sphi 0, %s82
    %s97 = sphi 0, %s83
    %s101 = sphi 0, %s101
    %s103 = sphi 0, %s101
    %s104 = sphi 0, %s103
    %s118 = sphi 0, %s104
    %s122 = sphi 0, %s122
    %s124 = sphi 0, %s122
    %s125 = sphi 0, %s124
    %s139 = sphi 0, %s125
    %s143 = sphi 0, %s143
    %s145 = sphi 0, %s143
    %s146 = sphi 0, %s145
    %s160 = sphi 0, %s146
    %s164 = sphi 0, %s164
    %s166 = sphi 0, %s164
    %s167 = sphi 0, %s166
    %s181 = sphi 0, %s167
    %s185 = sphi 0, %s185
    %s187 = sphi 0, %s185
    %s188 = sphi 0, %s187
    %s202 = sphi 0, %s188
    %s206 = sphi 0, %s206
    %s208 = sphi 0, %s206
    %s209 = sphi 0, %s208
    %s223 = sphi 0, %s209
    %s227 = sphi 0, %s227
    %s229 = sphi 0, %s227
    %s230 = sphi 0, %s229
    %s244 = sphi 0, %s230
    %s248 = sphi 0, %s248
    %s250 = sphi 0, %s248
    %s251 = sphi 0, %s250
    %s265 = sphi 0, %s251
    %s269 = sphi 0, %s269
    %s271 = sphi 0, %s269
    %s272 = sphi 0, %s271
    %s286 = sphi 0, %s272
    %s290 = sphi 0, %s290
    %s292 = sphi 0, %s290
    %s293 = sphi 0, %s292
    %s307 = sphi 0, %s293
    %s311 = sphi 0, %s311
    %s313 = sphi 0, %s311
    %s314 = sphi 0, %s313
    %s328 = sphi 0, %s314
    %s334 = sphi 0, %s336
    %s337 = sphi 0, %s334
    %s338 = sphi 0, %s337
    %s354 = sphi 0, %s338
  $region4: #{fwd.16} parent=0 // loop_header_branch
    %23 = sbr.rel (%p21) target = $region8
  $region5: #{fwd.16} parent=0 // loop_body
    %s25 = ssub.s32 %s20, 1
    %s26 = ssub.s32 %s20, 2
    %s27 = sadd.s32 %s20, 1
    %s28 = ssub.s32 %s20, %s27
    %p29 = scmp.eq.s32.totalorder %s28, 0
    %s31 = sadd.s32 %s30, 1
    %s32 = scalar_select %p29, %s30, %s31
    %p35 = pneg %p29
    %p36 = scmp.eq.s32.totalorder %s20, 1
    %p37 = por %p35, %p36
    %p38 = scmp.ne.s32.totalorder %s30, %s33
    %p39 = scmp.eq.s32.totalorder %s20, 0
    %p40 = por %p38, %p39
    %p41 = scmp.ne.s32.totalorder %s30, %s33
    %p42 = scmp.eq.s32.totalorder %s25, 1
    %p43 = por %p41, %p42
    %p44 = scmp.ne.s32.totalorder %s33, %s34
    %p45 = scmp.eq.s32.totalorder %s25, 0
    %p46 = por %p44, %p45
    %p47 = scmp.ne.s32.totalorder %s33, %s34
    %p48 = scmp.eq.s32.totalorder %s26, 1
    %p49 = por %p47, %p48
    %p51 = scmp.ne.s32.totalorder %s34, %s50
    %p52 = scmp.eq.s32.totalorder %s26, 0
    %p53 = por %p51, %p52
    %s54 = ssub.s32 %s20, %s27
    %p55 = scmp.eq.s32.totalorder %s54, 0
    %s57 = sadd.s32 %s56, 1
    %s58 = scalar_select %p55, %s56, %s57
    %p61 = pneg %p55
    %p62 = scmp.eq.s32.totalorder %s20, 1
    %p63 = por %p61, %p62
    %p64 = scmp.ne.s32.totalorder %s56, %s59
    %p65 = scmp.eq.s32.totalorder %s20, 0
    %p66 = por %p64, %p65
    %p67 = scmp.ne.s32.totalorder %s56, %s59
    %p68 = scmp.eq.s32.totalorder %s25, 1
    %p69 = por %p67, %p68
    %p70 = scmp.ne.s32.totalorder %s59, %s60
    %p71 = scmp.eq.s32.totalorder %s25, 0
    %p72 = por %p70, %p71
    %p73 = scmp.ne.s32.totalorder %s59, %s60
    %p74 = scmp.eq.s32.totalorder %s26, 1
    %p75 = por %p73, %p74
    %p77 = scmp.ne.s32.totalorder %s60, %s76
    %p78 = scmp.eq.s32.totalorder %s26, 0
    %p79 = por %p77, %p78
    %s81 = sadd.s32 %s80, 1
    %p84 = scmp.eq.s32.totalorder %s20, 1
    %p85 = scmp.ne.s32.totalorder %s80, %s82
    %p86 = scmp.eq.s32.totalorder %s20, 0
    %p87 = por %p85, %p86
    %p88 = scmp.ne.s32.totalorder %s80, %s82
    %p89 = scmp.eq.s32.totalorder %s25, 1
    %p90 = por %p88, %p89
    %p91 = scmp.ne.s32.totalorder %s82, %s83
    %p92 = scmp.eq.s32.totalorder %s25, 0
    %p93 = por %p91, %p92
    %p94 = scmp.ne.s32.totalorder %s82, %s83
    %p95 = scmp.eq.s32.totalorder %s26, 1
    %p96 = por %p94, %p95
    %p98 = scmp.ne.s32.totalorder %s83, %s97
    %p99 = scmp.eq.s32.totalorder %s26, 0
    %p100 = por %p98, %p99
    %s102 = sadd.s32 %s101, 1
    %p105 = scmp.eq.s32.totalorder %s20, 1
    %p106 = scmp.ne.s32.totalorder %s101, %s103
    %p107 = scmp.eq.s32.totalorder %s20, 0
    %p108 = por %p106, %p107
    %p109 = scmp.ne.s32.totalorder %s101, %s103
    %p110 = scmp.eq.s32.totalorder %s25, 1
    %p111 = por %p109, %p110
    %p112 = scmp.ne.s32.totalorder %s103, %s104
    %p113 = scmp.eq.s32.totalorder %s25, 0
    %p114 = por %p112, %p113
    %p115 = scmp.ne.s32.totalorder %s103, %s104
    %p116 = scmp.eq.s32.totalorder %s26, 1
    %p117 = por %p115, %p116
    %p119 = scmp.ne.s32.totalorder %s104, %s118
    %p120 = scmp.eq.s32.totalorder %s26, 0
    %p121 = por %p119, %p120
    %s123 = sadd.s32 %s122, 1
    %p126 = scmp.eq.s32.totalorder %s20, 1
    %p127 = scmp.ne.s32.totalorder %s122, %s124
    %p128 = scmp.eq.s32.totalorder %s20, 0
    %p129 = por %p127, %p128
    %p130 = scmp.ne.s32.totalorder %s122, %s124
    %p131 = scmp.eq.s32.totalorder %s25, 1
    %p132 = por %p130, %p131
    %p133 = scmp.ne.s32.totalorder %s124, %s125
    %p134 = scmp.eq.s32.totalorder %s25, 0
    %p135 = por %p133, %p134
    %p136 = scmp.ne.s32.totalorder %s124, %s125
    %p137 = scmp.eq.s32.totalorder %s26, 1
    %p138 = por %p136, %p137
    %p140 = scmp.ne.s32.totalorder %s125, %s139
    %p141 = scmp.eq.s32.totalorder %s26, 0
    %p142 = por %p140, %p141
    %s144 = sadd.s32 %s143, 1
    %p147 = scmp.eq.s32.totalorder %s20, 1
    %p148 = scmp.ne.s32.totalorder %s143, %s145
    %p149 = scmp.eq.s32.totalorder %s20, 0
    %p150 = por %p148, %p149
    %p151 = scmp.ne.s32.totalorder %s143, %s145
    %p152 = scmp.eq.s32.totalorder %s25, 1
    %p153 = por %p151, %p152
    %p154 = scmp.ne.s32.totalorder %s145, %s146
    %p155 = scmp.eq.s32.totalorder %s25, 0
    %p156 = por %p154, %p155
    %p157 = scmp.ne.s32.totalorder %s145, %s146
    %p158 = scmp.eq.s32.totalorder %s26, 1
    %p159 = por %p157, %p158
    %p161 = scmp.ne.s32.totalorder %s146, %s160
    %p162 = scmp.eq.s32.totalorder %s26, 0
    %p163 = por %p161, %p162
    %s165 = sadd.s32 %s164, 1
    %p168 = scmp.eq.s32.totalorder %s20, 1
    %p169 = scmp.ne.s32.totalorder %s164, %s166
    %p170 = scmp.eq.s32.totalorder %s20, 0
    %p171 = por %p169, %p170
    %p172 = scmp.ne.s32.totalorder %s164, %s166
    %p173 = scmp.eq.s32.totalorder %s25, 1
    %p174 = por %p172, %p173
    %p175 = scmp.ne.s32.totalorder %s166, %s167
    %p176 = scmp.eq.s32.totalorder %s25, 0
    %p177 = por %p175, %p176
    %p178 = scmp.ne.s32.totalorder %s166, %s167
    %p179 = scmp.eq.s32.totalorder %s26, 1
    %p180 = por %p178, %p179
    %p182 = scmp.ne.s32.totalorder %s167, %s181
    %p183 = scmp.eq.s32.totalorder %s26, 0
    %p184 = por %p182, %p183
    %s186 = sadd.s32 %s185, 1
    %p189 = scmp.eq.s32.totalorder %s20, 1
    %p190 = scmp.ne.s32.totalorder %s185, %s187
    %p191 = scmp.eq.s32.totalorder %s20, 0
    %p192 = por %p190, %p191
    %p193 = scmp.ne.s32.totalorder %s185, %s187
    %p194 = scmp.eq.s32.totalorder %s25, 1
    %p195 = por %p193, %p194
    %p196 = scmp.ne.s32.totalorder %s187, %s188
    %p197 = scmp.eq.s32.totalorder %s25, 0
    %p198 = por %p196, %p197
    %p199 = scmp.ne.s32.totalorder %s187, %s188
    %p200 = scmp.eq.s32.totalorder %s26, 1
    %p201 = por %p199, %p200
    %p203 = scmp.ne.s32.totalorder %s188, %s202
    %p204 = scmp.eq.s32.totalorder %s26, 0
    %p205 = por %p203, %p204
    %s207 = sadd.s32 %s206, 1
    %p210 = scmp.eq.s32.totalorder %s20, 1
    %p211 = scmp.ne.s32.totalorder %s206, %s208
    %p212 = scmp.eq.s32.totalorder %s20, 0
    %p213 = por %p211, %p212
    %p214 = scmp.ne.s32.totalorder %s206, %s208
    %p215 = scmp.eq.s32.totalorder %s25, 1
    %p216 = por %p214, %p215
    %p217 = scmp.ne.s32.totalorder %s208, %s209
    %p218 = scmp.eq.s32.totalorder %s25, 0
    %p219 = por %p217, %p218
    %p220 = scmp.ne.s32.totalorder %s208, %s209
    %p221 = scmp.eq.s32.totalorder %s26, 1
    %p222 = por %p220, %p221
    %p224 = scmp.ne.s32.totalorder %s209, %s223
    %p225 = scmp.eq.s32.totalorder %s26, 0
    %p226 = por %p224, %p225
    %s228 = sadd.s32 %s227, 1
    %p231 = scmp.eq.s32.totalorder %s20, 1
    %p232 = scmp.ne.s32.totalorder %s227, %s229
    %p233 = scmp.eq.s32.totalorder %s20, 0
    %p234 = por %p232, %p233
    %p235 = scmp.ne.s32.totalorder %s227, %s229
    %p236 = scmp.eq.s32.totalorder %s25, 1
    %p237 = por %p235, %p236
    %p238 = scmp.ne.s32.totalorder %s229, %s230
    %p239 = scmp.eq.s32.totalorder %s25, 0
    %p240 = por %p238, %p239
    %p241 = scmp.ne.s32.totalorder %s229, %s230
    %p242 = scmp.eq.s32.totalorder %s26, 1
    %p243 = por %p241, %p242
    %p245 = scmp.ne.s32.totalorder %s230, %s244
    %p246 = scmp.eq.s32.totalorder %s26, 0
    %p247 = por %p245, %p246
    %s249 = sadd.s32 %s248, 1
    %p252 = scmp.eq.s32.totalorder %s20, 1
    %p253 = scmp.ne.s32.totalorder %s248, %s250
    %p254 = scmp.eq.s32.totalorder %s20, 0
    %p255 = por %p253, %p254
    %p256 = scmp.ne.s32.totalorder %s248, %s250
    %p257 = scmp.eq.s32.totalorder %s25, 1
    %p258 = por %p256, %p257
    %p259 = scmp.ne.s32.totalorder %s250, %s251
    %p260 = scmp.eq.s32.totalorder %s25, 0
    %p261 = por %p259, %p260
    %p262 = scmp.ne.s32.totalorder %s250, %s251
    %p263 = scmp.eq.s32.totalorder %s26, 1
    %p264 = por %p262, %p263
    %p266 = scmp.ne.s32.totalorder %s251, %s265
    %p267 = scmp.eq.s32.totalorder %s26, 0
    %p268 = por %p266, %p267
    %s270 = sadd.s32 %s269, 1
    %p273 = scmp.eq.s32.totalorder %s20, 1
    %p274 = scmp.ne.s32.totalorder %s269, %s271
    %p275 = scmp.eq.s32.totalorder %s20, 0
    %p276 = por %p274, %p275
    %p277 = scmp.ne.s32.totalorder %s269, %s271
    %p278 = scmp.eq.s32.totalorder %s25, 1
    %p279 = por %p277, %p278
    %p280 = scmp.ne.s32.totalorder %s271, %s272
    %p281 = scmp.eq.s32.totalorder %s25, 0
    %p282 = por %p280, %p281
    %p283 = scmp.ne.s32.totalorder %s271, %s272
    %p284 = scmp.eq.s32.totalorder %s26, 1
    %p285 = por %p283, %p284
    %p287 = scmp.ne.s32.totalorder %s272, %s286
    %p288 = scmp.eq.s32.totalorder %s26, 0
    %p289 = por %p287, %p288
    %s291 = sadd.s32 %s290, 1
    %p294 = scmp.eq.s32.totalorder %s20, 1
    %p295 = scmp.ne.s32.totalorder %s290, %s292
    %p296 = scmp.eq.s32.totalorder %s20, 0
    %p297 = por %p295, %p296
    %p298 = scmp.ne.s32.totalorder %s290, %s292
    %p299 = scmp.eq.s32.totalorder %s25, 1
    %p300 = por %p298, %p299
    %p301 = scmp.ne.s32.totalorder %s292, %s293
    %p302 = scmp.eq.s32.totalorder %s25, 0
    %p303 = por %p301, %p302
    %p304 = scmp.ne.s32.totalorder %s292, %s293
    %p305 = scmp.eq.s32.totalorder %s26, 1
    %p306 = por %p304, %p305
    %p308 = scmp.ne.s32.totalorder %s293, %s307
    %p309 = scmp.eq.s32.totalorder %s26, 0
    %p310 = por %p308, %p309
    %s312 = sadd.s32 %s311, 1
    %p315 = scmp.eq.s32.totalorder %s20, 1
    %p316 = scmp.ne.s32.totalorder %s311, %s313
    %p317 = scmp.eq.s32.totalorder %s20, 0
    %p318 = por %p316, %p317
    %p319 = scmp.ne.s32.totalorder %s311, %s313
    %p320 = scmp.eq.s32.totalorder %s25, 1
    %p321 = por %p319, %p320
    %p322 = scmp.ne.s32.totalorder %s313, %s314
    %p323 = scmp.eq.s32.totalorder %s25, 0
    %p324 = por %p322, %p323
    %p325 = scmp.ne.s32.totalorder %s313, %s314
    %p326 = scmp.eq.s32.totalorder %s26, 1
    %p327 = por %p325, %p326
    %p329 = scmp.ne.s32.totalorder %s314, %s328
    %p330 = scmp.eq.s32.totalorder %s26, 0
    %p331 = por %p329, %p330
    %s332 = ssub.s32 %s20, %s27
    %p333 = scmp.eq.s32.totalorder %s332, 0
    %s335 = sadd.s32 %s334, 1
    %s336 = scalar_select %p333, %s334, %s335
    %p339 = pneg %p333
    %p340 = scmp.eq.s32.totalorder %s20, 1
    %p341 = por %p339, %p340
    %p342 = scmp.ne.s32.totalorder %s334, %s337
    %p343 = scmp.eq.s32.totalorder %s20, 0
    %p344 = por %p342, %p343
    %p345 = scmp.ne.s32.totalorder %s334, %s337
    %p346 = scmp.eq.s32.totalorder %s25, 1
    %p347 = por %p345, %p346
    %p348 = scmp.ne.s32.totalorder %s337, %s338
    %p349 = scmp.eq.s32.totalorder %s25, 0
    %p350 = por %p348, %p349
    %p351 = scmp.ne.s32.totalorder %s337, %s338
    %p352 = scmp.eq.s32.totalorder %s26, 1
    %p353 = por %p351, %p352
    %p355 = scmp.ne.s32.totalorder %s338, %s354
    %p356 = scmp.eq.s32.totalorder %s26, 0
    %p357 = por %p355, %p356
    %p358 = scmp.le.s32.totalorder 1, %s20
    %p359 = scmp.lt.s32.totalorder %s20, 3
    %p360 = pnand %p358, %p359
    %p361 = pneg %p360
    // Predicated region
    $region9: #{fwd.16} parent=5 // pred_check
      _
    $region10: #{fwd.16} parent=5 // pred_check_branch
      %363 = sbr.rel (%p360) target = $region12
    $region11: #{fwd.16} parent=5 // pred_region
      %s364 = ssub.s32 %s20, 1
      // Predicated region
      $region13: #{fwd.16} parent=11 // pred_check
        %p365 = pneg %p93
      $region14: #{fwd.16} parent=11 // pred_check_branch
        %367 = sbr.rel (%p365) target = $region16
      $region15: #{fwd.16} parent=11 // pred_region
        _
      $region16: #{fwd.16} parent=11 // pred_fallthru
        _
      // Predicated region
      $region17: #{fwd.16} parent=11 // pred_check
        %p368 = pneg %p114
      $region18: #{fwd.16} parent=11 // pred_check_branch
        %370 = sbr.rel (%p368) target = $region20
      $region19: #{fwd.16} parent=11 // pred_region
        _
      $region20: #{fwd.16} parent=11 // pred_fallthru
        _
      // Predicated region
      $region21: #{fwd.16} parent=11 // pred_check
        %p371 = pneg %p135
      $region22: #{fwd.16} parent=11 // pred_check_branch
        %373 = sbr.rel (%p371) target = $region24
      $region23: #{fwd.16} parent=11 // pred_region
        _
      $region24: #{fwd.16} parent=11 // pred_fallthru
        _
      // Predicated region
      $region25: #{fwd.16} parent=11 // pred_check
        %p374 = pneg %p156
      $region26: #{fwd.16} parent=11 // pred_check_branch
        %376 = sbr.rel (%p374) target = $region28
      $region27: #{fwd.16} parent=11 // pred_region
        _
      $region28: #{fwd.16} parent=11 // pred_fallthru
        _
      // Predicated region
      $region29: #{fwd.16} parent=11 // pred_check
        %p377 = pneg %p177
      $region30: #{fwd.16} parent=11 // pred_check_branch
        %379 = sbr.rel (%p377) target = $region32
      $region31: #{fwd.16} parent=11 // pred_region
        _
      $region32: #{fwd.16} parent=11 // pred_fallthru
        _
      // Predicated region
      $region33: #{fwd.16} parent=11 // pred_check
        %p380 = pneg %p198
      $region34: #{fwd.16} parent=11 // pred_check_branch
        %382 = sbr.rel (%p380) target = $region36
      $region35: #{fwd.16} parent=11 // pred_region
        _
      $region36: #{fwd.16} parent=11 // pred_fallthru
        _
      // Predicated region
      $region37: #{fwd.16} parent=11 // pred_check
        %p383 = pneg %p219
      $region38: #{fwd.16} parent=11 // pred_check_branch
        %385 = sbr.rel (%p383) target = $region40
      $region39: #{fwd.16} parent=11 // pred_region
        _
      $region40: #{fwd.16} parent=11 // pred_fallthru
        _
      // Predicated region
      $region41: #{fwd.16} parent=11 // pred_check
        %p386 = pneg %p240
      $region42: #{fwd.16} parent=11 // pred_check_branch
        %388 = sbr.rel (%p386) target = $region44
      $region43: #{fwd.16} parent=11 // pred_region
        _
      $region44: #{fwd.16} parent=11 // pred_fallthru
        _
      // Predicated region
      $region45: #{fwd.16} parent=11 // pred_check
        %p389 = pneg %p261
      $region46: #{fwd.16} parent=11 // pred_check_branch
        %391 = sbr.rel (%p389) target = $region48
      $region47: #{fwd.16} parent=11 // pred_region
        _
      $region48: #{fwd.16} parent=11 // pred_fallthru
        _
      // Predicated region
      $region49: #{fwd.16} parent=11 // pred_check
        %p392 = pneg %p282
      $region50: #{fwd.16} parent=11 // pred_check_branch
        %394 = sbr.rel (%p392) target = $region52
      $region51: #{fwd.16} parent=11 // pred_region
        _
      $region52: #{fwd.16} parent=11 // pred_fallthru
        _
      // Predicated region
      $region53: #{fwd.16} parent=11 // pred_check
        %p395 = pneg %p303
      $region54: #{fwd.16} parent=11 // pred_check_branch
        %397 = sbr.rel (%p395) target = $region56
      $region55: #{fwd.16} parent=11 // pred_region
        _
      $region56: #{fwd.16} parent=11 // pred_fallthru
        _
      // Predicated region
      $region57: #{fwd.16} parent=11 // pred_check
        %p398 = pneg %p324
      $region58: #{fwd.16} parent=11 // pred_check_branch
        %400 = sbr.rel (%p398) target = $region60
      $region59: #{fwd.16} parent=11 // pred_region
        _
      $region60: #{fwd.16} parent=11 // pred_fallthru
        _
    $region12: #{fwd.16} parent=5 // pred_fallthru
      _
    %p401 = scmp.lt.s32.totalorder %s20, 2
    // Predicated region
    $region61: #{fwd.16} parent=5 // pred_check
      %p402 = pneg %p401
    $region62: #{fwd.16} parent=5 // pred_check_branch
      %404 = sbr.rel (%p402) target = $region64
    $region63: #{fwd.16} parent=5 // pred_region
      // Predicated region
      $region65: #{fwd.16} parent=63 // pred_check
        %p405 = pneg %p40
      $region66: #{fwd.16} parent=63 // pred_check_branch
        %407 = sbr.rel (%p405) target = $region68
      $region67: #{fwd.16} parent=63 // pred_region
        %p408 = scmp.lt.s32.totalorder %s20, 1
        %s409 = scalar_select %p408, %s20, 1
        %s410 = smul.addr %s409, 8
        %s411 = scalar_lea.vmem %s0, %s410
      $region68: #{fwd.16} parent=63 // pred_fallthru
        _
      // Predicated region
      $region69: #{fwd.16} parent=63 // pred_check
        %p412 = pneg %p66
      $region70: #{fwd.16} parent=63 // pred_check_branch
        %414 = sbr.rel (%p412) target = $region72
      $region71: #{fwd.16} parent=63 // pred_region
        %p415 = scmp.lt.s32.totalorder %s20, 1
        %s416 = scalar_select %p415, %s20, 1
        %s417 = scalar_lea.vmem %s1, %s416
      $region72: #{fwd.16} parent=63 // pred_fallthru
        _
    $region64: #{fwd.16} parent=5 // pred_fallthru
      _
    %p418 = scmp.le.s32.totalorder 1, %s20
    %p419 = scmp.lt.s32.totalorder %s20, 3
    %p420 = pnand %p418, %p419
    %p421 = pneg %p420
    // Predicated region
    $region73: #{fwd.16} parent=5 // pred_check
      _
    $region74: #{fwd.16} parent=5 // pred_check_branch
      %423 = sbr.rel (%p420) target = $region76
    $region75: #{fwd.16} parent=5 // pred_region
      %s424 = ssub.s32 %s20, 1
      %p425 = scmp.lt.s32.totalorder %s25, 1
      %s426 = scalar_select %p425, %s25, 1
      %s427 = smul.addr %s426, 8
      %s428 = scalar_lea.vmem %s0, %s427
      %p429 = pneg %p46
      %p430 = pneg %p43
      %p431 = scmp.lt.s32.totalorder %s25, 1
      %s432 = scalar_select %p431, %s25, 1
      %s433 = scalar_lea.vmem %s1, %s432
      %p434 = pneg %p72
      %p435 = pneg %p69
      %p436 = pneg %p93
      %p437 = pneg %p90
      %p438 = pneg %p114
      %p439 = pneg %p111
      %p440 = pneg %p135
      %p441 = pneg %p132
      %p442 = pneg %p156
      %p443 = pneg %p153
      %p444 = pneg %p177
      %p445 = pneg %p174
      %p446 = pneg %p198
      %p447 = pneg %p195
      %p448 = pneg %p219
      %p449 = pneg %p216
      %p450 = pneg %p240
      %p451 = pneg %p237
      %p452 = pneg %p261
      %p453 = pneg %p258
      %p454 = pneg %p282
      %p455 = pneg %p279
      %p456 = pneg %p303
      %p457 = pneg %p300
      %p458 = pneg %p324
      %p459 = pneg %p321
      %p460 = pneg %p350
      %p461 = pneg %p347
      %p462 = scmp.lt.s32.totalorder %s25, 1
      %s463 = scalar_select %p462, %s25, 1
      %s464 = smul.addr %s463, 8
      %s465 = scalar_lea.vmem %s14, %s464
      %p466 = scmp.lt.s32.totalorder %s25, 1
      %s467 = scalar_select %p466, %s25, 1
      %s468 = smul.addr %s467, 8
      %s469 = scalar_lea.vmem %s0, %s468
      %p470 = scmp.lt.s32.totalorder %s25, 1
      %s471 = scalar_select %p470, %s25, 1
      %s472 = scalar_lea.vmem %s1, %s471
      %p473 = scmp.lt.s32.totalorder %s25, 1
      %s474 = scalar_select %p473, %s25, 1
      %s475 = smul.addr %s474, 8
      %s476 = scalar_lea.vmem %s14, %s475
      %v478 = vld [vmem:[%s469] sm:$0xff]
      %v479 = vld [vmem:[%s472] sm:$0x1]
      %v480 = vld [vmem:[%s2] sm:$0x1]
      %v481 = vld [vmem:[%s3] sm:$0x1]
      %vm482 = vcmask 261120
      %v483 = vsel %vm482, %v478, 0.0
      %484 = vadd.xlane.f32.xlu0 %v483
      %v485 = vpop.xlane.xlu0 %484
      %v486 = vrcp.pop 32.0
      %v487 = vmul.f32 %v485, %v486
      %v488 = vsub.f32 %v478, %v487
      %v489 = vmul.f32 %v488, %v488
      %v490 = vsel %vm482, %v489, 0.0
      %491 = vadd.xlane.f32.xlu0 %v490
      %v492 = vpop.xlane.xlu0 %491
      %v493 = vmul.f32 %v492, %v486
      %v494 = vadd.f32 %v493, 1e-06
      %v495 = vrsqrt.pop %v494
      %v496 = vmul.f32 %v488, %v495
      %v498 = vlaneseq
      %v499 = vshrl.u32 %v498, 7
      %v500 = vsub.s32 0, %v499
      %v501 = vrot.slane %v480, %v500
      %v503 = vmul.f32 %v496, %v501
      %v505 = vlaneseq
      %v506 = vshrl.u32 %v505, 7
      %v507 = vsub.s32 0, %v506
      %v508 = vrot.slane %v481, %v507
      %v510 = vadd.f32 %v503, %v508
      %v511 = vld [vmem:[%s4] sm:$0xf]
      %v512 = vld [vmem:[%s4 + $0x4] sm:$0xf]
      %v513 = vld [vmem:[%s4 + $0x8] sm:$0xf]
      %v514 = vld [vmem:[%s4 + $0xc] sm:$0xf]
      %v515 = vpack.c.bf16 %v510, %v510
      %v516 = vld [vmem:[%s5] sm:$0x1]
      %v518 = vlaneseq
      %v519 = vshrl.u32 %v518, 7
      %v520 = vsub.s32 0, %v519
      %v521 = vrot.slane %v516, %v520
      %v527 = vunpack.c.l.b16 %v511
      %v528 = vunpack.c.l.b16 %v512
      %v529 = vunpack.c.l.b16 %v513
      %v530 = vunpack.c.l.b16 %v514
      %v531 = vpack.c.b16 %v528, %v527
      %v532 = vpack.c.b16 %v530, %v529
      %v536 = vsel %vm482, %v515, 0
      %538 = vmatprep.subr.bf16.mxu0 0
      %539 = vmatpush1.bf16.msra.mxu0 %v531
      %540 = vmatprep.subr.bf16.mxu0 0
      %541 = vmatpush1.bf16.msra.mxu0 %v532
      %542 = vmatprep.subr.bf16.mxu0 0
      %543 = vmatpush1.bf16.msra.mxu0 0
      %544 = vmatprep.subr.bf16.mxu0 0
      %545 = vmatpush1.bf16.msra.mxu0 0
      %546 = vmatprep.subr.bf16.mxu0 0
      %547 = vmatpush1.bf16.msra.mxu0 0
      %548 = vmatprep.subr.bf16.mxu0 0
      %549 = vmatpush1.bf16.msra.mxu0 0
      %550 = vmatprep.subr.bf16.mxu0 0
      %551 = vmatpush1.bf16.msra.mxu0 0
      %552 = vmatprep.subr.bf16.mxu0 0
      %553 = vmatpush1.bf16.msra.mxu0 0
      %554 = vmatprep.subr.bf16.mxu0 0
      %555 = vmatpush1.bf16.msra.mxu0 0
      %556 = vmatprep.subr.bf16.mxu0 0
      %557 = vmatpush1.bf16.msra.mxu0 0
      %558 = vmatprep.subr.bf16.mxu0 0
      %559 = vmatpush1.bf16.msra.mxu0 0
      %560 = vmatprep.subr.bf16.mxu0 0
      %561 = vmatpush1.bf16.msra.mxu0 0
      %562 = vmatprep.subr.bf16.mxu0 0
      %563 = vmatpush1.bf16.msra.mxu0 0
      %564 = vmatprep.subr.bf16.mxu0 0
      %565 = vmatpush1.bf16.msra.mxu0 0
      %566 = vmatprep.subr.bf16.mxu0 0
      %567 = vmatpush1.bf16.msra.mxu0 0
      %568 = vmatprep.subr.bf16.mxu0 0
      %569 = vmatpush1.bf16.msra.mxu0 0
      %570 = vmatprep.mubr.bf16.mxu0 0
      %571 = vmatmul.mubr.bf16.gmra.mrb[0].mxu0 %v536
      %v572 = vpop.f32.mrb[0].mxu0
      %v573 = vadd.f32 %v521, %v572
      %v574 = vpop.f32.mrb[0].mxu0
      %v575 = vpop.f32.mrb[0].mxu0
      %v576 = vpop.f32.mrb[0].mxu0
      %577 = vdwg.mxu0
      %v578 = vpack.c.bf16 %v573, %v573
      %580 = vrot.lane.b32.xlu0 %v578, 96
      %v581 = vpop.permute.xlu0 %580
      %vm582 = vcmask 64512
      %v584 = vsel %vm582, %v578, 0
      %v587 = vsel %vm582, %v581, 0
      %589 = vmatprep.subr.bf16.mxu0 0
      %590 = vmatpush1.bf16.xpose.msra.mxu0 %v587
      %591 = vmatprep.subr.bf16.mxu0 0
      %592 = vmatpush1.bf16.xpose.msra.mxu0 0
      %593 = vmatprep.subr.bf16.mxu0 0
      %594 = vmatpush1.bf16.xpose.msra.mxu0 0
      %595 = vmatprep.subr.bf16.mxu0 0
      %596 = vmatpush1.bf16.xpose.msra.mxu0 0
      %597 = vmatprep.subr.bf16.mxu0 0
      %598 = vmatpush1.bf16.xpose.msra.mxu0 0
      %599 = vmatprep.subr.bf16.mxu0 0
      %600 = vmatpush1.bf16.xpose.msra.mxu0 0
      %601 = vmatprep.subr.bf16.mxu0 0
      %602 = vmatpush1.bf16.xpose.msra.mxu0 0
      %603 = vmatprep.subr.bf16.mxu0 0
      %604 = vmatpush1.bf16.xpose.msra.mxu0 0
      %605 = vmatprep.subr.bf16.mxu0 0
      %606 = vmatpush1.bf16.xpose.msra.mxu0 0
      %607 = vmatprep.subr.bf16.mxu0 0
      %608 = vmatpush1.bf16.xpose.msra.mxu0 0
      %609 = vmatprep.subr.bf16.mxu0 0
      %610 = vmatpush1.bf16.xpose.msra.mxu0 0
      %611 = vmatprep.subr.bf16.mxu0 0
      %612 = vmatpush1.bf16.xpose.msra.mxu0 0
      %613 = vmatprep.subr.bf16.mxu0 0
      %614 = vmatpush1.bf16.xpose.msra.mxu0 0
      %615 = vmatprep.subr.bf16.mxu0 0
      %616 = vmatpush1.bf16.xpose.msra.mxu0 0
      %617 = vmatprep.subr.bf16.mxu0 0
      %618 = vmatpush1.bf16.xpose.msra.mxu0 0
      %619 = vmatprep.subr.bf16.mxu0 0
      %620 = vmatpush1.bf16.xpose.msra.mxu0 0
      %621 = vmatprep.mubr.bf16.mxu0 0
      %622 = vmatmul.mubr.bf16.gmra.mrb[0].mxu0 %v584
      %v623 = vpop.f32.mrb[0].mxu0
      %v624 = vadd.f32 0.0, %v623
      %v625 = vpop.f32.mrb[0].mxu0
      %v626 = vpop.f32.mrb[0].mxu0
      %v627 = vpop.f32.mrb[0].mxu0
      %628 = vdwg.mxu0
      %v629 = vmul.f32 %v624, 0.35355338
      %vm630 = vcmp.eq.f32.partialorder %v479, 0.0
      %v631 = vsel %vm630, 1, 0
      %v632 = vlaneseq
      %v633 = vshrl.u32 %v632, 7
      %v634 = vsub.s32 0, %v633
      %v635 = vrot.slane %v631, %v634
      %vm636 = vcmp.eq.s32.totalorder %v635, 1
      %v637 = vsel %vm636, -1e+09, %v629
      %v638 = vsel %vm582, %v637, -inf
      %639 = vmax.xlane.f32.xlu0 %v638
      %v640 = vpop.xlane.xlu0 %639
      %v641 = vsub.f32 %v637, %v640
      %v642 = vmul.f32 %v641, 1.442695
      %v643 = vpow.pop %v642
      %v644 = vsel %vm582, %v643, 0.0
      %645 = vadd.xlane.f32.xlu0 %v644
      %v646 = vpop.xlane.xlu0 %645
      %v647 = vrcp.pop %v646
      %v648 = vmul.f32 %v643, %v647
      %v649 = vsel %vm636, 0.0, %v648
      %v650 = vpack.c.bf16 %v649, %v649
      %651 = vrot.lane.b32.xlu0 %v578, 64
      %v652 = vpop.permute.xlu0 %651
      %v654 = vsel %vm582, %v650, 0
      %vm656 = vcmask 1043456
      %v658 = vsel %vm656, %v652, 0
      %660 = vmatprep.subr.bf16.mxu0 0
      %661 = vmatpush1.bf16.msra.mxu0 %v658
      %662 = vmatprep.subr.bf16.mxu0 0
      %663 = vmatpush1.bf16.msra.mxu0 0
      %664 = vmatprep.subr.bf16.mxu0 0
      %665 = vmatpush1.bf16.msra.mxu0 0
      %666 = vmatprep.subr.bf16.mxu0 0
      %667 = vmatpush1.bf16.msra.mxu0 0
      %668 = vmatprep.subr.bf16.mxu0 0
      %669 = vmatpush1.bf16.msra.mxu0 0
      %670 = vmatprep.subr.bf16.mxu0 0
      %671 = vmatpush1.bf16.msra.mxu0 0
      %672 = vmatprep.subr.bf16.mxu0 0
      %673 = vmatpush1.bf16.msra.mxu0 0
      %674 = vmatprep.subr.bf16.mxu0 0
      %675 = vmatpush1.bf16.msra.mxu0 0
      %676 = vmatprep.subr.bf16.mxu0 0
      %677 = vmatpush1.bf16.msra.mxu0 0
      %678 = vmatprep.subr.bf16.mxu0 0
      %679 = vmatpush1.bf16.msra.mxu0 0
      %680 = vmatprep.subr.bf16.mxu0 0
      %681 = vmatpush1.bf16.msra.mxu0 0
      %682 = vmatprep.subr.bf16.mxu0 0
      %683 = vmatpush1.bf16.msra.mxu0 0
      %684 = vmatprep.subr.bf16.mxu0 0
      %685 = vmatpush1.bf16.msra.mxu0 0
      %686 = vmatprep.subr.bf16.mxu0 0
      %687 = vmatpush1.bf16.msra.mxu0 0
      %688 = vmatprep.subr.bf16.mxu0 0
      %689 = vmatpush1.bf16.msra.mxu0 0
      %690 = vmatprep.subr.bf16.mxu0 0
      %691 = vmatpush1.bf16.msra.mxu0 0
      %692 = vmatprep.mubr.bf16.mxu0 0
      %693 = vmatmul.mubr.bf16.gmra.mrb[0].mxu0 %v654
      %v694 = vpop.f32.mrb[0].mxu0
      %v695 = vadd.f32 0.0, %v694
      %v696 = vpop.f32.mrb[0].mxu0
      %v697 = vpop.f32.mrb[0].mxu0
      %v698 = vpop.f32.mrb[0].mxu0
      %699 = vdwg.mxu0
      %700 = vrot.lane.b32.xlu0 %v578, 120
      %v701 = vpop.permute.xlu0 %700
      %702 = vrot.lane.b32.xlu0 %v578, 88
      %v703 = vpop.permute.xlu0 %702
      %v705 = vsel %vm582, %v701, 0
      %v708 = vsel %vm582, %v703, 0
      %710 = vmatprep.subr.bf16.mxu0 0
      %711 = vmatpush1.bf16.xpose.msra.mxu0 %v708
      %712 = vmatprep.subr.bf16.mxu0 0
      %713 = vmatpush1.bf16.xpose.msra.mxu0 0
      %714 = vmatprep.subr.bf16.mxu0 0
      %715 = vmatpush1.bf16.xpose.msra.mxu0 0
      %716 = vmatprep.subr.bf16.mxu0 0
      %717 = vmatpush1.bf16.xpose.msra.mxu0 0
      %718 = vmatprep.subr.bf16.mxu0 0
      %719 = vmatpush1.bf16.xpose.msra.mxu0 0
      %720 = vmatprep.subr.bf16.mxu0 0
      %721 = vmatpush1.bf16.xpose.msra.mxu0 0
      %722 = vmatprep.subr.bf16.mxu0 0
      %723 = vmatpush1.bf16.xpose.msra.mxu0 0
      %724 = vmatprep.subr.bf16.mxu0 0
      %725 = vmatpush1.bf16.xpose.msra.mxu0 0
      %726 = vmatprep.subr.bf16.mxu0 0
      %727 = vmatpush1.bf16.xpose.msra.mxu0 0
      %728 = vmatprep.subr.bf16.mxu0 0
      %729 = vmatpush1.bf16.xpose.msra.mxu0 0
      %730 = vmatprep.subr.bf16.mxu0 0
      %731 = vmatpush1.bf16.xpose.msra.mxu0 0
      %732 = vmatprep.subr.bf16.mxu0 0
      %733 = vmatpush1.bf16.xpose.msra.mxu0 0
      %734 = vmatprep.subr.bf16.mxu0 0
      %735 = vmatpush1.bf16.xpose.msra.mxu0 0
      %736 = vmatprep.subr.bf16.mxu0 0
      %737 = vmatpush1.bf16.xpose.msra.mxu0 0
      %738 = vmatprep.subr.bf16.mxu0 0
      %739 = vmatpush1.bf16.xpose.msra.mxu0 0
      %740 = vmatprep.subr.bf16.mxu0 0
      %741 = vmatpush1.bf16.xpose.msra.mxu0 0
      %742 = vmatprep.mubr.bf16.mxu0 0
      %743 = vmatmul.mubr.bf16.gmra.mrb[0].mxu0 %v705
      %v744 = vpop.f32.mrb[0].mxu0
      %v745 = vadd.f32 0.0, %v744
      %v746 = vpop.f32.mrb[0].mxu0
      %v747 = vpop.f32.mrb[0].mxu0
      %v748 = vpop.f32.mrb[0].mxu0
      %749 = vdwg.mxu0
      %v750 = vmul.f32 %v745, 0.35355338
      %v751 = vsel %vm636, -1e+09, %v750
      %v752 = vsel %vm582, %v751, -inf
      %753 = vmax.xlane.f32.xlu0 %v752
      %v754 = vpop.xlane.xlu0 %753
      %v755 = vsub.f32 %v751, %v754
      %v756 = vmul.f32 %v755, 1.442695
      %v757 = vpow.pop %v756
      %v758 = vsel %vm582, %v757, 0.0
      %759 = vadd.xlane.f32.xlu0 %v758
      %v760 = vpop.xlane.xlu0 %759
      %v761 = vrcp.pop %v760
      %v762 = vmul.f32 %v757, %v761
      %v763 = vsel %vm636, 0.0, %v762
      %v764 = vpack.c.bf16 %v763, %v763
      %765 = vrot.lane.b32.xlu0 %v578, 56
      %v766 = vpop.permute.xlu0 %765
      %v768 = vsel %vm582, %v764, 0
      %v771 = vsel %vm656, %v766, 0
      %773 = vmatprep.subr.bf16.mxu0 0
      %774 = vmatpush1.bf16.msra.mxu0 %v771
      %775 = vmatprep.subr.bf16.mxu0 0
      %776 = vmatpush1.bf16.msra.mxu0 0
      %777 = vmatprep.subr.bf16.mxu0 0
      %778 = vmatpush1.bf16.msra.mxu0 0
      %779 = vmatprep.subr.bf16.mxu0 0
      %780 = vmatpush1.bf16.msra.mxu0 0
      %781 = vmatprep.subr.bf16.mxu0 0
      %782 = vmatpush1.bf16.msra.mxu0 0
      %783 = vmatprep.subr.bf16.mxu0 0
      %784 = vmatpush1.bf16.msra.mxu0 0
      %785 = vmatprep.subr.bf16.mxu0 0
      %786 = vmatpush1.bf16.msra.mxu0 0
      %787 = vmatprep.subr.bf16.mxu0 0
      %788 = vmatpush1.bf16.msra.mxu0 0
      %789 = vmatprep.subr.bf16.mxu0 0
      %790 = vmatpush1.bf16.msra.mxu0 0
      %791 = vmatprep.subr.bf16.mxu0 0
      %792 = vmatpush1.bf16.msra.mxu0 0
      %793 = vmatprep.subr.bf16.mxu0 0
      %794 = vmatpush1.bf16.msra.mxu0 0
      %795 = vmatprep.subr.bf16.mxu0 0
      %796 = vmatpush1.bf16.msra.mxu0 0
      %797 = vmatprep.subr.bf16.mxu0 0
      %798 = vmatpush1.bf16.msra.mxu0 0
      %799 = vmatprep.subr.bf16.mxu0 0
      %800 = vmatpush1.bf16.msra.mxu0 0
      %801 = vmatprep.subr.bf16.mxu0 0
      %802 = vmatpush1.bf16.msra.mxu0 0
      %803 = vmatprep.subr.bf16.mxu0 0
      %804 = vmatpush1.bf16.msra.mxu0 0
      %805 = vmatprep.mubr.bf16.mxu0 0
      %806 = vmatmul.mubr.bf16.gmra.mrb[0].mxu0 %v768
      %v807 = vpop.f32.mrb[0].mxu0
      %v808 = vadd.f32 0.0, %v807
      %v809 = vpop.f32.mrb[0].mxu0
      %v810 = vpop.f32.mrb[0].mxu0
      %v811 = vpop.f32.mrb[0].mxu0
      %812 = vdwg.mxu0
      %813 = vrot.lane.b32.xlu0 %v578, 112
      %v814 = vpop.permute.xlu0 %813
      %815 = vrot.lane.b32.xlu0 %v578, 80
      %v816 = vpop.permute.xlu0 %815
      %v818 = vsel %vm582, %v814, 0
      %v821 = vsel %vm582, %v816, 0
      %823 = vmatprep.subr.bf16.mxu0 0
      %824 = vmatpush1.bf16.xpose.msra.mxu0 %v821
      %825 = vmatprep.subr.bf16.mxu0 0
      %826 = vmatpush1.bf16.xpose.msra.mxu0 0
      %827 = vmatprep.subr.bf16.mxu0 0
      %828 = vmatpush1.bf16.xpose.msra.mxu0 0
      %829 = vmatprep.subr.bf16.mxu0 0
      %830 = vmatpush1.bf16.xpose.msra.mxu0 0
      %831 = vmatprep.subr.bf16.mxu0 0
      %832 = vmatpush1.bf16.xpose.msra.mxu0 0
      %833 = vmatprep.subr.bf16.mxu0 0
      %834 = vmatpush1.bf16.xpose.msra.mxu0 0
      %835 = vmatprep.subr.bf16.mxu0 0
      %836 = vmatpush1.bf16.xpose.msra.mxu0 0
      %837 = vmatprep.subr.bf16.mxu0 0
      %838 = vmatpush1.bf16.xpose.msra.mxu0 0
      %839 = vmatprep.subr.bf16.mxu0 0
      %840 = vmatpush1.bf16.xpose.msra.mxu0 0
      %841 = vmatprep.subr.bf16.mxu0 0
      %842 = vmatpush1.bf16.xpose.msra.mxu0 0
      %843 = vmatprep.subr.bf16.mxu0 0
      %844 = vmatpush1.bf16.xpose.msra.mxu0 0
      %845 = vmatprep.subr.bf16.mxu0 0
      %846 = vmatpush1.bf16.xpose.msra.mxu0 0
      %847 = vmatprep.subr.bf16.mxu0 0
      %848 = vmatpush1.bf16.xpose.msra.mxu0 0
      %849 = vmatprep.subr.bf16.mxu0 0
      %850 = vmatpush1.bf16.xpose.msra.mxu0 0
      %851 = vmatprep.subr.bf16.mxu0 0
      %852 = vmatpush1.bf16.xpose.msra.mxu0 0
      %853 = vmatprep.subr.bf16.mxu0 0
      %854 = vmatpush1.bf16.xpose.msra.mxu0 0
      %855 = vmatprep.mubr.bf16.mxu0 0
      %856 = vmatmul.mubr.bf16.gmra.mrb[0].mxu0 %v818
      %v857 = vpop.f32.mrb[0].mxu0
      %v858 = vadd.f32 0.0, %v857
      %v859 = vpop.f32.mrb[0].mxu0
      %v860 = vpop.f32.mrb[0].mxu0
      %v861 = vpop.f32.mrb[0].mxu0
      %862 = vdwg.mxu0
      %v863 = vmul.f32 %v858, 0.35355338
      %v864 = vsel %vm636, -1e+09, %v863
      %v865 = vsel %vm582, %v864, -inf
      %866 = vmax.xlane.f32.xlu0 %v865
      %v867 = vpop.xlane.xlu0 %866
      %v868 = vsub.f32 %v864, %v867
      %v869 = vmul.f32 %v868, 1.442695
      %v870 = vpow.pop %v869
      %v871 = vsel %vm582, %v870, 0.0
      %872 = vadd.xlane.f32.xlu0 %v871
      %v873 = vpop.xlane.xlu0 %872
      %v874 = vrcp.pop %v873
      %v875 = vmul.f32 %v870, %v874
      %v876 = vsel %vm636, 0.0, %v875
      %v877 = vpack.c.bf16 %v876, %v876
      %878 = vrot.lane.b32.xlu0 %v578, 48
      %v879 = vpop.permute.xlu0 %878
      %v881 = vsel %vm582, %v877, 0
      %v884 = vsel %vm656, %v879, 0
      %886 = vmatprep.subr.bf16.mxu0 0
      %887 = vmatpush1.bf16.msra.mxu0 %v884
      %888 = vmatprep.subr.bf16.mxu0 0
      %889 = vmatpush1.bf16.msra.mxu0 0
      %890 = vmatprep.subr.bf16.mxu0 0
      %891 = vmatpush1.bf16.msra.mxu0 0
      %892 = vmatprep.subr.bf16.mxu0 0
      %893 = vmatpush1.bf16.msra.mxu0 0
      %894 = vmatprep.subr.bf16.mxu0 0
      %895 = vmatpush1.bf16.msra.mxu0 0
      %896 = vmatprep.subr.bf16.mxu0 0
      %897 = vmatpush1.bf16.msra.mxu0 0
      %898 = vmatprep.subr.bf16.mxu0 0
      %899 = vmatpush1.bf16.msra.mxu0 0
      %900 = vmatprep.subr.bf16.mxu0 0
      %901 = vmatpush1.bf16.msra.mxu0 0
      %902 = vmatprep.subr.bf16.mxu0 0
      %903 = vmatpush1.bf16.msra.mxu0 0
      %904 = vmatprep.subr.bf16.mxu0 0
      %905 = vmatpush1.bf16.msra.mxu0 0
      %906 = vmatprep.subr.bf16.mxu0 0
      %907 = vmatpush1.bf16.msra.mxu0 0
      %908 = vmatprep.subr.bf16.mxu0 0
      %909 = vmatpush1.bf16.msra.mxu0 0
      %910 = vmatprep.subr.bf16.mxu0 0
      %911 = vmatpush1.bf16.msra.mxu0 0
      %912 = vmatprep.subr.bf16.mxu0 0
      %913 = vmatpush1.bf16.msra.mxu0 0
      %914 = vmatprep.subr.bf16.mxu0 0
      %915 = vmatpush1.bf16.msra.mxu0 0
      %916 = vmatprep.subr.bf16.mxu0 0
      %917 = vmatpush1.bf16.msra.mxu0 0
      %918 = vmatprep.mubr.bf16.mxu0 0
      %919 = vmatmul.mubr.bf16.gmra.mrb[0].mxu0 %v881
      %v920 = vpop.f32.mrb[0].mxu0
      %v921 = vadd.f32 0.0, %v920
      %v922 = vpop.f32.mrb[0].mxu0
      %v923 = vpop.f32.mrb[0].mxu0
      %v924 = vpop.f32.mrb[0].mxu0
      %925 = vdwg.mxu0
      %926 = vrot.lane.b32.xlu0 %v578, 104
      %v927 = vpop.permute.xlu0 %926
      %928 = vrot.lane.b32.xlu0 %v578, 72
      %v929 = vpop.permute.xlu0 %928
      %v931 = vsel %vm582, %v927, 0
      %v934 = vsel %vm582, %v929, 0
      %936 = vmatprep.subr.bf16.mxu0 0
      %937 = vmatpush1.bf16.xpose.msra.mxu0 %v934
      %938 = vmatprep.subr.bf16.mxu0 0
      %939 = vmatpush1.bf16.xpose.msra.mxu0 0
      %940 = vmatprep.subr.bf16.mxu0 0
      %941 = vmatpush1.bf16.xpose.msra.mxu0 0
      %942 = vmatprep.subr.bf16.mxu0 0
      %943 = vmatpush1.bf16.xpose.msra.mxu0 0
      %944 = vmatprep.subr.bf16.mxu0 0
      %945 = vmatpush1.bf16.xpose.msra.mxu0 0
      %946 = vmatprep.subr.bf16.mxu0 0
      %947 = vmatpush1.bf16.xpose.msra.mxu0 0
      %948 = vmatprep.subr.bf16.mxu0 0
      %949 = vmatpush1.bf16.xpose.msra.mxu0 0
      %950 = vmatprep.subr.bf16.mxu0 0
      %951 = vmatpush1.bf16.xpose.msra.mxu0 0
      %952 = vmatprep.subr.bf16.mxu0 0
      %953 = vmatpush1.bf16.xpose.msra.mxu0 0
      %954 = vmatprep.subr.bf16.mxu0 0
      %955 = vmatpush1.bf16.xpose.msra.mxu0 0
      %956 = vmatprep.subr.bf16.mxu0 0
      %957 = vmatpush1.bf16.xpose.msra.mxu0 0
      %958 = vmatprep.subr.bf16.mxu0 0
      %959 = vmatpush1.bf16.xpose.msra.mxu0 0
      %960 = vmatprep.subr.bf16.mxu0 0
      %961 = vmatpush1.bf16.xpose.msra.mxu0 0
      %962 = vmatprep.subr.bf16.mxu0 0
      %963 = vmatpush1.bf16.xpose.msra.mxu0 0
      %964 = vmatprep.subr.bf16.mxu0 0
      %965 = vmatpush1.bf16.xpose.msra.mxu0 0
      %966 = vmatprep.subr.bf16.mxu0 0
      %967 = vmatpush1.bf16.xpose.msra.mxu0 0
      %968 = vmatprep.mubr.bf16.mxu0 0
      %969 = vmatmul.mubr.bf16.gmra.mrb[0].mxu0 %v931
      %v970 = vpop.f32.mrb[0].mxu0
      %v971 = vadd.f32 0.0, %v970
      %v972 = vpop.f32.mrb[0].mxu0
      %v973 = vpop.f32.mrb[0].mxu0
      %v974 = vpop.f32.mrb[0].mxu0
      %975 = vdwg.mxu0
      %v976 = vmul.f32 %v971, 0.35355338
      %v977 = vsel %vm636, -1e+09, %v976
      %v978 = vsel %vm582, %v977, -inf
      %979 = vmax.xlane.f32.xlu0 %v978
      %v980 = vpop.xlane.xlu0 %979
      %v981 = vsub.f32 %v977, %v980
      %v982 = vmul.f32 %v981, 1.442695
      %v983 = vpow.pop %v982
      %v984 = vsel %vm582, %v983, 0.0
      %985 = vadd.xlane.f32.xlu0 %v984
      %v986 = vpop.xlane.xlu0 %985
      %v987 = vrcp.pop %v986
      %v988 = vmul.f32 %v983, %v987
      %v989 = vsel %vm636, 0.0, %v988
      %v990 = vpack.c.bf16 %v989, %v989
      %991 = vrot.lane.b32.xlu0 %v578, 40
      %v992 = vpop.permute.xlu0 %991
      %v994 = vsel %vm582, %v990, 0
      %v997 = vsel %vm656, %v992, 0
      %999 = vmatprep.subr.bf16.mxu0 0
      %1000 = vmatpush1.bf16.msra.mxu0 %v997
      %1001 = vmatprep.subr.bf16.mxu0 0
      %1002 = vmatpush1.bf16.msra.mxu0 0
      %1003 = vmatprep.subr.bf16.mxu0 0
      %1004 = vmatpush1.bf16.msra.mxu0 0
      %1005 = vmatprep.subr.bf16.mxu0 0
      %1006 = vmatpush1.bf16.msra.mxu0 0
      %1007 = vmatprep.subr.bf16.mxu0 0
      %1008 = vmatpush1.bf16.msra.mxu0 0
      %1009 = vmatprep.subr.bf16.mxu0 0
      %1010 = vmatpush1.bf16.msra.mxu0 0
      %1011 = vmatprep.subr.bf16.mxu0 0
      %1012 = vmatpush1.bf16.msra.mxu0 0
      %1013 = vmatprep.subr.bf16.mxu0 0
      %1014 = vmatpush1.bf16.msra.mxu0 0
      %1015 = vmatprep.subr.bf16.mxu0 0
      %1016 = vmatpush1.bf16.msra.mxu0 0
      %1017 = vmatprep.subr.bf16.mxu0 0
      %1018 = vmatpush1.bf16.msra.mxu0 0
      %1019 = vmatprep.subr.bf16.mxu0 0
      %1020 = vmatpush1.bf16.msra.mxu0 0
      %1021 = vmatprep.subr.bf16.mxu0 0
      %1022 = vmatpush1.bf16.msra.mxu0 0
      %1023 = vmatprep.subr.bf16.mxu0 0
      %1024 = vmatpush1.bf16.msra.mxu0 0
      %1025 = vmatprep.subr.bf16.mxu0 0
      %1026 = vmatpush1.bf16.msra.mxu0 0
      %1027 = vmatprep.subr.bf16.mxu0 0
      %1028 = vmatpush1.bf16.msra.mxu0 0
      %1029 = vmatprep.subr.bf16.mxu0 0
      %1030 = vmatpush1.bf16.msra.mxu0 0
      %1031 = vmatprep.mubr.bf16.mxu0 0
      %1032 = vmatmul.mubr.bf16.gmra.mrb[0].mxu0 %v994
      %v1033 = vpop.f32.mrb[0].mxu0
      %v1034 = vadd.f32 0.0, %v1033
      %v1035 = vpop.f32.mrb[0].mxu0
      %v1036 = vpop.f32.mrb[0].mxu0
      %v1037 = vpop.f32.mrb[0].mxu0
      %1038 = vdwg.mxu0
      %1040 = vrot.lane.b32.xlu0 %v808, 8
      %v1041 = vpop.permute.xlu0 %1040
      %1044 = vrot.lane.b32.xlu0 %v921, 16
      %v1045 = vpop.permute.xlu0 %1044
      %1048 = vrot.lane.b32.xlu0 %v1034, 24
      %v1049 = vpop.permute.xlu0 %1048
      %v1051 = vsel %vm582, %v695, %v1041
      %vm1052 = vcmask 130048
      %v1053 = vsel %vm1052, %v1051, %v1045
      %vm1054 = vcmask 195584
      %v1055 = vsel %vm1054, %v1053, %v1049
      %v1056 = vld [vmem:[%s6] sm:$0xf]
      %v1057 = vld [vmem:[%s6 + $0x4] sm:$0xf]
      %v1058 = vld [vmem:[%s6 + $0x8] sm:$0xf]
      %v1059 = vld [vmem:[%s6 + $0xc] sm:$0xf]
      %v1060 = vpack.c.bf16 %v1055, %v1055
      %v1061 = vld [vmem:[%s7] sm:$0x1]
      %v1063 = vlaneseq
      %v1064 = vshrl.u32 %v1063, 7
      %v1065 = vsub.s32 0, %v1064
      %v1066 = vrot.slane %v1061, %v1065
      %v1072 = vunpack.c.l.b16 %v1056
      %v1073 = vunpack.c.l.b16 %v1057
      %v1074 = vunpack.c.l.b16 %v1058
      %v1075 = vunpack.c.l.b16 %v1059
      %v1076 = vpack.c.b16 %v1073, %v1072
      %v1077 = vpack.c.b16 %v1075, %v1074
      %v1081 = vsel %vm482, %v1060, 0
      %1083 = vmatprep.subr.bf16.mxu0 0
      %1084 = vmatpush1.bf16.msra.mxu0 %v1076
      %1085 = vmatprep.subr.bf16.mxu0 0
      %1086 = vmatpush1.bf16.msra.mxu0 %v1077
      %1087 = vmatprep.subr.bf16.mxu0 0
      %1088 = vmatpush1.bf16.msra.mxu0 0
      %1089 = vmatprep.subr.bf16.mxu0 0
      %1090 = vmatpush1.bf16.msra.mxu0 0
      %1091 = vmatprep.subr.bf16.mxu0 0
      %1092 = vmatpush1.bf16.msra.mxu0 0
      %1093 = vmatprep.subr.bf16.mxu0 0
      %1094 = vmatpush1.bf16.msra.mxu0 0
      %1095 = vmatprep.subr.bf16.mxu0 0
      %1096 = vmatpush1.bf16.msra.mxu0 0
      %1097 = vmatprep.subr.bf16.mxu0 0
      %1098 = vmatpush1.bf16.msra.mxu0 0
      %1099 = vmatprep.subr.bf16.mxu0 0
      %1100 = vmatpush1.bf16.msra.mxu0 0
      %1101 = vmatprep.subr.bf16.mxu0 0
      %1102 = vmatpush1.bf16.msra.mxu0 0
      %1103 = vmatprep.subr.bf16.mxu0 0
      %1104 = vmatpush1.bf16.msra.mxu0 0
      %1105 = vmatprep.subr.bf16.mxu0 0
      %1106 = vmatpush1.bf16.msra.mxu0 0
      %1107 = vmatprep.subr.bf16.mxu0 0
      %1108 = vmatpush1.bf16.msra.mxu0 0
      %1109 = vmatprep.subr.bf16.mxu0 0
      %1110 = vmatpush1.bf16.msra.mxu0 0
      %1111 = vmatprep.subr.bf16.mxu0 0
      %1112 = vmatpush1.bf16.msra.mxu0 0
      %1113 = vmatprep.subr.bf16.mxu0 0
      %1114 = vmatpush1.bf16.msra.mxu0 0
      %1115 = vmatprep.mubr.bf16.mxu0 0
      %1116 = vmatmul.mubr.bf16.gmra.mrb[0].mxu0 %v1081
      %v1117 = vpop.f32.mrb[0].mxu0
      %v1118 = vadd.f32 %v1066, %v1117
      %v1119 = vpop.f32.mrb[0].mxu0
      %v1120 = vpop.f32.mrb[0].mxu0
      %v1121 = vpop.f32.mrb[0].mxu0
      %1122 = vdwg.mxu0
      %v1123 = vadd.f32 %v478, %v1118
      %v1124 = vld [vmem:[%s8] sm:$0x1]
      %v1125 = vld [vmem:[%s9] sm:$0x1]
      %v1126 = vsel %vm482, %v1123, 0.0
      %1127 = vadd.xlane.f32.xlu0 %v1126
      %v1128 = vpop.xlane.xlu0 %1127
      %v1129 = vmul.f32 %v1128, %v486
      %v1130 = vsub.f32 %v1123, %v1129
      %v1131 = vmul.f32 %v1130, %v1130
      %v1132 = vsel %vm482, %v1131, 0.0
      %1133 = vadd.xlane.f32.xlu0 %v1132
      %v1134 = vpop.xlane.xlu0 %1133
      %v1135 = vmul.f32 %v1134, %v486
      %v1136 = vadd.f32 %v1135, 1e-06
      %v1137 = vrsqrt.pop %v1136
      %v1138 = vmul.f32 %v1130, %v1137
      %v1140 = vlaneseq
      %v1141 = vshrl.u32 %v1140, 7
      %v1142 = vsub.s32 0, %v1141
      %v1143 = vrot.slane %v1124, %v1142
      %v1145 = vmul.f32 %v1138, %v1143
      %v1147 = vlaneseq
      %v1148 = vshrl.u32 %v1147, 7
      %v1149 = vsub.s32 0, %v1148
      %v1150 = vrot.slane %v1125, %v1149
      %v1152 = vadd.f32 %v1145, %v1150
      %v1153 = vld [vmem:[%s10] sm:$0xf]
      %v1154 = vld [vmem:[%s10 + $0x4] sm:$0xf]
      %v1155 = vld [vmem:[%s10 + $0x8] sm:$0xf]
      %v1156 = vld [vmem:[%s10 + $0xc] sm:$0xf]
      %v1157 = vpack.c.bf16 %v1152, %v1152
      %v1158 = vld [vmem:[%s11] sm:$0x1]
      %v1160 = vlaneseq
      %v1161 = vshrl.u32 %v1160, 7
      %v1162 = vsub.s32 0, %v1161
      %v1163 = vrot.slane %v1158, %v1162
      %v1169 = vunpack.c.l.b16 %v1153
      %v1170 = vunpack.c.l.b16 %v1154
      %v1171 = vunpack.c.l.b16 %v1155
      %v1172 = vunpack.c.l.b16 %v1156
      %v1173 = vpack.c.b16 %v1170, %v1169
      %v1174 = vpack.c.b16 %v1172, %v1171
      %v1178 = vsel %vm482, %v1157, 0
      %1180 = vmatprep.subr.bf16.mxu0 0
      %1181 = vmatpush1.bf16.msra.mxu0 %v1173
      %1182 = vmatprep.subr.bf16.mxu0 0
      %1183 = vmatpush1.bf16.msra.mxu0 %v1174
      %1184 = vmatprep.subr.bf16.mxu0 0
      %1185 = vmatpush1.bf16.msra.mxu0 0
      %1186 = vmatprep.subr.bf16.mxu0 0
      %1187 = vmatpush1.bf16.msra.mxu0 0
      %1188 = vmatprep.subr.bf16.mxu0 0
      %1189 = vmatpush1.bf16.msra.mxu0 0
      %1190 = vmatprep.subr.bf16.mxu0 0
      %1191 = vmatpush1.bf16.msra.mxu0 0
      %1192 = vmatprep.subr.bf16.mxu0 0
      %1193 = vmatpush1.bf16.msra.mxu0 0
      %1194 = vmatprep.subr.bf16.mxu0 0
      %1195 = vmatpush1.bf16.msra.mxu0 0
      %1196 = vmatprep.subr.bf16.mxu0 0
      %1197 = vmatpush1.bf16.msra.mxu0 0
      %1198 = vmatprep.subr.bf16.mxu0 0
      %1199 = vmatpush1.bf16.msra.mxu0 0
      %1200 = vmatprep.subr.bf16.mxu0 0
      %1201 = vmatpush1.bf16.msra.mxu0 0
      %1202 = vmatprep.subr.bf16.mxu0 0
      %1203 = vmatpush1.bf16.msra.mxu0 0
      %1204 = vmatprep.subr.bf16.mxu0 0
      %1205 = vmatpush1.bf16.msra.mxu0 0
      %1206 = vmatprep.subr.bf16.mxu0 0
      %1207 = vmatpush1.bf16.msra.mxu0 0
      %1208 = vmatprep.subr.bf16.mxu0 0
      %1209 = vmatpush1.bf16.msra.mxu0 0
      %1210 = vmatprep.subr.bf16.mxu0 0
      %1211 = vmatpush1.bf16.msra.mxu0 0
      %1212 = vmatprep.mubr.bf16.mxu0 0
      %1213 = vmatmul.mubr.bf16.gmra.mrb[0].mxu0 %v1178
      %v1214 = vpop.f32.mrb[0].mxu0
      %v1215 = vadd.f32 %v1163, %v1214
      %v1216 = vpop.f32.mrb[0].mxu0
      %v1217 = vpop.f32.mrb[0].mxu0
      %v1218 = vpop.f32.mrb[0].mxu0
      %1219 = vdwg.mxu0
      %v1220 = vmax.f32 %v1215, 0.0
      %v1221 = vld [vmem:[%s12] sm:$0xf]
      %v1222 = vld [vmem:[%s12 + $0x4] sm:$0xf]
      %v1223 = vld [vmem:[%s12 + $0x8] sm:$0xf]
      %v1224 = vld [vmem:[%s12 + $0xc] sm:$0xf]
      %v1225 = vld [vmem:[%s12 + $0x10] sm:$0xf]
      %v1226 = vld [vmem:[%s12 + $0x14] sm:$0xf]
      %v1227 = vld [vmem:[%s12 + $0x18] sm:$0xf]
      %v1228 = vld [vmem:[%s12 + $0x1c] sm:$0xf]
      %v1229 = vpack.c.bf16 %v1220, %v1220
      %v1230 = vld [vmem:[%s13] sm:$0x1]
      %v1232 = vlaneseq
      %v1233 = vshrl.u32 %v1232, 7
      %v1234 = vsub.s32 0, %v1233
      %v1235 = vrot.slane %v1230, %v1234
      %v1245 = vunpack.c.l.b16 %v1221
      %v1246 = vunpack.c.l.b16 %v1222
      %v1247 = vunpack.c.l.b16 %v1223
      %v1248 = vunpack.c.l.b16 %v1224
      %v1249 = vunpack.c.l.b16 %v1225
      %v1250 = vunpack.c.l.b16 %v1226
      %v1251 = vunpack.c.l.b16 %v1227
      %v1252 = vunpack.c.l.b16 %v1228
      %v1253 = vpack.c.b16 %v1246, %v1245
      %v1254 = vpack.c.b16 %v1248, %v1247
      %v1255 = vpack.c.b16 %v1250, %v1249
      %v1256 = vpack.c.b16 %v1252, %v1251
      %vm1261 = vcmask 523264
      %v1263 = vsel %vm1261, %v1229, 0
      %1265 = vmatprep.subr.bf16.mxu0 0
      %1266 = vmatpush1.bf16.msra.mxu0 %v1253
      %1267 = vmatprep.subr.bf16.mxu0 0
      %1268 = vmatpush1.bf16.msra.mxu0 %v1254
      %1269 = vmatprep.subr.bf16.mxu0 0
      %1270 = vmatpush1.bf16.msra.mxu0 %v1255
      %1271 = vmatprep.subr.bf16.mxu0 0
      %1272 = vmatpush1.bf16.msra.mxu0 %v1256
      %1273 = vmatprep.subr.bf16.mxu0 0
      %1274 = vmatpush1.bf16.msra.mxu0 0
      %1275 = vmatprep.subr.bf16.mxu0 0
      %1276 = vmatpush1.bf16.msra.mxu0 0
      %1277 = vmatprep.subr.bf16.mxu0 0
      %1278 = vmatpush1.bf16.msra.mxu0 0
      %1279 = vmatprep.subr.bf16.mxu0 0
      %1280 = vmatpush1.bf16.msra.mxu0 0
      %1281 = vmatprep.subr.bf16.mxu0 0
      %1282 = vmatpush1.bf16.msra.mxu0 0
      %1283 = vmatprep.subr.bf16.mxu0 0
      %1284 = vmatpush1.bf16.msra.mxu0 0
      %1285 = vmatprep.subr.bf16.mxu0 0
      %1286 = vmatpush1.bf16.msra.mxu0 0
      %1287 = vmatprep.subr.bf16.mxu0 0
      %1288 = vmatpush1.bf16.msra.mxu0 0
      %1289 = vmatprep.subr.bf16.mxu0 0
      %1290 = vmatpush1.bf16.msra.mxu0 0
      %1291 = vmatprep.subr.bf16.mxu0 0
      %1292 = vmatpush1.bf16.msra.mxu0 0
      %1293 = vmatprep.subr.bf16.mxu0 0
      %1294 = vmatpush1.bf16.msra.mxu0 0
      %1295 = vmatprep.subr.bf16.mxu0 0
      %1296 = vmatpush1.bf16.msra.mxu0 0
      %1297 = vmatprep.mubr.bf16.mxu0 0
      %1298 = vmatmul.mubr.bf16.gmra.mrb[0].mxu0 %v1263
      %v1299 = vpop.f32.mrb[0].mxu0
      %v1300 = vadd.f32 %v1235, %v1299
      %v1301 = vpop.f32.mrb[0].mxu0
      %v1302 = vpop.f32.mrb[0].mxu0
      %v1303 = vpop.f32.mrb[0].mxu0
      %1304 = vdwg.mxu0
      %v1305 = vadd.f32 %v1123, %v1300
      %1306 = vst.msk [vmem:[%s476] sm:$0xff] %vm482, %v1305
      %p1307 = scmp.lt.s32.totalorder %s25, 1
      %s1308 = scalar_select %p1307, %s25, 1
      %s1309 = smul.addr %s1308, 8
      %s1310 = scalar_lea.vmem %s14, %s1309
      // Predicated region
      $region77: #{fwd.16} parent=75 // pred_check
        %p1311 = pneg %p347
      $region78: #{fwd.16} parent=75 // pred_check_branch
        %1313 = sbr.rel (%p1311) target = $region80
      $region79: #{fwd.16} parent=75 // pred_region
        _
      $region80: #{fwd.16} parent=75 // pred_fallthru
        _
    $region76: #{fwd.16} parent=5 // pred_fallthru
      _
    %p1314 = scmp.le.s32.totalorder 2, %s20
    // Predicated region
    $region81: #{fwd.16} parent=5 // pred_check
      %p1315 = pneg %p1314
    $region82: #{fwd.16} parent=5 // pred_check_branch
      %1317 = sbr.rel (%p1315) target = $region84
    $region83: #{fwd.16} parent=5 // pred_region
      %s1318 = ssub.s32 %s20, 2
      // Predicated region
      $region85: #{fwd.16} parent=83 // pred_check
        %p1319 = pneg %p353
      $region86: #{fwd.16} parent=83 // pred_check_branch
        %1321 = sbr.rel (%p1319) target = $region88
      $region87: #{fwd.16} parent=83 // pred_region
        %p1322 = scmp.lt.s32.totalorder %s26, 1
        %s1323 = scalar_select %p1322, %s26, 1
        %s1324 = smul.addr %s1323, 8
        %s1325 = scalar_lea.vmem %s14, %s1324
      $region88: #{fwd.16} parent=83 // pred_fallthru
        _
    $region84: #{fwd.16} parent=5 // pred_fallthru
      _
  $region6: #{fwd.16} parent=0 // loop_footer
    %s24 = sadd.s32 1, %s20
  $region7: #{fwd.16} parent=0 // loop_footer_branch
    %19 = sbr.rel target = $region3
  $region8: #{fwd.16} parent=0 // loop_exit
    _

// kernel: fwd.21
$region0: #{fwd.21}
  #allocation0 [shape = 'u32[]', space=smem, size = 0x4, offset = 0x4, fixed_abs, tag = 'smem constant byte address 0x4 - core index']
  #allocation1 [shape = 'u32[144,128]{1,0:T(1,128)}', space=vmem, size = 0x12000, scoped, tag = 'internal scratch']
  #allocation2 [shape = 'f32[1,1]{1,0:T(1,128)S(1)}', space=vmem, size = 0x200, scoped, tag = 'scoped memory for fwd.21']
  %s0 = inlined_call_operand.vmem [shape: f32[10,67], index: 0, kind: input, shape index: {}]
  %s1 = inlined_call_operand.vmem [shape: s32[10,1], index: 1, kind: input, shape index: {}]
  %s2 = inlined_call_operand.vmem [shape: bf16[67,64], index: 2, kind: input, shape index: {}]
  %s3 = inlined_call_operand.vmem [shape: f32[1,64], index: 3, kind: input, shape index: {}]
  %s4 = inlined_call_operand.vmem [shape: f32[1,64], index: 4, kind: input, shape index: {}]
  %s5 = inlined_call_operand.vmem [shape: f32[1,64], index: 5, kind: input, shape index: {}]
  %s6 = inlined_call_operand.vmem [shape: bf16[8,64,67], index: 6, kind: input, shape index: {}]
  %s7 = inlined_call_operand.vmem [shape: f32[8,1,67], index: 7, kind: input, shape index: {}]
  %s8 = inlined_call_operand.vmem [shape: f32[8,1,67], index: 8, kind: input, shape index: {}]
  %s9 = inlined_call_operand.vmem [shape: f32[8,1,67], index: 9, kind: input, shape index: {}]
  %s10 = inlined_call_operand.vmem [shape: bf16[67,16], index: 10, kind: input, shape index: {}]
  %s11 = inlined_call_operand.vmem [shape: f32[1,16], index: 11, kind: input, shape index: {}]
  %s12 = inlined_call_operand.vmem [shape: f32[1,16], index: 12, kind: input, shape index: {}]
  %s13 = inlined_call_operand.vmem [shape: f32[1,16], index: 13, kind: input, shape index: {}]
  %s14 = inlined_call_operand.vmem [shape: bf16[16,1], index: 14, kind: input, shape index: {}]
  %s15 = inlined_call_operand.<no memory space> [shape: f32[1,1], index: 15, kind: input, shape index: {}]
  %s16 = inlined_call_operand.vmem [shape: f32[10,1], index: 16, kind: output, shape index: {}]
  %s17 = sld [smem:[#allocation0]]
  $region74: #{fwd.21} parent=0
    _
  %s19 = ssub.s32 1, %s17
  %s20 = scalar_select 0, %s19, %s17
  %v21 = vstv %s15
  %22 = vst [vmem:[#allocation2] sm:$0x1] %v21
  // Predicated region
  $region2: #{fwd.21} parent=0 // pred_check
    _
  $region3: #{fwd.21} parent=0 // pred_check_branch
    %24 = sbr.rel (0) target = $region5
  $region4: #{fwd.21} parent=0 // pred_region
    _
  $region5: #{fwd.21} parent=0 // pred_fallthru
    _
  // Predicated region
  $region6: #{fwd.21} parent=0 // pred_check
    _
  $region7: #{fwd.21} parent=0 // pred_check_branch
    %26 = sbr.rel (0) target = $region9
  $region8: #{fwd.21} parent=0 // pred_region
    _
  $region9: #{fwd.21} parent=0 // pred_fallthru
    _
  // Predicated region
  $region10: #{fwd.21} parent=0 // pred_check
    _
  $region11: #{fwd.21} parent=0 // pred_check_branch
    %28 = sbr.rel (0) target = $region13
  $region12: #{fwd.21} parent=0 // pred_region
    _
  $region13: #{fwd.21} parent=0 // pred_fallthru
    _
  // Predicated region
  $region14: #{fwd.21} parent=0 // pred_check
    _
  $region15: #{fwd.21} parent=0 // pred_check_branch
    %30 = sbr.rel (0) target = $region17
  $region16: #{fwd.21} parent=0 // pred_region
    _
  $region17: #{fwd.21} parent=0 // pred_fallthru
    _
  // Predicated region
  $region18: #{fwd.21} parent=0 // pred_check
    _
  $region19: #{fwd.21} parent=0 // pred_check_branch
    %32 = sbr.rel (0) target = $region21
  $region20: #{fwd.21} parent=0 // pred_region
    _
  $region21: #{fwd.21} parent=0 // pred_fallthru
    _
  // Predicated region
  $region22: #{fwd.21} parent=0 // pred_check
    _
  $region23: #{fwd.21} parent=0 // pred_check_branch
    %34 = sbr.rel (0) target = $region25
  $region24: #{fwd.21} parent=0 // pred_region
    _
  $region25: #{fwd.21} parent=0 // pred_fallthru
    _
  // Predicated region
  $region26: #{fwd.21} parent=0 // pred_check
    _
  $region27: #{fwd.21} parent=0 // pred_check_branch
    %36 = sbr.rel (0) target = $region29
  $region28: #{fwd.21} parent=0 // pred_region
    _
  $region29: #{fwd.21} parent=0 // pred_fallthru
    _
  // Predicated region
  $region30: #{fwd.21} parent=0 // pred_check
    _
  $region31: #{fwd.21} parent=0 // pred_check_branch
    %38 = sbr.rel (0) target = $region33
  $region32: #{fwd.21} parent=0 // pred_region
    _
  $region33: #{fwd.21} parent=0 // pred_fallthru
    _
  // Predicated region
  $region34: #{fwd.21} parent=0 // pred_check
    _
  $region35: #{fwd.21} parent=0 // pred_check_branch
    %40 = sbr.rel (0) target = $region37
  $region36: #{fwd.21} parent=0 // pred_region
    _
  $region37: #{fwd.21} parent=0 // pred_fallthru
    _
  // Predicated region
  $region38: #{fwd.21} parent=0 // pred_check
    _
  $region39: #{fwd.21} parent=0 // pred_check_branch
    %42 = sbr.rel (0) target = $region41
  $region40: #{fwd.21} parent=0 // pred_region
    _
  $region41: #{fwd.21} parent=0 // pred_fallthru
    _
  // Predicated region
  $region42: #{fwd.21} parent=0 // pred_check
    _
  $region43: #{fwd.21} parent=0 // pred_check_branch
    %44 = sbr.rel (0) target = $region45
  $region44: #{fwd.21} parent=0 // pred_region
    _
  $region45: #{fwd.21} parent=0 // pred_fallthru
    _
  // Predicated region
  $region46: #{fwd.21} parent=0 // pred_check
    _
  $region47: #{fwd.21} parent=0 // pred_check_branch
    %46 = sbr.rel (0) target = $region49
  $region48: #{fwd.21} parent=0 // pred_region
    _
  $region49: #{fwd.21} parent=0 // pred_fallthru
    _
  // Predicated region
  $region50: #{fwd.21} parent=0 // pred_check
    _
  $region51: #{fwd.21} parent=0 // pred_check_branch
    %48 = sbr.rel (0) target = $region53
  $region52: #{fwd.21} parent=0 // pred_region
    _
  $region53: #{fwd.21} parent=0 // pred_fallthru
    _
  // Predicated region
  $region54: #{fwd.21} parent=0 // pred_check
    _
  $region55: #{fwd.21} parent=0 // pred_check_branch
    %50 = sbr.rel (0) target = $region57
  $region56: #{fwd.21} parent=0 // pred_region
    _
  $region57: #{fwd.21} parent=0 // pred_fallthru
    _
  // Predicated region
  $region58: #{fwd.21} parent=0 // pred_check
    _
  $region59: #{fwd.21} parent=0 // pred_check_branch
    %52 = sbr.rel (0) target = $region61
  $region60: #{fwd.21} parent=0 // pred_region
    _
  $region61: #{fwd.21} parent=0 // pred_fallthru
    _
  // Predicated region
  $region62: #{fwd.21} parent=0 // pred_check
    _
  $region63: #{fwd.21} parent=0 // pred_check_branch
    %54 = sbr.rel (0) target = $region65
  $region64: #{fwd.21} parent=0 // pred_region
    _
  $region65: #{fwd.21} parent=0 // pred_fallthru
    _
  %v56 = vld [vmem:[%s0] sm:$0xff]
  %v57 = vld [vmem:[%s0 + $0x8] sm:$0x3]
  %v58 = vld [vmem:[%s1] sm:$0xff]
  %v59 = vld [vmem:[%s1 + $0x8] sm:$0x3]
  %v60 = vld [vmem:[%s2] sm:$0xf]
  %v61 = vld [vmem:[%s2 + $0x4] sm:$0xf]
  %v62 = vld [vmem:[%s2 + $0x8] sm:$0xf]
  %v63 = vld [vmem:[%s2 + $0xc] sm:$0xf]
  %v64 = vld [vmem:[%s2 + $0x10] sm:$0xf]
  %v65 = vld [vmem:[%s2 + $0x14] sm:$0xf]
  %v66 = vld [vmem:[%s2 + $0x18] sm:$0xf]
  %v67 = vld [vmem:[%s2 + $0x1c] sm:$0xf]
  %v68 = vld [vmem:[%s2 + $0x20] sm:$0x3]
  %v69 = vpack.c.bf16 %v57, %v56
  %v70 = vld [vmem:[%s3] sm:$0x1]
  %v72 = vlaneseq
  %v73 = vshrl.u32 %v72, 7
  %v74 = vsub.s32 0, %v73
  %v75 = vrot.slane %v70, %v74
  %v86 = vunpack.c.l.b16 %v60
  %v87 = vunpack.c.l.b16 %v61
  %v88 = vunpack.c.l.b16 %v62
  %v89 = vunpack.c.l.b16 %v63
  %v90 = vunpack.c.l.b16 %v64
  %v91 = vunpack.c.l.b16 %v65
  %v92 = vunpack.c.l.b16 %v66
  %v93 = vunpack.c.l.b16 %v67
  %v94 = vunpack.c.l.b16 %v68
  %v95 = vpack.c.b16 %v87, %v86
  %v96 = vpack.c.b16 %v89, %v88
  %v97 = vpack.c.b16 %v91, %v90
  %v98 = vpack.c.b16 %v93, %v92
  %v99 = vpack.c.b16 %v94, %v94
  %vm104 = vcmask 547840
  %v106 = vsel %vm104, %v69, 0
  %vm108 = vcmask 1040384
  %vm109 = vcmask 1041408
  %v110 = vsel %vm108, 4294967295, 65535
  %v111 = vsel %vm109, %v110, 0
  %v113 = vand.u32 %v99, %v111
  %115 = vmatprep.subr.bf16.mxu0 0
  %116 = vmatpush1.bf16.msra.mxu0 %v95
  %117 = vmatprep.subr.bf16.mxu0 0
  %118 = vmatpush1.bf16.msra.mxu0 %v96
  %119 = vmatprep.subr.bf16.mxu0 0
  %120 = vmatpush1.bf16.msra.mxu0 %v97
  %121 = vmatprep.subr.bf16.mxu0 0
  %122 = vmatpush1.bf16.msra.mxu0 %v98
  %123 = vmatprep.subr.bf16.mxu0 0
  %124 = vmatpush1.bf16.msra.mxu0 %v113
  %125 = vmatprep.subr.bf16.mxu0 0
  %126 = vmatpush1.bf16.msra.mxu0 0
  %127 = vmatprep.subr.bf16.mxu0 0
  %128 = vmatpush1.bf16.msra.mxu0 0
  %129 = vmatprep.subr.bf16.mxu0 0
  %130 = vmatpush1.bf16.msra.mxu0 0
  %131 = vmatprep.subr.bf16.mxu0 0
  %132 = vmatpush1.bf16.msra.mxu0 0
  %133 = vmatprep.subr.bf16.mxu0 0
  %134 = vmatpush1.bf16.msra.mxu0 0
  %135 = vmatprep.subr.bf16.mxu0 0
  %136 = vmatpush1.bf16.msra.mxu0 0
  %137 = vmatprep.subr.bf16.mxu0 0
  %138 = vmatpush1.bf16.msra.mxu0 0
  %139 = vmatprep.subr.bf16.mxu0 0
  %140 = vmatpush1.bf16.msra.mxu0 0
  %141 = vmatprep.subr.bf16.mxu0 0
  %142 = vmatpush1.bf16.msra.mxu0 0
  %143 = vmatprep.subr.bf16.mxu0 0
  %144 = vmatpush1.bf16.msra.mxu0 0
  %145 = vmatprep.subr.bf16.mxu0 0
  %146 = vmatpush1.bf16.msra.mxu0 0
  %147 = vmatprep.mubr.bf16.mxu0 0
  %148 = vmatmul.mubr.bf16.gmra.mrb[0].mxu0 %v106
  %v149 = vpop.f32.mrb[0].mxu0
  %v150 = vadd.f32 %v75, %v149
  %v151 = vpop.f32.mrb[0].mxu0
  %v152 = vpop.f32.mrb[0].mxu0
  %v153 = vadd.f32 %v75, %v152
  %v154 = vpop.f32.mrb[0].mxu0
  %155 = vdwg.mxu0
  %v156 = vld [vmem:[%s4] sm:$0x1]
  %v157 = vld [vmem:[%s5] sm:$0x1]
  %vm158 = vcmask 523264
  %v159 = vsel %vm158, %v150, 0.0
  %160 = vadd.xlane.f32.xlu0 %v159
  %v161 = vpop.xlane.xlu0 %160
  %vm162 = vcmask 517120
  %v163 = vsel %vm162, %v153, 0.0
  %164 = vadd.xlane.f32.xlu0 %v163
  %v165 = vpop.xlane.xlu0 %164
  %v166 = vrcp.pop 64.0
  %v167 = vmul.f32 %v161, %v166
  %v168 = vmul.f32 %v165, %v166
  %v169 = vsub.f32 %v150, %v167
  %v170 = vsub.f32 %v153, %v168
  %v171 = vmul.f32 %v169, %v169
  %v172 = vmul.f32 %v170, %v170
  %v173 = vsel %vm158, %v171, 0.0
  %174 = vadd.xlane.f32.xlu0 %v173
  %v175 = vpop.xlane.xlu0 %174
  %v176 = vsel %vm162, %v172, 0.0
  %177 = vadd.xlane.f32.xlu0 %v176
  %v178 = vpop.xlane.xlu0 %177
  %v179 = vmul.f32 %v175, %v166
  %v180 = vmul.f32 %v178, %v166
  %v181 = vadd.f32 %v179, 1e-06
  %v182 = vadd.f32 %v180, 1e-06
  %v183 = vrsqrt.pop %v181
  %v184 = vrsqrt.pop %v182
  %v185 = vmul.f32 %v169, %v183
  %v186 = vmul.f32 %v170, %v184
  %v188 = vlaneseq
  %v189 = vshrl.u32 %v188, 7
  %v190 = vsub.s32 0, %v189
  %v191 = vrot.slane %v156, %v190
  %v193 = vmul.f32 %v185, %v191
  %v194 = vmul.f32 %v186, %v191
  %v196 = vlaneseq
  %v197 = vshrl.u32 %v196, 7
  %v198 = vsub.s32 0, %v197
  %v199 = vrot.slane %v157, %v198
  %v201 = vadd.f32 %v193, %v199
  %v202 = vadd.f32 %v194, %v199
  %v203 = vmax.f32 %v201, 0.0
  %v204 = vmax.f32 %v202, 0.0
  %v205 = vld [vmem:[%s6] sm:$0xf]
  %v206 = vld [vmem:[%s6 + $0x4] sm:$0xf]
  %v207 = vld [vmem:[%s6 + $0x8] sm:$0xf]
  %v208 = vld [vmem:[%s6 + $0xc] sm:$0xf]
  %v209 = vld [vmem:[%s6 + $0x10] sm:$0xf]
  %v210 = vld [vmem:[%s6 + $0x14] sm:$0xf]
  %v211 = vld [vmem:[%s6 + $0x18] sm:$0xf]
  %v212 = vld [vmem:[%s6 + $0x1c] sm:$0xf]
  %v213 = vpack.c.bf16 %v204, %v203
  %v214 = vld [vmem:[%s7] sm:$0x1]
  %v216 = vlaneseq
  %v217 = vshrl.u32 %v216, 7
  %v218 = vsub.s32 0, %v217
  %v219 = vrot.slane %v214, %v218
  %v229 = vunpack.c.l.b16 %v205
  %v230 = vunpack.c.l.b16 %v206
  %v231 = vunpack.c.l.b16 %v207
  %v232 = vunpack.c.l.b16 %v208
  %v233 = vunpack.c.l.b16 %v209
  %v234 = vunpack.c.l.b16 %v210
  %v235 = vunpack.c.l.b16 %v211
  %v236 = vunpack.c.l.b16 %v212
  %v237 = vpack.c.b16 %v230, %v229
  %v238 = vpack.c.b16 %v232, %v231
  %v239 = vpack.c.b16 %v234, %v233
  %v240 = vpack.c.b16 %v236, %v235
  %v246 = vsel %vm158, %v213, 0
  %248 = vmatprep.subr.bf16.mxu0 0
  %249 = vmatpush1.bf16.msra.mxu0 %v237
  %250 = vmatprep.subr.bf16.mxu0 0
  %251 = vmatpush1.bf16.msra.mxu0 %v238
  %252 = vmatprep.subr.bf16.mxu0 0
  %253 = vmatpush1.bf16.msra.mxu0 %v239
  %254 = vmatprep.subr.bf16.mxu0 0
  %255 = vmatpush1.bf16.msra.mxu0 %v240
  %256 = vmatprep.subr.bf16.mxu0 0
  %257 = vmatpush1.bf16.msra.mxu0 0
  %258 = vmatprep.subr.bf16.mxu0 0
  %259 = vmatpush1.bf16.msra.mxu0 0
  %260 = vmatprep.subr.bf16.mxu0 0
  %261 = vmatpush1.bf16.msra.mxu0 0
  %262 = vmatprep.subr.bf16.mxu0 0
  %263 = vmatpush1.bf16.msra.mxu0 0
  %264 = vmatprep.subr.bf16.mxu0 0
  %265 = vmatpush1.bf16.msra.mxu0 0
  %266 = vmatprep.subr.bf16.mxu0 0
  %267 = vmatpush1.bf16.msra.mxu0 0
  %268 = vmatprep.subr.bf16.mxu0 0
  %269 = vmatpush1.bf16.msra.mxu0 0
  %270 = vmatprep.subr.bf16.mxu0 0
  %271 = vmatpush1.bf16.msra.mxu0 0
  %272 = vmatprep.subr.bf16.mxu0 0
  %273 = vmatpush1.bf16.msra.mxu0 0
  %274 = vmatprep.subr.bf16.mxu0 0
  %275 = vmatpush1.bf16.msra.mxu0 0
  %276 = vmatprep.subr.bf16.mxu0 0
  %277 = vmatpush1.bf16.msra.mxu0 0
  %278 = vmatprep.subr.bf16.mxu0 0
  %279 = vmatpush1.bf16.msra.mxu0 0
  %280 = vmatprep.mubr.bf16.mxu0 0
  %281 = vmatmul.mubr.bf16.gmra.mrb[0].mxu0 %v246
  %v282 = vpop.f32.mrb[0].mxu0
  %v283 = vadd.f32 %v219, %v282
  %v284 = vpop.f32.mrb[0].mxu0
  %v285 = vpop.f32.mrb[0].mxu0
  %v286 = vadd.f32 %v219, %v285
  %v287 = vpop.f32.mrb[0].mxu0
  %288 = vdwg.mxu0
  %v289 = vld [vmem:[%s8] sm:$0x1]
  %v290 = vld [vmem:[%s9] sm:$0x1]
  %v291 = vsel %vm104, %v283, 0.0
  %292 = vadd.xlane.f32.xlu0 %v291
  %v293 = vpop.xlane.xlu0 %292
  %vm294 = vcmask 541696
  %v295 = vsel %vm294, %v286, 0.0
  %296 = vadd.xlane.f32.xlu0 %v295
  %v297 = vpop.xlane.xlu0 %296
  %v298 = vrcp.pop 67.0
  %v299 = vmul.f32 %v293, %v298
  %v300 = vmul.f32 %v297, %v298
  %v301 = vsub.f32 %v283, %v299
  %v302 = vsub.f32 %v286, %v300
  %v303 = vmul.f32 %v301, %v301
  %v304 = vmul.f32 %v302, %v302
  %v305 = vsel %vm104, %v303, 0.0
  %306 = vadd.xlane.f32.xlu0 %v305
  %v307 = vpop.xlane.xlu0 %306
  %v308 = vsel %vm294, %v304, 0.0
  %309 = vadd.xlane.f32.xlu0 %v308
  %v310 = vpop.xlane.xlu0 %309
  %v311 = vmul.f32 %v307, %v298
  %v312 = vmul.f32 %v310, %v298
  %v313 = vadd.f32 %v311, 1e-06
  %v314 = vadd.f32 %v312, 1e-06
  %v315 = vrsqrt.pop %v313
  %v316 = vrsqrt.pop %v314
  %v317 = vmul.f32 %v301, %v315
  %v318 = vmul.f32 %v302, %v316
  %v320 = vlaneseq
  %v321 = vshrl.u32 %v320, 7
  %v322 = vsub.s32 0, %v321
  %v323 = vrot.slane %v289, %v322
  %v325 = vmul.f32 %v317, %v323
  %v326 = vmul.f32 %v318, %v323
  %v328 = vlaneseq
  %v329 = vshrl.u32 %v328, 7
  %v330 = vsub.s32 0, %v329
  %v331 = vrot.slane %v290, %v330
  %v333 = vadd.f32 %v325, %v331
  %v334 = vadd.f32 %v326, %v331
  %v335 = vmax.f32 %v333, 0.0
  %v336 = vmax.f32 %v334, 0.0
  %vm337 = vcmp.eq.s32.totalorder %v58, 0
  %vm338 = vcmp.eq.s32.totalorder %v59, 0
  %v339 = vsel %vm337, 1, 0
  %v340 = vsel %vm338, 1, 0
  %341 = vset.pattern.permute.xlu0 0
  %342 = vperm.xlu0 %341, %v339
  %v343 = vpop.permute.xlu0 %342
  %344 = vset.pattern.permute.xlu0 0
  %345 = vperm.xlu0 %344, %v340
  %v346 = vpop.permute.xlu0 %345
  %vm347 = vcmp.eq.s32.totalorder %v343, 1
  %vm348 = vcmp.eq.s32.totalorder %v346, 1
  %v349 = vsel %vm347, %v335, 0.0
  %v350 = vsel %vm348, %v336, 0.0
  %s351 = scalar_lea.vmem %s6, 32
  %v352 = vld [vmem:[%s351] sm:$0xf]
  %v353 = vld [vmem:[%s351 + $0x4] sm:$0xf]
  %v354 = vld [vmem:[%s351 + $0x8] sm:$0xf]
  %v355 = vld [vmem:[%s351 + $0xc] sm:$0xf]
  %v356 = vld [vmem:[%s351 + $0x10] sm:$0xf]
  %v357 = vld [vmem:[%s351 + $0x14] sm:$0xf]
  %v358 = vld [vmem:[%s351 + $0x18] sm:$0xf]
  %v359 = vld [vmem:[%s351 + $0x1c] sm:$0xf]
  %s360 = scalar_lea.vmem %s7, 1
  %v361 = vld [vmem:[%s360] sm:$0x1]
  %v363 = vlaneseq
  %v364 = vshrl.u32 %v363, 7
  %v365 = vsub.s32 0, %v364
  %v366 = vrot.slane %v361, %v365
  %v376 = vunpack.c.l.b16 %v352
  %v377 = vunpack.c.l.b16 %v353
  %v378 = vunpack.c.l.b16 %v354
  %v379 = vunpack.c.l.b16 %v355
  %v380 = vunpack.c.l.b16 %v356
  %v381 = vunpack.c.l.b16 %v357
  %v382 = vunpack.c.l.b16 %v358
  %v383 = vunpack.c.l.b16 %v359
  %v384 = vpack.c.b16 %v377, %v376
  %v385 = vpack.c.b16 %v379, %v378
  %v386 = vpack.c.b16 %v381, %v380
  %v387 = vpack.c.b16 %v383, %v382
  %392 = vmatprep.subr.bf16.mxu0 0
  %393 = vmatpush1.bf16.msra.mxu0 %v384
  %394 = vmatprep.subr.bf16.mxu0 0
  %395 = vmatpush1.bf16.msra.mxu0 %v385
  %396 = vmatprep.subr.bf16.mxu0 0
  %397 = vmatpush1.bf16.msra.mxu0 %v386
  %398 = vmatprep.subr.bf16.mxu0 0
  %399 = vmatpush1.bf16.msra.mxu0 %v387
  %400 = vmatprep.subr.bf16.mxu0 0
  %401 = vmatpush1.bf16.msra.mxu0 0
  %402 = vmatprep.subr.bf16.mxu0 0
  %403 = vmatpush1.bf16.msra.mxu0 0
  %404 = vmatprep.subr.bf16.mxu0 0
  %405 = vmatpush1.bf16.msra.mxu0 0
  %406 = vmatprep.subr.bf16.mxu0 0
  %407 = vmatpush1.bf16.msra.mxu0 0
  %408 = vmatprep.subr.bf16.mxu0 0
  %409 = vmatpush1.bf16.msra.mxu0 0
  %410 = vmatprep.subr.bf16.mxu0 0
  %411 = vmatpush1.bf16.msra.mxu0 0
  %412 = vmatprep.subr.bf16.mxu0 0
  %413 = vmatpush1.bf16.msra.mxu0 0
  %414 = vmatprep.subr.bf16.mxu0 0
  %415 = vmatpush1.bf16.msra.mxu0 0
  %416 = vmatprep.subr.bf16.mxu0 0
  %417 = vmatpush1.bf16.msra.mxu0 0
  %418 = vmatprep.subr.bf16.mxu0 0
  %419 = vmatpush1.bf16.msra.mxu0 0
  %420 = vmatprep.subr.bf16.mxu0 0
  %421 = vmatpush1.bf16.msra.mxu0 0
  %422 = vmatprep.subr.bf16.mxu0 0
  %423 = vmatpush1.bf16.msra.mxu0 0
  %424 = vmatprep.mubr.bf16.mxu0 0
  %425 = vmatmul.mubr.bf16.gmra.mrb[0].mxu0 %v246
  %v426 = vpop.f32.mrb[0].mxu0
  %v427 = vadd.f32 %v366, %v426
  %v428 = vpop.f32.mrb[0].mxu0
  %v429 = vpop.f32.mrb[0].mxu0
  %v430 = vadd.f32 %v366, %v429
  %v431 = vpop.f32.mrb[0].mxu0
  %432 = vdwg.mxu0
  %s433 = scalar_lea.vmem %s8, 1
  %v434 = vld [vmem:[%s433] sm:$0x1]
  %s435 = scalar_lea.vmem %s9, 1
  %v436 = vld [vmem:[%s435] sm:$0x1]
  %v437 = vsel %vm104, %v427, 0.0
  %438 = vadd.xlane.f32.xlu0 %v437
  %v439 = vpop.xlane.xlu0 %438
  %v440 = vsel %vm294, %v430, 0.0
  %441 = vadd.xlane.f32.xlu0 %v440
  %v442 = vpop.xlane.xlu0 %441
  %v443 = vmul.f32 %v439, %v298
  %v444 = vmul.f32 %v442, %v298
  %v445 = vsub.f32 %v427, %v443
  %v446 = vsub.f32 %v430, %v444
  %v447 = vmul.f32 %v445, %v445
  %v448 = vmul.f32 %v446, %v446
  %v449 = vsel %vm104, %v447, 0.0
  %450 = vadd.xlane.f32.xlu0 %v449
  %v451 = vpop.xlane.xlu0 %450
  %v452 = vsel %vm294, %v448, 0.0
  %453 = vadd.xlane.f32.xlu0 %v452
  %v454 = vpop.xlane.xlu0 %453
  %v455 = vmul.f32 %v451, %v298
  %v456 = vmul.f32 %v454, %v298
  %v457 = vadd.f32 %v455, 1e-06
  %v458 = vadd.f32 %v456, 1e-06
  %v459 = vrsqrt.pop %v457
  %v460 = vrsqrt.pop %v458
  %v461 = vmul.f32 %v445, %v459
  %v462 = vmul.f32 %v446, %v460
  %v464 = vlaneseq
  %v465 = vshrl.u32 %v464, 7
  %v466 = vsub.s32 0, %v465
  %v467 = vrot.slane %v434, %v466
  %v469 = vmul.f32 %v461, %v467
  %v470 = vmul.f32 %v462, %v467
  %v472 = vlaneseq
  %v473 = vshrl.u32 %v472, 7
  %v474 = vsub.s32 0, %v473
  %v475 = vrot.slane %v436, %v474
  %v477 = vadd.f32 %v469, %v475
  %v478 = vadd.f32 %v470, %v475
  %v479 = vmax.f32 %v477, 0.0
  %v480 = vmax.f32 %v478, 0.0
  %vm481 = vcmp.eq.s32.totalorder %v58, 1
  %vm482 = vcmp.eq.s32.totalorder %v59, 1
  %v483 = vsel %vm481, 1, 0
  %v484 = vsel %vm482, 1, 0
  %485 = vset.pattern.permute.xlu0 0
  %486 = vperm.xlu0 %485, %v483
  %v487 = vpop.permute.xlu0 %486
  %488 = vset.pattern.permute.xlu0 0
  %489 = vperm.xlu0 %488, %v484
  %v490 = vpop.permute.xlu0 %489
  %vm491 = vcmp.eq.s32.totalorder %v487, 1
  %vm492 = vcmp.eq.s32.totalorder %v490, 1
  %v493 = vsel %vm491, %v479, %v349
  %v494 = vsel %vm492, %v480, %v350
  %s495 = scalar_lea.vmem %s6, 64
  %v496 = vld [vmem:[%s495] sm:$0xf]
  %v497 = vld [vmem:[%s495 + $0x4] sm:$0xf]
  %v498 = vld [vmem:[%s495 + $0x8] sm:$0xf]
  %v499 = vld [vmem:[%s495 + $0xc] sm:$0xf]
  %v500 = vld [vmem:[%s495 + $0x10] sm:$0xf]
  %v501 = vld [vmem:[%s495 + $0x14] sm:$0xf]
  %v502 = vld [vmem:[%s495 + $0x18] sm:$0xf]
  %v503 = vld [vmem:[%s495 + $0x1c] sm:$0xf]
  %s504 = scalar_lea.vmem %s7, 2
  %v505 = vld [vmem:[%s504] sm:$0x1]
  %v507 = vlaneseq
  %v508 = vshrl.u32 %v507, 7
  %v509 = vsub.s32 0, %v508
  %v510 = vrot.slane %v505, %v509
  %v520 = vunpack.c.l.b16 %v496
  %v521 = vunpack.c.l.b16 %v497
  %v522 = vunpack.c.l.b16 %v498
  %v523 = vunpack.c.l.b16 %v499
  %v524 = vunpack.c.l.b16 %v500
  %v525 = vunpack.c.l.b16 %v501
  %v526 = vunpack.c.l.b16 %v502
  %v527 = vunpack.c.l.b16 %v503
  %v528 = vpack.c.b16 %v521, %v520
  %v529 = vpack.c.b16 %v523, %v522
  %v530 = vpack.c.b16 %v525, %v524
  %v531 = vpack.c.b16 %v527, %v526
  %536 = vmatprep.subr.bf16.mxu0 0
  %537 = vmatpush1.bf16.msra.mxu0 %v528
  %538 = vmatprep.subr.bf16.mxu0 0
  %539 = vmatpush1.bf16.msra.mxu0 %v529
  %540 = vmatprep.subr.bf16.mxu0 0
  %541 = vmatpush1.bf16.msra.mxu0 %v530
  %542 = vmatprep.subr.bf16.mxu0 0
  %543 = vmatpush1.bf16.msra.mxu0 %v531
  %544 = vmatprep.subr.bf16.mxu0 0
  %545 = vmatpush1.bf16.msra.mxu0 0
  %546 = vmatprep.subr.bf16.mxu0 0
  %547 = vmatpush1.bf16.msra.mxu0 0
  %548 = vmatprep.subr.bf16.mxu0 0
  %549 = vmatpush1.bf16.msra.mxu0 0
  %550 = vmatprep.subr.bf16.mxu0 0
  %551 = vmatpush1.bf16.msra.mxu0 0
  %552 = vmatprep.subr.bf16.mxu0 0
  %553 = vmatpush1.bf16.msra.mxu0 0
  %554 = vmatprep.subr.bf16.mxu0 0
  %555 = vmatpush1.bf16.msra.mxu0 0
  %556 = vmatprep.subr.bf16.mxu0 0
  %557 = vmatpush1.bf16.msra.mxu0 0
  %558 = vmatprep.subr.bf16.mxu0 0
  %559 = vmatpush1.bf16.msra.mxu0 0
  %560 = vmatprep.subr.bf16.mxu0 0
  %561 = vmatpush1.bf16.msra.mxu0 0
  %562 = vmatprep.subr.bf16.mxu0 0
  %563 = vmatpush1.bf16.msra.mxu0 0
  %564 = vmatprep.subr.bf16.mxu0 0
  %565 = vmatpush1.bf16.msra.mxu0 0
  %566 = vmatprep.subr.bf16.mxu0 0
  %567 = vmatpush1.bf16.msra.mxu0 0
  %568 = vmatprep.mubr.bf16.mxu0 0
  %569 = vmatmul.mubr.bf16.gmra.mrb[0].mxu0 %v246
  %v570 = vpop.f32.mrb[0].mxu0
  %v571 = vadd.f32 %v510, %v570
  %v572 = vpop.f32.mrb[0].mxu0
  %v573 = vpop.f32.mrb[0].mxu0
  %v574 = vadd.f32 %v510, %v573
  %v575 = vpop.f32.mrb[0].mxu0
  %576 = vdwg.mxu0
  %s577 = scalar_lea.vmem %s8, 2
  %v578 = vld [vmem:[%s577] sm:$0x1]
  %s579 = scalar_lea.vmem %s9, 2
  %v580 = vld [vmem:[%s579] sm:$0x1]
  %v581 = vsel %vm104, %v571, 0.0
  %582 = vadd.xlane.f32.xlu0 %v581
  %v583 = vpop.xlane.xlu0 %582
  %v584 = vsel %vm294, %v574, 0.0
  %585 = vadd.xlane.f32.xlu0 %v584
  %v586 = vpop.xlane.xlu0 %585
  %v587 = vmul.f32 %v583, %v298
  %v588 = vmul.f32 %v586, %v298
  %v589 = vsub.f32 %v571, %v587
  %v590 = vsub.f32 %v574, %v588
  %v591 = vmul.f32 %v589, %v589
  %v592 = vmul.f32 %v590, %v590
  %v593 = vsel %vm104, %v591, 0.0
  %594 = vadd.xlane.f32.xlu0 %v593
  %v595 = vpop.xlane.xlu0 %594
  %v596 = vsel %vm294, %v592, 0.0
  %597 = vadd.xlane.f32.xlu0 %v596
  %v598 = vpop.xlane.xlu0 %597
  %v599 = vmul.f32 %v595, %v298
  %v600 = vmul.f32 %v598, %v298
  %v601 = vadd.f32 %v599, 1e-06
  %v602 = vadd.f32 %v600, 1e-06
  %v603 = vrsqrt.pop %v601
  %v604 = vrsqrt.pop %v602
  %v605 = vmul.f32 %v589, %v603
  %v606 = vmul.f32 %v590, %v604
  %v608 = vlaneseq
  %v609 = vshrl.u32 %v608, 7
  %v610 = vsub.s32 0, %v609
  %v611 = vrot.slane %v578, %v610
  %v613 = vmul.f32 %v605, %v611
  %v614 = vmul.f32 %v606, %v611
  %v616 = vlaneseq
  %v617 = vshrl.u32 %v616, 7
  %v618 = vsub.s32 0, %v617
  %v619 = vrot.slane %v580, %v618
  %v621 = vadd.f32 %v613, %v619
  %v622 = vadd.f32 %v614, %v619
  %v623 = vmax.f32 %v621, 0.0
  %v624 = vmax.f32 %v622, 0.0
  %vm625 = vcmp.eq.s32.totalorder %v58, 2
  %vm626 = vcmp.eq.s32.totalorder %v59, 2
  %v627 = vsel %vm625, 1, 0
  %v628 = vsel %vm626, 1, 0
  %629 = vset.pattern.permute.xlu0 0
  %630 = vperm.xlu0 %629, %v627
  %v631 = vpop.permute.xlu0 %630
  %632 = vset.pattern.permute.xlu0 0
  %633 = vperm.xlu0 %632, %v628
  %v634 = vpop.permute.xlu0 %633
  %vm635 = vcmp.eq.s32.totalorder %v631, 1
  %vm636 = vcmp.eq.s32.totalorder %v634, 1
  %v637 = vsel %vm635, %v623, %v493
  %v638 = vsel %vm636, %v624, %v494
  %s639 = scalar_lea.vmem %s6, 96
  %v640 = vld [vmem:[%s639] sm:$0xf]
  %v641 = vld [vmem:[%s639 + $0x4] sm:$0xf]
  %v642 = vld [vmem:[%s639 + $0x8] sm:$0xf]
  %v643 = vld [vmem:[%s639 + $0xc] sm:$0xf]
  %v644 = vld [vmem:[%s639 + $0x10] sm:$0xf]
  %v645 = vld [vmem:[%s639 + $0x14] sm:$0xf]
  %v646 = vld [vmem:[%s639 + $0x18] sm:$0xf]
  %v647 = vld [vmem:[%s639 + $0x1c] sm:$0xf]
  %s648 = scalar_lea.vmem %s7, 3
  %v649 = vld [vmem:[%s648] sm:$0x1]
  %v651 = vlaneseq
  %v652 = vshrl.u32 %v651, 7
  %v653 = vsub.s32 0, %v652
  %v654 = vrot.slane %v649, %v653
  %v664 = vunpack.c.l.b16 %v640
  %v665 = vunpack.c.l.b16 %v641
  %v666 = vunpack.c.l.b16 %v642
  %v667 = vunpack.c.l.b16 %v643
  %v668 = vunpack.c.l.b16 %v644
  %v669 = vunpack.c.l.b16 %v645
  %v670 = vunpack.c.l.b16 %v646
  %v671 = vunpack.c.l.b16 %v647
  %v672 = vpack.c.b16 %v665, %v664
  %v673 = vpack.c.b16 %v667, %v666
  %v674 = vpack.c.b16 %v669, %v668
  %v675 = vpack.c.b16 %v671, %v670
  %680 = vmatprep.subr.bf16.mxu0 0
  %681 = vmatpush1.bf16.msra.mxu0 %v672
  %682 = vmatprep.subr.bf16.mxu0 0
  %683 = vmatpush1.bf16.msra.mxu0 %v673
  %684 = vmatprep.subr.bf16.mxu0 0
  %685 = vmatpush1.bf16.msra.mxu0 %v674
  %686 = vmatprep.subr.bf16.mxu0 0
  %687 = vmatpush1.bf16.msra.mxu0 %v675
  %688 = vmatprep.subr.bf16.mxu0 0
  %689 = vmatpush1.bf16.msra.mxu0 0
  %690 = vmatprep.subr.bf16.mxu0 0
  %691 = vmatpush1.bf16.msra.mxu0 0
  %692 = vmatprep.subr.bf16.mxu0 0
  %693 = vmatpush1.bf16.msra.mxu0 0
  %694 = vmatprep.subr.bf16.mxu0 0
  %695 = vmatpush1.bf16.msra.mxu0 0
  %696 = vmatprep.subr.bf16.mxu0 0
  %697 = vmatpush1.bf16.msra.mxu0 0
  %698 = vmatprep.subr.bf16.mxu0 0
  %699 = vmatpush1.bf16.msra.mxu0 0
  %700 = vmatprep.subr.bf16.mxu0 0
  %701 = vmatpush1.bf16.msra.mxu0 0
  %702 = vmatprep.subr.bf16.mxu0 0
  %703 = vmatpush1.bf16.msra.mxu0 0
  %704 = vmatprep.subr.bf16.mxu0 0
  %705 = vmatpush1.bf16.msra.mxu0 0
  %706 = vmatprep.subr.bf16.mxu0 0
  %707 = vmatpush1.bf16.msra.mxu0 0
  %708 = vmatprep.subr.bf16.mxu0 0
  %709 = vmatpush1.bf16.msra.mxu0 0
  %710 = vmatprep.subr.bf16.mxu0 0
  %711 = vmatpush1.bf16.msra.mxu0 0
  %712 = vmatprep.mubr.bf16.mxu0 0
  %713 = vmatmul.mubr.bf16.gmra.mrb[0].mxu0 %v246
  %v714 = vpop.f32.mrb[0].mxu0
  %v715 = vadd.f32 %v654, %v714
  %v716 = vpop.f32.mrb[0].mxu0
  %v717 = vpop.f32.mrb[0].mxu0
  %v718 = vadd.f32 %v654, %v717
  %v719 = vpop.f32.mrb[0].mxu0
  %720 = vdwg.mxu0
  %s721 = scalar_lea.vmem %s8, 3
  %v722 = vld [vmem:[%s721] sm:$0x1]
  %s723 = scalar_lea.vmem %s9, 3
  %v724 = vld [vmem:[%s723] sm:$0x1]
  %v725 = vsel %vm104, %v715, 0.0
  %726 = vadd.xlane.f32.xlu0 %v725
  %v727 = vpop.xlane.xlu0 %726
  %v728 = vsel %vm294, %v718, 0.0
  %729 = vadd.xlane.f32.xlu0 %v728
  %v730 = vpop.xlane.xlu0 %729
  %v731 = vmul.f32 %v727, %v298
  %v732 = vmul.f32 %v730, %v298
  %v733 = vsub.f32 %v715, %v731
  %v734 = vsub.f32 %v718, %v732
  %v735 = vmul.f32 %v733, %v733
  %v736 = vmul.f32 %v734, %v734
  %v737 = vsel %vm104, %v735, 0.0
  %738 = vadd.xlane.f32.xlu0 %v737
  %v739 = vpop.xlane.xlu0 %738
  %v740 = vsel %vm294, %v736, 0.0
  %741 = vadd.xlane.f32.xlu0 %v740
  %v742 = vpop.xlane.xlu0 %741
  %v743 = vmul.f32 %v739, %v298
  %v744 = vmul.f32 %v742, %v298
  %v745 = vadd.f32 %v743, 1e-06
  %v746 = vadd.f32 %v744, 1e-06
  %v747 = vrsqrt.pop %v745
  %v748 = vrsqrt.pop %v746
  %v749 = vmul.f32 %v733, %v747
  %v750 = vmul.f32 %v734, %v748
  %v752 = vlaneseq
  %v753 = vshrl.u32 %v752, 7
  %v754 = vsub.s32 0, %v753
  %v755 = vrot.slane %v722, %v754
  %v757 = vmul.f32 %v749, %v755
  %v758 = vmul.f32 %v750, %v755
  %v760 = vlaneseq
  %v761 = vshrl.u32 %v760, 7
  %v762 = vsub.s32 0, %v761
  %v763 = vrot.slane %v724, %v762
  %v765 = vadd.f32 %v757, %v763
  %v766 = vadd.f32 %v758, %v763
  %v767 = vmax.f32 %v765, 0.0
  %v768 = vmax.f32 %v766, 0.0
  %vm769 = vcmp.eq.s32.totalorder %v58, 3
  %vm770 = vcmp.eq.s32.totalorder %v59, 3
  %v771 = vsel %vm769, 1, 0
  %v772 = vsel %vm770, 1, 0
  %773 = vset.pattern.permute.xlu0 0
  %774 = vperm.xlu0 %773, %v771
  %v775 = vpop.permute.xlu0 %774
  %776 = vset.pattern.permute.xlu0 0
  %777 = vperm.xlu0 %776, %v772
  %v778 = vpop.permute.xlu0 %777
  %vm779 = vcmp.eq.s32.totalorder %v775, 1
  %vm780 = vcmp.eq.s32.totalorder %v778, 1
  %v781 = vsel %vm779, %v767, %v637
  %v782 = vsel %vm780, %v768, %v638
  %s783 = scalar_lea.vmem %s6, 128
  %v784 = vld [vmem:[%s783] sm:$0xf]
  %v785 = vld [vmem:[%s783 + $0x4] sm:$0xf]
  %v786 = vld [vmem:[%s783 + $0x8] sm:$0xf]
  %v787 = vld [vmem:[%s783 + $0xc] sm:$0xf]
  %v788 = vld [vmem:[%s783 + $0x10] sm:$0xf]
  %v789 = vld [vmem:[%s783 + $0x14] sm:$0xf]
  %v790 = vld [vmem:[%s783 + $0x18] sm:$0xf]
  %v791 = vld [vmem:[%s783 + $0x1c] sm:$0xf]
  %s792 = scalar_lea.vmem %s7, 4
  %v793 = vld [vmem:[%s792] sm:$0x1]
  %v795 = vlaneseq
  %v796 = vshrl.u32 %v795, 7
  %v797 = vsub.s32 0, %v796
  %v798 = vrot.slane %v793, %v797
  %v808 = vunpack.c.l.b16 %v784
  %v809 = vunpack.c.l.b16 %v785
  %v810 = vunpack.c.l.b16 %v786
  %v811 = vunpack.c.l.b16 %v787
  %v812 = vunpack.c.l.b16 %v788
  %v813 = vunpack.c.l.b16 %v789
  %v814 = vunpack.c.l.b16 %v790
  %v815 = vunpack.c.l.b16 %v791
  %v816 = vpack.c.b16 %v809, %v808
  %v817 = vpack.c.b16 %v811, %v810
  %v818 = vpack.c.b16 %v813, %v812
  %v819 = vpack.c.b16 %v815, %v814
  %824 = vmatprep.subr.bf16.mxu0 0
  %825 = vmatpush1.bf16.msra.mxu0 %v816
  %826 = vmatprep.subr.bf16.mxu0 0
  %827 = vmatpush1.bf16.msra.mxu0 %v817
  %828 = vmatprep.subr.bf16.mxu0 0
  %829 = vmatpush1.bf16.msra.mxu0 %v818
  %830 = vmatprep.subr.bf16.mxu0 0
  %831 = vmatpush1.bf16.msra.mxu0 %v819
  %832 = vmatprep.subr.bf16.mxu0 0
  %833 = vmatpush1.bf16.msra.mxu0 0
  %834 = vmatprep.subr.bf16.mxu0 0
  %835 = vmatpush1.bf16.msra.mxu0 0
  %836 = vmatprep.subr.bf16.mxu0 0
  %837 = vmatpush1.bf16.msra.mxu0 0
  %838 = vmatprep.subr.bf16.mxu0 0
  %839 = vmatpush1.bf16.msra.mxu0 0
  %840 = vmatprep.subr.bf16.mxu0 0
  %841 = vmatpush1.bf16.msra.mxu0 0
  %842 = vmatprep.subr.bf16.mxu0 0
  %843 = vmatpush1.bf16.msra.mxu0 0
  %844 = vmatprep.subr.bf16.mxu0 0
  %845 = vmatpush1.bf16.msra.mxu0 0
  %846 = vmatprep.subr.bf16.mxu0 0
  %847 = vmatpush1.bf16.msra.mxu0 0
  %848 = vmatprep.subr.bf16.mxu0 0
  %849 = vmatpush1.bf16.msra.mxu0 0
  %850 = vmatprep.subr.bf16.mxu0 0
  %851 = vmatpush1.bf16.msra.mxu0 0
  %852 = vmatprep.subr.bf16.mxu0 0
  %853 = vmatpush1.bf16.msra.mxu0 0
  %854 = vmatprep.subr.bf16.mxu0 0
  %855 = vmatpush1.bf16.msra.mxu0 0
  %856 = vmatprep.mubr.bf16.mxu0 0
  %857 = vmatmul.mubr.bf16.gmra.mrb[0].mxu0 %v246
  %v858 = vpop.f32.mrb[0].mxu0
  %v859 = vadd.f32 %v798, %v858
  %v860 = vpop.f32.mrb[0].mxu0
  %v861 = vpop.f32.mrb[0].mxu0
  %v862 = vadd.f32 %v798, %v861
  %v863 = vpop.f32.mrb[0].mxu0
  %864 = vdwg.mxu0
  %s865 = scalar_lea.vmem %s8, 4
  %v866 = vld [vmem:[%s865] sm:$0x1]
  %s867 = scalar_lea.vmem %s9, 4
  %v868 = vld [vmem:[%s867] sm:$0x1]
  %v869 = vsel %vm104, %v859, 0.0
  %870 = vadd.xlane.f32.xlu0 %v869
  %v871 = vpop.xlane.xlu0 %870
  %v872 = vsel %vm294, %v862, 0.0
  %873 = vadd.xlane.f32.xlu0 %v872
  %v874 = vpop.xlane.xlu0 %873
  %v875 = vmul.f32 %v871, %v298
  %v876 = vmul.f32 %v874, %v298
  %v877 = vsub.f32 %v859, %v875
  %v878 = vsub.f32 %v862, %v876
  %v879 = vmul.f32 %v877, %v877
  %v880 = vmul.f32 %v878, %v878
  %v881 = vsel %vm104, %v879, 0.0
  %882 = vadd.xlane.f32.xlu0 %v881
  %v883 = vpop.xlane.xlu0 %882
  %v884 = vsel %vm294, %v880, 0.0
  %885 = vadd.xlane.f32.xlu0 %v884
  %v886 = vpop.xlane.xlu0 %885
  %v887 = vmul.f32 %v883, %v298
  %v888 = vmul.f32 %v886, %v298
  %v889 = vadd.f32 %v887, 1e-06
  %v890 = vadd.f32 %v888, 1e-06
  %v891 = vrsqrt.pop %v889
  %v892 = vrsqrt.pop %v890
  %v893 = vmul.f32 %v877, %v891
  %v894 = vmul.f32 %v878, %v892
  %v896 = vlaneseq
  %v897 = vshrl.u32 %v896, 7
  %v898 = vsub.s32 0, %v897
  %v899 = vrot.slane %v866, %v898
  %v901 = vmul.f32 %v893, %v899
  %v902 = vmul.f32 %v894, %v899
  %v904 = vlaneseq
  %v905 = vshrl.u32 %v904, 7
  %v906 = vsub.s32 0, %v905
  %v907 = vrot.slane %v868, %v906
  %v909 = vadd.f32 %v901, %v907
  %v910 = vadd.f32 %v902, %v907
  %v911 = vmax.f32 %v909, 0.0
  %v912 = vmax.f32 %v910, 0.0
  %vm913 = vcmp.eq.s32.totalorder %v58, 4
  %vm914 = vcmp.eq.s32.totalorder %v59, 4
  %v915 = vsel %vm913, 1, 0
  %v916 = vsel %vm914, 1, 0
  %917 = vset.pattern.permute.xlu0 0
  %918 = vperm.xlu0 %917, %v915
  %v919 = vpop.permute.xlu0 %918
  %920 = vset.pattern.permute.xlu0 0
  %921 = vperm.xlu0 %920, %v916
  %v922 = vpop.permute.xlu0 %921
  %vm923 = vcmp.eq.s32.totalorder %v919, 1
  %vm924 = vcmp.eq.s32.totalorder %v922, 1
  %v925 = vsel %vm923, %v911, %v781
  %v926 = vsel %vm924, %v912, %v782
  %s927 = scalar_lea.vmem %s6, 160
  %v928 = vld [vmem:[%s927] sm:$0xf]
  %v929 = vld [vmem:[%s927 + $0x4] sm:$0xf]
  %v930 = vld [vmem:[%s927 + $0x8] sm:$0xf]
  %v931 = vld [vmem:[%s927 + $0xc] sm:$0xf]
  %v932 = vld [vmem:[%s927 + $0x10] sm:$0xf]
  %v933 = vld [vmem:[%s927 + $0x14] sm:$0xf]
  %v934 = vld [vmem:[%s927 + $0x18] sm:$0xf]
  %v935 = vld [vmem:[%s927 + $0x1c] sm:$0xf]
  %s936 = scalar_lea.vmem %s7, 5
  %v937 = vld [vmem:[%s936] sm:$0x1]
  %v939 = vlaneseq
  %v940 = vshrl.u32 %v939, 7
  %v941 = vsub.s32 0, %v940
  %v942 = vrot.slane %v937, %v941
  %v952 = vunpack.c.l.b16 %v928
  %v953 = vunpack.c.l.b16 %v929
  %v954 = vunpack.c.l.b16 %v930
  %v955 = vunpack.c.l.b16 %v931
  %v956 = vunpack.c.l.b16 %v932
  %v957 = vunpack.c.l.b16 %v933
  %v958 = vunpack.c.l.b16 %v934
  %v959 = vunpack.c.l.b16 %v935
  %v960 = vpack.c.b16 %v953, %v952
  %v961 = vpack.c.b16 %v955, %v954
  %v962 = vpack.c.b16 %v957, %v956
  %v963 = vpack.c.b16 %v959, %v958
  %968 = vmatprep.subr.bf16.mxu0 0
  %969 = vmatpush1.bf16.msra.mxu0 %v960
  %970 = vmatprep.subr.bf16.mxu0 0
  %971 = vmatpush1.bf16.msra.mxu0 %v961
  %972 = vmatprep.subr.bf16.mxu0 0
  %973 = vmatpush1.bf16.msra.mxu0 %v962
  %974 = vmatprep.subr.bf16.mxu0 0
  %975 = vmatpush1.bf16.msra.mxu0 %v963
  %976 = vmatprep.subr.bf16.mxu0 0
  %977 = vmatpush1.bf16.msra.mxu0 0
  %978 = vmatprep.subr.bf16.mxu0 0
  %979 = vmatpush1.bf16.msra.mxu0 0
  %980 = vmatprep.subr.bf16.mxu0 0
  %981 = vmatpush1.bf16.msra.mxu0 0
  %982 = vmatprep.subr.bf16.mxu0 0
  %983 = vmatpush1.bf16.msra.mxu0 0
  %984 = vmatprep.subr.bf16.mxu0 0
  %985 = vmatpush1.bf16.msra.mxu0 0
  %986 = vmatprep.subr.bf16.mxu0 0
  %987 = vmatpush1.bf16.msra.mxu0 0
  %988 = vmatprep.subr.bf16.mxu0 0
  %989 = vmatpush1.bf16.msra.mxu0 0
  %990 = vmatprep.subr.bf16.mxu0 0
  %991 = vmatpush1.bf16.msra.mxu0 0
  %992 = vmatprep.subr.bf16.mxu0 0
  %993 = vmatpush1.bf16.msra.mxu0 0
  %994 = vmatprep.subr.bf16.mxu0 0
  %995 = vmatpush1.bf16.msra.mxu0 0
  %996 = vmatprep.subr.bf16.mxu0 0
  %997 = vmatpush1.bf16.msra.mxu0 0
  %998 = vmatprep.subr.bf16.mxu0 0
  %999 = vmatpush1.bf16.msra.mxu0 0
  %1000 = vmatprep.mubr.bf16.mxu0 0
  %1001 = vmatmul.mubr.bf16.gmra.mrb[0].mxu0 %v246
  %v1002 = vpop.f32.mrb[0].mxu0
  %v1003 = vadd.f32 %v942, %v1002
  %v1004 = vpop.f32.mrb[0].mxu0
  %v1005 = vpop.f32.mrb[0].mxu0
  %v1006 = vadd.f32 %v942, %v1005
  %v1007 = vpop.f32.mrb[0].mxu0
  %1008 = vdwg.mxu0
  %s1009 = scalar_lea.vmem %s8, 5
  %v1010 = vld [vmem:[%s1009] sm:$0x1]
  %s1011 = scalar_lea.vmem %s9, 5
  %v1012 = vld [vmem:[%s1011] sm:$0x1]
  %v1013 = vsel %vm104, %v1003, 0.0
  %1014 = vadd.xlane.f32.xlu0 %v1013
  %v1015 = vpop.xlane.xlu0 %1014
  %v1016 = vsel %vm294, %v1006, 0.0
  %1017 = vadd.xlane.f32.xlu0 %v1016
  %v1018 = vpop.xlane.xlu0 %1017
  %v1019 = vmul.f32 %v1015, %v298
  %v1020 = vmul.f32 %v1018, %v298
  %v1021 = vsub.f32 %v1003, %v1019
  %v1022 = vsub.f32 %v1006, %v1020
  %v1023 = vmul.f32 %v1021, %v1021
  %v1024 = vmul.f32 %v1022, %v1022
  %v1025 = vsel %vm104, %v1023, 0.0
  %1026 = vadd.xlane.f32.xlu0 %v1025
  %v1027 = vpop.xlane.xlu0 %1026
  %v1028 = vsel %vm294, %v1024, 0.0
  %1029 = vadd.xlane.f32.xlu0 %v1028
  %v1030 = vpop.xlane.xlu0 %1029
  %v1031 = vmul.f32 %v1027, %v298
  %v1032 = vmul.f32 %v1030, %v298
  %v1033 = vadd.f32 %v1031, 1e-06
  %v1034 = vadd.f32 %v1032, 1e-06
  %v1035 = vrsqrt.pop %v1033
  %v1036 = vrsqrt.pop %v1034
  %v1037 = vmul.f32 %v1021, %v1035
  %v1038 = vmul.f32 %v1022, %v1036
  %v1040 = vlaneseq
  %v1041 = vshrl.u32 %v1040, 7
  %v1042 = vsub.s32 0, %v1041
  %v1043 = vrot.slane %v1010, %v1042
  %v1045 = vmul.f32 %v1037, %v1043
  %v1046 = vmul.f32 %v1038, %v1043
  %v1048 = vlaneseq
  %v1049 = vshrl.u32 %v1048, 7
  %v1050 = vsub.s32 0, %v1049
  %v1051 = vrot.slane %v1012, %v1050
  %v1053 = vadd.f32 %v1045, %v1051
  %v1054 = vadd.f32 %v1046, %v1051
  %v1055 = vmax.f32 %v1053, 0.0
  %v1056 = vmax.f32 %v1054, 0.0
  %vm1057 = vcmp.eq.s32.totalorder %v58, 5
  %vm1058 = vcmp.eq.s32.totalorder %v59, 5
  %v1059 = vsel %vm1057, 1, 0
  %v1060 = vsel %vm1058, 1, 0
  %1061 = vset.pattern.permute.xlu0 0
  %1062 = vperm.xlu0 %1061, %v1059
  %v1063 = vpop.permute.xlu0 %1062
  %1064 = vset.pattern.permute.xlu0 0
  %1065 = vperm.xlu0 %1064, %v1060
  %v1066 = vpop.permute.xlu0 %1065
  %vm1067 = vcmp.eq.s32.totalorder %v1063, 1
  %vm1068 = vcmp.eq.s32.totalorder %v1066, 1
  %v1069 = vsel %vm1067, %v1055, %v925
  %v1070 = vsel %vm1068, %v1056, %v926
  %s1071 = scalar_lea.vmem %s6, 192
  %v1072 = vld [vmem:[%s1071] sm:$0xf]
  %v1073 = vld [vmem:[%s1071 + $0x4] sm:$0xf]
  %v1074 = vld [vmem:[%s1071 + $0x8] sm:$0xf]
  %v1075 = vld [vmem:[%s1071 + $0xc] sm:$0xf]
  %v1076 = vld [vmem:[%s1071 + $0x10] sm:$0xf]
  %v1077 = vld [vmem:[%s1071 + $0x14] sm:$0xf]
  %v1078 = vld [vmem:[%s1071 + $0x18] sm:$0xf]
  %v1079 = vld [vmem:[%s1071 + $0x1c] sm:$0xf]
  %s1080 = scalar_lea.vmem %s7, 6
  %v1081 = vld [vmem:[%s1080] sm:$0x1]
  %v1083 = vlaneseq
  %v1084 = vshrl.u32 %v1083, 7
  %v1085 = vsub.s32 0, %v1084
  %v1086 = vrot.slane %v1081, %v1085
  %v1096 = vunpack.c.l.b16 %v1072
  %v1097 = vunpack.c.l.b16 %v1073
  %v1098 = vunpack.c.l.b16 %v1074
  %v1099 = vunpack.c.l.b16 %v1075
  %v1100 = vunpack.c.l.b16 %v1076
  %v1101 = vunpack.c.l.b16 %v1077
  %v1102 = vunpack.c.l.b16 %v1078
  %v1103 = vunpack.c.l.b16 %v1079
  %v1104 = vpack.c.b16 %v1097, %v1096
  %v1105 = vpack.c.b16 %v1099, %v1098
  %v1106 = vpack.c.b16 %v1101, %v1100
  %v1107 = vpack.c.b16 %v1103, %v1102
  %1112 = vmatprep.subr.bf16.mxu0 0
  %1113 = vmatpush1.bf16.msra.mxu0 %v1104
  %1114 = vmatprep.subr.bf16.mxu0 0
  %1115 = vmatpush1.bf16.msra.mxu0 %v1105
  %1116 = vmatprep.subr.bf16.mxu0 0
  %1117 = vmatpush1.bf16.msra.mxu0 %v1106
  %1118 = vmatprep.subr.bf16.mxu0 0
  %1119 = vmatpush1.bf16.msra.mxu0 %v1107
  %1120 = vmatprep.subr.bf16.mxu0 0
  %1121 = vmatpush1.bf16.msra.mxu0 0
  %1122 = vmatprep.subr.bf16.mxu0 0
  %1123 = vmatpush1.bf16.msra.mxu0 0
  %1124 = vmatprep.subr.bf16.mxu0 0
  %1125 = vmatpush1.bf16.msra.mxu0 0
  %1126 = vmatprep.subr.bf16.mxu0 0
  %1127 = vmatpush1.bf16.msra.mxu0 0
  %1128 = vmatprep.subr.bf16.mxu0 0
  %1129 = vmatpush1.bf16.msra.mxu0 0
  %1130 = vmatprep.subr.bf16.mxu0 0
  %1131 = vmatpush1.bf16.msra.mxu0 0
  %1132 = vmatprep.subr.bf16.mxu0 0
  %1133 = vmatpush1.bf16.msra.mxu0 0
  %1134 = vmatprep.subr.bf16.mxu0 0
  %1135 = vmatpush1.bf16.msra.mxu0 0
  %1136 = vmatprep.subr.bf16.mxu0 0
  %1137 = vmatpush1.bf16.msra.mxu0 0
  %1138 = vmatprep.subr.bf16.mxu0 0
  %1139 = vmatpush1.bf16.msra.mxu0 0
  %1140 = vmatprep.subr.bf16.mxu0 0
  %1141 = vmatpush1.bf16.msra.mxu0 0
  %1142 = vmatprep.subr.bf16.mxu0 0
  %1143 = vmatpush1.bf16.msra.mxu0 0
  %1144 = vmatprep.mubr.bf16.mxu0 0
  %1145 = vmatmul.mubr.bf16.gmra.mrb[0].mxu0 %v246
  %v1146 = vpop.f32.mrb[0].mxu0
  %v1147 = vadd.f32 %v1086, %v1146
  %v1148 = vpop.f32.mrb[0].mxu0
  %v1149 = vpop.f32.mrb[0].mxu0
  %v1150 = vadd.f32 %v1086, %v1149
  %v1151 = vpop.f32.mrb[0].mxu0
  %1152 = vdwg.mxu0
  %s1153 = scalar_lea.vmem %s8, 6
  %v1154 = vld [vmem:[%s1153] sm:$0x1]
  %s1155 = scalar_lea.vmem %s9, 6
  %v1156 = vld [vmem:[%s1155] sm:$0x1]
  %v1157 = vsel %vm104, %v1147, 0.0
  %1158 = vadd.xlane.f32.xlu0 %v1157
  %v1159 = vpop.xlane.xlu0 %1158
  %v1160 = vsel %vm294, %v1150, 0.0
  %1161 = vadd.xlane.f32.xlu0 %v1160
  %v1162 = vpop.xlane.xlu0 %1161
  %v1163 = vmul.f32 %v1159, %v298
  %v1164 = vmul.f32 %v1162, %v298
  %v1165 = vsub.f32 %v1147, %v1163
  %v1166 = vsub.f32 %v1150, %v1164
  %v1167 = vmul.f32 %v1165, %v1165
  %v1168 = vmul.f32 %v1166, %v1166
  %v1169 = vsel %vm104, %v1167, 0.0
  %1170 = vadd.xlane.f32.xlu0 %v1169
  %v1171 = vpop.xlane.xlu0 %1170
  %v1172 = vsel %vm294, %v1168, 0.0
  %1173 = vadd.xlane.f32.xlu0 %v1172
  %v1174 = vpop.xlane.xlu0 %1173
  %v1175 = vmul.f32 %v1171, %v298
  %v1176 = vmul.f32 %v1174, %v298
  %v1177 = vadd.f32 %v1175, 1e-06
  %v1178 = vadd.f32 %v1176, 1e-06
  %v1179 = vrsqrt.pop %v1177
  %v1180 = vrsqrt.pop %v1178
  %v1181 = vmul.f32 %v1165, %v1179
  %v1182 = vmul.f32 %v1166, %v1180
  %v1184 = vlaneseq
  %v1185 = vshrl.u32 %v1184, 7
  %v1186 = vsub.s32 0, %v1185
  %v1187 = vrot.slane %v1154, %v1186
  %v1189 = vmul.f32 %v1181, %v1187
  %v1190 = vmul.f32 %v1182, %v1187
  %v1192 = vlaneseq
  %v1193 = vshrl.u32 %v1192, 7
  %v1194 = vsub.s32 0, %v1193
  %v1195 = vrot.slane %v1156, %v1194
  %v1197 = vadd.f32 %v1189, %v1195
  %v1198 = vadd.f32 %v1190, %v1195
  %v1199 = vmax.f32 %v1197, 0.0
  %v1200 = vmax.f32 %v1198, 0.0
  %vm1201 = vcmp.eq.s32.totalorder %v58, 6
  %vm1202 = vcmp.eq.s32.totalorder %v59, 6
  %v1203 = vsel %vm1201, 1, 0
  %v1204 = vsel %vm1202, 1, 0
  %1205 = vset.pattern.permute.xlu0 0
  %1206 = vperm.xlu0 %1205, %v1203
  %v1207 = vpop.permute.xlu0 %1206
  %1208 = vset.pattern.permute.xlu0 0
  %1209 = vperm.xlu0 %1208, %v1204
  %v1210 = vpop.permute.xlu0 %1209
  %vm1211 = vcmp.eq.s32.totalorder %v1207, 1
  %vm1212 = vcmp.eq.s32.totalorder %v1210, 1
  %v1213 = vsel %vm1211, %v1199, %v1069
  %v1214 = vsel %vm1212, %v1200, %v1070
  %s1215 = scalar_lea.vmem %s6, 224
  %v1216 = vld [vmem:[%s1215] sm:$0xf]
  %v1217 = vld [vmem:[%s1215 + $0x4] sm:$0xf]
  %v1218 = vld [vmem:[%s1215 + $0x8] sm:$0xf]
  %v1219 = vld [vmem:[%s1215 + $0xc] sm:$0xf]
  %v1220 = vld [vmem:[%s1215 + $0x10] sm:$0xf]
  %v1221 = vld [vmem:[%s1215 + $0x14] sm:$0xf]
  %v1222 = vld [vmem:[%s1215 + $0x18] sm:$0xf]
  %v1223 = vld [vmem:[%s1215 + $0x1c] sm:$0xf]
  %s1224 = scalar_lea.vmem %s7, 7
  %v1225 = vld [vmem:[%s1224] sm:$0x1]
  %v1227 = vlaneseq
  %v1228 = vshrl.u32 %v1227, 7
  %v1229 = vsub.s32 0, %v1228
  %v1230 = vrot.slane %v1225, %v1229
  %v1240 = vunpack.c.l.b16 %v1216
  %v1241 = vunpack.c.l.b16 %v1217
  %v1242 = vunpack.c.l.b16 %v1218
  %v1243 = vunpack.c.l.b16 %v1219
  %v1244 = vunpack.c.l.b16 %v1220
  %v1245 = vunpack.c.l.b16 %v1221
  %v1246 = vunpack.c.l.b16 %v1222
  %v1247 = vunpack.c.l.b16 %v1223
  %v1248 = vpack.c.b16 %v1241, %v1240
  %v1249 = vpack.c.b16 %v1243, %v1242
  %v1250 = vpack.c.b16 %v1245, %v1244
  %v1251 = vpack.c.b16 %v1247, %v1246
  %1256 = vmatprep.subr.bf16.mxu0 0
  %1257 = vmatpush1.bf16.msra.mxu0 %v1248
  %1258 = vmatprep.subr.bf16.mxu0 0
  %1259 = vmatpush1.bf16.msra.mxu0 %v1249
  %1260 = vmatprep.subr.bf16.mxu0 0
  %1261 = vmatpush1.bf16.msra.mxu0 %v1250
  %1262 = vmatprep.subr.bf16.mxu0 0
  %1263 = vmatpush1.bf16.msra.mxu0 %v1251
  %1264 = vmatprep.subr.bf16.mxu0 0
  %1265 = vmatpush1.bf16.msra.mxu0 0
  %1266 = vmatprep.subr.bf16.mxu0 0
  %1267 = vmatpush1.bf16.msra.mxu0 0
  %1268 = vmatprep.subr.bf16.mxu0 0
  %1269 = vmatpush1.bf16.msra.mxu0 0
  %1270 = vmatprep.subr.bf16.mxu0 0
  %1271 = vmatpush1.bf16.msra.mxu0 0
  %1272 = vmatprep.subr.bf16.mxu0 0
  %1273 = vmatpush1.bf16.msra.mxu0 0
  %1274 = vmatprep.subr.bf16.mxu0 0
  %1275 = vmatpush1.bf16.msra.mxu0 0
  %1276 = vmatprep.subr.bf16.mxu0 0
  %1277 = vmatpush1.bf16.msra.mxu0 0
  %1278 = vmatprep.subr.bf16.mxu0 0
  %1279 = vmatpush1.bf16.msra.mxu0 0
  %1280 = vmatprep.subr.bf16.mxu0 0
  %1281 = vmatpush1.bf16.msra.mxu0 0
  %1282 = vmatprep.subr.bf16.mxu0 0
  %1283 = vmatpush1.bf16.msra.mxu0 0
  %1284 = vmatprep.subr.bf16.mxu0 0
  %1285 = vmatpush1.bf16.msra.mxu0 0
  %1286 = vmatprep.subr.bf16.mxu0 0
  %1287 = vmatpush1.bf16.msra.mxu0 0
  %1288 = vmatprep.mubr.bf16.mxu0 0
  %1289 = vmatmul.mubr.bf16.gmra.mrb[0].mxu0 %v246
  %v1290 = vpop.f32.mrb[0].mxu0
  %v1291 = vadd.f32 %v1230, %v1290
  %v1292 = vpop.f32.mrb[0].mxu0
  %v1293 = vpop.f32.mrb[0].mxu0
  %v1294 = vadd.f32 %v1230, %v1293
  %v1295 = vpop.f32.mrb[0].mxu0
  %1296 = vdwg.mxu0
  %s1297 = scalar_lea.vmem %s8, 7
  %v1298 = vld [vmem:[%s1297] sm:$0x1]
  %s1299 = scalar_lea.vmem %s9, 7
  %v1300 = vld [vmem:[%s1299] sm:$0x1]
  %v1301 = vsel %vm104, %v1291, 0.0
  %1302 = vadd.xlane.f32.xlu0 %v1301
  %v1303 = vpop.xlane.xlu0 %1302
  %v1304 = vsel %vm294, %v1294, 0.0
  %1305 = vadd.xlane.f32.xlu0 %v1304
  %v1306 = vpop.xlane.xlu0 %1305
  %v1307 = vmul.f32 %v1303, %v298
  %v1308 = vmul.f32 %v1306, %v298
  %v1309 = vsub.f32 %v1291, %v1307
  %v1310 = vsub.f32 %v1294, %v1308
  %v1311 = vmul.f32 %v1309, %v1309
  %v1312 = vmul.f32 %v1310, %v1310
  %v1313 = vsel %vm104, %v1311, 0.0
  %1314 = vadd.xlane.f32.xlu0 %v1313
  %v1315 = vpop.xlane.xlu0 %1314
  %v1316 = vsel %vm294, %v1312, 0.0
  %1317 = vadd.xlane.f32.xlu0 %v1316
  %v1318 = vpop.xlane.xlu0 %1317
  %v1319 = vmul.f32 %v1315, %v298
  %v1320 = vmul.f32 %v1318, %v298
  %v1321 = vadd.f32 %v1319, 1e-06
  %v1322 = vadd.f32 %v1320, 1e-06
  %v1323 = vrsqrt.pop %v1321
  %v1324 = vrsqrt.pop %v1322
  %v1325 = vmul.f32 %v1309, %v1323
  %v1326 = vmul.f32 %v1310, %v1324
  %v1328 = vlaneseq
  %v1329 = vshrl.u32 %v1328, 7
  %v1330 = vsub.s32 0, %v1329
  %v1331 = vrot.slane %v1298, %v1330
  %v1333 = vmul.f32 %v1325, %v1331
  %v1334 = vmul.f32 %v1326, %v1331
  %v1336 = vlaneseq
  %v1337 = vshrl.u32 %v1336, 7
  %v1338 = vsub.s32 0, %v1337
  %v1339 = vrot.slane %v1300, %v1338
  %v1341 = vadd.f32 %v1333, %v1339
  %v1342 = vadd.f32 %v1334, %v1339
  %v1343 = vmax.f32 %v1341, 0.0
  %v1344 = vmax.f32 %v1342, 0.0
  %vm1345 = vcmp.eq.s32.totalorder %v58, 7
  %vm1346 = vcmp.eq.s32.totalorder %v59, 7
  %v1347 = vsel %vm1345, 1, 0
  %v1348 = vsel %vm1346, 1, 0
  %1349 = vset.pattern.permute.xlu0 0
  %1350 = vperm.xlu0 %1349, %v1347
  %v1351 = vpop.permute.xlu0 %1350
  %1352 = vset.pattern.permute.xlu0 0
  %1353 = vperm.xlu0 %1352, %v1348
  %v1354 = vpop.permute.xlu0 %1353
  %vm1355 = vcmp.eq.s32.totalorder %v1351, 1
  %vm1356 = vcmp.eq.s32.totalorder %v1354, 1
  %v1357 = vsel %vm1355, %v1343, %v1213
  %v1358 = vsel %vm1356, %v1344, %v1214
  %v1359 = vadd.f32 %v56, %v1357
  %v1360 = vadd.f32 %v57, %v1358
  %v1361 = vld [vmem:[%s10] sm:$0xf]
  %v1362 = vld [vmem:[%s10 + $0x4] sm:$0xf]
  %v1363 = vld [vmem:[%s10 + $0x8] sm:$0xf]
  %v1364 = vld [vmem:[%s10 + $0xc] sm:$0xf]
  %v1365 = vld [vmem:[%s10 + $0x10] sm:$0xf]
  %v1366 = vld [vmem:[%s10 + $0x14] sm:$0xf]
  %v1367 = vld [vmem:[%s10 + $0x18] sm:$0xf]
  %v1368 = vld [vmem:[%s10 + $0x1c] sm:$0xf]
  %v1369 = vld [vmem:[%s10 + $0x20] sm:$0x3]
  %v1370 = vpack.c.bf16 %v1360, %v1359
  %v1371 = vld [vmem:[%s11] sm:$0x1]
  %v1373 = vlaneseq
  %v1374 = vshrl.u32 %v1373, 7
  %v1375 = vsub.s32 0, %v1374
  %v1376 = vrot.slane %v1371, %v1375
  %v1387 = vunpack.c.l.b16 %v1361
  %v1388 = vunpack.c.l.b16 %v1362
  %v1389 = vunpack.c.l.b16 %v1363
  %v1390 = vunpack.c.l.b16 %v1364
  %v1391 = vunpack.c.l.b16 %v1365
  %v1392 = vunpack.c.l.b16 %v1366
  %v1393 = vunpack.c.l.b16 %v1367
  %v1394 = vunpack.c.l.b16 %v1368
  %v1395 = vunpack.c.l.b16 %v1369
  %v1396 = vpack.c.b16 %v1388, %v1387
  %v1397 = vpack.c.b16 %v1390, %v1389
  %v1398 = vpack.c.b16 %v1392, %v1391
  %v1399 = vpack.c.b16 %v1394, %v1393
  %v1400 = vpack.c.b16 %v1395, %v1395
  %v1406 = vsel %vm104, %v1370, 0
  %v1409 = vand.u32 %v1400, %v111
  %1411 = vmatprep.subr.bf16.mxu0 0
  %1412 = vmatpush1.bf16.msra.mxu0 %v1396
  %1413 = vmatprep.subr.bf16.mxu0 0
  %1414 = vmatpush1.bf16.msra.mxu0 %v1397
  %1415 = vmatprep.subr.bf16.mxu0 0
  %1416 = vmatpush1.bf16.msra.mxu0 %v1398
  %1417 = vmatprep.subr.bf16.mxu0 0
  %1418 = vmatpush1.bf16.msra.mxu0 %v1399
  %1419 = vmatprep.subr.bf16.mxu0 0
  %1420 = vmatpush1.bf16.msra.mxu0 %v1409
  %1421 = vmatprep.subr.bf16.mxu0 0
  %1422 = vmatpush1.bf16.msra.mxu0 0
  %1423 = vmatprep.subr.bf16.mxu0 0
  %1424 = vmatpush1.bf16.msra.mxu0 0
  %1425 = vmatprep.subr.bf16.mxu0 0
  %1426 = vmatpush1.bf16.msra.mxu0 0
  %1427 = vmatprep.subr.bf16.mxu0 0
  %1428 = vmatpush1.bf16.msra.mxu0 0
  %1429 = vmatprep.subr.bf16.mxu0 0
  %1430 = vmatpush1.bf16.msra.mxu0 0
  %1431 = vmatprep.subr.bf16.mxu0 0
  %1432 = vmatpush1.bf16.msra.mxu0 0
  %1433 = vmatprep.subr.bf16.mxu0 0
  %1434 = vmatpush1.bf16.msra.mxu0 0
  %1435 = vmatprep.subr.bf16.mxu0 0
  %1436 = vmatpush1.bf16.msra.mxu0 0
  %1437 = vmatprep.subr.bf16.mxu0 0
  %1438 = vmatpush1.bf16.msra.mxu0 0
  %1439 = vmatprep.subr.bf16.mxu0 0
  %1440 = vmatpush1.bf16.msra.mxu0 0
  %1441 = vmatprep.subr.bf16.mxu0 0
  %1442 = vmatpush1.bf16.msra.mxu0 0
  %1443 = vmatprep.mubr.bf16.mxu0 0
  %1444 = vmatmul.mubr.bf16.gmra.mrb[0].mxu0 %v1406
  %v1445 = vpop.f32.mrb[0].mxu0
  %v1446 = vadd.f32 %v1376, %v1445
  %v1447 = vpop.f32.mrb[0].mxu0
  %v1448 = vpop.f32.mrb[0].mxu0
  %v1449 = vadd.f32 %v1376, %v1448
  %v1450 = vpop.f32.mrb[0].mxu0
  %1451 = vdwg.mxu0
  %v1452 = vld [vmem:[%s12] sm:$0x1]
  %v1453 = vld [vmem:[%s13] sm:$0x1]
  %vm1454 = vcmask 130048
  %v1455 = vsel %vm1454, %v1446, 0.0
  %1456 = vadd.xlane.f32.xlu0 %v1455
  %v1457 = vpop.xlane.xlu0 %1456
  %vm1458 = vcmask 123904
  %v1459 = vsel %vm1458, %v1449, 0.0
  %1460 = vadd.xlane.f32.xlu0 %v1459
  %v1461 = vpop.xlane.xlu0 %1460
  %v1462 = vrcp.pop 16.0
  %v1463 = vmul.f32 %v1457, %v1462
  %v1464 = vmul.f32 %v1461, %v1462
  %v1465 = vsub.f32 %v1446, %v1463
  %v1466 = vsub.f32 %v1449, %v1464
  %v1467 = vmul.f32 %v1465, %v1465
  %v1468 = vmul.f32 %v1466, %v1466
  %v1469 = vsel %vm1454, %v1467, 0.0
  %1470 = vadd.xlane.f32.xlu0 %v1469
  %v1471 = vpop.xlane.xlu0 %1470
  %v1472 = vsel %vm1458, %v1468, 0.0
  %1473 = vadd.xlane.f32.xlu0 %v1472
  %v1474 = vpop.xlane.xlu0 %1473
  %v1475 = vmul.f32 %v1471, %v1462
  %v1476 = vmul.f32 %v1474, %v1462
  %v1477 = vadd.f32 %v1475, 1e-06
  %v1478 = vadd.f32 %v1476, 1e-06
  %v1479 = vrsqrt.pop %v1477
  %v1480 = vrsqrt.pop %v1478
  %v1481 = vmul.f32 %v1465, %v1479
  %v1482 = vmul.f32 %v1466, %v1480
  %v1484 = vlaneseq
  %v1485 = vshrl.u32 %v1484, 7
  %v1486 = vsub.s32 0, %v1485
  %v1487 = vrot.slane %v1452, %v1486
  %v1489 = vmul.f32 %v1481, %v1487
  %v1490 = vmul.f32 %v1482, %v1487
  %v1492 = vlaneseq
  %v1493 = vshrl.u32 %v1492, 7
  %v1494 = vsub.s32 0, %v1493
  %v1495 = vrot.slane %v1453, %v1494
  %v1497 = vadd.f32 %v1489, %v1495
  %v1498 = vadd.f32 %v1490, %v1495
  %v1499 = vmax.f32 %v1497, 0.0
  %v1500 = vmax.f32 %v1498, 0.0
  %v1501 = vld [vmem:[%s14] sm:$0xf]
  %v1502 = vld [vmem:[%s14 + $0x4] sm:$0xf]
  %v1503 = vpack.c.bf16 %v1500, %v1499
  %v1504 = vld [vmem:[#allocation2] sm:$0x1]
  %v1506 = vlaneseq
  %v1507 = vshrl.u32 %v1506, 7
  %v1508 = vsub.s32 0, %v1507
  %v1509 = vrot.slane %v1504, %v1508
  %v1513 = vunpack.c.l.b16 %v1501
  %v1514 = vunpack.c.l.b16 %v1502
  %v1515 = vpack.c.b16 %v1514, %v1513
  %v1518 = vsel %vm1454, %v1503, 0
  %1520 = vmatprep.subr.bf16.mxu0 0
  %1521 = vmatpush1.bf16.msra.mxu0 %v1515
  %1522 = vmatprep.subr.bf16.mxu0 0
  %1523 = vmatpush1.bf16.msra.mxu0 0
  %1524 = vmatprep.subr.bf16.mxu0 0
  %1525 = vmatpush1.bf16.msra.mxu0 0
  %1526 = vmatprep.subr.bf16.mxu0 0
  %1527 = vmatpush1.bf16.msra.mxu0 0
  %1528 = vmatprep.subr.bf16.mxu0 0
  %1529 = vmatpush1.bf16.msra.mxu0 0
  %1530 = vmatprep.subr.bf16.mxu0 0
  %1531 = vmatpush1.bf16.msra.mxu0 0
  %1532 = vmatprep.subr.bf16.mxu0 0
  %1533 = vmatpush1.bf16.msra.mxu0 0
  %1534 = vmatprep.subr.bf16.mxu0 0
  %1535 = vmatpush1.bf16.msra.mxu0 0
  %1536 = vmatprep.subr.bf16.mxu0 0
  %1537 = vmatpush1.bf16.msra.mxu0 0
  %1538 = vmatprep.subr.bf16.mxu0 0
  %1539 = vmatpush1.bf16.msra.mxu0 0
  %1540 = vmatprep.subr.bf16.mxu0 0
  %1541 = vmatpush1.bf16.msra.mxu0 0
  %1542 = vmatprep.subr.bf16.mxu0 0
  %1543 = vmatpush1.bf16.msra.mxu0 0
  %1544 = vmatprep.subr.bf16.mxu0 0
  %1545 = vmatpush1.bf16.msra.mxu0 0
  %1546 = vmatprep.subr.bf16.mxu0 0
  %1547 = vmatpush1.bf16.msra.mxu0 0
  %1548 = vmatprep.subr.bf16.mxu0 0
  %1549 = vmatpush1.bf16.msra.mxu0 0
  %1550 = vmatprep.subr.bf16.mxu0 0
  %1551 = vmatpush1.bf16.msra.mxu0 0
  %1552 = vmatprep.mubr.bf16.mxu0 0
  %1553 = vmatmul.mubr.bf16.gmra.mrb[0].mxu0 %v1518
  %v1554 = vpop.f32.mrb[0].mxu0
  %v1555 = vadd.f32 %v1509, %v1554
  %v1556 = vpop.f32.mrb[0].mxu0
  %v1557 = vpop.f32.mrb[0].mxu0
  %v1558 = vadd.f32 %v1509, %v1557
  %v1559 = vpop.f32.mrb[0].mxu0
  %1560 = vdwg.mxu0
  %vm1561 = vcmask 7168
  %1562 = vst.msk [vmem:[%s16] sm:$0xff] %vm1561, %v1555
  %vm1563 = vcmask 1024
  %1564 = vst.msk [vmem:[%s16 + $0x8] sm:$0x3] %vm1563, %v1558
  // Predicated region
  $region66: #{fwd.21} parent=0 // pred_check
    _
  $region67: #{fwd.21} parent=0 // pred_check_branch
    %1566 = sbr.rel (0) target = $region69
  $region68: #{fwd.21} parent=0 // pred_region
    _
  $region69: #{fwd.21} parent=0 // pred_fallthru
    _
  // Predicated region
  $region70: #{fwd.21} parent=0 // pred_check
    _
  $region71: #{fwd.21} parent=0 // pred_check_branch
    %1568 = sbr.rel (0) target = $region73
  $region72: #{fwd.21} parent=0 // pred_region
    _
  $region73: #{fwd.21} parent=0 // pred_fallthru
    _

</llo_original>
